<compile_context>
chip_gen: v7x
topology: tpu7x:2x2x1
jax: 0.10.0
libtpu: 0.0.40
codegen_flags: <defaults>
</compile_context>

<pallas_src>
import functools

import numpy as np
import jax
import jax.numpy as jnp
from jax import lax
from jax.experimental import pallas as pl
from jax.experimental.pallas import tpu as pltpu


KH = KW = 5                      # kernel_size=5, stride=1, padding=2 in the PyTorch module
COMPUTE_DTYPE = jnp.bfloat16     # MXU-native on v5e/v6e/v7x; accumulation stays float32


def _round_up(x, m):
    return (x + m - 1) // m * m


# ---------------------------------------------------------------------------
# fused encoder kernel: one grid step == `tb` images, all 5 conv layers + ReLUs
# ---------------------------------------------------------------------------
def _encoder_kernel(x_ref, colmask_ref, w_ref, b_ref, out_ref, apad_ref, rhs_ref, *,
                    n_layers, cp, width, n_pix, pad_cols, seg, tb, dy_per_dot):
    # x_ref      : (1, Cp, tb*N)          input images, channels zero-padded to Cp
    # colmask_ref: (KW, N) bf16           1.0 where horizontal tap dx stays inside the row
    # w_ref      : (L, Cp, 25*Cp) bf16    packed tap weights, taps concatenated along K
    # b_ref      : (L, Cp, 1) f32         zero-padded biases
    # out_ref    : (1, Cp, tb*N) f32
    # apad_ref   : (Cp, tb*seg) bf16      zero-padded per-image activation staging slab
    # rhs_ref    : (dy_per_dot*KW*Cp, tb*N) bf16   staged matmul RHS
    kc = KH // 2
    k_per_dot = dy_per_dot * KW * cp
    n_chunks = KH // dy_per_dot

    # Zero only the per-image pad stripes; the centre of every segment is fully
    # overwritten by each layer's staging store.  Unconditional (cheap, a few vregs)
    # rather than @pl.when(program_id==0): with "parallel" megacore sharding the
    # second TensorCore never executes program_id == 0.
    for b in range(tb):
        base = b * seg
        apad_ref[:, base:base + pad_cols] = jnp.zeros((cp, pad_cols), apad_ref.dtype)
        apad_ref[:, base + pad_cols + n_pix:base + seg] = jnp.zeros(
            (cp, seg - pad_cols - n_pix), apad_ref.dtype)

    # Hoisted once: (1, N) mask rows; the multiply below sublane-broadcasts them.
    colmask = colmask_ref[...]
    colmask_rows = [colmask[dx:dx + 1, :] for dx in range(KW)]

    a = x_ref[0]                                   # (Cp, tb*N): channels on sublanes

    for layer in range(n_layers):
        # --- stage the activation into the zero-padded per-image segments (bf16) ----
        for b in range(tb):
            base = b * seg + pad_cols              # multiple of 128 -> unmasked store
            apad_ref[:, base:base + n_pix] = (
                a[:, b * n_pix:(b + 1) * n_pix].astype(apad_ref.dtype))

        w_layer = w_ref[layer]                     # (Cp, 25*Cp) bf16

        acc = None
        for c in range(n_chunks):
            # --- stage this chunk's taps as the matmul RHS (mask fused into the store)
            for jdy in range(dy_per_dot):
                dy = c * dy_per_dot + jdy
                for dx in range(KW):
                    j = jdy * KW + dx
                    off = (dy - kc) * width + (dx - kc)
                    for b in range(tb):
                        src = b * seg + pad_cols + off
                        xs = apad_ref[:, src:src + n_pix]        # shifted pixel window
                        if dx != kc:                             # horizontal out-of-row taps
                            xs = xs * colmask_rows[dx]
                        rhs_ref[j * cp:(j + 1) * cp,
                                b * n_pix:(b + 1) * n_pix] = xs
            # --- one MXU matmul per chunk: K = dy_per_dot*KW*Cp, f32 accumulation ----
            w_c = w_layer if n_chunks == 1 else w_layer[:, c * k_per_dot:(c + 1) * k_per_dot]
            d = jnp.dot(w_c, rhs_ref[...], preferred_element_type=jnp.float32)
            acc = d if acc is None else acc + d

        acc = acc + b_ref[layer]                   # (Cp, 1) bias broadcast over pixels
        a = jnp.maximum(acc, 0.0) if layer < n_layers - 1 else acc   # no ReLU after last

    out_ref[0] = a.astype(out_ref.dtype)


# ---------------------------------------------------------------------------
# wrapper
# ---------------------------------------------------------------------------
def bottom_up_encoder(x, weights, biases, *, images_per_block=None, dy_per_dot=KH):
    """x: (B, C_in, H, W) f32 NCHW.  weights[i]: (C_out, C_in, 5, 5) (PyTorch OIHW),
    biases[i]: (C_out,).  Returns (B, output_size, H, W) f32, matching the PyTorch forward.

    dy_per_dot: taps per matmul along dy (5 = one K=25*Cp dot per layer; 1 = per-dy
    K=5*Cp chunks, the v5e-friendly variant)."""
    B, c_in, H, W = (int(s) for s in x.shape)
    N = H * W
    L = len(weights)
    assert int(weights[0].shape[1]) == c_in
    assert KH % dy_per_dot == 0
    assert N % 128 == 0, "H*W must be a multiple of 128 for the lane-dense layout"
    # TODO(synk): support H*W not a multiple of 128 via masked staging stores.

    chans = [c_in] + [int(w.shape[0]) for w in weights]
    cp = _round_up(max(chans), 8)                 # uniform padded channel count
    out_c = int(weights[-1].shape[0])
    taps = KH * KW

    if images_per_block is None:
        # Keep the grid length even (both v7x TensorCores busy) while widening the
        # matmul N dim; fold odd batches completely (v5e/v6e have a single core).
        images_per_block = B // 2 if (B % 2 == 0 and B > 1) else B
    tb = images_per_block
    assert B % tb == 0
    n_blocks = B // tb

    # Zero-padded staging geometry: largest tap offset is 2*W + 2.
    max_off = (KH // 2) * W + KW // 2
    pad_cols = _round_up(max_off, 128)            # lane-aligned zero gap, >= max_off
    assert pad_cols >= max_off
    seg = pad_cols + N + pad_cols                 # per-image segment in the staging slab

    # --- pack weights once: (L, Cp, 25*Cp) bf16 (taps along K); biases (L, Cp, 1) f32 ---
    w_stack = np.zeros((L, cp, taps * cp), np.float32)
    b_stack = np.zeros((L, cp, 1), np.float32)
    for l, (w, b) in enumerate(zip(weights, biases)):
        co, ci = int(w.shape[0]), int(w.shape[1])
        w_np = np.asarray(w, np.float32).transpose(2, 3, 0, 1)    # (KH, KW, co, ci)
        for dy in range(KH):
            for dx in range(KW):
                t = dy * KW + dx
                w_stack[l, :co, t * cp:t * cp + ci] = w_np[dy, dx]
        b_stack[l, :co, 0] = np.asarray(b, np.float32)
    w_stack = jnp.asarray(w_stack, dtype=COMPUTE_DTYPE)
    b_stack = jnp.asarray(b_stack)

    # --- per-dx horizontal validity masks (precomputed once) ---------------------
    col = np.arange(N) % W
    colmask = np.zeros((KW, N), np.float32)
    for dx in range(KW):
        cn = col + dx - KW // 2
        colmask[dx] = ((cn >= 0) & (cn < W)).astype(np.float32)
    colmask = jnp.asarray(colmask, dtype=COMPUTE_DTYPE)

    # --- input: flatten spatial, zero-pad channels to Cp, fold tb images onto lanes ---
    x_flat = jnp.pad(x.reshape(B, c_in, N).astype(jnp.float32),
                     ((0, 0), (0, cp - c_in), (0, 0)))
    x_lanes = x_flat.reshape(n_blocks, tb, cp, N).transpose(0, 2, 1, 3).reshape(
        n_blocks, cp, tb * N)

    kernel = functools.partial(_encoder_kernel, n_layers=L, cp=cp, width=W,
                               n_pix=N, pad_cols=pad_cols, seg=seg, tb=tb,
                               dy_per_dot=dy_per_dot)
    rhs_rows = dy_per_dot * KW * cp

    out = pl.pallas_call(
        kernel,
        out_shape=jax.ShapeDtypeStruct((n_blocks, cp, tb * N), jnp.float32),
        grid_spec=pltpu.PrefetchScalarGridSpec(
            num_scalar_prefetch=0,
            grid=(n_blocks,),
            in_specs=[
                pl.BlockSpec((1, cp, tb * N), lambda g: (g, 0, 0)),        # tb images
                pl.BlockSpec((KW, N), lambda g: (0, 0)),                   # column masks
                pl.BlockSpec((L, cp, taps * cp), lambda g: (0, 0, 0)),     # packed weights
                pl.BlockSpec((L, cp, 1), lambda g: (0, 0, 0)),             # biases
            ],
            out_specs=pl.BlockSpec((1, cp, tb * N), lambda g: (g, 0, 0)),
            scratch_shapes=[
                pltpu.VMEM((cp, tb * seg), COMPUTE_DTYPE),        # zero-padded activation slab
                pltpu.VMEM((rhs_rows, tb * N), COMPUTE_DTYPE),    # staged matmul RHS
            ],
        ),
        compiler_params=pltpu.CompilerParams(dimension_semantics=("parallel",)),
    )(x_lanes, colmask, w_stack, b_stack)

    y = out.reshape(n_blocks, cp, tb, N).transpose(0, 2, 1, 3).reshape(B, cp, N)
    return y[:, :out_c, :].reshape(B, out_c, H, W)


# ---------------------------------------------------------------------------
# pure-JAX reference (mirrors the PyTorch forward exactly, f32 HIGHEST precision)
# ---------------------------------------------------------------------------
def bottom_up_encoder_ref(x, weights, biases):
    h = x
    L = len(weights)
    for i, (w, b) in enumerate(zip(weights, biases)):
        h = lax.conv_general_dilated(
            h, w, window_strides=(1, 1), padding="SAME",
            dimension_numbers=("NCHW", "OIHW", "NCHW"),
            precision=lax.Precision.HIGHEST)
        h = h + b.reshape(1, -1, 1, 1)
        if i < L - 1:
            h = jnp.maximum(h, 0.0)
    return h


# ---------------------------------------------------------------------------
def init_params(key, input_size, output_size, hidden_size):
    in_channels = [input_size, hidden_size // 2, hidden_size, hidden_size, output_size]
    out_channels = [hidden_size // 2, hidden_size, hidden_size, output_size, output_size]
    keys = jax.random.split(key, 2 * len(in_channels))
    weights, biases = [], []
    for i, (ci, co) in enumerate(zip(in_channels, out_channels)):
        scale = 1.0 / np.sqrt(ci * KH * KW)
        weights.append((scale * jax.random.normal(keys[2 * i], (co, ci, KH, KW))).astype(jnp.float32))
        biases.append((scale * jax.random.normal(keys[2 * i + 1], (co,))).astype(jnp.float32))
    return weights, biases


if __name__ == "__main__":
    B = 2
    INPUT_SIZE = 4
    OUTPUT_SIZE = 32
    HIDDEN_SIZE = 32
    H = W = 16

    key = jax.random.PRNGKey(0)
    kx, kp = jax.random.split(key)
    x = jax.random.normal(kx, (B, INPUT_SIZE, H, W), dtype=jnp.float32)
    weights, biases = init_params(kp, INPUT_SIZE, OUTPUT_SIZE, HIDDEN_SIZE)

    y = bottom_up_encoder(x, weights, biases)
    y = jax.block_until_ready(y)

    y_ref = bottom_up_encoder_ref(x, weights, biases)
    # bf16 MXU operands (f32 accumulation) over a 5-layer stack vs. a HIGHEST-precision
    # f32 reference: tolerances loosened accordingly.
    np.testing.assert_allclose(np.asarray(y), np.asarray(y_ref), rtol=3e-2, atol=3e-2)
    assert y.shape == (B, OUTPUT_SIZE, H, W)

    print("KERNEL_OK")
</pallas_src>

<mosaic_0001>
module attributes {stable_mosaic.version = 11 : i64} {
  func.func @_encoder_kernel(%arg0: i32, %arg1: memref<1x32x256xf32, #tpu.memory_space<vmem>>, %arg2: memref<5x256xbf16, #tpu.memory_space<vmem>>, %arg3: memref<5x32x800xbf16, #tpu.memory_space<vmem>>, %arg4: memref<5x32x1xf32, #tpu.memory_space<vmem>>, %arg5: memref<1x32x256xf32, #tpu.memory_space<vmem>>, %arg6: memref<32x512xbf16, #tpu.memory_space<vmem>>, %arg7: memref<800x256xbf16, #tpu.memory_space<vmem>>) attributes {dimension_semantics = [#tpu.dimension_semantics<parallel>], iteration_bounds = array<i64: 2>, scalar_prefetch = 0 : i64, scratch_operands = 2 : i64, tpu.core_type = #tpu.core_type<tc>, window_params = [{transform_indices = @transform_0, window_bounds = array<i64: 1, 32, 256>}, {pipeline_mode = #tpu.pipeline_mode<synchronous>, transform_indices = @transform_1, window_bounds = array<i64: 5, 256>}, {pipeline_mode = #tpu.pipeline_mode<synchronous>, transform_indices = @transform_2, window_bounds = array<i64: 5, 32, 800>}, {pipeline_mode = #tpu.pipeline_mode<synchronous>, transform_indices = @transform_3, window_bounds = array<i64: 5, 32, 1>}, {transform_indices = @transform_4, window_bounds = array<i64: 1, 32, 256>}]} {
    %cst = arith.constant 0.000000e+00 : bf16
    %0 = vector.broadcast %cst : bf16 to vector<32x128xbf16>
    %c0 = arith.constant 0 : index
    %c0_0 = arith.constant 0 : index
    %1 = vector.load %arg6[%c0, %c0_0] : memref<32x512xbf16, #tpu.memory_space<vmem>>, vector<32x128xbf16>
    tpu.vector_store %arg6[%c0, %c0_0], %0 {strides = array<i32>} : memref<32x512xbf16, #tpu.memory_space<vmem>>, vector<32x128xbf16>,
    %cst_1 = arith.constant 0.000000e+00 : bf16
    %2 = vector.broadcast %cst_1 : bf16 to vector<32x128xbf16>
    %c0_2 = arith.constant 0 : index
    %c384 = arith.constant 384 : index
    %3 = vector.load %arg6[%c0_2, %c384] : memref<32x512xbf16, #tpu.memory_space<vmem>>, vector<32x128xbf16>
    tpu.vector_store %arg6[%c0_2, %c384], %2 {strides = array<i32>} : memref<32x512xbf16, #tpu.memory_space<vmem>>, vector<32x128xbf16>,
    %c0_3 = arith.constant 0 : index
    %c0_4 = arith.constant 0 : index
    %4 = vector.load %arg2[%c0_3, %c0_4] : memref<5x256xbf16, #tpu.memory_space<vmem>>, vector<5x256xbf16>
    %5 = vector.extract_strided_slice %4 {offsets = [0, 0], sizes = [1, 256], strides = [1, 1]} : vector<5x256xbf16> to vector<1x256xbf16>
    %6 = vector.extract_strided_slice %4 {offsets = [1, 0], sizes = [1, 256], strides = [1, 1]} : vector<5x256xbf16> to vector<1x256xbf16>
    %7 = vector.extract_strided_slice %4 {offsets = [3, 0], sizes = [1, 256], strides = [1, 1]} : vector<5x256xbf16> to vector<1x256xbf16>
    %8 = vector.extract_strided_slice %4 {offsets = [4, 0], sizes = [1, 256], strides = [1, 1]} : vector<5x256xbf16> to vector<1x256xbf16>
    %c0_5 = arith.constant 0 : index
    %c0_6 = arith.constant 0 : index
    %c0_7 = arith.constant 0 : index
    %9 = vector.load %arg1[%c0_5, %c0_6, %c0_7] : memref<1x32x256xf32, #tpu.memory_space<vmem>>, vector<1x32x256xf32>
    %10 = vector.shape_cast %9 : vector<1x32x256xf32> to vector<32x256xf32>
    %11 = arith.truncf %10 : vector<32x256xf32> to vector<32x256xbf16>
    %c0_8 = arith.constant 0 : index
    %c128 = arith.constant 128 : index
    %12 = vector.load %arg6[%c0_8, %c128] : memref<32x512xbf16, #tpu.memory_space<vmem>>, vector<32x256xbf16>
    tpu.vector_store %arg6[%c0_8, %c128], %11 {strides = array<i32>} : memref<32x512xbf16, #tpu.memory_space<vmem>>, vector<32x256xbf16>,
    %c0_9 = arith.constant 0 : index
    %c0_10 = arith.constant 0 : index
    %c0_11 = arith.constant 0 : index
    %13 = vector.load %arg3[%c0_9, %c0_10, %c0_11] : memref<5x32x800xbf16, #tpu.memory_space<vmem>>, vector<1x32x800xbf16>
    %14 = vector.shape_cast %13 : vector<1x32x800xbf16> to vector<32x800xbf16>
    %c0_12 = arith.constant 0 : index
    %c94 = arith.constant 94 : index
    %15 = vector.load %arg6[%c0_12, %c94] : memref<32x512xbf16, #tpu.memory_space<vmem>>, vector<32x256xbf16>
    %16 = vector.broadcast %5 : vector<1x256xbf16> to vector<32x256xbf16>
    %17 = arith.mulf %15, %16 : vector<32x256xbf16>
    %c0_13 = arith.constant 0 : index
    %c0_14 = arith.constant 0 : index
    %18 = vector.load %arg7[%c0_13, %c0_14] : memref<800x256xbf16, #tpu.memory_space<vmem>>, vector<32x256xbf16>
    tpu.vector_store %arg7[%c0_13, %c0_14], %17 {strides = array<i32>} : memref<800x256xbf16, #tpu.memory_space<vmem>>, vector<32x256xbf16>,
    %c0_15 = arith.constant 0 : index
    %c95 = arith.constant 95 : index
    %19 = vector.load %arg6[%c0_15, %c95] : memref<32x512xbf16, #tpu.memory_space<vmem>>, vector<32x256xbf16>
    %20 = vector.broadcast %6 : vector<1x256xbf16> to vector<32x256xbf16>
    %21 = arith.mulf %19, %20 : vector<32x256xbf16>
    %c32 = arith.constant 32 : index
    %c0_16 = arith.constant 0 : index
    %22 = vector.load %arg7[%c32, %c0_16] : memref<800x256xbf16, #tpu.memory_space<vmem>>, vector<32x256xbf16>
    tpu.vector_store %arg7[%c32, %c0_16], %21 {strides = array<i32>} : memref<800x256xbf16, #tpu.memory_space<vmem>>, vector<32x256xbf16>,
    %c0_17 = arith.constant 0 : index
    %c96 = arith.constant 96 : index
    %23 = vector.load %arg6[%c0_17, %c96] : memref<32x512xbf16, #tpu.memory_space<vmem>>, vector<32x256xbf16>
    %c64 = arith.constant 64 : index
    %c0_18 = arith.constant 0 : index
    %24 = vector.load %arg7[%c64, %c0_18] : memref<800x256xbf16, #tpu.memory_space<vmem>>, vector<32x256xbf16>
    tpu.vector_store %arg7[%c64, %c0_18], %23 {strides = array<i32>} : memref<800x256xbf16, #tpu.memory_space<vmem>>, vector<32x256xbf16>,
    %c0_19 = arith.constant 0 : index
    %c97 = arith.constant 97 : index
    %25 = vector.load %arg6[%c0_19, %c97] : memref<32x512xbf16, #tpu.memory_space<vmem>>, vector<32x256xbf16>
    %26 = vector.broadcast %7 : vector<1x256xbf16> to vector<32x256xbf16>
    %27 = arith.mulf %25, %26 : vector<32x256xbf16>
    %c96_20 = arith.constant 96 : index
    %c0_21 = arith.constant 0 : index
    %28 = vector.load %arg7[%c96_20, %c0_21] : memref<800x256xbf16, #tpu.memory_space<vmem>>, vector<32x256xbf16>
    tpu.vector_store %arg7[%c96_20, %c0_21], %27 {strides = array<i32>} : memref<800x256xbf16, #tpu.memory_space<vmem>>, vector<32x256xbf16>,
    %c0_22 = arith.constant 0 : index
    %c98 = arith.constant 98 : index
    %29 = vector.load %arg6[%c0_22, %c98] : memref<32x512xbf16, #tpu.memory_space<vmem>>, vector<32x256xbf16>
    %30 = vector.broadcast %8 : vector<1x256xbf16> to vector<32x256xbf16>
    %31 = arith.mulf %29, %30 : vector<32x256xbf16>
    %c128_23 = arith.constant 128 : index
    %c0_24 = arith.constant 0 : index
    %32 = vector.load %arg7[%c128_23, %c0_24] : memref<800x256xbf16, #tpu.memory_space<vmem>>, vector<32x256xbf16>
    tpu.vector_store %arg7[%c128_23, %c0_24], %31 {strides = array<i32>} : memref<800x256xbf16, #tpu.memory_space<vmem>>, vector<32x256xbf16>,
    %c0_25 = arith.constant 0 : index
    %c110 = arith.constant 110 : index
    %33 = vector.load %arg6[%c0_25, %c110] : memref<32x512xbf16, #tpu.memory_space<vmem>>, vector<32x256xbf16>
    %34 = vector.broadcast %5 : vector<1x256xbf16> to vector<32x256xbf16>
    %35 = arith.mulf %33, %34 : vector<32x256xbf16>
    %c160 = arith.constant 160 : index
    %c0_26 = arith.constant 0 : index
    %36 = vector.load %arg7[%c160, %c0_26] : memref<800x256xbf16, #tpu.memory_space<vmem>>, vector<32x256xbf16>
    tpu.vector_store %arg7[%c160, %c0_26], %35 {strides = array<i32>} : memref<800x256xbf16, #tpu.memory_space<vmem>>, vector<32x256xbf16>,
    %c0_27 = arith.constant 0 : index
    %c111 = arith.constant 111 : index
    %37 = vector.load %arg6[%c0_27, %c111] : memref<32x512xbf16, #tpu.memory_space<vmem>>, vector<32x256xbf16>
    %38 = vector.broadcast %6 : vector<1x256xbf16> to vector<32x256xbf16>
    %39 = arith.mulf %37, %38 : vector<32x256xbf16>
    %c192 = arith.constant 192 : index
    %c0_28 = arith.constant 0 : index
    %40 = vector.load %arg7[%c192, %c0_28] : memref<800x256xbf16, #tpu.memory_space<vmem>>, vector<32x256xbf16>
    tpu.vector_store %arg7[%c192, %c0_28], %39 {strides = array<i32>} : memref<800x256xbf16, #tpu.memory_space<vmem>>, vector<32x256xbf16>,
    %c0_29 = arith.constant 0 : index
    %c112 = arith.constant 112 : index
    %41 = vector.load %arg6[%c0_29, %c112] : memref<32x512xbf16, #tpu.memory_space<vmem>>, vector<32x256xbf16>
    %c224 = arith.constant 224 : index
    %c0_30 = arith.constant 0 : index
    %42 = vector.load %arg7[%c224, %c0_30] : memref<800x256xbf16, #tpu.memory_space<vmem>>, vector<32x256xbf16>
    tpu.vector_store %arg7[%c224, %c0_30], %41 {strides = array<i32>} : memref<800x256xbf16, #tpu.memory_space<vmem>>, vector<32x256xbf16>,
    %c0_31 = arith.constant 0 : index
    %c113 = arith.constant 113 : index
    %43 = vector.load %arg6[%c0_31, %c113] : memref<32x512xbf16, #tpu.memory_space<vmem>>, vector<32x256xbf16>
    %44 = vector.broadcast %7 : vector<1x256xbf16> to vector<32x256xbf16>
    %45 = arith.mulf %43, %44 : vector<32x256xbf16>
    %c256 = arith.constant 256 : index
    %c0_32 = arith.constant 0 : index
    %46 = vector.load %arg7[%c256, %c0_32] : memref<800x256xbf16, #tpu.memory_space<vmem>>, vector<32x256xbf16>
    tpu.vector_store %arg7[%c256, %c0_32], %45 {strides = array<i32>} : memref<800x256xbf16, #tpu.memory_space<vmem>>, vector<32x256xbf16>,
    %c0_33 = arith.constant 0 : index
    %c114 = arith.constant 114 : index
    %47 = vector.load %arg6[%c0_33, %c114] : memref<32x512xbf16, #tpu.memory_space<vmem>>, vector<32x256xbf16>
    %48 = vector.broadcast %8 : vector<1x256xbf16> to vector<32x256xbf16>
    %49 = arith.mulf %47, %48 : vector<32x256xbf16>
    %c288 = arith.constant 288 : index
    %c0_34 = arith.constant 0 : index
    %50 = vector.load %arg7[%c288, %c0_34] : memref<800x256xbf16, #tpu.memory_space<vmem>>, vector<32x256xbf16>
    tpu.vector_store %arg7[%c288, %c0_34], %49 {strides = array<i32>} : memref<800x256xbf16, #tpu.memory_space<vmem>>, vector<32x256xbf16>,
    %c0_35 = arith.constant 0 : index
    %c126 = arith.constant 126 : index
    %51 = vector.load %arg6[%c0_35, %c126] : memref<32x512xbf16, #tpu.memory_space<vmem>>, vector<32x256xbf16>
    %52 = vector.broadcast %5 : vector<1x256xbf16> to vector<32x256xbf16>
    %53 = arith.mulf %51, %52 : vector<32x256xbf16>
    %c320 = arith.constant 320 : index
    %c0_36 = arith.constant 0 : index
    %54 = vector.load %arg7[%c320, %c0_36] : memref<800x256xbf16, #tpu.memory_space<vmem>>, vector<32x256xbf16>
    tpu.vector_store %arg7[%c320, %c0_36], %53 {strides = array<i32>} : memref<800x256xbf16, #tpu.memory_space<vmem>>, vector<32x256xbf16>,
    %c0_37 = arith.constant 0 : index
    %c127 = arith.constant 127 : index
    %55 = vector.load %arg6[%c0_37, %c127] : memref<32x512xbf16, #tpu.memory_space<vmem>>, vector<32x256xbf16>
    %56 = vector.broadcast %6 : vector<1x256xbf16> to vector<32x256xbf16>
    %57 = arith.mulf %55, %56 : vector<32x256xbf16>
    %c352 = arith.constant 352 : index
    %c0_38 = arith.constant 0 : index
    %58 = vector.load %arg7[%c352, %c0_38] : memref<800x256xbf16, #tpu.memory_space<vmem>>, vector<32x256xbf16>
    tpu.vector_store %arg7[%c352, %c0_38], %57 {strides = array<i32>} : memref<800x256xbf16, #tpu.memory_space<vmem>>, vector<32x256xbf16>,
    %c0_39 = arith.constant 0 : index
    %c128_40 = arith.constant 128 : index
    %59 = vector.load %arg6[%c0_39, %c128_40] : memref<32x512xbf16, #tpu.memory_space<vmem>>, vector<32x256xbf16>
    %c384_41 = arith.constant 384 : index
    %c0_42 = arith.constant 0 : index
    %60 = vector.load %arg7[%c384_41, %c0_42] : memref<800x256xbf16, #tpu.memory_space<vmem>>, vector<32x256xbf16>
    tpu.vector_store %arg7[%c384_41, %c0_42], %59 {strides = array<i32>} : memref<800x256xbf16, #tpu.memory_space<vmem>>, vector<32x256xbf16>,
    %c0_43 = arith.constant 0 : index
    %c129 = arith.constant 129 : index
    %61 = vector.load %arg6[%c0_43, %c129] : memref<32x512xbf16, #tpu.memory_space<vmem>>, vector<32x256xbf16>
    %62 = vector.broadcast %7 : vector<1x256xbf16> to vector<32x256xbf16>
    %63 = arith.mulf %61, %62 : vector<32x256xbf16>
    %c416 = arith.constant 416 : index
    %c0_44 = arith.constant 0 : index
    %64 = vector.load %arg7[%c416, %c0_44] : memref<800x256xbf16, #tpu.memory_space<vmem>>, vector<32x256xbf16>
    tpu.vector_store %arg7[%c416, %c0_44], %63 {strides = array<i32>} : memref<800x256xbf16, #tpu.memory_space<vmem>>, vector<32x256xbf16>,
    %c0_45 = arith.constant 0 : index
    %c130 = arith.constant 130 : index
    %65 = vector.load %arg6[%c0_45, %c130] : memref<32x512xbf16, #tpu.memory_space<vmem>>, vector<32x256xbf16>
    %66 = vector.broadcast %8 : vector<1x256xbf16> to vector<32x256xbf16>
    %67 = arith.mulf %65, %66 : vector<32x256xbf16>
    %c448 = arith.constant 448 : index
    %c0_46 = arith.constant 0 : index
    %68 = vector.load %arg7[%c448, %c0_46] : memref<800x256xbf16, #tpu.memory_space<vmem>>, vector<32x256xbf16>
    tpu.vector_store %arg7[%c448, %c0_46], %67 {strides = array<i32>} : memref<800x256xbf16, #tpu.memory_space<vmem>>, vector<32x256xbf16>,
    %c0_47 = arith.constant 0 : index
    %c142 = arith.constant 142 : index
    %69 = vector.load %arg6[%c0_47, %c142] : memref<32x512xbf16, #tpu.memory_space<vmem>>, vector<32x256xbf16>
    %70 = vector.broadcast %5 : vector<1x256xbf16> to vector<32x256xbf16>
    %71 = arith.mulf %69, %70 : vector<32x256xbf16>
    %c480 = arith.constant 480 : index
    %c0_48 = arith.constant 0 : index
    %72 = vector.load %arg7[%c480, %c0_48] : memref<800x256xbf16, #tpu.memory_space<vmem>>, vector<32x256xbf16>
    tpu.vector_store %arg7[%c480, %c0_48], %71 {strides = array<i32>} : memref<800x256xbf16, #tpu.memory_space<vmem>>, vector<32x256xbf16>,
    %c0_49 = arith.constant 0 : index
    %c143 = arith.constant 143 : index
    %73 = vector.load %arg6[%c0_49, %c143] : memref<32x512xbf16, #tpu.memory_space<vmem>>, vector<32x256xbf16>
    %74 = vector.broadcast %6 : vector<1x256xbf16> to vector<32x256xbf16>
    %75 = arith.mulf %73, %74 : vector<32x256xbf16>
    %c512 = arith.constant 512 : index
    %c0_50 = arith.constant 0 : index
    %76 = vector.load %arg7[%c512, %c0_50] : memref<800x256xbf16, #tpu.memory_space<vmem>>, vector<32x256xbf16>
    tpu.vector_store %arg7[%c512, %c0_50], %75 {strides = array<i32>} : memref<800x256xbf16, #tpu.memory_space<vmem>>, vector<32x256xbf16>,
    %c0_51 = arith.constant 0 : index
    %c144 = arith.constant 144 : index
    %77 = vector.load %arg6[%c0_51, %c144] : memref<32x512xbf16, #tpu.memory_space<vmem>>, vector<32x256xbf16>
    %c544 = arith.constant 544 : index
    %c0_52 = arith.constant 0 : index
    %78 = vector.load %arg7[%c544, %c0_52] : memref<800x256xbf16, #tpu.memory_space<vmem>>, vector<32x256xbf16>
    tpu.vector_store %arg7[%c544, %c0_52], %77 {strides = array<i32>} : memref<800x256xbf16, #tpu.memory_space<vmem>>, vector<32x256xbf16>,
    %c0_53 = arith.constant 0 : index
    %c145 = arith.constant 145 : index
    %79 = vector.load %arg6[%c0_53, %c145] : memref<32x512xbf16, #tpu.memory_space<vmem>>, vector<32x256xbf16>
    %80 = vector.broadcast %7 : vector<1x256xbf16> to vector<32x256xbf16>
    %81 = arith.mulf %79, %80 : vector<32x256xbf16>
    %c576 = arith.constant 576 : index
    %c0_54 = arith.constant 0 : index
    %82 = vector.load %arg7[%c576, %c0_54] : memref<800x256xbf16, #tpu.memory_space<vmem>>, vector<32x256xbf16>
    tpu.vector_store %arg7[%c576, %c0_54], %81 {strides = array<i32>} : memref<800x256xbf16, #tpu.memory_space<vmem>>, vector<32x256xbf16>,
    %c0_55 = arith.constant 0 : index
    %c146 = arith.constant 146 : index
    %83 = vector.load %arg6[%c0_55, %c146] : memref<32x512xbf16, #tpu.memory_space<vmem>>, vector<32x256xbf16>
    %84 = vector.broadcast %8 : vector<1x256xbf16> to vector<32x256xbf16>
    %85 = arith.mulf %83, %84 : vector<32x256xbf16>
    %c608 = arith.constant 608 : index
    %c0_56 = arith.constant 0 : index
    %86 = vector.load %arg7[%c608, %c0_56] : memref<800x256xbf16, #tpu.memory_space<vmem>>, vector<32x256xbf16>
    tpu.vector_store %arg7[%c608, %c0_56], %85 {strides = array<i32>} : memref<800x256xbf16, #tpu.memory_space<vmem>>, vector<32x256xbf16>,
    %c0_57 = arith.constant 0 : index
    %c158 = arith.constant 158 : index
    %87 = vector.load %arg6[%c0_57, %c158] : memref<32x512xbf16, #tpu.memory_space<vmem>>, vector<32x256xbf16>
    %88 = vector.broadcast %5 : vector<1x256xbf16> to vector<32x256xbf16>
    %89 = arith.mulf %87, %88 : vector<32x256xbf16>
    %c640 = arith.constant 640 : index
    %c0_58 = arith.constant 0 : index
    %90 = vector.load %arg7[%c640, %c0_58] : memref<800x256xbf16, #tpu.memory_space<vmem>>, vector<32x256xbf16>
    tpu.vector_store %arg7[%c640, %c0_58], %89 {strides = array<i32>} : memref<800x256xbf16, #tpu.memory_space<vmem>>, vector<32x256xbf16>,
    %c0_59 = arith.constant 0 : index
    %c159 = arith.constant 159 : index
    %91 = vector.load %arg6[%c0_59, %c159] : memref<32x512xbf16, #tpu.memory_space<vmem>>, vector<32x256xbf16>
    %92 = vector.broadcast %6 : vector<1x256xbf16> to vector<32x256xbf16>
    %93 = arith.mulf %91, %92 : vector<32x256xbf16>
    %c672 = arith.constant 672 : index
    %c0_60 = arith.constant 0 : index
    %94 = vector.load %arg7[%c672, %c0_60] : memref<800x256xbf16, #tpu.memory_space<vmem>>, vector<32x256xbf16>
    tpu.vector_store %arg7[%c672, %c0_60], %93 {strides = array<i32>} : memref<800x256xbf16, #tpu.memory_space<vmem>>, vector<32x256xbf16>,
    %c0_61 = arith.constant 0 : index
    %c160_62 = arith.constant 160 : index
    %95 = vector.load %arg6[%c0_61, %c160_62] : memref<32x512xbf16, #tpu.memory_space<vmem>>, vector<32x256xbf16>
    %c704 = arith.constant 704 : index
    %c0_63 = arith.constant 0 : index
    %96 = vector.load %arg7[%c704, %c0_63] : memref<800x256xbf16, #tpu.memory_space<vmem>>, vector<32x256xbf16>
    tpu.vector_store %arg7[%c704, %c0_63], %95 {strides = array<i32>} : memref<800x256xbf16, #tpu.memory_space<vmem>>, vector<32x256xbf16>,
    %c0_64 = arith.constant 0 : index
    %c161 = arith.constant 161 : index
    %97 = vector.load %arg6[%c0_64, %c161] : memref<32x512xbf16, #tpu.memory_space<vmem>>, vector<32x256xbf16>
    %98 = vector.broadcast %7 : vector<1x256xbf16> to vector<32x256xbf16>
    %99 = arith.mulf %97, %98 : vector<32x256xbf16>
    %c736 = arith.constant 736 : index
    %c0_65 = arith.constant 0 : index
    %100 = vector.load %arg7[%c736, %c0_65] : memref<800x256xbf16, #tpu.memory_space<vmem>>, vector<32x256xbf16>
    tpu.vector_store %arg7[%c736, %c0_65], %99 {strides = array<i32>} : memref<800x256xbf16, #tpu.memory_space<vmem>>, vector<32x256xbf16>,
    %c0_66 = arith.constant 0 : index
    %c162 = arith.constant 162 : index
    %101 = vector.load %arg6[%c0_66, %c162] : memref<32x512xbf16, #tpu.memory_space<vmem>>, vector<32x256xbf16>
    %102 = vector.broadcast %8 : vector<1x256xbf16> to vector<32x256xbf16>
    %103 = arith.mulf %101, %102 : vector<32x256xbf16>
    %c768 = arith.constant 768 : index
    %c0_67 = arith.constant 0 : index
    %104 = vector.load %arg7[%c768, %c0_67] : memref<800x256xbf16, #tpu.memory_space<vmem>>, vector<32x256xbf16>
    tpu.vector_store %arg7[%c768, %c0_67], %103 {strides = array<i32>} : memref<800x256xbf16, #tpu.memory_space<vmem>>, vector<32x256xbf16>,
    %c0_68 = arith.constant 0 : index
    %c0_69 = arith.constant 0 : index
    %105 = vector.load %arg7[%c0_68, %c0_69] : memref<800x256xbf16, #tpu.memory_space<vmem>>, vector<800x256xbf16>
    %cst_70 = arith.constant dense<0.000000e+00> : vector<32x256xf32>
    %106 = tpu.matmul %14, %105, %cst_70 {dimension_numbers = #tpu.dot_dimension_numbers<[1], [0], [0], [1], [0, 0, 1, 1], [], []>} : vector<32x800xbf16>, vector<800x256xbf16>, vector<32x256xf32> -> vector<32x256xf32>
    %c0_71 = arith.constant 0 : index
    %c0_72 = arith.constant 0 : index
    %c0_73 = arith.constant 0 : index
    %107 = vector.load %arg4[%c0_71, %c0_72, %c0_73] : memref<5x32x1xf32, #tpu.memory_space<vmem>>, vector<1x32x1xf32>
    %108 = vector.shape_cast %107 : vector<1x32x1xf32> to vector<32x1xf32>
    %109 = vector.broadcast %108 : vector<32x1xf32> to vector<32x256xf32>
    %110 = arith.addf %106, %109 : vector<32x256xf32>
    %cst_74 = arith.constant 0.000000e+00 : f32
    %111 = vector.broadcast %cst_74 : f32 to vector<32x256xf32>
    %112 = arith.maximumf %110, %111 : vector<32x256xf32>
    %113 = arith.truncf %112 : vector<32x256xf32> to vector<32x256xbf16>
    %c0_75 = arith.constant 0 : index
    %c128_76 = arith.constant 128 : index
    %114 = vector.load %arg6[%c0_75, %c128_76] : memref<32x512xbf16, #tpu.memory_space<vmem>>, vector<32x256xbf16>
    tpu.vector_store %arg6[%c0_75, %c128_76], %113 {strides = array<i32>} : memref<32x512xbf16, #tpu.memory_space<vmem>>, vector<32x256xbf16>,
    %c1 = arith.constant 1 : index
    %c0_77 = arith.constant 0 : index
    %c0_78 = arith.constant 0 : index
    %115 = vector.load %arg3[%c1, %c0_77, %c0_78] : memref<5x32x800xbf16, #tpu.memory_space<vmem>>, vector<1x32x800xbf16>
    %116 = vector.shape_cast %115 : vector<1x32x800xbf16> to vector<32x800xbf16>
    %c0_79 = arith.constant 0 : index
    %c94_80 = arith.constant 94 : index
    %117 = vector.load %arg6[%c0_79, %c94_80] : memref<32x512xbf16, #tpu.memory_space<vmem>>, vector<32x256xbf16>
    %118 = vector.broadcast %5 : vector<1x256xbf16> to vector<32x256xbf16>
    %119 = arith.mulf %117, %118 : vector<32x256xbf16>
    %c0_81 = arith.constant 0 : index
    %c0_82 = arith.constant 0 : index
    %120 = vector.load %arg7[%c0_81, %c0_82] : memref<800x256xbf16, #tpu.memory_space<vmem>>, vector<32x256xbf16>
    tpu.vector_store %arg7[%c0_81, %c0_82], %119 {strides = array<i32>} : memref<800x256xbf16, #tpu.memory_space<vmem>>, vector<32x256xbf16>,
    %c0_83 = arith.constant 0 : index
    %c95_84 = arith.constant 95 : index
    %121 = vector.load %arg6[%c0_83, %c95_84] : memref<32x512xbf16, #tpu.memory_space<vmem>>, vector<32x256xbf16>
    %122 = vector.broadcast %6 : vector<1x256xbf16> to vector<32x256xbf16>
    %123 = arith.mulf %121, %122 : vector<32x256xbf16>
    %c32_85 = arith.constant 32 : index
    %c0_86 = arith.constant 0 : index
    %124 = vector.load %arg7[%c32_85, %c0_86] : memref<800x256xbf16, #tpu.memory_space<vmem>>, vector<32x256xbf16>
    tpu.vector_store %arg7[%c32_85, %c0_86], %123 {strides = array<i32>} : memref<800x256xbf16, #tpu.memory_space<vmem>>, vector<32x256xbf16>,
    %c0_87 = arith.constant 0 : index
    %c96_88 = arith.constant 96 : index
    %125 = vector.load %arg6[%c0_87, %c96_88] : memref<32x512xbf16, #tpu.memory_space<vmem>>, vector<32x256xbf16>
    %c64_89 = arith.constant 64 : index
    %c0_90 = arith.constant 0 : index
    %126 = vector.load %arg7[%c64_89, %c0_90] : memref<800x256xbf16, #tpu.memory_space<vmem>>, vector<32x256xbf16>
    tpu.vector_store %arg7[%c64_89, %c0_90], %125 {strides = array<i32>} : memref<800x256xbf16, #tpu.memory_space<vmem>>, vector<32x256xbf16>,
    %c0_91 = arith.constant 0 : index
    %c97_92 = arith.constant 97 : index
    %127 = vector.load %arg6[%c0_91, %c97_92] : memref<32x512xbf16, #tpu.memory_space<vmem>>, vector<32x256xbf16>
    %128 = vector.broadcast %7 : vector<1x256xbf16> to vector<32x256xbf16>
    %129 = arith.mulf %127, %128 : vector<32x256xbf16>
    %c96_93 = arith.constant 96 : index
    %c0_94 = arith.constant 0 : index
    %130 = vector.load %arg7[%c96_93, %c0_94] : memref<800x256xbf16, #tpu.memory_space<vmem>>, vector<32x256xbf16>
    tpu.vector_store %arg7[%c96_93, %c0_94], %129 {strides = array<i32>} : memref<800x256xbf16, #tpu.memory_space<vmem>>, vector<32x256xbf16>,
    %c0_95 = arith.constant 0 : index
    %c98_96 = arith.constant 98 : index
    %131 = vector.load %arg6[%c0_95, %c98_96] : memref<32x512xbf16, #tpu.memory_space<vmem>>, vector<32x256xbf16>
    %132 = vector.broadcast %8 : vector<1x256xbf16> to vector<32x256xbf16>
    %133 = arith.mulf %131, %132 : vector<32x256xbf16>
    %c128_97 = arith.constant 128 : index
    %c0_98 = arith.constant 0 : index
    %134 = vector.load %arg7[%c128_97, %c0_98] : memref<800x256xbf16, #tpu.memory_space<vmem>>, vector<32x256xbf16>
    tpu.vector_store %arg7[%c128_97, %c0_98], %133 {strides = array<i32>} : memref<800x256xbf16, #tpu.memory_space<vmem>>, vector<32x256xbf16>,
    %c0_99 = arith.constant 0 : index
    %c110_100 = arith.constant 110 : index
    %135 = vector.load %arg6[%c0_99, %c110_100] : memref<32x512xbf16, #tpu.memory_space<vmem>>, vector<32x256xbf16>
    %136 = vector.broadcast %5 : vector<1x256xbf16> to vector<32x256xbf16>
    %137 = arith.mulf %135, %136 : vector<32x256xbf16>
    %c160_101 = arith.constant 160 : index
    %c0_102 = arith.constant 0 : index
    %138 = vector.load %arg7[%c160_101, %c0_102] : memref<800x256xbf16, #tpu.memory_space<vmem>>, vector<32x256xbf16>
    tpu.vector_store %arg7[%c160_101, %c0_102], %137 {strides = array<i32>} : memref<800x256xbf16, #tpu.memory_space<vmem>>, vector<32x256xbf16>,
    %c0_103 = arith.constant 0 : index
    %c111_104 = arith.constant 111 : index
    %139 = vector.load %arg6[%c0_103, %c111_104] : memref<32x512xbf16, #tpu.memory_space<vmem>>, vector<32x256xbf16>
    %140 = vector.broadcast %6 : vector<1x256xbf16> to vector<32x256xbf16>
    %141 = arith.mulf %139, %140 : vector<32x256xbf16>
    %c192_105 = arith.constant 192 : index
    %c0_106 = arith.constant 0 : index
    %142 = vector.load %arg7[%c192_105, %c0_106] : memref<800x256xbf16, #tpu.memory_space<vmem>>, vector<32x256xbf16>
    tpu.vector_store %arg7[%c192_105, %c0_106], %141 {strides = array<i32>} : memref<800x256xbf16, #tpu.memory_space<vmem>>, vector<32x256xbf16>,
    %c0_107 = arith.constant 0 : index
    %c112_108 = arith.constant 112 : index
    %143 = vector.load %arg6[%c0_107, %c112_108] : memref<32x512xbf16, #tpu.memory_space<vmem>>, vector<32x256xbf16>
    %c224_109 = arith.constant 224 : index
    %c0_110 = arith.constant 0 : index
    %144 = vector.load %arg7[%c224_109, %c0_110] : memref<800x256xbf16, #tpu.memory_space<vmem>>, vector<32x256xbf16>
    tpu.vector_store %arg7[%c224_109, %c0_110], %143 {strides = array<i32>} : memref<800x256xbf16, #tpu.memory_space<vmem>>, vector<32x256xbf16>,
    %c0_111 = arith.constant 0 : index
    %c113_112 = arith.constant 113 : index
    %145 = vector.load %arg6[%c0_111, %c113_112] : memref<32x512xbf16, #tpu.memory_space<vmem>>, vector<32x256xbf16>
    %146 = vector.broadcast %7 : vector<1x256xbf16> to vector<32x256xbf16>
    %147 = arith.mulf %145, %146 : vector<32x256xbf16>
    %c256_113 = arith.constant 256 : index
    %c0_114 = arith.constant 0 : index
    %148 = vector.load %arg7[%c256_113, %c0_114] : memref<800x256xbf16, #tpu.memory_space<vmem>>, vector<32x256xbf16>
    tpu.vector_store %arg7[%c256_113, %c0_114], %147 {strides = array<i32>} : memref<800x256xbf16, #tpu.memory_space<vmem>>, vector<32x256xbf16>,
    %c0_115 = arith.constant 0 : index
    %c114_116 = arith.constant 114 : index
    %149 = vector.load %arg6[%c0_115, %c114_116] : memref<32x512xbf16, #tpu.memory_space<vmem>>, vector<32x256xbf16>
    %150 = vector.broadcast %8 : vector<1x256xbf16> to vector<32x256xbf16>
    %151 = arith.mulf %149, %150 : vector<32x256xbf16>
    %c288_117 = arith.constant 288 : index
    %c0_118 = arith.constant 0 : index
    %152 = vector.load %arg7[%c288_117, %c0_118] : memref<800x256xbf16, #tpu.memory_space<vmem>>, vector<32x256xbf16>
    tpu.vector_store %arg7[%c288_117, %c0_118], %151 {strides = array<i32>} : memref<800x256xbf16, #tpu.memory_space<vmem>>, vector<32x256xbf16>,
    %c0_119 = arith.constant 0 : index
    %c126_120 = arith.constant 126 : index
    %153 = vector.load %arg6[%c0_119, %c126_120] : memref<32x512xbf16, #tpu.memory_space<vmem>>, vector<32x256xbf16>
    %154 = vector.broadcast %5 : vector<1x256xbf16> to vector<32x256xbf16>
    %155 = arith.mulf %153, %154 : vector<32x256xbf16>
    %c320_121 = arith.constant 320 : index
    %c0_122 = arith.constant 0 : index
    %156 = vector.load %arg7[%c320_121, %c0_122] : memref<800x256xbf16, #tpu.memory_space<vmem>>, vector<32x256xbf16>
    tpu.vector_store %arg7[%c320_121, %c0_122], %155 {strides = array<i32>} : memref<800x256xbf16, #tpu.memory_space<vmem>>, vector<32x256xbf16>,
    %c0_123 = arith.constant 0 : index
    %c127_124 = arith.constant 127 : index
    %157 = vector.load %arg6[%c0_123, %c127_124] : memref<32x512xbf16, #tpu.memory_space<vmem>>, vector<32x256xbf16>
    %158 = vector.broadcast %6 : vector<1x256xbf16> to vector<32x256xbf16>
    %159 = arith.mulf %157, %158 : vector<32x256xbf16>
    %c352_125 = arith.constant 352 : index
    %c0_126 = arith.constant 0 : index
    %160 = vector.load %arg7[%c352_125, %c0_126] : memref<800x256xbf16, #tpu.memory_space<vmem>>, vector<32x256xbf16>
    tpu.vector_store %arg7[%c352_125, %c0_126], %159 {strides = array<i32>} : memref<800x256xbf16, #tpu.memory_space<vmem>>, vector<32x256xbf16>,
    %c0_127 = arith.constant 0 : index
    %c128_128 = arith.constant 128 : index
    %161 = vector.load %arg6[%c0_127, %c128_128] : memref<32x512xbf16, #tpu.memory_space<vmem>>, vector<32x256xbf16>
    %c384_129 = arith.constant 384 : index
    %c0_130 = arith.constant 0 : index
    %162 = vector.load %arg7[%c384_129, %c0_130] : memref<800x256xbf16, #tpu.memory_space<vmem>>, vector<32x256xbf16>
    tpu.vector_store %arg7[%c384_129, %c0_130], %161 {strides = array<i32>} : memref<800x256xbf16, #tpu.memory_space<vmem>>, vector<32x256xbf16>,
    %c0_131 = arith.constant 0 : index
    %c129_132 = arith.constant 129 : index
    %163 = vector.load %arg6[%c0_131, %c129_132] : memref<32x512xbf16, #tpu.memory_space<vmem>>, vector<32x256xbf16>
    %164 = vector.broadcast %7 : vector<1x256xbf16> to vector<32x256xbf16>
    %165 = arith.mulf %163, %164 : vector<32x256xbf16>
    %c416_133 = arith.constant 416 : index
    %c0_134 = arith.constant 0 : index
    %166 = vector.load %arg7[%c416_133, %c0_134] : memref<800x256xbf16, #tpu.memory_space<vmem>>, vector<32x256xbf16>
    tpu.vector_store %arg7[%c416_133, %c0_134], %165 {strides = array<i32>} : memref<800x256xbf16, #tpu.memory_space<vmem>>, vector<32x256xbf16>,
    %c0_135 = arith.constant 0 : index
    %c130_136 = arith.constant 130 : index
    %167 = vector.load %arg6[%c0_135, %c130_136] : memref<32x512xbf16, #tpu.memory_space<vmem>>, vector<32x256xbf16>
    %168 = vector.broadcast %8 : vector<1x256xbf16> to vector<32x256xbf16>
    %169 = arith.mulf %167, %168 : vector<32x256xbf16>
    %c448_137 = arith.constant 448 : index
    %c0_138 = arith.constant 0 : index
    %170 = vector.load %arg7[%c448_137, %c0_138] : memref<800x256xbf16, #tpu.memory_space<vmem>>, vector<32x256xbf16>
    tpu.vector_store %arg7[%c448_137, %c0_138], %169 {strides = array<i32>} : memref<800x256xbf16, #tpu.memory_space<vmem>>, vector<32x256xbf16>,
    %c0_139 = arith.constant 0 : index
    %c142_140 = arith.constant 142 : index
    %171 = vector.load %arg6[%c0_139, %c142_140] : memref<32x512xbf16, #tpu.memory_space<vmem>>, vector<32x256xbf16>
    %172 = vector.broadcast %5 : vector<1x256xbf16> to vector<32x256xbf16>
    %173 = arith.mulf %171, %172 : vector<32x256xbf16>
    %c480_141 = arith.constant 480 : index
    %c0_142 = arith.constant 0 : index
    %174 = vector.load %arg7[%c480_141, %c0_142] : memref<800x256xbf16, #tpu.memory_space<vmem>>, vector<32x256xbf16>
    tpu.vector_store %arg7[%c480_141, %c0_142], %173 {strides = array<i32>} : memref<800x256xbf16, #tpu.memory_space<vmem>>, vector<32x256xbf16>,
    %c0_143 = arith.constant 0 : index
    %c143_144 = arith.constant 143 : index
    %175 = vector.load %arg6[%c0_143, %c143_144] : memref<32x512xbf16, #tpu.memory_space<vmem>>, vector<32x256xbf16>
    %176 = vector.broadcast %6 : vector<1x256xbf16> to vector<32x256xbf16>
    %177 = arith.mulf %175, %176 : vector<32x256xbf16>
    %c512_145 = arith.constant 512 : index
    %c0_146 = arith.constant 0 : index
    %178 = vector.load %arg7[%c512_145, %c0_146] : memref<800x256xbf16, #tpu.memory_space<vmem>>, vector<32x256xbf16>
    tpu.vector_store %arg7[%c512_145, %c0_146], %177 {strides = array<i32>} : memref<800x256xbf16, #tpu.memory_space<vmem>>, vector<32x256xbf16>,
    %c0_147 = arith.constant 0 : index
    %c144_148 = arith.constant 144 : index
    %179 = vector.load %arg6[%c0_147, %c144_148] : memref<32x512xbf16, #tpu.memory_space<vmem>>, vector<32x256xbf16>
    %c544_149 = arith.constant 544 : index
    %c0_150 = arith.constant 0 : index
    %180 = vector.load %arg7[%c544_149, %c0_150] : memref<800x256xbf16, #tpu.memory_space<vmem>>, vector<32x256xbf16>
    tpu.vector_store %arg7[%c544_149, %c0_150], %179 {strides = array<i32>} : memref<800x256xbf16, #tpu.memory_space<vmem>>, vector<32x256xbf16>,
    %c0_151 = arith.constant 0 : index
    %c145_152 = arith.constant 145 : index
    %181 = vector.load %arg6[%c0_151, %c145_152] : memref<32x512xbf16, #tpu.memory_space<vmem>>, vector<32x256xbf16>
    %182 = vector.broadcast %7 : vector<1x256xbf16> to vector<32x256xbf16>
    %183 = arith.mulf %181, %182 : vector<32x256xbf16>
    %c576_153 = arith.constant 576 : index
    %c0_154 = arith.constant 0 : index
    %184 = vector.load %arg7[%c576_153, %c0_154] : memref<800x256xbf16, #tpu.memory_space<vmem>>, vector<32x256xbf16>
    tpu.vector_store %arg7[%c576_153, %c0_154], %183 {strides = array<i32>} : memref<800x256xbf16, #tpu.memory_space<vmem>>, vector<32x256xbf16>,
    %c0_155 = arith.constant 0 : index
    %c146_156 = arith.constant 146 : index
    %185 = vector.load %arg6[%c0_155, %c146_156] : memref<32x512xbf16, #tpu.memory_space<vmem>>, vector<32x256xbf16>
    %186 = vector.broadcast %8 : vector<1x256xbf16> to vector<32x256xbf16>
    %187 = arith.mulf %185, %186 : vector<32x256xbf16>
    %c608_157 = arith.constant 608 : index
    %c0_158 = arith.constant 0 : index
    %188 = vector.load %arg7[%c608_157, %c0_158] : memref<800x256xbf16, #tpu.memory_space<vmem>>, vector<32x256xbf16>
    tpu.vector_store %arg7[%c608_157, %c0_158], %187 {strides = array<i32>} : memref<800x256xbf16, #tpu.memory_space<vmem>>, vector<32x256xbf16>,
    %c0_159 = arith.constant 0 : index
    %c158_160 = arith.constant 158 : index
    %189 = vector.load %arg6[%c0_159, %c158_160] : memref<32x512xbf16, #tpu.memory_space<vmem>>, vector<32x256xbf16>
    %190 = vector.broadcast %5 : vector<1x256xbf16> to vector<32x256xbf16>
    %191 = arith.mulf %189, %190 : vector<32x256xbf16>
    %c640_161 = arith.constant 640 : index
    %c0_162 = arith.constant 0 : index
    %192 = vector.load %arg7[%c640_161, %c0_162] : memref<800x256xbf16, #tpu.memory_space<vmem>>, vector<32x256xbf16>
    tpu.vector_store %arg7[%c640_161, %c0_162], %191 {strides = array<i32>} : memref<800x256xbf16, #tpu.memory_space<vmem>>, vector<32x256xbf16>,
    %c0_163 = arith.constant 0 : index
    %c159_164 = arith.constant 159 : index
    %193 = vector.load %arg6[%c0_163, %c159_164] : memref<32x512xbf16, #tpu.memory_space<vmem>>, vector<32x256xbf16>
    %194 = vector.broadcast %6 : vector<1x256xbf16> to vector<32x256xbf16>
    %195 = arith.mulf %193, %194 : vector<32x256xbf16>
    %c672_165 = arith.constant 672 : index
    %c0_166 = arith.constant 0 : index
    %196 = vector.load %arg7[%c672_165, %c0_166] : memref<800x256xbf16, #tpu.memory_space<vmem>>, vector<32x256xbf16>
    tpu.vector_store %arg7[%c672_165, %c0_166], %195 {strides = array<i32>} : memref<800x256xbf16, #tpu.memory_space<vmem>>, vector<32x256xbf16>,
    %c0_167 = arith.constant 0 : index
    %c160_168 = arith.constant 160 : index
    %197 = vector.load %arg6[%c0_167, %c160_168] : memref<32x512xbf16, #tpu.memory_space<vmem>>, vector<32x256xbf16>
    %c704_169 = arith.constant 704 : index
    %c0_170 = arith.constant 0 : index
    %198 = vector.load %arg7[%c704_169, %c0_170] : memref<800x256xbf16, #tpu.memory_space<vmem>>, vector<32x256xbf16>
    tpu.vector_store %arg7[%c704_169, %c0_170], %197 {strides = array<i32>} : memref<800x256xbf16, #tpu.memory_space<vmem>>, vector<32x256xbf16>,
    %c0_171 = arith.constant 0 : index
    %c161_172 = arith.constant 161 : index
    %199 = vector.load %arg6[%c0_171, %c161_172] : memref<32x512xbf16, #tpu.memory_space<vmem>>, vector<32x256xbf16>
    %200 = vector.broadcast %7 : vector<1x256xbf16> to vector<32x256xbf16>
    %201 = arith.mulf %199, %200 : vector<32x256xbf16>
    %c736_173 = arith.constant 736 : index
    %c0_174 = arith.constant 0 : index
    %202 = vector.load %arg7[%c736_173, %c0_174] : memref<800x256xbf16, #tpu.memory_space<vmem>>, vector<32x256xbf16>
    tpu.vector_store %arg7[%c736_173, %c0_174], %201 {strides = array<i32>} : memref<800x256xbf16, #tpu.memory_space<vmem>>, vector<32x256xbf16>,
    %c0_175 = arith.constant 0 : index
    %c162_176 = arith.constant 162 : index
    %203 = vector.load %arg6[%c0_175, %c162_176] : memref<32x512xbf16, #tpu.memory_space<vmem>>, vector<32x256xbf16>
    %204 = vector.broadcast %8 : vector<1x256xbf16> to vector<32x256xbf16>
    %205 = arith.mulf %203, %204 : vector<32x256xbf16>
    %c768_177 = arith.constant 768 : index
    %c0_178 = arith.constant 0 : index
    %206 = vector.load %arg7[%c768_177, %c0_178] : memref<800x256xbf16, #tpu.memory_space<vmem>>, vector<32x256xbf16>
    tpu.vector_store %arg7[%c768_177, %c0_178], %205 {strides = array<i32>} : memref<800x256xbf16, #tpu.memory_space<vmem>>, vector<32x256xbf16>,
    %c0_179 = arith.constant 0 : index
    %c0_180 = arith.constant 0 : index
    %207 = vector.load %arg7[%c0_179, %c0_180] : memref<800x256xbf16, #tpu.memory_space<vmem>>, vector<800x256xbf16>
    %cst_181 = arith.constant dense<0.000000e+00> : vector<32x256xf32>
    %208 = tpu.matmul %116, %207, %cst_181 {dimension_numbers = #tpu.dot_dimension_numbers<[1], [0], [0], [1], [0, 0, 1, 1], [], []>} : vector<32x800xbf16>, vector<800x256xbf16>, vector<32x256xf32> -> vector<32x256xf32>
    %c1_182 = arith.constant 1 : index
    %c0_183 = arith.constant 0 : index
    %c0_184 = arith.constant 0 : index
    %209 = vector.load %arg4[%c1_182, %c0_183, %c0_184] : memref<5x32x1xf32, #tpu.memory_space<vmem>>, vector<1x32x1xf32>
    %210 = vector.shape_cast %209 : vector<1x32x1xf32> to vector<32x1xf32>
    %211 = vector.broadcast %210 : vector<32x1xf32> to vector<32x256xf32>
    %212 = arith.addf %208, %211 : vector<32x256xf32>
    %cst_185 = arith.constant 0.000000e+00 : f32
    %213 = vector.broadcast %cst_185 : f32 to vector<32x256xf32>
    %214 = arith.maximumf %212, %213 : vector<32x256xf32>
    %215 = arith.truncf %214 : vector<32x256xf32> to vector<32x256xbf16>
    %c0_186 = arith.constant 0 : index
    %c128_187 = arith.constant 128 : index
    %216 = vector.load %arg6[%c0_186, %c128_187] : memref<32x512xbf16, #tpu.memory_space<vmem>>, vector<32x256xbf16>
    tpu.vector_store %arg6[%c0_186, %c128_187], %215 {strides = array<i32>} : memref<32x512xbf16, #tpu.memory_space<vmem>>, vector<32x256xbf16>,
    %c2 = arith.constant 2 : index
    %c0_188 = arith.constant 0 : index
    %c0_189 = arith.constant 0 : index
    %217 = vector.load %arg3[%c2, %c0_188, %c0_189] : memref<5x32x800xbf16, #tpu.memory_space<vmem>>, vector<1x32x800xbf16>
    %218 = vector.shape_cast %217 : vector<1x32x800xbf16> to vector<32x800xbf16>
    %c0_190 = arith.constant 0 : index
    %c94_191 = arith.constant 94 : index
    %219 = vector.load %arg6[%c0_190, %c94_191] : memref<32x512xbf16, #tpu.memory_space<vmem>>, vector<32x256xbf16>
    %220 = vector.broadcast %5 : vector<1x256xbf16> to vector<32x256xbf16>
    %221 = arith.mulf %219, %220 : vector<32x256xbf16>
    %c0_192 = arith.constant 0 : index
    %c0_193 = arith.constant 0 : index
    %222 = vector.load %arg7[%c0_192, %c0_193] : memref<800x256xbf16, #tpu.memory_space<vmem>>, vector<32x256xbf16>
    tpu.vector_store %arg7[%c0_192, %c0_193], %221 {strides = array<i32>} : memref<800x256xbf16, #tpu.memory_space<vmem>>, vector<32x256xbf16>,
    %c0_194 = arith.constant 0 : index
    %c95_195 = arith.constant 95 : index
    %223 = vector.load %arg6[%c0_194, %c95_195] : memref<32x512xbf16, #tpu.memory_space<vmem>>, vector<32x256xbf16>
    %224 = vector.broadcast %6 : vector<1x256xbf16> to vector<32x256xbf16>
    %225 = arith.mulf %223, %224 : vector<32x256xbf16>
    %c32_196 = arith.constant 32 : index
    %c0_197 = arith.constant 0 : index
    %226 = vector.load %arg7[%c32_196, %c0_197] : memref<800x256xbf16, #tpu.memory_space<vmem>>, vector<32x256xbf16>
    tpu.vector_store %arg7[%c32_196, %c0_197], %225 {strides = array<i32>} : memref<800x256xbf16, #tpu.memory_space<vmem>>, vector<32x256xbf16>,
    %c0_198 = arith.constant 0 : index
    %c96_199 = arith.constant 96 : index
    %227 = vector.load %arg6[%c0_198, %c96_199] : memref<32x512xbf16, #tpu.memory_space<vmem>>, vector<32x256xbf16>
    %c64_200 = arith.constant 64 : index
    %c0_201 = arith.constant 0 : index
    %228 = vector.load %arg7[%c64_200, %c0_201] : memref<800x256xbf16, #tpu.memory_space<vmem>>, vector<32x256xbf16>
    tpu.vector_store %arg7[%c64_200, %c0_201], %227 {strides = array<i32>} : memref<800x256xbf16, #tpu.memory_space<vmem>>, vector<32x256xbf16>,
    %c0_202 = arith.constant 0 : index
    %c97_203 = arith.constant 97 : index
    %229 = vector.load %arg6[%c0_202, %c97_203] : memref<32x512xbf16, #tpu.memory_space<vmem>>, vector<32x256xbf16>
    %230 = vector.broadcast %7 : vector<1x256xbf16> to vector<32x256xbf16>
    %231 = arith.mulf %229, %230 : vector<32x256xbf16>
    %c96_204 = arith.constant 96 : index
    %c0_205 = arith.constant 0 : index
    %232 = vector.load %arg7[%c96_204, %c0_205] : memref<800x256xbf16, #tpu.memory_space<vmem>>, vector<32x256xbf16>
    tpu.vector_store %arg7[%c96_204, %c0_205], %231 {strides = array<i32>} : memref<800x256xbf16, #tpu.memory_space<vmem>>, vector<32x256xbf16>,
    %c0_206 = arith.constant 0 : index
    %c98_207 = arith.constant 98 : index
    %233 = vector.load %arg6[%c0_206, %c98_207] : memref<32x512xbf16, #tpu.memory_space<vmem>>, vector<32x256xbf16>
    %234 = vector.broadcast %8 : vector<1x256xbf16> to vector<32x256xbf16>
    %235 = arith.mulf %233, %234 : vector<32x256xbf16>
    %c128_208 = arith.constant 128 : index
    %c0_209 = arith.constant 0 : index
    %236 = vector.load %arg7[%c128_208, %c0_209] : memref<800x256xbf16, #tpu.memory_space<vmem>>, vector<32x256xbf16>
    tpu.vector_store %arg7[%c128_208, %c0_209], %235 {strides = array<i32>} : memref<800x256xbf16, #tpu.memory_space<vmem>>, vector<32x256xbf16>,
    %c0_210 = arith.constant 0 : index
    %c110_211 = arith.constant 110 : index
    %237 = vector.load %arg6[%c0_210, %c110_211] : memref<32x512xbf16, #tpu.memory_space<vmem>>, vector<32x256xbf16>
    %238 = vector.broadcast %5 : vector<1x256xbf16> to vector<32x256xbf16>
    %239 = arith.mulf %237, %238 : vector<32x256xbf16>
    %c160_212 = arith.constant 160 : index
    %c0_213 = arith.constant 0 : index
    %240 = vector.load %arg7[%c160_212, %c0_213] : memref<800x256xbf16, #tpu.memory_space<vmem>>, vector<32x256xbf16>
    tpu.vector_store %arg7[%c160_212, %c0_213], %239 {strides = array<i32>} : memref<800x256xbf16, #tpu.memory_space<vmem>>, vector<32x256xbf16>,
    %c0_214 = arith.constant 0 : index
    %c111_215 = arith.constant 111 : index
    %241 = vector.load %arg6[%c0_214, %c111_215] : memref<32x512xbf16, #tpu.memory_space<vmem>>, vector<32x256xbf16>
    %242 = vector.broadcast %6 : vector<1x256xbf16> to vector<32x256xbf16>
    %243 = arith.mulf %241, %242 : vector<32x256xbf16>
    %c192_216 = arith.constant 192 : index
    %c0_217 = arith.constant 0 : index
    %244 = vector.load %arg7[%c192_216, %c0_217] : memref<800x256xbf16, #tpu.memory_space<vmem>>, vector<32x256xbf16>
    tpu.vector_store %arg7[%c192_216, %c0_217], %243 {strides = array<i32>} : memref<800x256xbf16, #tpu.memory_space<vmem>>, vector<32x256xbf16>,
    %c0_218 = arith.constant 0 : index
    %c112_219 = arith.constant 112 : index
    %245 = vector.load %arg6[%c0_218, %c112_219] : memref<32x512xbf16, #tpu.memory_space<vmem>>, vector<32x256xbf16>
    %c224_220 = arith.constant 224 : index
    %c0_221 = arith.constant 0 : index
    %246 = vector.load %arg7[%c224_220, %c0_221] : memref<800x256xbf16, #tpu.memory_space<vmem>>, vector<32x256xbf16>
    tpu.vector_store %arg7[%c224_220, %c0_221], %245 {strides = array<i32>} : memref<800x256xbf16, #tpu.memory_space<vmem>>, vector<32x256xbf16>,
    %c0_222 = arith.constant 0 : index
    %c113_223 = arith.constant 113 : index
    %247 = vector.load %arg6[%c0_222, %c113_223] : memref<32x512xbf16, #tpu.memory_space<vmem>>, vector<32x256xbf16>
    %248 = vector.broadcast %7 : vector<1x256xbf16> to vector<32x256xbf16>
    %249 = arith.mulf %247, %248 : vector<32x256xbf16>
    %c256_224 = arith.constant 256 : index
    %c0_225 = arith.constant 0 : index
    %250 = vector.load %arg7[%c256_224, %c0_225] : memref<800x256xbf16, #tpu.memory_space<vmem>>, vector<32x256xbf16>
    tpu.vector_store %arg7[%c256_224, %c0_225], %249 {strides = array<i32>} : memref<800x256xbf16, #tpu.memory_space<vmem>>, vector<32x256xbf16>,
    %c0_226 = arith.constant 0 : index
    %c114_227 = arith.constant 114 : index
    %251 = vector.load %arg6[%c0_226, %c114_227] : memref<32x512xbf16, #tpu.memory_space<vmem>>, vector<32x256xbf16>
    %252 = vector.broadcast %8 : vector<1x256xbf16> to vector<32x256xbf16>
    %253 = arith.mulf %251, %252 : vector<32x256xbf16>
    %c288_228 = arith.constant 288 : index
    %c0_229 = arith.constant 0 : index
    %254 = vector.load %arg7[%c288_228, %c0_229] : memref<800x256xbf16, #tpu.memory_space<vmem>>, vector<32x256xbf16>
    tpu.vector_store %arg7[%c288_228, %c0_229], %253 {strides = array<i32>} : memref<800x256xbf16, #tpu.memory_space<vmem>>, vector<32x256xbf16>,
    %c0_230 = arith.constant 0 : index
    %c126_231 = arith.constant 126 : index
    %255 = vector.load %arg6[%c0_230, %c126_231] : memref<32x512xbf16, #tpu.memory_space<vmem>>, vector<32x256xbf16>
    %256 = vector.broadcast %5 : vector<1x256xbf16> to vector<32x256xbf16>
    %257 = arith.mulf %255, %256 : vector<32x256xbf16>
    %c320_232 = arith.constant 320 : index
    %c0_233 = arith.constant 0 : index
    %258 = vector.load %arg7[%c320_232, %c0_233] : memref<800x256xbf16, #tpu.memory_space<vmem>>, vector<32x256xbf16>
    tpu.vector_store %arg7[%c320_232, %c0_233], %257 {strides = array<i32>} : memref<800x256xbf16, #tpu.memory_space<vmem>>, vector<32x256xbf16>,
    %c0_234 = arith.constant 0 : index
    %c127_235 = arith.constant 127 : index
    %259 = vector.load %arg6[%c0_234, %c127_235] : memref<32x512xbf16, #tpu.memory_space<vmem>>, vector<32x256xbf16>
    %260 = vector.broadcast %6 : vector<1x256xbf16> to vector<32x256xbf16>
    %261 = arith.mulf %259, %260 : vector<32x256xbf16>
    %c352_236 = arith.constant 352 : index
    %c0_237 = arith.constant 0 : index
    %262 = vector.load %arg7[%c352_236, %c0_237] : memref<800x256xbf16, #tpu.memory_space<vmem>>, vector<32x256xbf16>
    tpu.vector_store %arg7[%c352_236, %c0_237], %261 {strides = array<i32>} : memref<800x256xbf16, #tpu.memory_space<vmem>>, vector<32x256xbf16>,
    %c0_238 = arith.constant 0 : index
    %c128_239 = arith.constant 128 : index
    %263 = vector.load %arg6[%c0_238, %c128_239] : memref<32x512xbf16, #tpu.memory_space<vmem>>, vector<32x256xbf16>
    %c384_240 = arith.constant 384 : index
    %c0_241 = arith.constant 0 : index
    %264 = vector.load %arg7[%c384_240, %c0_241] : memref<800x256xbf16, #tpu.memory_space<vmem>>, vector<32x256xbf16>
    tpu.vector_store %arg7[%c384_240, %c0_241], %263 {strides = array<i32>} : memref<800x256xbf16, #tpu.memory_space<vmem>>, vector<32x256xbf16>,
    %c0_242 = arith.constant 0 : index
    %c129_243 = arith.constant 129 : index
    %265 = vector.load %arg6[%c0_242, %c129_243] : memref<32x512xbf16, #tpu.memory_space<vmem>>, vector<32x256xbf16>
    %266 = vector.broadcast %7 : vector<1x256xbf16> to vector<32x256xbf16>
    %267 = arith.mulf %265, %266 : vector<32x256xbf16>
    %c416_244 = arith.constant 416 : index
    %c0_245 = arith.constant 0 : index
    %268 = vector.load %arg7[%c416_244, %c0_245] : memref<800x256xbf16, #tpu.memory_space<vmem>>, vector<32x256xbf16>
    tpu.vector_store %arg7[%c416_244, %c0_245], %267 {strides = array<i32>} : memref<800x256xbf16, #tpu.memory_space<vmem>>, vector<32x256xbf16>,
    %c0_246 = arith.constant 0 : index
    %c130_247 = arith.constant 130 : index
    %269 = vector.load %arg6[%c0_246, %c130_247] : memref<32x512xbf16, #tpu.memory_space<vmem>>, vector<32x256xbf16>
    %270 = vector.broadcast %8 : vector<1x256xbf16> to vector<32x256xbf16>
    %271 = arith.mulf %269, %270 : vector<32x256xbf16>
    %c448_248 = arith.constant 448 : index
    %c0_249 = arith.constant 0 : index
    %272 = vector.load %arg7[%c448_248, %c0_249] : memref<800x256xbf16, #tpu.memory_space<vmem>>, vector<32x256xbf16>
    tpu.vector_store %arg7[%c448_248, %c0_249], %271 {strides = array<i32>} : memref<800x256xbf16, #tpu.memory_space<vmem>>, vector<32x256xbf16>,
    %c0_250 = arith.constant 0 : index
    %c142_251 = arith.constant 142 : index
    %273 = vector.load %arg6[%c0_250, %c142_251] : memref<32x512xbf16, #tpu.memory_space<vmem>>, vector<32x256xbf16>
    %274 = vector.broadcast %5 : vector<1x256xbf16> to vector<32x256xbf16>
    %275 = arith.mulf %273, %274 : vector<32x256xbf16>
    %c480_252 = arith.constant 480 : index
    %c0_253 = arith.constant 0 : index
    %276 = vector.load %arg7[%c480_252, %c0_253] : memref<800x256xbf16, #tpu.memory_space<vmem>>, vector<32x256xbf16>
    tpu.vector_store %arg7[%c480_252, %c0_253], %275 {strides = array<i32>} : memref<800x256xbf16, #tpu.memory_space<vmem>>, vector<32x256xbf16>,
    %c0_254 = arith.constant 0 : index
    %c143_255 = arith.constant 143 : index
    %277 = vector.load %arg6[%c0_254, %c143_255] : memref<32x512xbf16, #tpu.memory_space<vmem>>, vector<32x256xbf16>
    %278 = vector.broadcast %6 : vector<1x256xbf16> to vector<32x256xbf16>
    %279 = arith.mulf %277, %278 : vector<32x256xbf16>
    %c512_256 = arith.constant 512 : index
    %c0_257 = arith.constant 0 : index
    %280 = vector.load %arg7[%c512_256, %c0_257] : memref<800x256xbf16, #tpu.memory_space<vmem>>, vector<32x256xbf16>
    tpu.vector_store %arg7[%c512_256, %c0_257], %279 {strides = array<i32>} : memref<800x256xbf16, #tpu.memory_space<vmem>>, vector<32x256xbf16>,
    %c0_258 = arith.constant 0 : index
    %c144_259 = arith.constant 144 : index
    %281 = vector.load %arg6[%c0_258, %c144_259] : memref<32x512xbf16, #tpu.memory_space<vmem>>, vector<32x256xbf16>
    %c544_260 = arith.constant 544 : index
    %c0_261 = arith.constant 0 : index
    %282 = vector.load %arg7[%c544_260, %c0_261] : memref<800x256xbf16, #tpu.memory_space<vmem>>, vector<32x256xbf16>
    tpu.vector_store %arg7[%c544_260, %c0_261], %281 {strides = array<i32>} : memref<800x256xbf16, #tpu.memory_space<vmem>>, vector<32x256xbf16>,
    %c0_262 = arith.constant 0 : index
    %c145_263 = arith.constant 145 : index
    %283 = vector.load %arg6[%c0_262, %c145_263] : memref<32x512xbf16, #tpu.memory_space<vmem>>, vector<32x256xbf16>
    %284 = vector.broadcast %7 : vector<1x256xbf16> to vector<32x256xbf16>
    %285 = arith.mulf %283, %284 : vector<32x256xbf16>
    %c576_264 = arith.constant 576 : index
    %c0_265 = arith.constant 0 : index
    %286 = vector.load %arg7[%c576_264, %c0_265] : memref<800x256xbf16, #tpu.memory_space<vmem>>, vector<32x256xbf16>
    tpu.vector_store %arg7[%c576_264, %c0_265], %285 {strides = array<i32>} : memref<800x256xbf16, #tpu.memory_space<vmem>>, vector<32x256xbf16>,
    %c0_266 = arith.constant 0 : index
    %c146_267 = arith.constant 146 : index
    %287 = vector.load %arg6[%c0_266, %c146_267] : memref<32x512xbf16, #tpu.memory_space<vmem>>, vector<32x256xbf16>
    %288 = vector.broadcast %8 : vector<1x256xbf16> to vector<32x256xbf16>
    %289 = arith.mulf %287, %288 : vector<32x256xbf16>
    %c608_268 = arith.constant 608 : index
    %c0_269 = arith.constant 0 : index
    %290 = vector.load %arg7[%c608_268, %c0_269] : memref<800x256xbf16, #tpu.memory_space<vmem>>, vector<32x256xbf16>
    tpu.vector_store %arg7[%c608_268, %c0_269], %289 {strides = array<i32>} : memref<800x256xbf16, #tpu.memory_space<vmem>>, vector<32x256xbf16>,
    %c0_270 = arith.constant 0 : index
    %c158_271 = arith.constant 158 : index
    %291 = vector.load %arg6[%c0_270, %c158_271] : memref<32x512xbf16, #tpu.memory_space<vmem>>, vector<32x256xbf16>
    %292 = vector.broadcast %5 : vector<1x256xbf16> to vector<32x256xbf16>
    %293 = arith.mulf %291, %292 : vector<32x256xbf16>
    %c640_272 = arith.constant 640 : index
    %c0_273 = arith.constant 0 : index
    %294 = vector.load %arg7[%c640_272, %c0_273] : memref<800x256xbf16, #tpu.memory_space<vmem>>, vector<32x256xbf16>
    tpu.vector_store %arg7[%c640_272, %c0_273], %293 {strides = array<i32>} : memref<800x256xbf16, #tpu.memory_space<vmem>>, vector<32x256xbf16>,
    %c0_274 = arith.constant 0 : index
    %c159_275 = arith.constant 159 : index
    %295 = vector.load %arg6[%c0_274, %c159_275] : memref<32x512xbf16, #tpu.memory_space<vmem>>, vector<32x256xbf16>
    %296 = vector.broadcast %6 : vector<1x256xbf16> to vector<32x256xbf16>
    %297 = arith.mulf %295, %296 : vector<32x256xbf16>
    %c672_276 = arith.constant 672 : index
    %c0_277 = arith.constant 0 : index
    %298 = vector.load %arg7[%c672_276, %c0_277] : memref<800x256xbf16, #tpu.memory_space<vmem>>, vector<32x256xbf16>
    tpu.vector_store %arg7[%c672_276, %c0_277], %297 {strides = array<i32>} : memref<800x256xbf16, #tpu.memory_space<vmem>>, vector<32x256xbf16>,
    %c0_278 = arith.constant 0 : index
    %c160_279 = arith.constant 160 : index
    %299 = vector.load %arg6[%c0_278, %c160_279] : memref<32x512xbf16, #tpu.memory_space<vmem>>, vector<32x256xbf16>
    %c704_280 = arith.constant 704 : index
    %c0_281 = arith.constant 0 : index
    %300 = vector.load %arg7[%c704_280, %c0_281] : memref<800x256xbf16, #tpu.memory_space<vmem>>, vector<32x256xbf16>
    tpu.vector_store %arg7[%c704_280, %c0_281], %299 {strides = array<i32>} : memref<800x256xbf16, #tpu.memory_space<vmem>>, vector<32x256xbf16>,
    %c0_282 = arith.constant 0 : index
    %c161_283 = arith.constant 161 : index
    %301 = vector.load %arg6[%c0_282, %c161_283] : memref<32x512xbf16, #tpu.memory_space<vmem>>, vector<32x256xbf16>
    %302 = vector.broadcast %7 : vector<1x256xbf16> to vector<32x256xbf16>
    %303 = arith.mulf %301, %302 : vector<32x256xbf16>
    %c736_284 = arith.constant 736 : index
    %c0_285 = arith.constant 0 : index
    %304 = vector.load %arg7[%c736_284, %c0_285] : memref<800x256xbf16, #tpu.memory_space<vmem>>, vector<32x256xbf16>
    tpu.vector_store %arg7[%c736_284, %c0_285], %303 {strides = array<i32>} : memref<800x256xbf16, #tpu.memory_space<vmem>>, vector<32x256xbf16>,
    %c0_286 = arith.constant 0 : index
    %c162_287 = arith.constant 162 : index
    %305 = vector.load %arg6[%c0_286, %c162_287] : memref<32x512xbf16, #tpu.memory_space<vmem>>, vector<32x256xbf16>
    %306 = vector.broadcast %8 : vector<1x256xbf16> to vector<32x256xbf16>
    %307 = arith.mulf %305, %306 : vector<32x256xbf16>
    %c768_288 = arith.constant 768 : index
    %c0_289 = arith.constant 0 : index
    %308 = vector.load %arg7[%c768_288, %c0_289] : memref<800x256xbf16, #tpu.memory_space<vmem>>, vector<32x256xbf16>
    tpu.vector_store %arg7[%c768_288, %c0_289], %307 {strides = array<i32>} : memref<800x256xbf16, #tpu.memory_space<vmem>>, vector<32x256xbf16>,
    %c0_290 = arith.constant 0 : index
    %c0_291 = arith.constant 0 : index
    %309 = vector.load %arg7[%c0_290, %c0_291] : memref<800x256xbf16, #tpu.memory_space<vmem>>, vector<800x256xbf16>
    %cst_292 = arith.constant dense<0.000000e+00> : vector<32x256xf32>
    %310 = tpu.matmul %218, %309, %cst_292 {dimension_numbers = #tpu.dot_dimension_numbers<[1], [0], [0], [1], [0, 0, 1, 1], [], []>} : vector<32x800xbf16>, vector<800x256xbf16>, vector<32x256xf32> -> vector<32x256xf32>
    %c2_293 = arith.constant 2 : index
    %c0_294 = arith.constant 0 : index
    %c0_295 = arith.constant 0 : index
    %311 = vector.load %arg4[%c2_293, %c0_294, %c0_295] : memref<5x32x1xf32, #tpu.memory_space<vmem>>, vector<1x32x1xf32>
    %312 = vector.shape_cast %311 : vector<1x32x1xf32> to vector<32x1xf32>
    %313 = vector.broadcast %312 : vector<32x1xf32> to vector<32x256xf32>
    %314 = arith.addf %310, %313 : vector<32x256xf32>
    %cst_296 = arith.constant 0.000000e+00 : f32
    %315 = vector.broadcast %cst_296 : f32 to vector<32x256xf32>
    %316 = arith.maximumf %314, %315 : vector<32x256xf32>
    %317 = arith.truncf %316 : vector<32x256xf32> to vector<32x256xbf16>
    %c0_297 = arith.constant 0 : index
    %c128_298 = arith.constant 128 : index
    %318 = vector.load %arg6[%c0_297, %c128_298] : memref<32x512xbf16, #tpu.memory_space<vmem>>, vector<32x256xbf16>
    tpu.vector_store %arg6[%c0_297, %c128_298], %317 {strides = array<i32>} : memref<32x512xbf16, #tpu.memory_space<vmem>>, vector<32x256xbf16>,
    %c3 = arith.constant 3 : index
    %c0_299 = arith.constant 0 : index
    %c0_300 = arith.constant 0 : index
    %319 = vector.load %arg3[%c3, %c0_299, %c0_300] : memref<5x32x800xbf16, #tpu.memory_space<vmem>>, vector<1x32x800xbf16>
    %320 = vector.shape_cast %319 : vector<1x32x800xbf16> to vector<32x800xbf16>
    %c0_301 = arith.constant 0 : index
    %c94_302 = arith.constant 94 : index
    %321 = vector.load %arg6[%c0_301, %c94_302] : memref<32x512xbf16, #tpu.memory_space<vmem>>, vector<32x256xbf16>
    %322 = vector.broadcast %5 : vector<1x256xbf16> to vector<32x256xbf16>
    %323 = arith.mulf %321, %322 : vector<32x256xbf16>
    %c0_303 = arith.constant 0 : index
    %c0_304 = arith.constant 0 : index
    %324 = vector.load %arg7[%c0_303, %c0_304] : memref<800x256xbf16, #tpu.memory_space<vmem>>, vector<32x256xbf16>
    tpu.vector_store %arg7[%c0_303, %c0_304], %323 {strides = array<i32>} : memref<800x256xbf16, #tpu.memory_space<vmem>>, vector<32x256xbf16>,
    %c0_305 = arith.constant 0 : index
    %c95_306 = arith.constant 95 : index
    %325 = vector.load %arg6[%c0_305, %c95_306] : memref<32x512xbf16, #tpu.memory_space<vmem>>, vector<32x256xbf16>
    %326 = vector.broadcast %6 : vector<1x256xbf16> to vector<32x256xbf16>
    %327 = arith.mulf %325, %326 : vector<32x256xbf16>
    %c32_307 = arith.constant 32 : index
    %c0_308 = arith.constant 0 : index
    %328 = vector.load %arg7[%c32_307, %c0_308] : memref<800x256xbf16, #tpu.memory_space<vmem>>, vector<32x256xbf16>
    tpu.vector_store %arg7[%c32_307, %c0_308], %327 {strides = array<i32>} : memref<800x256xbf16, #tpu.memory_space<vmem>>, vector<32x256xbf16>,
    %c0_309 = arith.constant 0 : index
    %c96_310 = arith.constant 96 : index
    %329 = vector.load %arg6[%c0_309, %c96_310] : memref<32x512xbf16, #tpu.memory_space<vmem>>, vector<32x256xbf16>
    %c64_311 = arith.constant 64 : index
    %c0_312 = arith.constant 0 : index
    %330 = vector.load %arg7[%c64_311, %c0_312] : memref<800x256xbf16, #tpu.memory_space<vmem>>, vector<32x256xbf16>
    tpu.vector_store %arg7[%c64_311, %c0_312], %329 {strides = array<i32>} : memref<800x256xbf16, #tpu.memory_space<vmem>>, vector<32x256xbf16>,
    %c0_313 = arith.constant 0 : index
    %c97_314 = arith.constant 97 : index
    %331 = vector.load %arg6[%c0_313, %c97_314] : memref<32x512xbf16, #tpu.memory_space<vmem>>, vector<32x256xbf16>
    %332 = vector.broadcast %7 : vector<1x256xbf16> to vector<32x256xbf16>
    %333 = arith.mulf %331, %332 : vector<32x256xbf16>
    %c96_315 = arith.constant 96 : index
    %c0_316 = arith.constant 0 : index
    %334 = vector.load %arg7[%c96_315, %c0_316] : memref<800x256xbf16, #tpu.memory_space<vmem>>, vector<32x256xbf16>
    tpu.vector_store %arg7[%c96_315, %c0_316], %333 {strides = array<i32>} : memref<800x256xbf16, #tpu.memory_space<vmem>>, vector<32x256xbf16>,
    %c0_317 = arith.constant 0 : index
    %c98_318 = arith.constant 98 : index
    %335 = vector.load %arg6[%c0_317, %c98_318] : memref<32x512xbf16, #tpu.memory_space<vmem>>, vector<32x256xbf16>
    %336 = vector.broadcast %8 : vector<1x256xbf16> to vector<32x256xbf16>
    %337 = arith.mulf %335, %336 : vector<32x256xbf16>
    %c128_319 = arith.constant 128 : index
    %c0_320 = arith.constant 0 : index
    %338 = vector.load %arg7[%c128_319, %c0_320] : memref<800x256xbf16, #tpu.memory_space<vmem>>, vector<32x256xbf16>
    tpu.vector_store %arg7[%c128_319, %c0_320], %337 {strides = array<i32>} : memref<800x256xbf16, #tpu.memory_space<vmem>>, vector<32x256xbf16>,
    %c0_321 = arith.constant 0 : index
    %c110_322 = arith.constant 110 : index
    %339 = vector.load %arg6[%c0_321, %c110_322] : memref<32x512xbf16, #tpu.memory_space<vmem>>, vector<32x256xbf16>
    %340 = vector.broadcast %5 : vector<1x256xbf16> to vector<32x256xbf16>
    %341 = arith.mulf %339, %340 : vector<32x256xbf16>
    %c160_323 = arith.constant 160 : index
    %c0_324 = arith.constant 0 : index
    %342 = vector.load %arg7[%c160_323, %c0_324] : memref<800x256xbf16, #tpu.memory_space<vmem>>, vector<32x256xbf16>
    tpu.vector_store %arg7[%c160_323, %c0_324], %341 {strides = array<i32>} : memref<800x256xbf16, #tpu.memory_space<vmem>>, vector<32x256xbf16>,
    %c0_325 = arith.constant 0 : index
    %c111_326 = arith.constant 111 : index
    %343 = vector.load %arg6[%c0_325, %c111_326] : memref<32x512xbf16, #tpu.memory_space<vmem>>, vector<32x256xbf16>
    %344 = vector.broadcast %6 : vector<1x256xbf16> to vector<32x256xbf16>
    %345 = arith.mulf %343, %344 : vector<32x256xbf16>
    %c192_327 = arith.constant 192 : index
    %c0_328 = arith.constant 0 : index
    %346 = vector.load %arg7[%c192_327, %c0_328] : memref<800x256xbf16, #tpu.memory_space<vmem>>, vector<32x256xbf16>
    tpu.vector_store %arg7[%c192_327, %c0_328], %345 {strides = array<i32>} : memref<800x256xbf16, #tpu.memory_space<vmem>>, vector<32x256xbf16>,
    %c0_329 = arith.constant 0 : index
    %c112_330 = arith.constant 112 : index
    %347 = vector.load %arg6[%c0_329, %c112_330] : memref<32x512xbf16, #tpu.memory_space<vmem>>, vector<32x256xbf16>
    %c224_331 = arith.constant 224 : index
    %c0_332 = arith.constant 0 : index
    %348 = vector.load %arg7[%c224_331, %c0_332] : memref<800x256xbf16, #tpu.memory_space<vmem>>, vector<32x256xbf16>
    tpu.vector_store %arg7[%c224_331, %c0_332], %347 {strides = array<i32>} : memref<800x256xbf16, #tpu.memory_space<vmem>>, vector<32x256xbf16>,
    %c0_333 = arith.constant 0 : index
    %c113_334 = arith.constant 113 : index
    %349 = vector.load %arg6[%c0_333, %c113_334] : memref<32x512xbf16, #tpu.memory_space<vmem>>, vector<32x256xbf16>
    %350 = vector.broadcast %7 : vector<1x256xbf16> to vector<32x256xbf16>
    %351 = arith.mulf %349, %350 : vector<32x256xbf16>
    %c256_335 = arith.constant 256 : index
    %c0_336 = arith.constant 0 : index
    %352 = vector.load %arg7[%c256_335, %c0_336] : memref<800x256xbf16, #tpu.memory_space<vmem>>, vector<32x256xbf16>
    tpu.vector_store %arg7[%c256_335, %c0_336], %351 {strides = array<i32>} : memref<800x256xbf16, #tpu.memory_space<vmem>>, vector<32x256xbf16>,
    %c0_337 = arith.constant 0 : index
    %c114_338 = arith.constant 114 : index
    %353 = vector.load %arg6[%c0_337, %c114_338] : memref<32x512xbf16, #tpu.memory_space<vmem>>, vector<32x256xbf16>
    %354 = vector.broadcast %8 : vector<1x256xbf16> to vector<32x256xbf16>
    %355 = arith.mulf %353, %354 : vector<32x256xbf16>
    %c288_339 = arith.constant 288 : index
    %c0_340 = arith.constant 0 : index
    %356 = vector.load %arg7[%c288_339, %c0_340] : memref<800x256xbf16, #tpu.memory_space<vmem>>, vector<32x256xbf16>
    tpu.vector_store %arg7[%c288_339, %c0_340], %355 {strides = array<i32>} : memref<800x256xbf16, #tpu.memory_space<vmem>>, vector<32x256xbf16>,
    %c0_341 = arith.constant 0 : index
    %c126_342 = arith.constant 126 : index
    %357 = vector.load %arg6[%c0_341, %c126_342] : memref<32x512xbf16, #tpu.memory_space<vmem>>, vector<32x256xbf16>
    %358 = vector.broadcast %5 : vector<1x256xbf16> to vector<32x256xbf16>
    %359 = arith.mulf %357, %358 : vector<32x256xbf16>
    %c320_343 = arith.constant 320 : index
    %c0_344 = arith.constant 0 : index
    %360 = vector.load %arg7[%c320_343, %c0_344] : memref<800x256xbf16, #tpu.memory_space<vmem>>, vector<32x256xbf16>
    tpu.vector_store %arg7[%c320_343, %c0_344], %359 {strides = array<i32>} : memref<800x256xbf16, #tpu.memory_space<vmem>>, vector<32x256xbf16>,
    %c0_345 = arith.constant 0 : index
    %c127_346 = arith.constant 127 : index
    %361 = vector.load %arg6[%c0_345, %c127_346] : memref<32x512xbf16, #tpu.memory_space<vmem>>, vector<32x256xbf16>
    %362 = vector.broadcast %6 : vector<1x256xbf16> to vector<32x256xbf16>
    %363 = arith.mulf %361, %362 : vector<32x256xbf16>
    %c352_347 = arith.constant 352 : index
    %c0_348 = arith.constant 0 : index
    %364 = vector.load %arg7[%c352_347, %c0_348] : memref<800x256xbf16, #tpu.memory_space<vmem>>, vector<32x256xbf16>
    tpu.vector_store %arg7[%c352_347, %c0_348], %363 {strides = array<i32>} : memref<800x256xbf16, #tpu.memory_space<vmem>>, vector<32x256xbf16>,
    %c0_349 = arith.constant 0 : index
    %c128_350 = arith.constant 128 : index
    %365 = vector.load %arg6[%c0_349, %c128_350] : memref<32x512xbf16, #tpu.memory_space<vmem>>, vector<32x256xbf16>
    %c384_351 = arith.constant 384 : index
    %c0_352 = arith.constant 0 : index
    %366 = vector.load %arg7[%c384_351, %c0_352] : memref<800x256xbf16, #tpu.memory_space<vmem>>, vector<32x256xbf16>
    tpu.vector_store %arg7[%c384_351, %c0_352], %365 {strides = array<i32>} : memref<800x256xbf16, #tpu.memory_space<vmem>>, vector<32x256xbf16>,
    %c0_353 = arith.constant 0 : index
    %c129_354 = arith.constant 129 : index
    %367 = vector.load %arg6[%c0_353, %c129_354] : memref<32x512xbf16, #tpu.memory_space<vmem>>, vector<32x256xbf16>
    %368 = vector.broadcast %7 : vector<1x256xbf16> to vector<32x256xbf16>
    %369 = arith.mulf %367, %368 : vector<32x256xbf16>
    %c416_355 = arith.constant 416 : index
    %c0_356 = arith.constant 0 : index
    %370 = vector.load %arg7[%c416_355, %c0_356] : memref<800x256xbf16, #tpu.memory_space<vmem>>, vector<32x256xbf16>
    tpu.vector_store %arg7[%c416_355, %c0_356], %369 {strides = array<i32>} : memref<800x256xbf16, #tpu.memory_space<vmem>>, vector<32x256xbf16>,
    %c0_357 = arith.constant 0 : index
    %c130_358 = arith.constant 130 : index
    %371 = vector.load %arg6[%c0_357, %c130_358] : memref<32x512xbf16, #tpu.memory_space<vmem>>, vector<32x256xbf16>
    %372 = vector.broadcast %8 : vector<1x256xbf16> to vector<32x256xbf16>
    %373 = arith.mulf %371, %372 : vector<32x256xbf16>
    %c448_359 = arith.constant 448 : index
    %c0_360 = arith.constant 0 : index
    %374 = vector.load %arg7[%c448_359, %c0_360] : memref<800x256xbf16, #tpu.memory_space<vmem>>, vector<32x256xbf16>
    tpu.vector_store %arg7[%c448_359, %c0_360], %373 {strides = array<i32>} : memref<800x256xbf16, #tpu.memory_space<vmem>>, vector<32x256xbf16>,
    %c0_361 = arith.constant 0 : index
    %c142_362 = arith.constant 142 : index
    %375 = vector.load %arg6[%c0_361, %c142_362] : memref<32x512xbf16, #tpu.memory_space<vmem>>, vector<32x256xbf16>
    %376 = vector.broadcast %5 : vector<1x256xbf16> to vector<32x256xbf16>
    %377 = arith.mulf %375, %376 : vector<32x256xbf16>
    %c480_363 = arith.constant 480 : index
    %c0_364 = arith.constant 0 : index
    %378 = vector.load %arg7[%c480_363, %c0_364] : memref<800x256xbf16, #tpu.memory_space<vmem>>, vector<32x256xbf16>
    tpu.vector_store %arg7[%c480_363, %c0_364], %377 {strides = array<i32>} : memref<800x256xbf16, #tpu.memory_space<vmem>>, vector<32x256xbf16>,
    %c0_365 = arith.constant 0 : index
    %c143_366 = arith.constant 143 : index
    %379 = vector.load %arg6[%c0_365, %c143_366] : memref<32x512xbf16, #tpu.memory_space<vmem>>, vector<32x256xbf16>
    %380 = vector.broadcast %6 : vector<1x256xbf16> to vector<32x256xbf16>
    %381 = arith.mulf %379, %380 : vector<32x256xbf16>
    %c512_367 = arith.constant 512 : index
    %c0_368 = arith.constant 0 : index
    %382 = vector.load %arg7[%c512_367, %c0_368] : memref<800x256xbf16, #tpu.memory_space<vmem>>, vector<32x256xbf16>
    tpu.vector_store %arg7[%c512_367, %c0_368], %381 {strides = array<i32>} : memref<800x256xbf16, #tpu.memory_space<vmem>>, vector<32x256xbf16>,
    %c0_369 = arith.constant 0 : index
    %c144_370 = arith.constant 144 : index
    %383 = vector.load %arg6[%c0_369, %c144_370] : memref<32x512xbf16, #tpu.memory_space<vmem>>, vector<32x256xbf16>
    %c544_371 = arith.constant 544 : index
    %c0_372 = arith.constant 0 : index
    %384 = vector.load %arg7[%c544_371, %c0_372] : memref<800x256xbf16, #tpu.memory_space<vmem>>, vector<32x256xbf16>
    tpu.vector_store %arg7[%c544_371, %c0_372], %383 {strides = array<i32>} : memref<800x256xbf16, #tpu.memory_space<vmem>>, vector<32x256xbf16>,
    %c0_373 = arith.constant 0 : index
    %c145_374 = arith.constant 145 : index
    %385 = vector.load %arg6[%c0_373, %c145_374] : memref<32x512xbf16, #tpu.memory_space<vmem>>, vector<32x256xbf16>
    %386 = vector.broadcast %7 : vector<1x256xbf16> to vector<32x256xbf16>
    %387 = arith.mulf %385, %386 : vector<32x256xbf16>
    %c576_375 = arith.constant 576 : index
    %c0_376 = arith.constant 0 : index
    %388 = vector.load %arg7[%c576_375, %c0_376] : memref<800x256xbf16, #tpu.memory_space<vmem>>, vector<32x256xbf16>
    tpu.vector_store %arg7[%c576_375, %c0_376], %387 {strides = array<i32>} : memref<800x256xbf16, #tpu.memory_space<vmem>>, vector<32x256xbf16>,
    %c0_377 = arith.constant 0 : index
    %c146_378 = arith.constant 146 : index
    %389 = vector.load %arg6[%c0_377, %c146_378] : memref<32x512xbf16, #tpu.memory_space<vmem>>, vector<32x256xbf16>
    %390 = vector.broadcast %8 : vector<1x256xbf16> to vector<32x256xbf16>
    %391 = arith.mulf %389, %390 : vector<32x256xbf16>
    %c608_379 = arith.constant 608 : index
    %c0_380 = arith.constant 0 : index
    %392 = vector.load %arg7[%c608_379, %c0_380] : memref<800x256xbf16, #tpu.memory_space<vmem>>, vector<32x256xbf16>
    tpu.vector_store %arg7[%c608_379, %c0_380], %391 {strides = array<i32>} : memref<800x256xbf16, #tpu.memory_space<vmem>>, vector<32x256xbf16>,
    %c0_381 = arith.constant 0 : index
    %c158_382 = arith.constant 158 : index
    %393 = vector.load %arg6[%c0_381, %c158_382] : memref<32x512xbf16, #tpu.memory_space<vmem>>, vector<32x256xbf16>
    %394 = vector.broadcast %5 : vector<1x256xbf16> to vector<32x256xbf16>
    %395 = arith.mulf %393, %394 : vector<32x256xbf16>
    %c640_383 = arith.constant 640 : index
    %c0_384 = arith.constant 0 : index
    %396 = vector.load %arg7[%c640_383, %c0_384] : memref<800x256xbf16, #tpu.memory_space<vmem>>, vector<32x256xbf16>
    tpu.vector_store %arg7[%c640_383, %c0_384], %395 {strides = array<i32>} : memref<800x256xbf16, #tpu.memory_space<vmem>>, vector<32x256xbf16>,
    %c0_385 = arith.constant 0 : index
    %c159_386 = arith.constant 159 : index
    %397 = vector.load %arg6[%c0_385, %c159_386] : memref<32x512xbf16, #tpu.memory_space<vmem>>, vector<32x256xbf16>
    %398 = vector.broadcast %6 : vector<1x256xbf16> to vector<32x256xbf16>
    %399 = arith.mulf %397, %398 : vector<32x256xbf16>
    %c672_387 = arith.constant 672 : index
    %c0_388 = arith.constant 0 : index
    %400 = vector.load %arg7[%c672_387, %c0_388] : memref<800x256xbf16, #tpu.memory_space<vmem>>, vector<32x256xbf16>
    tpu.vector_store %arg7[%c672_387, %c0_388], %399 {strides = array<i32>} : memref<800x256xbf16, #tpu.memory_space<vmem>>, vector<32x256xbf16>,
    %c0_389 = arith.constant 0 : index
    %c160_390 = arith.constant 160 : index
    %401 = vector.load %arg6[%c0_389, %c160_390] : memref<32x512xbf16, #tpu.memory_space<vmem>>, vector<32x256xbf16>
    %c704_391 = arith.constant 704 : index
    %c0_392 = arith.constant 0 : index
    %402 = vector.load %arg7[%c704_391, %c0_392] : memref<800x256xbf16, #tpu.memory_space<vmem>>, vector<32x256xbf16>
    tpu.vector_store %arg7[%c704_391, %c0_392], %401 {strides = array<i32>} : memref<800x256xbf16, #tpu.memory_space<vmem>>, vector<32x256xbf16>,
    %c0_393 = arith.constant 0 : index
    %c161_394 = arith.constant 161 : index
    %403 = vector.load %arg6[%c0_393, %c161_394] : memref<32x512xbf16, #tpu.memory_space<vmem>>, vector<32x256xbf16>
    %404 = vector.broadcast %7 : vector<1x256xbf16> to vector<32x256xbf16>
    %405 = arith.mulf %403, %404 : vector<32x256xbf16>
    %c736_395 = arith.constant 736 : index
    %c0_396 = arith.constant 0 : index
    %406 = vector.load %arg7[%c736_395, %c0_396] : memref<800x256xbf16, #tpu.memory_space<vmem>>, vector<32x256xbf16>
    tpu.vector_store %arg7[%c736_395, %c0_396], %405 {strides = array<i32>} : memref<800x256xbf16, #tpu.memory_space<vmem>>, vector<32x256xbf16>,
    %c0_397 = arith.constant 0 : index
    %c162_398 = arith.constant 162 : index
    %407 = vector.load %arg6[%c0_397, %c162_398] : memref<32x512xbf16, #tpu.memory_space<vmem>>, vector<32x256xbf16>
    %408 = vector.broadcast %8 : vector<1x256xbf16> to vector<32x256xbf16>
    %409 = arith.mulf %407, %408 : vector<32x256xbf16>
    %c768_399 = arith.constant 768 : index
    %c0_400 = arith.constant 0 : index
    %410 = vector.load %arg7[%c768_399, %c0_400] : memref<800x256xbf16, #tpu.memory_space<vmem>>, vector<32x256xbf16>
    tpu.vector_store %arg7[%c768_399, %c0_400], %409 {strides = array<i32>} : memref<800x256xbf16, #tpu.memory_space<vmem>>, vector<32x256xbf16>,
    %c0_401 = arith.constant 0 : index
    %c0_402 = arith.constant 0 : index
    %411 = vector.load %arg7[%c0_401, %c0_402] : memref<800x256xbf16, #tpu.memory_space<vmem>>, vector<800x256xbf16>
    %cst_403 = arith.constant dense<0.000000e+00> : vector<32x256xf32>
    %412 = tpu.matmul %320, %411, %cst_403 {dimension_numbers = #tpu.dot_dimension_numbers<[1], [0], [0], [1], [0, 0, 1, 1], [], []>} : vector<32x800xbf16>, vector<800x256xbf16>, vector<32x256xf32> -> vector<32x256xf32>
    %c3_404 = arith.constant 3 : index
    %c0_405 = arith.constant 0 : index
    %c0_406 = arith.constant 0 : index
    %413 = vector.load %arg4[%c3_404, %c0_405, %c0_406] : memref<5x32x1xf32, #tpu.memory_space<vmem>>, vector<1x32x1xf32>
    %414 = vector.shape_cast %413 : vector<1x32x1xf32> to vector<32x1xf32>
    %415 = vector.broadcast %414 : vector<32x1xf32> to vector<32x256xf32>
    %416 = arith.addf %412, %415 : vector<32x256xf32>
    %cst_407 = arith.constant 0.000000e+00 : f32
    %417 = vector.broadcast %cst_407 : f32 to vector<32x256xf32>
    %418 = arith.maximumf %416, %417 : vector<32x256xf32>
    %419 = arith.truncf %418 : vector<32x256xf32> to vector<32x256xbf16>
    %c0_408 = arith.constant 0 : index
    %c128_409 = arith.constant 128 : index
    %420 = vector.load %arg6[%c0_408, %c128_409] : memref<32x512xbf16, #tpu.memory_space<vmem>>, vector<32x256xbf16>
    tpu.vector_store %arg6[%c0_408, %c128_409], %419 {strides = array<i32>} : memref<32x512xbf16, #tpu.memory_space<vmem>>, vector<32x256xbf16>,
    %c4 = arith.constant 4 : index
    %c0_410 = arith.constant 0 : index
    %c0_411 = arith.constant 0 : index
    %421 = vector.load %arg3[%c4, %c0_410, %c0_411] : memref<5x32x800xbf16, #tpu.memory_space<vmem>>, vector<1x32x800xbf16>
    %422 = vector.shape_cast %421 : vector<1x32x800xbf16> to vector<32x800xbf16>
    %c0_412 = arith.constant 0 : index
    %c94_413 = arith.constant 94 : index
    %423 = vector.load %arg6[%c0_412, %c94_413] : memref<32x512xbf16, #tpu.memory_space<vmem>>, vector<32x256xbf16>
    %424 = vector.broadcast %5 : vector<1x256xbf16> to vector<32x256xbf16>
    %425 = arith.mulf %423, %424 : vector<32x256xbf16>
    %c0_414 = arith.constant 0 : index
    %c0_415 = arith.constant 0 : index
    %426 = vector.load %arg7[%c0_414, %c0_415] : memref<800x256xbf16, #tpu.memory_space<vmem>>, vector<32x256xbf16>
    tpu.vector_store %arg7[%c0_414, %c0_415], %425 {strides = array<i32>} : memref<800x256xbf16, #tpu.memory_space<vmem>>, vector<32x256xbf16>,
    %c0_416 = arith.constant 0 : index
    %c95_417 = arith.constant 95 : index
    %427 = vector.load %arg6[%c0_416, %c95_417] : memref<32x512xbf16, #tpu.memory_space<vmem>>, vector<32x256xbf16>
    %428 = vector.broadcast %6 : vector<1x256xbf16> to vector<32x256xbf16>
    %429 = arith.mulf %427, %428 : vector<32x256xbf16>
    %c32_418 = arith.constant 32 : index
    %c0_419 = arith.constant 0 : index
    %430 = vector.load %arg7[%c32_418, %c0_419] : memref<800x256xbf16, #tpu.memory_space<vmem>>, vector<32x256xbf16>
    tpu.vector_store %arg7[%c32_418, %c0_419], %429 {strides = array<i32>} : memref<800x256xbf16, #tpu.memory_space<vmem>>, vector<32x256xbf16>,
    %c0_420 = arith.constant 0 : index
    %c96_421 = arith.constant 96 : index
    %431 = vector.load %arg6[%c0_420, %c96_421] : memref<32x512xbf16, #tpu.memory_space<vmem>>, vector<32x256xbf16>
    %c64_422 = arith.constant 64 : index
    %c0_423 = arith.constant 0 : index
    %432 = vector.load %arg7[%c64_422, %c0_423] : memref<800x256xbf16, #tpu.memory_space<vmem>>, vector<32x256xbf16>
    tpu.vector_store %arg7[%c64_422, %c0_423], %431 {strides = array<i32>} : memref<800x256xbf16, #tpu.memory_space<vmem>>, vector<32x256xbf16>,
    %c0_424 = arith.constant 0 : index
    %c97_425 = arith.constant 97 : index
    %433 = vector.load %arg6[%c0_424, %c97_425] : memref<32x512xbf16, #tpu.memory_space<vmem>>, vector<32x256xbf16>
    %434 = vector.broadcast %7 : vector<1x256xbf16> to vector<32x256xbf16>
    %435 = arith.mulf %433, %434 : vector<32x256xbf16>
    %c96_426 = arith.constant 96 : index
    %c0_427 = arith.constant 0 : index
    %436 = vector.load %arg7[%c96_426, %c0_427] : memref<800x256xbf16, #tpu.memory_space<vmem>>, vector<32x256xbf16>
    tpu.vector_store %arg7[%c96_426, %c0_427], %435 {strides = array<i32>} : memref<800x256xbf16, #tpu.memory_space<vmem>>, vector<32x256xbf16>,
    %c0_428 = arith.constant 0 : index
    %c98_429 = arith.constant 98 : index
    %437 = vector.load %arg6[%c0_428, %c98_429] : memref<32x512xbf16, #tpu.memory_space<vmem>>, vector<32x256xbf16>
    %438 = vector.broadcast %8 : vector<1x256xbf16> to vector<32x256xbf16>
    %439 = arith.mulf %437, %438 : vector<32x256xbf16>
    %c128_430 = arith.constant 128 : index
    %c0_431 = arith.constant 0 : index
    %440 = vector.load %arg7[%c128_430, %c0_431] : memref<800x256xbf16, #tpu.memory_space<vmem>>, vector<32x256xbf16>
    tpu.vector_store %arg7[%c128_430, %c0_431], %439 {strides = array<i32>} : memref<800x256xbf16, #tpu.memory_space<vmem>>, vector<32x256xbf16>,
    %c0_432 = arith.constant 0 : index
    %c110_433 = arith.constant 110 : index
    %441 = vector.load %arg6[%c0_432, %c110_433] : memref<32x512xbf16, #tpu.memory_space<vmem>>, vector<32x256xbf16>
    %442 = vector.broadcast %5 : vector<1x256xbf16> to vector<32x256xbf16>
    %443 = arith.mulf %441, %442 : vector<32x256xbf16>
    %c160_434 = arith.constant 160 : index
    %c0_435 = arith.constant 0 : index
    %444 = vector.load %arg7[%c160_434, %c0_435] : memref<800x256xbf16, #tpu.memory_space<vmem>>, vector<32x256xbf16>
    tpu.vector_store %arg7[%c160_434, %c0_435], %443 {strides = array<i32>} : memref<800x256xbf16, #tpu.memory_space<vmem>>, vector<32x256xbf16>,
    %c0_436 = arith.constant 0 : index
    %c111_437 = arith.constant 111 : index
    %445 = vector.load %arg6[%c0_436, %c111_437] : memref<32x512xbf16, #tpu.memory_space<vmem>>, vector<32x256xbf16>
    %446 = vector.broadcast %6 : vector<1x256xbf16> to vector<32x256xbf16>
    %447 = arith.mulf %445, %446 : vector<32x256xbf16>
    %c192_438 = arith.constant 192 : index
    %c0_439 = arith.constant 0 : index
    %448 = vector.load %arg7[%c192_438, %c0_439] : memref<800x256xbf16, #tpu.memory_space<vmem>>, vector<32x256xbf16>
    tpu.vector_store %arg7[%c192_438, %c0_439], %447 {strides = array<i32>} : memref<800x256xbf16, #tpu.memory_space<vmem>>, vector<32x256xbf16>,
    %c0_440 = arith.constant 0 : index
    %c112_441 = arith.constant 112 : index
    %449 = vector.load %arg6[%c0_440, %c112_441] : memref<32x512xbf16, #tpu.memory_space<vmem>>, vector<32x256xbf16>
    %c224_442 = arith.constant 224 : index
    %c0_443 = arith.constant 0 : index
    %450 = vector.load %arg7[%c224_442, %c0_443] : memref<800x256xbf16, #tpu.memory_space<vmem>>, vector<32x256xbf16>
    tpu.vector_store %arg7[%c224_442, %c0_443], %449 {strides = array<i32>} : memref<800x256xbf16, #tpu.memory_space<vmem>>, vector<32x256xbf16>,
    %c0_444 = arith.constant 0 : index
    %c113_445 = arith.constant 113 : index
    %451 = vector.load %arg6[%c0_444, %c113_445] : memref<32x512xbf16, #tpu.memory_space<vmem>>, vector<32x256xbf16>
    %452 = vector.broadcast %7 : vector<1x256xbf16> to vector<32x256xbf16>
    %453 = arith.mulf %451, %452 : vector<32x256xbf16>
    %c256_446 = arith.constant 256 : index
    %c0_447 = arith.constant 0 : index
    %454 = vector.load %arg7[%c256_446, %c0_447] : memref<800x256xbf16, #tpu.memory_space<vmem>>, vector<32x256xbf16>
    tpu.vector_store %arg7[%c256_446, %c0_447], %453 {strides = array<i32>} : memref<800x256xbf16, #tpu.memory_space<vmem>>, vector<32x256xbf16>,
    %c0_448 = arith.constant 0 : index
    %c114_449 = arith.constant 114 : index
    %455 = vector.load %arg6[%c0_448, %c114_449] : memref<32x512xbf16, #tpu.memory_space<vmem>>, vector<32x256xbf16>
    %456 = vector.broadcast %8 : vector<1x256xbf16> to vector<32x256xbf16>
    %457 = arith.mulf %455, %456 : vector<32x256xbf16>
    %c288_450 = arith.constant 288 : index
    %c0_451 = arith.constant 0 : index
    %458 = vector.load %arg7[%c288_450, %c0_451] : memref<800x256xbf16, #tpu.memory_space<vmem>>, vector<32x256xbf16>
    tpu.vector_store %arg7[%c288_450, %c0_451], %457 {strides = array<i32>} : memref<800x256xbf16, #tpu.memory_space<vmem>>, vector<32x256xbf16>,
    %c0_452 = arith.constant 0 : index
    %c126_453 = arith.constant 126 : index
    %459 = vector.load %arg6[%c0_452, %c126_453] : memref<32x512xbf16, #tpu.memory_space<vmem>>, vector<32x256xbf16>
    %460 = vector.broadcast %5 : vector<1x256xbf16> to vector<32x256xbf16>
    %461 = arith.mulf %459, %460 : vector<32x256xbf16>
    %c320_454 = arith.constant 320 : index
    %c0_455 = arith.constant 0 : index
    %462 = vector.load %arg7[%c320_454, %c0_455] : memref<800x256xbf16, #tpu.memory_space<vmem>>, vector<32x256xbf16>
    tpu.vector_store %arg7[%c320_454, %c0_455], %461 {strides = array<i32>} : memref<800x256xbf16, #tpu.memory_space<vmem>>, vector<32x256xbf16>,
    %c0_456 = arith.constant 0 : index
    %c127_457 = arith.constant 127 : index
    %463 = vector.load %arg6[%c0_456, %c127_457] : memref<32x512xbf16, #tpu.memory_space<vmem>>, vector<32x256xbf16>
    %464 = vector.broadcast %6 : vector<1x256xbf16> to vector<32x256xbf16>
    %465 = arith.mulf %463, %464 : vector<32x256xbf16>
    %c352_458 = arith.constant 352 : index
    %c0_459 = arith.constant 0 : index
    %466 = vector.load %arg7[%c352_458, %c0_459] : memref<800x256xbf16, #tpu.memory_space<vmem>>, vector<32x256xbf16>
    tpu.vector_store %arg7[%c352_458, %c0_459], %465 {strides = array<i32>} : memref<800x256xbf16, #tpu.memory_space<vmem>>, vector<32x256xbf16>,
    %c0_460 = arith.constant 0 : index
    %c128_461 = arith.constant 128 : index
    %467 = vector.load %arg6[%c0_460, %c128_461] : memref<32x512xbf16, #tpu.memory_space<vmem>>, vector<32x256xbf16>
    %c384_462 = arith.constant 384 : index
    %c0_463 = arith.constant 0 : index
    %468 = vector.load %arg7[%c384_462, %c0_463] : memref<800x256xbf16, #tpu.memory_space<vmem>>, vector<32x256xbf16>
    tpu.vector_store %arg7[%c384_462, %c0_463], %467 {strides = array<i32>} : memref<800x256xbf16, #tpu.memory_space<vmem>>, vector<32x256xbf16>,
    %c0_464 = arith.constant 0 : index
    %c129_465 = arith.constant 129 : index
    %469 = vector.load %arg6[%c0_464, %c129_465] : memref<32x512xbf16, #tpu.memory_space<vmem>>, vector<32x256xbf16>
    %470 = vector.broadcast %7 : vector<1x256xbf16> to vector<32x256xbf16>
    %471 = arith.mulf %469, %470 : vector<32x256xbf16>
    %c416_466 = arith.constant 416 : index
    %c0_467 = arith.constant 0 : index
    %472 = vector.load %arg7[%c416_466, %c0_467] : memref<800x256xbf16, #tpu.memory_space<vmem>>, vector<32x256xbf16>
    tpu.vector_store %arg7[%c416_466, %c0_467], %471 {strides = array<i32>} : memref<800x256xbf16, #tpu.memory_space<vmem>>, vector<32x256xbf16>,
    %c0_468 = arith.constant 0 : index
    %c130_469 = arith.constant 130 : index
    %473 = vector.load %arg6[%c0_468, %c130_469] : memref<32x512xbf16, #tpu.memory_space<vmem>>, vector<32x256xbf16>
    %474 = vector.broadcast %8 : vector<1x256xbf16> to vector<32x256xbf16>
    %475 = arith.mulf %473, %474 : vector<32x256xbf16>
    %c448_470 = arith.constant 448 : index
    %c0_471 = arith.constant 0 : index
    %476 = vector.load %arg7[%c448_470, %c0_471] : memref<800x256xbf16, #tpu.memory_space<vmem>>, vector<32x256xbf16>
    tpu.vector_store %arg7[%c448_470, %c0_471], %475 {strides = array<i32>} : memref<800x256xbf16, #tpu.memory_space<vmem>>, vector<32x256xbf16>,
    %c0_472 = arith.constant 0 : index
    %c142_473 = arith.constant 142 : index
    %477 = vector.load %arg6[%c0_472, %c142_473] : memref<32x512xbf16, #tpu.memory_space<vmem>>, vector<32x256xbf16>
    %478 = vector.broadcast %5 : vector<1x256xbf16> to vector<32x256xbf16>
    %479 = arith.mulf %477, %478 : vector<32x256xbf16>
    %c480_474 = arith.constant 480 : index
    %c0_475 = arith.constant 0 : index
    %480 = vector.load %arg7[%c480_474, %c0_475] : memref<800x256xbf16, #tpu.memory_space<vmem>>, vector<32x256xbf16>
    tpu.vector_store %arg7[%c480_474, %c0_475], %479 {strides = array<i32>} : memref<800x256xbf16, #tpu.memory_space<vmem>>, vector<32x256xbf16>,
    %c0_476 = arith.constant 0 : index
    %c143_477 = arith.constant 143 : index
    %481 = vector.load %arg6[%c0_476, %c143_477] : memref<32x512xbf16, #tpu.memory_space<vmem>>, vector<32x256xbf16>
    %482 = vector.broadcast %6 : vector<1x256xbf16> to vector<32x256xbf16>
    %483 = arith.mulf %481, %482 : vector<32x256xbf16>
    %c512_478 = arith.constant 512 : index
    %c0_479 = arith.constant 0 : index
    %484 = vector.load %arg7[%c512_478, %c0_479] : memref<800x256xbf16, #tpu.memory_space<vmem>>, vector<32x256xbf16>
    tpu.vector_store %arg7[%c512_478, %c0_479], %483 {strides = array<i32>} : memref<800x256xbf16, #tpu.memory_space<vmem>>, vector<32x256xbf16>,
    %c0_480 = arith.constant 0 : index
    %c144_481 = arith.constant 144 : index
    %485 = vector.load %arg6[%c0_480, %c144_481] : memref<32x512xbf16, #tpu.memory_space<vmem>>, vector<32x256xbf16>
    %c544_482 = arith.constant 544 : index
    %c0_483 = arith.constant 0 : index
    %486 = vector.load %arg7[%c544_482, %c0_483] : memref<800x256xbf16, #tpu.memory_space<vmem>>, vector<32x256xbf16>
    tpu.vector_store %arg7[%c544_482, %c0_483], %485 {strides = array<i32>} : memref<800x256xbf16, #tpu.memory_space<vmem>>, vector<32x256xbf16>,
    %c0_484 = arith.constant 0 : index
    %c145_485 = arith.constant 145 : index
    %487 = vector.load %arg6[%c0_484, %c145_485] : memref<32x512xbf16, #tpu.memory_space<vmem>>, vector<32x256xbf16>
    %488 = vector.broadcast %7 : vector<1x256xbf16> to vector<32x256xbf16>
    %489 = arith.mulf %487, %488 : vector<32x256xbf16>
    %c576_486 = arith.constant 576 : index
    %c0_487 = arith.constant 0 : index
    %490 = vector.load %arg7[%c576_486, %c0_487] : memref<800x256xbf16, #tpu.memory_space<vmem>>, vector<32x256xbf16>
    tpu.vector_store %arg7[%c576_486, %c0_487], %489 {strides = array<i32>} : memref<800x256xbf16, #tpu.memory_space<vmem>>, vector<32x256xbf16>,
    %c0_488 = arith.constant 0 : index
    %c146_489 = arith.constant 146 : index
    %491 = vector.load %arg6[%c0_488, %c146_489] : memref<32x512xbf16, #tpu.memory_space<vmem>>, vector<32x256xbf16>
    %492 = vector.broadcast %8 : vector<1x256xbf16> to vector<32x256xbf16>
    %493 = arith.mulf %491, %492 : vector<32x256xbf16>
    %c608_490 = arith.constant 608 : index
    %c0_491 = arith.constant 0 : index
    %494 = vector.load %arg7[%c608_490, %c0_491] : memref<800x256xbf16, #tpu.memory_space<vmem>>, vector<32x256xbf16>
    tpu.vector_store %arg7[%c608_490, %c0_491], %493 {strides = array<i32>} : memref<800x256xbf16, #tpu.memory_space<vmem>>, vector<32x256xbf16>,
    %c0_492 = arith.constant 0 : index
    %c158_493 = arith.constant 158 : index
    %495 = vector.load %arg6[%c0_492, %c158_493] : memref<32x512xbf16, #tpu.memory_space<vmem>>, vector<32x256xbf16>
    %496 = vector.broadcast %5 : vector<1x256xbf16> to vector<32x256xbf16>
    %497 = arith.mulf %495, %496 : vector<32x256xbf16>
    %c640_494 = arith.constant 640 : index
    %c0_495 = arith.constant 0 : index
    %498 = vector.load %arg7[%c640_494, %c0_495] : memref<800x256xbf16, #tpu.memory_space<vmem>>, vector<32x256xbf16>
    tpu.vector_store %arg7[%c640_494, %c0_495], %497 {strides = array<i32>} : memref<800x256xbf16, #tpu.memory_space<vmem>>, vector<32x256xbf16>,
    %c0_496 = arith.constant 0 : index
    %c159_497 = arith.constant 159 : index
    %499 = vector.load %arg6[%c0_496, %c159_497] : memref<32x512xbf16, #tpu.memory_space<vmem>>, vector<32x256xbf16>
    %500 = vector.broadcast %6 : vector<1x256xbf16> to vector<32x256xbf16>
    %501 = arith.mulf %499, %500 : vector<32x256xbf16>
    %c672_498 = arith.constant 672 : index
    %c0_499 = arith.constant 0 : index
    %502 = vector.load %arg7[%c672_498, %c0_499] : memref<800x256xbf16, #tpu.memory_space<vmem>>, vector<32x256xbf16>
    tpu.vector_store %arg7[%c672_498, %c0_499], %501 {strides = array<i32>} : memref<800x256xbf16, #tpu.memory_space<vmem>>, vector<32x256xbf16>,
    %c0_500 = arith.constant 0 : index
    %c160_501 = arith.constant 160 : index
    %503 = vector.load %arg6[%c0_500, %c160_501] : memref<32x512xbf16, #tpu.memory_space<vmem>>, vector<32x256xbf16>
    %c704_502 = arith.constant 704 : index
    %c0_503 = arith.constant 0 : index
    %504 = vector.load %arg7[%c704_502, %c0_503] : memref<800x256xbf16, #tpu.memory_space<vmem>>, vector<32x256xbf16>
    tpu.vector_store %arg7[%c704_502, %c0_503], %503 {strides = array<i32>} : memref<800x256xbf16, #tpu.memory_space<vmem>>, vector<32x256xbf16>,
    %c0_504 = arith.constant 0 : index
    %c161_505 = arith.constant 161 : index
    %505 = vector.load %arg6[%c0_504, %c161_505] : memref<32x512xbf16, #tpu.memory_space<vmem>>, vector<32x256xbf16>
    %506 = vector.broadcast %7 : vector<1x256xbf16> to vector<32x256xbf16>
    %507 = arith.mulf %505, %506 : vector<32x256xbf16>
    %c736_506 = arith.constant 736 : index
    %c0_507 = arith.constant 0 : index
    %508 = vector.load %arg7[%c736_506, %c0_507] : memref<800x256xbf16, #tpu.memory_space<vmem>>, vector<32x256xbf16>
    tpu.vector_store %arg7[%c736_506, %c0_507], %507 {strides = array<i32>} : memref<800x256xbf16, #tpu.memory_space<vmem>>, vector<32x256xbf16>,
    %c0_508 = arith.constant 0 : index
    %c162_509 = arith.constant 162 : index
    %509 = vector.load %arg6[%c0_508, %c162_509] : memref<32x512xbf16, #tpu.memory_space<vmem>>, vector<32x256xbf16>
    %510 = vector.broadcast %8 : vector<1x256xbf16> to vector<32x256xbf16>
    %511 = arith.mulf %509, %510 : vector<32x256xbf16>
    %c768_510 = arith.constant 768 : index
    %c0_511 = arith.constant 0 : index
    %512 = vector.load %arg7[%c768_510, %c0_511] : memref<800x256xbf16, #tpu.memory_space<vmem>>, vector<32x256xbf16>
    tpu.vector_store %arg7[%c768_510, %c0_511], %511 {strides = array<i32>} : memref<800x256xbf16, #tpu.memory_space<vmem>>, vector<32x256xbf16>,
    %c0_512 = arith.constant 0 : index
    %c0_513 = arith.constant 0 : index
    %513 = vector.load %arg7[%c0_512, %c0_513] : memref<800x256xbf16, #tpu.memory_space<vmem>>, vector<800x256xbf16>
    %cst_514 = arith.constant dense<0.000000e+00> : vector<32x256xf32>
    %514 = tpu.matmul %422, %513, %cst_514 {dimension_numbers = #tpu.dot_dimension_numbers<[1], [0], [0], [1], [0, 0, 1, 1], [], []>} : vector<32x800xbf16>, vector<800x256xbf16>, vector<32x256xf32> -> vector<32x256xf32>
    %c4_515 = arith.constant 4 : index
    %c0_516 = arith.constant 0 : index
    %c0_517 = arith.constant 0 : index
    %515 = vector.load %arg4[%c4_515, %c0_516, %c0_517] : memref<5x32x1xf32, #tpu.memory_space<vmem>>, vector<1x32x1xf32>
    %516 = vector.shape_cast %515 : vector<1x32x1xf32> to vector<32x1xf32>
    %517 = vector.broadcast %516 : vector<32x1xf32> to vector<32x256xf32>
    %518 = arith.addf %514, %517 : vector<32x256xf32>
    %c0_518 = arith.constant 0 : index
    %c0_519 = arith.constant 0 : index
    %c0_520 = arith.constant 0 : index
    %519 = vector.load %arg5[%c0_518, %c0_519, %c0_520] : memref<1x32x256xf32, #tpu.memory_space<vmem>>, vector<1x32x256xf32>
    %520 = vector.shape_cast %519 : vector<1x32x256xf32> to vector<32x256xf32>
    %521 = vector.shape_cast %518 : vector<32x256xf32> to vector<1x32x256xf32>
    tpu.vector_store %arg5[%c0_518, %c0_519, %c0_520], %521 {strides = array<i32>} : memref<1x32x256xf32, #tpu.memory_space<vmem>>, vector<1x32x256xf32>,
    return
  }
  func.func @transform_0(%arg0: i32) -> (i32, i32, i32) {
    %c0_i32 = arith.constant 0 : i32
    %c0_i32_0 = arith.constant 0 : i32
    %c0_i32_1 = arith.constant 0 : i32
    return %arg0, %c0_i32, %c0_i32_0 : i32, i32, i32
  }
  func.func @transform_1(%arg0: i32) -> (i32, i32) {
    %c0_i32 = arith.constant 0 : i32
    %c0_i32_0 = arith.constant 0 : i32
    %c0_i32_1 = arith.constant 0 : i32
    return %c0_i32, %c0_i32_0 : i32, i32
  }
  func.func @transform_2(%arg0: i32) -> (i32, i32, i32) {
    %c0_i32 = arith.constant 0 : i32
    %c0_i32_0 = arith.constant 0 : i32
    %c0_i32_1 = arith.constant 0 : i32
    %c0_i32_2 = arith.constant 0 : i32
    return %c0_i32, %c0_i32_0, %c0_i32_1 : i32, i32, i32
  }
  func.func @transform_3(%arg0: i32) -> (i32, i32, i32) {
    %c0_i32 = arith.constant 0 : i32
    %c0_i32_0 = arith.constant 0 : i32
    %c0_i32_1 = arith.constant 0 : i32
    %c0_i32_2 = arith.constant 0 : i32
    return %c0_i32, %c0_i32_0, %c0_i32_1 : i32, i32, i32
  }
  func.func @transform_4(%arg0: i32) -> (i32, i32, i32) {
    %c0_i32 = arith.constant 0 : i32
    %c0_i32_0 = arith.constant 0 : i32
    %c0_i32_1 = arith.constant 0 : i32
    return %arg0, %c0_i32, %c0_i32_0 : i32, i32, i32
  }
}

</mosaic_0001>

<llo_original>
// kernel: tpu_custom_call.1
$region0: #{tpu_custom_call.1}
  #allocation0 [shape = 'u32[]', space=smem, size = 0x4, offset = 0x4, fixed_abs, tag = 'smem constant byte address 0x4 - core index']
  #allocation1 [shape = 'u32[144,128]{1,0:T(1,128)}', space=vmem, size = 0x12000, scoped, tag = 'internal scratch']
  #allocation2 [shape = 'bf16[32,512]{1,0:T(16,128)(2,1)}', space=vmem, size = 0x8000, scoped, tag = 'scratch operand']
  #allocation3 [shape = 'bf16[800,256]{1,0:T(16,128)(2,1)}', space=vmem, size = 0x64000, scoped, tag = 'scratch operand']
  %s0 = inlined_call_operand.vmem [shape: f32[2,32,256], index: 0, kind: input, shape index: {}]
  %s1 = inlined_call_operand.vmem [shape: bf16[5,256], index: 1, kind: input, shape index: {}]
  %s2 = inlined_call_operand.hbm [shape: bf16[5,32,800], index: 2, kind: input, shape index: {}]
  %s3 = inlined_call_operand.vmem [shape: f32[5,32,1], index: 3, kind: input, shape index: {}]
  %s4 = inlined_call_operand.hbm [shape: f32[2,32,256], index: 4, kind: output, shape index: {}]
  %s5 = sld [smem:[#allocation0]]
  $region53: #{tpu_custom_call.1} parent=0
    _
  %s7 = ssub.s32 1, %s5
  %s8 = scalar_select 0, %s7, %s5
  $region1: #{tpu_custom_call.1} parent=0
    #allocation4 [shape = 'u8[286720]{0}', space=vmem, size = 0x46000, scoped, tag = 'input window, operand 2, single buffered']
    #allocation5 [shape = 's32[2]{0}', space=sflag, size = 0x8, scoped, tag = 'scoped memory for tpu_custom_call.1']
    #allocation6 [shape = 's32[2]{0}', space=sflag, size = 0x8, scoped, tag = 'scoped memory for tpu_custom_call.1']
    #allocation7 [shape = 'u8[65536]{0}', space=vmem, size = 0x10000, scoped, tag = 'output window, operand 0']
    %9 = vsyncpa [#allocation5], 0
    %10 = vsyncpa [#allocation6], 0
    %s11 = scalar_lea.sflag [#allocation6], 1
    %12 = vsyncpa %s11, 0
    loop: start=0, step=1, limit=4
    $region2: #{tpu_custom_call.1} parent=1 // loop_pre_header
      _
    $region3: #{tpu_custom_call.1} parent=1 // loop_header
      %s14 = sphi 0, %s18
      %p15 = scmp.ge.s32.totalorder %s14, 4
      %s24 = sphi 0, %s26
      %s27 = sphi 0, %s24
      %s28 = sphi 0, %s27
      %s44 = sphi 0, %s28
      %s48 = sphi 0, %s48
      %s50 = sphi 0, %s48
      %s51 = sphi 0, %s50
      %s65 = sphi 0, %s51
      %s69 = sphi 0, %s69
      %s71 = sphi 0, %s69
      %s72 = sphi 0, %s71
      %s86 = sphi 0, %s72
      %s90 = sphi 0, %s90
      %s92 = sphi 0, %s90
      %s93 = sphi 0, %s92
      %s107 = sphi 0, %s93
      %s113 = sphi 0, %s115
      %s116 = sphi 0, %s113
      %s117 = sphi 0, %s116
      %s133 = sphi 0, %s117
    $region4: #{tpu_custom_call.1} parent=1 // loop_header_branch
      %17 = sbr.rel (%p15) target = $region8
    $region5: #{tpu_custom_call.1} parent=1 // loop_body
      %s19 = ssub.s32 %s14, 1
      %s20 = ssub.s32 %s14, 2
      %s21 = sadd.s32 %s14, 1
      %s22 = ssub.s32 %s14, %s21
      %p23 = scmp.eq.s32.totalorder %s22, 0
      %s25 = sadd.s32 %s24, 1
      %s26 = scalar_select %p23, %s24, %s25
      %p29 = pneg %p23
      %p30 = scmp.eq.s32.totalorder %s14, 1
      %p31 = por %p29, %p30
      %p32 = scmp.ne.s32.totalorder %s24, %s27
      %p33 = scmp.eq.s32.totalorder %s14, 0
      %p34 = por %p32, %p33
      %p35 = scmp.ne.s32.totalorder %s24, %s27
      %p36 = scmp.eq.s32.totalorder %s19, 1
      %p37 = por %p35, %p36
      %p38 = scmp.ne.s32.totalorder %s27, %s28
      %p39 = scmp.eq.s32.totalorder %s19, 0
      %p40 = por %p38, %p39
      %p41 = scmp.ne.s32.totalorder %s27, %s28
      %p42 = scmp.eq.s32.totalorder %s20, 1
      %p43 = por %p41, %p42
      %p45 = scmp.ne.s32.totalorder %s28, %s44
      %p46 = scmp.eq.s32.totalorder %s20, 0
      %p47 = por %p45, %p46
      %s49 = sadd.s32 %s48, 1
      %p52 = scmp.eq.s32.totalorder %s14, 1
      %p53 = scmp.ne.s32.totalorder %s48, %s50
      %p54 = scmp.eq.s32.totalorder %s14, 0
      %p55 = por %p53, %p54
      %p56 = scmp.ne.s32.totalorder %s48, %s50
      %p57 = scmp.eq.s32.totalorder %s19, 1
      %p58 = por %p56, %p57
      %p59 = scmp.ne.s32.totalorder %s50, %s51
      %p60 = scmp.eq.s32.totalorder %s19, 0
      %p61 = por %p59, %p60
      %p62 = scmp.ne.s32.totalorder %s50, %s51
      %p63 = scmp.eq.s32.totalorder %s20, 1
      %p64 = por %p62, %p63
      %p66 = scmp.ne.s32.totalorder %s51, %s65
      %p67 = scmp.eq.s32.totalorder %s20, 0
      %p68 = por %p66, %p67
      %s70 = sadd.s32 %s69, 1
      %p73 = scmp.eq.s32.totalorder %s14, 1
      %p74 = scmp.ne.s32.totalorder %s69, %s71
      %p75 = scmp.eq.s32.totalorder %s14, 0
      %p76 = por %p74, %p75
      %p77 = scmp.ne.s32.totalorder %s69, %s71
      %p78 = scmp.eq.s32.totalorder %s19, 1
      %p79 = por %p77, %p78
      %p80 = scmp.ne.s32.totalorder %s71, %s72
      %p81 = scmp.eq.s32.totalorder %s19, 0
      %p82 = por %p80, %p81
      %p83 = scmp.ne.s32.totalorder %s71, %s72
      %p84 = scmp.eq.s32.totalorder %s20, 1
      %p85 = por %p83, %p84
      %p87 = scmp.ne.s32.totalorder %s72, %s86
      %p88 = scmp.eq.s32.totalorder %s20, 0
      %p89 = por %p87, %p88
      %s91 = sadd.s32 %s90, 1
      %p94 = scmp.eq.s32.totalorder %s14, 1
      %p95 = scmp.ne.s32.totalorder %s90, %s92
      %p96 = scmp.eq.s32.totalorder %s14, 0
      %p97 = por %p95, %p96
      %p98 = scmp.ne.s32.totalorder %s90, %s92
      %p99 = scmp.eq.s32.totalorder %s19, 1
      %p100 = por %p98, %p99
      %p101 = scmp.ne.s32.totalorder %s92, %s93
      %p102 = scmp.eq.s32.totalorder %s19, 0
      %p103 = por %p101, %p102
      %p104 = scmp.ne.s32.totalorder %s92, %s93
      %p105 = scmp.eq.s32.totalorder %s20, 1
      %p106 = por %p104, %p105
      %p108 = scmp.ne.s32.totalorder %s93, %s107
      %p109 = scmp.eq.s32.totalorder %s20, 0
      %p110 = por %p108, %p109
      %s111 = ssub.s32 %s14, %s21
      %p112 = scmp.eq.s32.totalorder %s111, 0
      %s114 = sadd.s32 %s113, 1
      %s115 = scalar_select %p112, %s113, %s114
      %p118 = pneg %p112
      %p119 = scmp.eq.s32.totalorder %s14, 1
      %p120 = por %p118, %p119
      %p121 = scmp.ne.s32.totalorder %s113, %s116
      %p122 = scmp.eq.s32.totalorder %s14, 0
      %p123 = por %p121, %p122
      %p124 = scmp.ne.s32.totalorder %s113, %s116
      %p125 = scmp.eq.s32.totalorder %s19, 1
      %p126 = por %p124, %p125
      %p127 = scmp.ne.s32.totalorder %s116, %s117
      %p128 = scmp.eq.s32.totalorder %s19, 0
      %p129 = por %p127, %p128
      %p130 = scmp.ne.s32.totalorder %s116, %s117
      %p131 = scmp.eq.s32.totalorder %s20, 1
      %p132 = por %p130, %p131
      %p134 = scmp.ne.s32.totalorder %s117, %s133
      %p135 = scmp.eq.s32.totalorder %s20, 0
      %p136 = por %p134, %p135
      %p137 = scmp.le.s32.totalorder 1, %s14
      %p138 = scmp.lt.s32.totalorder %s14, 3
      %p139 = pnand %p137, %p138
      %p140 = pneg %p139
      // Predicated region
      $region9: #{tpu_custom_call.1} parent=5 // pred_check
        _
      $region10: #{tpu_custom_call.1} parent=5 // pred_check_branch
        %142 = sbr.rel (%p139) target = $region12
      $region11: #{tpu_custom_call.1} parent=5 // pred_region
        %s143 = ssub.s32 %s14, 1
        // Predicated region
        $region13: #{tpu_custom_call.1} parent=11 // pred_check
          %p144 = pneg %p61
        $region14: #{tpu_custom_call.1} parent=11 // pred_check_branch
          %146 = sbr.rel (%p144) target = $region16
        $region15: #{tpu_custom_call.1} parent=11 // pred_region
          _
        $region16: #{tpu_custom_call.1} parent=11 // pred_fallthru
          _
        // Predicated region
        $region17: #{tpu_custom_call.1} parent=11 // pred_check
          %p147 = pneg %p82
        $region18: #{tpu_custom_call.1} parent=11 // pred_check_branch
          %149 = sbr.rel (%p147) target = $region20
        $region19: #{tpu_custom_call.1} parent=11 // pred_region
          %s151 = ssub.s32 8960, 8960
          %152 = vsyncadd [#allocation5], %s151
          %s153 = sshll.u32 [#allocation4], 4
          %s154 = int_to_ptr.vmem [resolvable:$true] %s153
          %159 = dma.hbm_to_vmem [thread:$0]  %s2, 8960, %s154, [#allocation5], 448, 448, 28
        $region20: #{tpu_custom_call.1} parent=11 // pred_fallthru
          _
        // Predicated region
        $region21: #{tpu_custom_call.1} parent=11 // pred_check
          %p160 = pneg %p103
        $region22: #{tpu_custom_call.1} parent=11 // pred_check_branch
          %162 = sbr.rel (%p160) target = $region24
        $region23: #{tpu_custom_call.1} parent=11 // pred_region
          _
        $region24: #{tpu_custom_call.1} parent=11 // pred_fallthru
          _
      $region12: #{tpu_custom_call.1} parent=5 // pred_fallthru
        _
      %p163 = scmp.lt.s32.totalorder %s14, 2
      // Predicated region
      $region25: #{tpu_custom_call.1} parent=5 // pred_check
        %p164 = pneg %p163
      $region26: #{tpu_custom_call.1} parent=5 // pred_check_branch
        %166 = sbr.rel (%p164) target = $region28
      $region27: #{tpu_custom_call.1} parent=5 // pred_region
        // Predicated region
        $region29: #{tpu_custom_call.1} parent=27 // pred_check
          %p167 = pneg %p34
        $region30: #{tpu_custom_call.1} parent=27 // pred_check_branch
          %169 = sbr.rel (%p167) target = $region32
        $region31: #{tpu_custom_call.1} parent=27 // pred_region
          %p170 = scmp.lt.s32.totalorder %s14, 1
          %s171 = scalar_select %p170, %s14, 1
          %s172 = smul.addr %s171, 8
          %s173 = smul.addr %s172, 8
          %s174 = scalar_lea.vmem %s0, %s173
        $region32: #{tpu_custom_call.1} parent=27 // pred_fallthru
          _
      $region28: #{tpu_custom_call.1} parent=5 // pred_fallthru
        _
      %p175 = scmp.le.s32.totalorder 1, %s14
      %p176 = scmp.lt.s32.totalorder %s14, 3
      %p177 = pnand %p175, %p176
      %p178 = pneg %p177
      // Predicated region
      $region33: #{tpu_custom_call.1} parent=5 // pred_check
        _
      $region34: #{tpu_custom_call.1} parent=5 // pred_check_branch
        %180 = sbr.rel (%p177) target = $region36
      $region35: #{tpu_custom_call.1} parent=5 // pred_region
        %s181 = ssub.s32 %s14, 1
        // Predicated region
        $region37: #{tpu_custom_call.1} parent=35 // pred_check
          %p182 = pneg %p82
        $region38: #{tpu_custom_call.1} parent=35 // pred_check_branch
          %184 = sbr.rel (%p182) target = $region40
        $region39: #{tpu_custom_call.1} parent=35 // pred_region
          %185 = dma.done [#allocation5], 8960
        $region40: #{tpu_custom_call.1} parent=35 // pred_fallthru
          _
        %p186 = scmp.lt.s32.totalorder %s19, 1
        %s187 = scalar_select %p186, %s19, 1
        %s188 = smul.addr %s187, 8
        %s189 = smul.addr %s188, 8
        %s190 = scalar_lea.vmem %s0, %s189
        %p191 = pneg %p40
        %p192 = pneg %p37
        %p193 = pneg %p61
        %p194 = pneg %p58
        %p195 = pneg %p82
        %p196 = pneg %p79
        %p197 = pneg %p103
        %p198 = pneg %p100
        %p199 = pneg %p129
        %p200 = pneg %p126
        %s201 = sand.u32 %s116, 1
        %s202 = scalar_lea.sflag [#allocation6], %s201
        %s203 = sand.u32 %s116, 1
        %s204 = smul.addr %s203, 64
        %s205 = scalar_lea.vmem [#allocation7], %s204
        %p206 = scmp.lt.s32.totalorder %s19, 1
        %s207 = scalar_select %p206, %s19, 1
        %s208 = smul.addr %s207, 8
        %s209 = smul.addr %s208, 8
        %s210 = scalar_lea.vmem %s0, %s209
        %212 = vst [vmem:[#allocation2] sm:$0xff] 0
        %213 = vst [vmem:[#allocation2 + $0x20] sm:$0xff] 0
        %214 = vst [vmem:[#allocation2 + $0x18] sm:$0xff] 0
        %215 = vst [vmem:[#allocation2 + $0x38] sm:$0xff] 0
        %v216 = vld [vmem:[%s1] sm:$0x77]
        %v217 = vld [vmem:[%s210] sm:$0xff]
        %v218 = vld [vmem:[%s210 + $0x8] sm:$0xff]
        %v219 = vld [vmem:[%s210 + $0x10] sm:$0xff]
        %v220 = vld [vmem:[%s210 + $0x18] sm:$0xff]
        %v221 = vld [vmem:[%s210 + $0x20] sm:$0xff]
        %v222 = vld [vmem:[%s210 + $0x28] sm:$0xff]
        %v223 = vld [vmem:[%s210 + $0x30] sm:$0xff]
        %v224 = vld [vmem:[%s210 + $0x38] sm:$0xff]
        %v225 = vpack.c.bf16 %v219, %v217
        %v226 = vpack.c.bf16 %v220, %v218
        %v227 = vpack.c.bf16 %v223, %v221
        %v228 = vpack.c.bf16 %v224, %v222
        %229 = vst [vmem:[#allocation2 + $0x8] sm:$0xff] %v225
        %230 = vst [vmem:[#allocation2 + $0x10] sm:$0xff] %v226
        %231 = vst [vmem:[#allocation2 + $0x28] sm:$0xff] %v227
        %232 = vst [vmem:[#allocation2 + $0x30] sm:$0xff] %v228
        %v233 = vld [vmem:[#allocation4] sm:$0xff]
        %v234 = vld [vmem:[#allocation4 + $0x8] sm:$0xff]
        %v235 = vld [vmem:[#allocation4 + $0x10] sm:$0xff]
        %v236 = vld [vmem:[#allocation4 + $0x18] sm:$0xf]
        %v237 = vld [vmem:[#allocation4 + $0x1c] sm:$0xff]
        %v238 = vld [vmem:[#allocation4 + $0x24] sm:$0xff]
        %v239 = vld [vmem:[#allocation4 + $0x2c] sm:$0xff]
        %v240 = vld [vmem:[#allocation4 + $0x34] sm:$0xf]
        %v241 = vld [vmem:[#allocation4 + $0x38] sm:$0xff]
        %v242 = vld [vmem:[#allocation4 + $0x40] sm:$0xff]
        %v243 = vld [vmem:[#allocation4 + $0x48] sm:$0xff]
        %v244 = vld [vmem:[#allocation4 + $0x50] sm:$0xf]
        %v245 = vld [vmem:[#allocation4 + $0x54] sm:$0xff]
        %v246 = vld [vmem:[#allocation4 + $0x5c] sm:$0xff]
        %v247 = vld [vmem:[#allocation4 + $0x64] sm:$0xff]
        %v248 = vld [vmem:[#allocation4 + $0x6c] sm:$0xf]
        %v249 = vld [vmem:[#allocation2] sm:$0xff]
        %v250 = vld [vmem:[#allocation2 + $0x8] sm:$0xff]
        %v251 = vld [vmem:[#allocation2 + $0x10] sm:$0xff]
        %v252 = vld [vmem:[#allocation2 + $0x20] sm:$0xff]
        %v253 = vld [vmem:[#allocation2 + $0x28] sm:$0xff]
        %v254 = vld [vmem:[#allocation2 + $0x30] sm:$0xff]
        %v256 = vunpack.c.l.b16 %v216
        %v257 = vunpack.c.h.b16 %v216
        %v258 = vpack.c.b16 %v256, %v256
        %v259 = vpack.c.b16 %v257, %v257
        %v261 = vpack.i.b16 %v258, %v258
        %v263 = vlaneseq
        %v264 = vshrl.u32 %v263, 7
        %v265 = vsub.s32 0, %v264
        %v266 = vrot.slane %v261, %v265
        %v268 = vpack.i.b16 %v259, %v259
        %v270 = vlaneseq
        %v271 = vshrl.u32 %v270, 7
        %v272 = vsub.s32 0, %v271
        %v273 = vrot.slane %v268, %v272
        %276 = vrot.lane.b32.xlu0 %v266, 94
        %v277 = vpop.permute.xlu0 %276
        %278 = vrot.lane.b32.xlu0 %v273, 94
        %v279 = vpop.permute.xlu0 %278
        %vm280 = vcmask 769024
        %v281 = vsel %vm280, %v277, %v279
        %v285 = vmul.bf16 %v249, %v277
        %v286 = vmul.bf16 %v250, %v281
        %v287 = vmul.bf16 %v251, %v279
        %v288 = vmul.bf16 %v252, %v277
        %v289 = vmul.bf16 %v253, %v281
        %v290 = vmul.bf16 %v254, %v279
        %297 = vrot.lane.b32.xlu0 %v285, 34
        %v298 = vpop.permute.xlu0 %297
        %299 = vrot.lane.b32.xlu0 %v286, 34
        %v300 = vpop.permute.xlu0 %299
        %301 = vrot.lane.b32.xlu0 %v287, 34
        %v302 = vpop.permute.xlu0 %301
        %303 = vrot.lane.b32.xlu0 %v288, 34
        %v304 = vpop.permute.xlu0 %303
        %305 = vrot.lane.b32.xlu0 %v289, 34
        %v306 = vpop.permute.xlu0 %305
        %307 = vrot.lane.b32.xlu0 %v290, 34
        %v308 = vpop.permute.xlu0 %307
        %vm309 = vcmask 277504
        %v310 = vsel %vm309, %v298, %v300
        %v311 = vsel %vm309, %v300, %v302
        %v312 = vsel %vm309, %v304, %v306
        %v313 = vsel %vm309, %v306, %v308
        %318 = vst [vmem:[#allocation3] sm:$0xff] %v310
        %319 = vst [vmem:[#allocation3 + $0x8] sm:$0xff] %v311
        %320 = vst [vmem:[#allocation3 + $0x10] sm:$0xff] %v312
        %321 = vst [vmem:[#allocation3 + $0x18] sm:$0xff] %v313
        %v322 = vld [vmem:[#allocation2] sm:$0xff]
        %v323 = vld [vmem:[#allocation2 + $0x8] sm:$0xff]
        %v324 = vld [vmem:[#allocation2 + $0x10] sm:$0xff]
        %v325 = vld [vmem:[#allocation2 + $0x20] sm:$0xff]
        %v326 = vld [vmem:[#allocation2 + $0x28] sm:$0xff]
        %v327 = vld [vmem:[#allocation2 + $0x30] sm:$0xff]
        %v328 = vshrl.u32 %v258, 16
        %v329 = vpack.i.b16 %v328, %v328
        %v331 = vlaneseq
        %v332 = vshrl.u32 %v331, 7
        %v333 = vsub.s32 0, %v332
        %v334 = vrot.slane %v329, %v333
        %v335 = vshrl.u32 %v259, 16
        %v336 = vpack.i.b16 %v335, %v335
        %v338 = vlaneseq
        %v339 = vshrl.u32 %v338, 7
        %v340 = vsub.s32 0, %v339
        %v341 = vrot.slane %v336, %v340
        %344 = vrot.lane.b32.xlu0 %v334, 95
        %v345 = vpop.permute.xlu0 %344
        %346 = vrot.lane.b32.xlu0 %v341, 95
        %v347 = vpop.permute.xlu0 %346
        %vm348 = vcmask 777216
        %v349 = vsel %vm348, %v345, %v347
        %v353 = vmul.bf16 %v322, %v345
        %v354 = vmul.bf16 %v323, %v349
        %v355 = vmul.bf16 %v324, %v347
        %v356 = vmul.bf16 %v325, %v345
        %v357 = vmul.bf16 %v326, %v349
        %v358 = vmul.bf16 %v327, %v347
        %365 = vrot.lane.b32.xlu0 %v353, 33
        %v366 = vpop.permute.xlu0 %365
        %367 = vrot.lane.b32.xlu0 %v354, 33
        %v368 = vpop.permute.xlu0 %367
        %369 = vrot.lane.b32.xlu0 %v355, 33
        %v370 = vpop.permute.xlu0 %369
        %371 = vrot.lane.b32.xlu0 %v356, 33
        %v372 = vpop.permute.xlu0 %371
        %373 = vrot.lane.b32.xlu0 %v357, 33
        %v374 = vpop.permute.xlu0 %373
        %375 = vrot.lane.b32.xlu0 %v358, 33
        %v376 = vpop.permute.xlu0 %375
        %vm377 = vcmask 269312
        %v378 = vsel %vm377, %v366, %v368
        %v379 = vsel %vm377, %v368, %v370
        %v380 = vsel %vm377, %v372, %v374
        %v381 = vsel %vm377, %v374, %v376
        %386 = vst [vmem:[#allocation3 + $0x20] sm:$0xff] %v378
        %387 = vst [vmem:[#allocation3 + $0x28] sm:$0xff] %v379
        %388 = vst [vmem:[#allocation3 + $0x30] sm:$0xff] %v380
        %389 = vst [vmem:[#allocation3 + $0x38] sm:$0xff] %v381
        %v390 = vld [vmem:[#allocation2] sm:$0xff]
        %v391 = vld [vmem:[#allocation2 + $0x8] sm:$0xff]
        %v392 = vld [vmem:[#allocation2 + $0x10] sm:$0xff]
        %v393 = vld [vmem:[#allocation2 + $0x20] sm:$0xff]
        %v394 = vld [vmem:[#allocation2 + $0x28] sm:$0xff]
        %v395 = vld [vmem:[#allocation2 + $0x30] sm:$0xff]
        %402 = vrot.lane.b32.xlu0 %v390, 32
        %v403 = vpop.permute.xlu0 %402
        %404 = vrot.lane.b32.xlu0 %v391, 32
        %v405 = vpop.permute.xlu0 %404
        %406 = vrot.lane.b32.xlu0 %v392, 32
        %v407 = vpop.permute.xlu0 %406
        %408 = vrot.lane.b32.xlu0 %v393, 32
        %v409 = vpop.permute.xlu0 %408
        %410 = vrot.lane.b32.xlu0 %v394, 32
        %v411 = vpop.permute.xlu0 %410
        %412 = vrot.lane.b32.xlu0 %v395, 32
        %v413 = vpop.permute.xlu0 %412
        %vm414 = vcmask 261120
        %v415 = vsel %vm414, %v403, %v405
        %v416 = vsel %vm414, %v405, %v407
        %v417 = vsel %vm414, %v409, %v411
        %v418 = vsel %vm414, %v411, %v413
        %423 = vst [vmem:[#allocation3 + $0x40] sm:$0xff] %v415
        %424 = vst [vmem:[#allocation3 + $0x48] sm:$0xff] %v416
        %425 = vst [vmem:[#allocation3 + $0x50] sm:$0xff] %v417
        %426 = vst [vmem:[#allocation3 + $0x58] sm:$0xff] %v418
        %v427 = vld [vmem:[#allocation2] sm:$0xff]
        %v428 = vld [vmem:[#allocation2 + $0x8] sm:$0xff]
        %v429 = vld [vmem:[#allocation2 + $0x10] sm:$0xff]
        %v430 = vld [vmem:[#allocation2 + $0x20] sm:$0xff]
        %v431 = vld [vmem:[#allocation2 + $0x28] sm:$0xff]
        %v432 = vld [vmem:[#allocation2 + $0x30] sm:$0xff]
        %v433 = vlaneseq
        %v434 = vshrl.u32 %v433, 7
        %v435 = vsub.s32 1, %v434
        %v436 = vrot.slane %v329, %v435
        %v437 = vlaneseq
        %v438 = vshrl.u32 %v437, 7
        %v439 = vsub.s32 1, %v438
        %v440 = vrot.slane %v336, %v439
        %443 = vrot.lane.b32.xlu0 %v436, 97
        %v444 = vpop.permute.xlu0 %443
        %445 = vrot.lane.b32.xlu0 %v440, 97
        %v446 = vpop.permute.xlu0 %445
        %vm447 = vcmask 793600
        %v448 = vsel %vm447, %v444, %v446
        %v452 = vmul.bf16 %v427, %v444
        %v453 = vmul.bf16 %v428, %v448
        %v454 = vmul.bf16 %v429, %v446
        %v455 = vmul.bf16 %v430, %v444
        %v456 = vmul.bf16 %v431, %v448
        %v457 = vmul.bf16 %v432, %v446
        %464 = vrot.lane.b32.xlu0 %v452, 31
        %v465 = vpop.permute.xlu0 %464
        %466 = vrot.lane.b32.xlu0 %v453, 31
        %v467 = vpop.permute.xlu0 %466
        %468 = vrot.lane.b32.xlu0 %v454, 31
        %v469 = vpop.permute.xlu0 %468
        %470 = vrot.lane.b32.xlu0 %v455, 31
        %v471 = vpop.permute.xlu0 %470
        %472 = vrot.lane.b32.xlu0 %v456, 31
        %v473 = vpop.permute.xlu0 %472
        %474 = vrot.lane.b32.xlu0 %v457, 31
        %v475 = vpop.permute.xlu0 %474
        %vm476 = vcmask 252928
        %v477 = vsel %vm476, %v465, %v467
        %v478 = vsel %vm476, %v467, %v469
        %v479 = vsel %vm476, %v471, %v473
        %v480 = vsel %vm476, %v473, %v475
        %485 = vst [vmem:[#allocation3 + $0x60] sm:$0xff] %v477
        %486 = vst [vmem:[#allocation3 + $0x68] sm:$0xff] %v478
        %487 = vst [vmem:[#allocation3 + $0x70] sm:$0xff] %v479
        %488 = vst [vmem:[#allocation3 + $0x78] sm:$0xff] %v480
        %v489 = vld [vmem:[#allocation2] sm:$0xff]
        %v490 = vld [vmem:[#allocation2 + $0x8] sm:$0xff]
        %v491 = vld [vmem:[#allocation2 + $0x10] sm:$0xff]
        %v492 = vld [vmem:[#allocation2 + $0x20] sm:$0xff]
        %v493 = vld [vmem:[#allocation2 + $0x28] sm:$0xff]
        %v494 = vld [vmem:[#allocation2 + $0x30] sm:$0xff]
        %v495 = vlaneseq
        %v496 = vshrl.u32 %v495, 7
        %v497 = vsub.s32 2, %v496
        %v498 = vrot.slane %v261, %v497
        %v499 = vlaneseq
        %v500 = vshrl.u32 %v499, 7
        %v501 = vsub.s32 2, %v500
        %v502 = vrot.slane %v268, %v501
        %505 = vrot.lane.b32.xlu0 %v498, 98
        %v506 = vpop.permute.xlu0 %505
        %507 = vrot.lane.b32.xlu0 %v502, 98
        %v508 = vpop.permute.xlu0 %507
        %vm509 = vcmask 801792
        %v510 = vsel %vm509, %v506, %v508
        %v514 = vmul.bf16 %v489, %v506
        %v515 = vmul.bf16 %v490, %v510
        %v516 = vmul.bf16 %v491, %v508
        %v517 = vmul.bf16 %v492, %v506
        %v518 = vmul.bf16 %v493, %v510
        %v519 = vmul.bf16 %v494, %v508
        %526 = vrot.lane.b32.xlu0 %v514, 30
        %v527 = vpop.permute.xlu0 %526
        %528 = vrot.lane.b32.xlu0 %v515, 30
        %v529 = vpop.permute.xlu0 %528
        %530 = vrot.lane.b32.xlu0 %v516, 30
        %v531 = vpop.permute.xlu0 %530
        %532 = vrot.lane.b32.xlu0 %v517, 30
        %v533 = vpop.permute.xlu0 %532
        %534 = vrot.lane.b32.xlu0 %v518, 30
        %v535 = vpop.permute.xlu0 %534
        %536 = vrot.lane.b32.xlu0 %v519, 30
        %v537 = vpop.permute.xlu0 %536
        %vm538 = vcmask 244736
        %v539 = vsel %vm538, %v527, %v529
        %v540 = vsel %vm538, %v529, %v531
        %v541 = vsel %vm538, %v533, %v535
        %v542 = vsel %vm538, %v535, %v537
        %547 = vst [vmem:[#allocation3 + $0x80] sm:$0xff] %v539
        %548 = vst [vmem:[#allocation3 + $0x88] sm:$0xff] %v540
        %549 = vst [vmem:[#allocation3 + $0x90] sm:$0xff] %v541
        %550 = vst [vmem:[#allocation3 + $0x98] sm:$0xff] %v542
        %v551 = vld [vmem:[#allocation2] sm:$0xff]
        %v552 = vld [vmem:[#allocation2 + $0x8] sm:$0xff]
        %v553 = vld [vmem:[#allocation2 + $0x10] sm:$0xff]
        %v554 = vld [vmem:[#allocation2 + $0x20] sm:$0xff]
        %v555 = vld [vmem:[#allocation2 + $0x28] sm:$0xff]
        %v556 = vld [vmem:[#allocation2 + $0x30] sm:$0xff]
        %557 = vrot.lane.b32.xlu0 %v266, 110
        %v558 = vpop.permute.xlu0 %557
        %559 = vrot.lane.b32.xlu0 %v273, 110
        %v560 = vpop.permute.xlu0 %559
        %vm561 = vcmask 900096
        %v562 = vsel %vm561, %v558, %v560
        %v566 = vmul.bf16 %v551, %v558
        %v567 = vmul.bf16 %v552, %v562
        %v568 = vmul.bf16 %v553, %v560
        %v569 = vmul.bf16 %v554, %v558
        %v570 = vmul.bf16 %v555, %v562
        %v571 = vmul.bf16 %v556, %v560
        %578 = vrot.lane.b32.xlu0 %v566, 18
        %v579 = vpop.permute.xlu0 %578
        %580 = vrot.lane.b32.xlu0 %v567, 18
        %v581 = vpop.permute.xlu0 %580
        %582 = vrot.lane.b32.xlu0 %v568, 18
        %v583 = vpop.permute.xlu0 %582
        %584 = vrot.lane.b32.xlu0 %v569, 18
        %v585 = vpop.permute.xlu0 %584
        %586 = vrot.lane.b32.xlu0 %v570, 18
        %v587 = vpop.permute.xlu0 %586
        %588 = vrot.lane.b32.xlu0 %v571, 18
        %v589 = vpop.permute.xlu0 %588
        %vm590 = vcmask 146432
        %v591 = vsel %vm590, %v579, %v581
        %v592 = vsel %vm590, %v581, %v583
        %v593 = vsel %vm590, %v585, %v587
        %v594 = vsel %vm590, %v587, %v589
        %599 = vst [vmem:[#allocation3 + $0xa0] sm:$0xff] %v591
        %600 = vst [vmem:[#allocation3 + $0xa8] sm:$0xff] %v592
        %601 = vst [vmem:[#allocation3 + $0xb0] sm:$0xff] %v593
        %602 = vst [vmem:[#allocation3 + $0xb8] sm:$0xff] %v594
        %v603 = vld [vmem:[#allocation2] sm:$0xff]
        %v604 = vld [vmem:[#allocation2 + $0x8] sm:$0xff]
        %v605 = vld [vmem:[#allocation2 + $0x10] sm:$0xff]
        %v606 = vld [vmem:[#allocation2 + $0x20] sm:$0xff]
        %v607 = vld [vmem:[#allocation2 + $0x28] sm:$0xff]
        %v608 = vld [vmem:[#allocation2 + $0x30] sm:$0xff]
        %609 = vrot.lane.b32.xlu0 %v334, 111
        %v610 = vpop.permute.xlu0 %609
        %611 = vrot.lane.b32.xlu0 %v341, 111
        %v612 = vpop.permute.xlu0 %611
        %vm613 = vcmask 908288
        %v614 = vsel %vm613, %v610, %v612
        %v618 = vmul.bf16 %v603, %v610
        %v619 = vmul.bf16 %v604, %v614
        %v620 = vmul.bf16 %v605, %v612
        %v621 = vmul.bf16 %v606, %v610
        %v622 = vmul.bf16 %v607, %v614
        %v623 = vmul.bf16 %v608, %v612
        %630 = vrot.lane.b32.xlu0 %v618, 17
        %v631 = vpop.permute.xlu0 %630
        %632 = vrot.lane.b32.xlu0 %v619, 17
        %v633 = vpop.permute.xlu0 %632
        %634 = vrot.lane.b32.xlu0 %v620, 17
        %v635 = vpop.permute.xlu0 %634
        %636 = vrot.lane.b32.xlu0 %v621, 17
        %v637 = vpop.permute.xlu0 %636
        %638 = vrot.lane.b32.xlu0 %v622, 17
        %v639 = vpop.permute.xlu0 %638
        %640 = vrot.lane.b32.xlu0 %v623, 17
        %v641 = vpop.permute.xlu0 %640
        %vm642 = vcmask 138240
        %v643 = vsel %vm642, %v631, %v633
        %v644 = vsel %vm642, %v633, %v635
        %v645 = vsel %vm642, %v637, %v639
        %v646 = vsel %vm642, %v639, %v641
        %651 = vst [vmem:[#allocation3 + $0xc0] sm:$0xff] %v643
        %652 = vst [vmem:[#allocation3 + $0xc8] sm:$0xff] %v644
        %653 = vst [vmem:[#allocation3 + $0xd0] sm:$0xff] %v645
        %654 = vst [vmem:[#allocation3 + $0xd8] sm:$0xff] %v646
        %v655 = vld [vmem:[#allocation2] sm:$0xff]
        %v656 = vld [vmem:[#allocation2 + $0x8] sm:$0xff]
        %v657 = vld [vmem:[#allocation2 + $0x10] sm:$0xff]
        %v658 = vld [vmem:[#allocation2 + $0x20] sm:$0xff]
        %v659 = vld [vmem:[#allocation2 + $0x28] sm:$0xff]
        %v660 = vld [vmem:[#allocation2 + $0x30] sm:$0xff]
        %667 = vrot.lane.b32.xlu0 %v655, 16
        %v668 = vpop.permute.xlu0 %667
        %669 = vrot.lane.b32.xlu0 %v656, 16
        %v670 = vpop.permute.xlu0 %669
        %671 = vrot.lane.b32.xlu0 %v657, 16
        %v672 = vpop.permute.xlu0 %671
        %673 = vrot.lane.b32.xlu0 %v658, 16
        %v674 = vpop.permute.xlu0 %673
        %675 = vrot.lane.b32.xlu0 %v659, 16
        %v676 = vpop.permute.xlu0 %675
        %677 = vrot.lane.b32.xlu0 %v660, 16
        %v678 = vpop.permute.xlu0 %677
        %vm679 = vcmask 130048
        %v680 = vsel %vm679, %v668, %v670
        %v681 = vsel %vm679, %v670, %v672
        %v682 = vsel %vm679, %v674, %v676
        %v683 = vsel %vm679, %v676, %v678
        %688 = vst [vmem:[#allocation3 + $0xe0] sm:$0xff] %v680
        %689 = vst [vmem:[#allocation3 + $0xe8] sm:$0xff] %v681
        %690 = vst [vmem:[#allocation3 + $0xf0] sm:$0xff] %v682
        %691 = vst [vmem:[#allocation3 + $0xf8] sm:$0xff] %v683
        %v692 = vld [vmem:[#allocation2] sm:$0xff]
        %v693 = vld [vmem:[#allocation2 + $0x8] sm:$0xff]
        %v694 = vld [vmem:[#allocation2 + $0x10] sm:$0xff]
        %v695 = vld [vmem:[#allocation2 + $0x20] sm:$0xff]
        %v696 = vld [vmem:[#allocation2 + $0x28] sm:$0xff]
        %v697 = vld [vmem:[#allocation2 + $0x30] sm:$0xff]
        %698 = vrot.lane.b32.xlu0 %v436, 113
        %v699 = vpop.permute.xlu0 %698
        %700 = vrot.lane.b32.xlu0 %v440, 113
        %v701 = vpop.permute.xlu0 %700
        %vm702 = vcmask 924672
        %v703 = vsel %vm702, %v699, %v701
        %v707 = vmul.bf16 %v692, %v699
        %v708 = vmul.bf16 %v693, %v703
        %v709 = vmul.bf16 %v694, %v701
        %v710 = vmul.bf16 %v695, %v699
        %v711 = vmul.bf16 %v696, %v703
        %v712 = vmul.bf16 %v697, %v701
        %719 = vrot.lane.b32.xlu0 %v707, 15
        %v720 = vpop.permute.xlu0 %719
        %721 = vrot.lane.b32.xlu0 %v708, 15
        %v722 = vpop.permute.xlu0 %721
        %723 = vrot.lane.b32.xlu0 %v709, 15
        %v724 = vpop.permute.xlu0 %723
        %725 = vrot.lane.b32.xlu0 %v710, 15
        %v726 = vpop.permute.xlu0 %725
        %727 = vrot.lane.b32.xlu0 %v711, 15
        %v728 = vpop.permute.xlu0 %727
        %729 = vrot.lane.b32.xlu0 %v712, 15
        %v730 = vpop.permute.xlu0 %729
        %vm731 = vcmask 121856
        %v732 = vsel %vm731, %v720, %v722
        %v733 = vsel %vm731, %v722, %v724
        %v734 = vsel %vm731, %v726, %v728
        %v735 = vsel %vm731, %v728, %v730
        %740 = vst [vmem:[#allocation3 + $0x100] sm:$0xff] %v732
        %741 = vst [vmem:[#allocation3 + $0x108] sm:$0xff] %v733
        %742 = vst [vmem:[#allocation3 + $0x110] sm:$0xff] %v734
        %743 = vst [vmem:[#allocation3 + $0x118] sm:$0xff] %v735
        %v744 = vld [vmem:[#allocation2] sm:$0xff]
        %v745 = vld [vmem:[#allocation2 + $0x8] sm:$0xff]
        %v746 = vld [vmem:[#allocation2 + $0x10] sm:$0xff]
        %v747 = vld [vmem:[#allocation2 + $0x20] sm:$0xff]
        %v748 = vld [vmem:[#allocation2 + $0x28] sm:$0xff]
        %v749 = vld [vmem:[#allocation2 + $0x30] sm:$0xff]
        %750 = vrot.lane.b32.xlu0 %v498, 114
        %v751 = vpop.permute.xlu0 %750
        %752 = vrot.lane.b32.xlu0 %v502, 114
        %v753 = vpop.permute.xlu0 %752
        %vm754 = vcmask 932864
        %v755 = vsel %vm754, %v751, %v753
        %v759 = vmul.bf16 %v744, %v751
        %v760 = vmul.bf16 %v745, %v755
        %v761 = vmul.bf16 %v746, %v753
        %v762 = vmul.bf16 %v747, %v751
        %v763 = vmul.bf16 %v748, %v755
        %v764 = vmul.bf16 %v749, %v753
        %771 = vrot.lane.b32.xlu0 %v759, 14
        %v772 = vpop.permute.xlu0 %771
        %773 = vrot.lane.b32.xlu0 %v760, 14
        %v774 = vpop.permute.xlu0 %773
        %775 = vrot.lane.b32.xlu0 %v761, 14
        %v776 = vpop.permute.xlu0 %775
        %777 = vrot.lane.b32.xlu0 %v762, 14
        %v778 = vpop.permute.xlu0 %777
        %779 = vrot.lane.b32.xlu0 %v763, 14
        %v780 = vpop.permute.xlu0 %779
        %781 = vrot.lane.b32.xlu0 %v764, 14
        %v782 = vpop.permute.xlu0 %781
        %vm783 = vcmask 113664
        %v784 = vsel %vm783, %v772, %v774
        %v785 = vsel %vm783, %v774, %v776
        %v786 = vsel %vm783, %v778, %v780
        %v787 = vsel %vm783, %v780, %v782
        %792 = vst [vmem:[#allocation3 + $0x120] sm:$0xff] %v784
        %793 = vst [vmem:[#allocation3 + $0x128] sm:$0xff] %v785
        %794 = vst [vmem:[#allocation3 + $0x130] sm:$0xff] %v786
        %795 = vst [vmem:[#allocation3 + $0x138] sm:$0xff] %v787
        %v796 = vld [vmem:[#allocation2] sm:$0xff]
        %v797 = vld [vmem:[#allocation2 + $0x8] sm:$0xff]
        %v798 = vld [vmem:[#allocation2 + $0x10] sm:$0xff]
        %v799 = vld [vmem:[#allocation2 + $0x20] sm:$0xff]
        %v800 = vld [vmem:[#allocation2 + $0x28] sm:$0xff]
        %v801 = vld [vmem:[#allocation2 + $0x30] sm:$0xff]
        %802 = vrot.lane.b32.xlu0 %v266, 126
        %v803 = vpop.permute.xlu0 %802
        %804 = vrot.lane.b32.xlu0 %v273, 126
        %v805 = vpop.permute.xlu0 %804
        %vm806 = vcmask 1031168
        %v807 = vsel %vm806, %v803, %v805
        %v811 = vmul.bf16 %v796, %v803
        %v812 = vmul.bf16 %v797, %v807
        %v813 = vmul.bf16 %v798, %v805
        %v814 = vmul.bf16 %v799, %v803
        %v815 = vmul.bf16 %v800, %v807
        %v816 = vmul.bf16 %v801, %v805
        %823 = vrot.lane.b32.xlu0 %v811, 2
        %v824 = vpop.permute.xlu0 %823
        %825 = vrot.lane.b32.xlu0 %v812, 2
        %v826 = vpop.permute.xlu0 %825
        %827 = vrot.lane.b32.xlu0 %v813, 2
        %v828 = vpop.permute.xlu0 %827
        %829 = vrot.lane.b32.xlu0 %v814, 2
        %v830 = vpop.permute.xlu0 %829
        %831 = vrot.lane.b32.xlu0 %v815, 2
        %v832 = vpop.permute.xlu0 %831
        %833 = vrot.lane.b32.xlu0 %v816, 2
        %v834 = vpop.permute.xlu0 %833
        %vm835 = vcmask 15360
        %v836 = vsel %vm835, %v824, %v826
        %v837 = vsel %vm835, %v826, %v828
        %v838 = vsel %vm835, %v830, %v832
        %v839 = vsel %vm835, %v832, %v834
        %844 = vst [vmem:[#allocation3 + $0x140] sm:$0xff] %v836
        %845 = vst [vmem:[#allocation3 + $0x148] sm:$0xff] %v837
        %846 = vst [vmem:[#allocation3 + $0x150] sm:$0xff] %v838
        %847 = vst [vmem:[#allocation3 + $0x158] sm:$0xff] %v839
        %v848 = vld [vmem:[#allocation2] sm:$0xff]
        %v849 = vld [vmem:[#allocation2 + $0x8] sm:$0xff]
        %v850 = vld [vmem:[#allocation2 + $0x10] sm:$0xff]
        %v851 = vld [vmem:[#allocation2 + $0x20] sm:$0xff]
        %v852 = vld [vmem:[#allocation2 + $0x28] sm:$0xff]
        %v853 = vld [vmem:[#allocation2 + $0x30] sm:$0xff]
        %854 = vrot.lane.b32.xlu0 %v334, 127
        %v855 = vpop.permute.xlu0 %854
        %856 = vrot.lane.b32.xlu0 %v341, 127
        %v857 = vpop.permute.xlu0 %856
        %vm858 = vcmask 1039360
        %v859 = vsel %vm858, %v855, %v857
        %v863 = vmul.bf16 %v848, %v855
        %v864 = vmul.bf16 %v849, %v859
        %v865 = vmul.bf16 %v850, %v857
        %v866 = vmul.bf16 %v851, %v855
        %v867 = vmul.bf16 %v852, %v859
        %v868 = vmul.bf16 %v853, %v857
        %875 = vrot.lane.b32.xlu0 %v863, 1
        %v876 = vpop.permute.xlu0 %875
        %877 = vrot.lane.b32.xlu0 %v864, 1
        %v878 = vpop.permute.xlu0 %877
        %879 = vrot.lane.b32.xlu0 %v865, 1
        %v880 = vpop.permute.xlu0 %879
        %881 = vrot.lane.b32.xlu0 %v866, 1
        %v882 = vpop.permute.xlu0 %881
        %883 = vrot.lane.b32.xlu0 %v867, 1
        %v884 = vpop.permute.xlu0 %883
        %885 = vrot.lane.b32.xlu0 %v868, 1
        %v886 = vpop.permute.xlu0 %885
        %vm887 = vcmask 7168
        %v888 = vsel %vm887, %v876, %v878
        %v889 = vsel %vm887, %v878, %v880
        %v890 = vsel %vm887, %v882, %v884
        %v891 = vsel %vm887, %v884, %v886
        %896 = vst [vmem:[#allocation3 + $0x160] sm:$0xff] %v888
        %897 = vst [vmem:[#allocation3 + $0x168] sm:$0xff] %v889
        %898 = vst [vmem:[#allocation3 + $0x170] sm:$0xff] %v890
        %899 = vst [vmem:[#allocation3 + $0x178] sm:$0xff] %v891
        %v900 = vld [vmem:[#allocation2 + $0x8] sm:$0xff]
        %v901 = vld [vmem:[#allocation2 + $0x10] sm:$0xff]
        %v902 = vld [vmem:[#allocation2 + $0x28] sm:$0xff]
        %v903 = vld [vmem:[#allocation2 + $0x30] sm:$0xff]
        %904 = vst [vmem:[#allocation3 + $0x180] sm:$0xff] %v900
        %905 = vst [vmem:[#allocation3 + $0x188] sm:$0xff] %v901
        %906 = vst [vmem:[#allocation3 + $0x190] sm:$0xff] %v902
        %907 = vst [vmem:[#allocation3 + $0x198] sm:$0xff] %v903
        %v908 = vld [vmem:[#allocation2 + $0x8] sm:$0xff]
        %v909 = vld [vmem:[#allocation2 + $0x10] sm:$0xff]
        %v910 = vld [vmem:[#allocation2 + $0x18] sm:$0xff]
        %v911 = vld [vmem:[#allocation2 + $0x28] sm:$0xff]
        %v912 = vld [vmem:[#allocation2 + $0x30] sm:$0xff]
        %v913 = vld [vmem:[#allocation2 + $0x38] sm:$0xff]
        %914 = vrot.lane.b32.xlu0 %v436, 1
        %v915 = vpop.permute.xlu0 %914
        %916 = vrot.lane.b32.xlu0 %v440, 1
        %v917 = vpop.permute.xlu0 %916
        %v918 = vsel %vm887, %v915, %v917
        %v922 = vmul.bf16 %v908, %v915
        %v923 = vmul.bf16 %v909, %v918
        %v924 = vmul.bf16 %v910, %v917
        %v925 = vmul.bf16 %v911, %v915
        %v926 = vmul.bf16 %v912, %v918
        %v927 = vmul.bf16 %v913, %v917
        %934 = vrot.lane.b32.xlu0 %v922, 127
        %v935 = vpop.permute.xlu0 %934
        %936 = vrot.lane.b32.xlu0 %v923, 127
        %v937 = vpop.permute.xlu0 %936
        %938 = vrot.lane.b32.xlu0 %v924, 127
        %v939 = vpop.permute.xlu0 %938
        %940 = vrot.lane.b32.xlu0 %v925, 127
        %v941 = vpop.permute.xlu0 %940
        %942 = vrot.lane.b32.xlu0 %v926, 127
        %v943 = vpop.permute.xlu0 %942
        %944 = vrot.lane.b32.xlu0 %v927, 127
        %v945 = vpop.permute.xlu0 %944
        %v946 = vsel %vm858, %v935, %v937
        %v947 = vsel %vm858, %v937, %v939
        %v948 = vsel %vm858, %v941, %v943
        %v949 = vsel %vm858, %v943, %v945
        %954 = vst [vmem:[#allocation3 + $0x1a0] sm:$0xff] %v946
        %955 = vst [vmem:[#allocation3 + $0x1a8] sm:$0xff] %v947
        %956 = vst [vmem:[#allocation3 + $0x1b0] sm:$0xff] %v948
        %957 = vst [vmem:[#allocation3 + $0x1b8] sm:$0xff] %v949
        %v958 = vld [vmem:[#allocation2 + $0x8] sm:$0xff]
        %v959 = vld [vmem:[#allocation2 + $0x10] sm:$0xff]
        %v960 = vld [vmem:[#allocation2 + $0x18] sm:$0xff]
        %v961 = vld [vmem:[#allocation2 + $0x28] sm:$0xff]
        %v962 = vld [vmem:[#allocation2 + $0x30] sm:$0xff]
        %v963 = vld [vmem:[#allocation2 + $0x38] sm:$0xff]
        %964 = vrot.lane.b32.xlu0 %v498, 2
        %v965 = vpop.permute.xlu0 %964
        %966 = vrot.lane.b32.xlu0 %v502, 2
        %v967 = vpop.permute.xlu0 %966
        %v968 = vsel %vm835, %v965, %v967
        %v972 = vmul.bf16 %v958, %v965
        %v973 = vmul.bf16 %v959, %v968
        %v974 = vmul.bf16 %v960, %v967
        %v975 = vmul.bf16 %v961, %v965
        %v976 = vmul.bf16 %v962, %v968
        %v977 = vmul.bf16 %v963, %v967
        %984 = vrot.lane.b32.xlu0 %v972, 126
        %v985 = vpop.permute.xlu0 %984
        %986 = vrot.lane.b32.xlu0 %v973, 126
        %v987 = vpop.permute.xlu0 %986
        %988 = vrot.lane.b32.xlu0 %v974, 126
        %v989 = vpop.permute.xlu0 %988
        %990 = vrot.lane.b32.xlu0 %v975, 126
        %v991 = vpop.permute.xlu0 %990
        %992 = vrot.lane.b32.xlu0 %v976, 126
        %v993 = vpop.permute.xlu0 %992
        %994 = vrot.lane.b32.xlu0 %v977, 126
        %v995 = vpop.permute.xlu0 %994
        %v996 = vsel %vm806, %v985, %v987
        %v997 = vsel %vm806, %v987, %v989
        %v998 = vsel %vm806, %v991, %v993
        %v999 = vsel %vm806, %v993, %v995
        %1004 = vst [vmem:[#allocation3 + $0x1c0] sm:$0xff] %v996
        %1005 = vst [vmem:[#allocation3 + $0x1c8] sm:$0xff] %v997
        %1006 = vst [vmem:[#allocation3 + $0x1d0] sm:$0xff] %v998
        %1007 = vst [vmem:[#allocation3 + $0x1d8] sm:$0xff] %v999
        %v1008 = vld [vmem:[#allocation2 + $0x8] sm:$0xff]
        %v1009 = vld [vmem:[#allocation2 + $0x10] sm:$0xff]
        %v1010 = vld [vmem:[#allocation2 + $0x18] sm:$0xff]
        %v1011 = vld [vmem:[#allocation2 + $0x28] sm:$0xff]
        %v1012 = vld [vmem:[#allocation2 + $0x30] sm:$0xff]
        %v1013 = vld [vmem:[#allocation2 + $0x38] sm:$0xff]
        %1014 = vrot.lane.b32.xlu0 %v266, 14
        %v1015 = vpop.permute.xlu0 %1014
        %1016 = vrot.lane.b32.xlu0 %v273, 14
        %v1017 = vpop.permute.xlu0 %1016
        %v1018 = vsel %vm783, %v1015, %v1017
        %v1022 = vmul.bf16 %v1008, %v1015
        %v1023 = vmul.bf16 %v1009, %v1018
        %v1024 = vmul.bf16 %v1010, %v1017
        %v1025 = vmul.bf16 %v1011, %v1015
        %v1026 = vmul.bf16 %v1012, %v1018
        %v1027 = vmul.bf16 %v1013, %v1017
        %1034 = vrot.lane.b32.xlu0 %v1022, 114
        %v1035 = vpop.permute.xlu0 %1034
        %1036 = vrot.lane.b32.xlu0 %v1023, 114
        %v1037 = vpop.permute.xlu0 %1036
        %1038 = vrot.lane.b32.xlu0 %v1024, 114
        %v1039 = vpop.permute.xlu0 %1038
        %1040 = vrot.lane.b32.xlu0 %v1025, 114
        %v1041 = vpop.permute.xlu0 %1040
        %1042 = vrot.lane.b32.xlu0 %v1026, 114
        %v1043 = vpop.permute.xlu0 %1042
        %1044 = vrot.lane.b32.xlu0 %v1027, 114
        %v1045 = vpop.permute.xlu0 %1044
        %v1046 = vsel %vm754, %v1035, %v1037
        %v1047 = vsel %vm754, %v1037, %v1039
        %v1048 = vsel %vm754, %v1041, %v1043
        %v1049 = vsel %vm754, %v1043, %v1045
        %1054 = vst [vmem:[#allocation3 + $0x1e0] sm:$0xff] %v1046
        %1055 = vst [vmem:[#allocation3 + $0x1e8] sm:$0xff] %v1047
        %1056 = vst [vmem:[#allocation3 + $0x1f0] sm:$0xff] %v1048
        %1057 = vst [vmem:[#allocation3 + $0x1f8] sm:$0xff] %v1049
        %v1058 = vld [vmem:[#allocation2 + $0x8] sm:$0xff]
        %v1059 = vld [vmem:[#allocation2 + $0x10] sm:$0xff]
        %v1060 = vld [vmem:[#allocation2 + $0x18] sm:$0xff]
        %v1061 = vld [vmem:[#allocation2 + $0x28] sm:$0xff]
        %v1062 = vld [vmem:[#allocation2 + $0x30] sm:$0xff]
        %v1063 = vld [vmem:[#allocation2 + $0x38] sm:$0xff]
        %1064 = vrot.lane.b32.xlu0 %v334, 15
        %v1065 = vpop.permute.xlu0 %1064
        %1066 = vrot.lane.b32.xlu0 %v341, 15
        %v1067 = vpop.permute.xlu0 %1066
        %v1068 = vsel %vm731, %v1065, %v1067
        %v1072 = vmul.bf16 %v1058, %v1065
        %v1073 = vmul.bf16 %v1059, %v1068
        %v1074 = vmul.bf16 %v1060, %v1067
        %v1075 = vmul.bf16 %v1061, %v1065
        %v1076 = vmul.bf16 %v1062, %v1068
        %v1077 = vmul.bf16 %v1063, %v1067
        %1084 = vrot.lane.b32.xlu0 %v1072, 113
        %v1085 = vpop.permute.xlu0 %1084
        %1086 = vrot.lane.b32.xlu0 %v1073, 113
        %v1087 = vpop.permute.xlu0 %1086
        %1088 = vrot.lane.b32.xlu0 %v1074, 113
        %v1089 = vpop.permute.xlu0 %1088
        %1090 = vrot.lane.b32.xlu0 %v1075, 113
        %v1091 = vpop.permute.xlu0 %1090
        %1092 = vrot.lane.b32.xlu0 %v1076, 113
        %v1093 = vpop.permute.xlu0 %1092
        %1094 = vrot.lane.b32.xlu0 %v1077, 113
        %v1095 = vpop.permute.xlu0 %1094
        %v1096 = vsel %vm702, %v1085, %v1087
        %v1097 = vsel %vm702, %v1087, %v1089
        %v1098 = vsel %vm702, %v1091, %v1093
        %v1099 = vsel %vm702, %v1093, %v1095
        %1104 = vst [vmem:[#allocation3 + $0x200] sm:$0xff] %v1096
        %1105 = vst [vmem:[#allocation3 + $0x208] sm:$0xff] %v1097
        %1106 = vst [vmem:[#allocation3 + $0x210] sm:$0xff] %v1098
        %1107 = vst [vmem:[#allocation3 + $0x218] sm:$0xff] %v1099
        %v1108 = vld [vmem:[#allocation2 + $0x8] sm:$0xff]
        %v1109 = vld [vmem:[#allocation2 + $0x10] sm:$0xff]
        %v1110 = vld [vmem:[#allocation2 + $0x18] sm:$0xff]
        %v1111 = vld [vmem:[#allocation2 + $0x28] sm:$0xff]
        %v1112 = vld [vmem:[#allocation2 + $0x30] sm:$0xff]
        %v1113 = vld [vmem:[#allocation2 + $0x38] sm:$0xff]
        %1120 = vrot.lane.b32.xlu0 %v1108, 112
        %v1121 = vpop.permute.xlu0 %1120
        %1122 = vrot.lane.b32.xlu0 %v1109, 112
        %v1123 = vpop.permute.xlu0 %1122
        %1124 = vrot.lane.b32.xlu0 %v1110, 112
        %v1125 = vpop.permute.xlu0 %1124
        %1126 = vrot.lane.b32.xlu0 %v1111, 112
        %v1127 = vpop.permute.xlu0 %1126
        %1128 = vrot.lane.b32.xlu0 %v1112, 112
        %v1129 = vpop.permute.xlu0 %1128
        %1130 = vrot.lane.b32.xlu0 %v1113, 112
        %v1131 = vpop.permute.xlu0 %1130
        %vm1132 = vcmask 916480
        %v1133 = vsel %vm1132, %v1121, %v1123
        %v1134 = vsel %vm1132, %v1123, %v1125
        %v1135 = vsel %vm1132, %v1127, %v1129
        %v1136 = vsel %vm1132, %v1129, %v1131
        %1141 = vst [vmem:[#allocation3 + $0x220] sm:$0xff] %v1133
        %1142 = vst [vmem:[#allocation3 + $0x228] sm:$0xff] %v1134
        %1143 = vst [vmem:[#allocation3 + $0x230] sm:$0xff] %v1135
        %1144 = vst [vmem:[#allocation3 + $0x238] sm:$0xff] %v1136
        %v1145 = vld [vmem:[#allocation2 + $0x8] sm:$0xff]
        %v1146 = vld [vmem:[#allocation2 + $0x10] sm:$0xff]
        %v1147 = vld [vmem:[#allocation2 + $0x18] sm:$0xff]
        %v1148 = vld [vmem:[#allocation2 + $0x28] sm:$0xff]
        %v1149 = vld [vmem:[#allocation2 + $0x30] sm:$0xff]
        %v1150 = vld [vmem:[#allocation2 + $0x38] sm:$0xff]
        %1151 = vrot.lane.b32.xlu0 %v436, 17
        %v1152 = vpop.permute.xlu0 %1151
        %1153 = vrot.lane.b32.xlu0 %v440, 17
        %v1154 = vpop.permute.xlu0 %1153
        %v1155 = vsel %vm642, %v1152, %v1154
        %v1159 = vmul.bf16 %v1145, %v1152
        %v1160 = vmul.bf16 %v1146, %v1155
        %v1161 = vmul.bf16 %v1147, %v1154
        %v1162 = vmul.bf16 %v1148, %v1152
        %v1163 = vmul.bf16 %v1149, %v1155
        %v1164 = vmul.bf16 %v1150, %v1154
        %1171 = vrot.lane.b32.xlu0 %v1159, 111
        %v1172 = vpop.permute.xlu0 %1171
        %1173 = vrot.lane.b32.xlu0 %v1160, 111
        %v1174 = vpop.permute.xlu0 %1173
        %1175 = vrot.lane.b32.xlu0 %v1161, 111
        %v1176 = vpop.permute.xlu0 %1175
        %1177 = vrot.lane.b32.xlu0 %v1162, 111
        %v1178 = vpop.permute.xlu0 %1177
        %1179 = vrot.lane.b32.xlu0 %v1163, 111
        %v1180 = vpop.permute.xlu0 %1179
        %1181 = vrot.lane.b32.xlu0 %v1164, 111
        %v1182 = vpop.permute.xlu0 %1181
        %v1183 = vsel %vm613, %v1172, %v1174
        %v1184 = vsel %vm613, %v1174, %v1176
        %v1185 = vsel %vm613, %v1178, %v1180
        %v1186 = vsel %vm613, %v1180, %v1182
        %1191 = vst [vmem:[#allocation3 + $0x240] sm:$0xff] %v1183
        %1192 = vst [vmem:[#allocation3 + $0x248] sm:$0xff] %v1184
        %1193 = vst [vmem:[#allocation3 + $0x250] sm:$0xff] %v1185
        %1194 = vst [vmem:[#allocation3 + $0x258] sm:$0xff] %v1186
        %v1195 = vld [vmem:[#allocation2 + $0x8] sm:$0xff]
        %v1196 = vld [vmem:[#allocation2 + $0x10] sm:$0xff]
        %v1197 = vld [vmem:[#allocation2 + $0x18] sm:$0xff]
        %v1198 = vld [vmem:[#allocation2 + $0x28] sm:$0xff]
        %v1199 = vld [vmem:[#allocation2 + $0x30] sm:$0xff]
        %v1200 = vld [vmem:[#allocation2 + $0x38] sm:$0xff]
        %1201 = vrot.lane.b32.xlu0 %v498, 18
        %v1202 = vpop.permute.xlu0 %1201
        %1203 = vrot.lane.b32.xlu0 %v502, 18
        %v1204 = vpop.permute.xlu0 %1203
        %v1205 = vsel %vm590, %v1202, %v1204
        %v1209 = vmul.bf16 %v1195, %v1202
        %v1210 = vmul.bf16 %v1196, %v1205
        %v1211 = vmul.bf16 %v1197, %v1204
        %v1212 = vmul.bf16 %v1198, %v1202
        %v1213 = vmul.bf16 %v1199, %v1205
        %v1214 = vmul.bf16 %v1200, %v1204
        %1221 = vrot.lane.b32.xlu0 %v1209, 110
        %v1222 = vpop.permute.xlu0 %1221
        %1223 = vrot.lane.b32.xlu0 %v1210, 110
        %v1224 = vpop.permute.xlu0 %1223
        %1225 = vrot.lane.b32.xlu0 %v1211, 110
        %v1226 = vpop.permute.xlu0 %1225
        %1227 = vrot.lane.b32.xlu0 %v1212, 110
        %v1228 = vpop.permute.xlu0 %1227
        %1229 = vrot.lane.b32.xlu0 %v1213, 110
        %v1230 = vpop.permute.xlu0 %1229
        %1231 = vrot.lane.b32.xlu0 %v1214, 110
        %v1232 = vpop.permute.xlu0 %1231
        %v1233 = vsel %vm561, %v1222, %v1224
        %v1234 = vsel %vm561, %v1224, %v1226
        %v1235 = vsel %vm561, %v1228, %v1230
        %v1236 = vsel %vm561, %v1230, %v1232
        %1241 = vst [vmem:[#allocation3 + $0x260] sm:$0xff] %v1233
        %1242 = vst [vmem:[#allocation3 + $0x268] sm:$0xff] %v1234
        %1243 = vst [vmem:[#allocation3 + $0x270] sm:$0xff] %v1235
        %1244 = vst [vmem:[#allocation3 + $0x278] sm:$0xff] %v1236
        %v1245 = vld [vmem:[#allocation2 + $0x8] sm:$0xff]
        %v1246 = vld [vmem:[#allocation2 + $0x10] sm:$0xff]
        %v1247 = vld [vmem:[#allocation2 + $0x18] sm:$0xff]
        %v1248 = vld [vmem:[#allocation2 + $0x28] sm:$0xff]
        %v1249 = vld [vmem:[#allocation2 + $0x30] sm:$0xff]
        %v1250 = vld [vmem:[#allocation2 + $0x38] sm:$0xff]
        %1251 = vrot.lane.b32.xlu0 %v266, 30
        %v1252 = vpop.permute.xlu0 %1251
        %1253 = vrot.lane.b32.xlu0 %v273, 30
        %v1254 = vpop.permute.xlu0 %1253
        %v1255 = vsel %vm538, %v1252, %v1254
        %v1259 = vmul.bf16 %v1245, %v1252
        %v1260 = vmul.bf16 %v1246, %v1255
        %v1261 = vmul.bf16 %v1247, %v1254
        %v1262 = vmul.bf16 %v1248, %v1252
        %v1263 = vmul.bf16 %v1249, %v1255
        %v1264 = vmul.bf16 %v1250, %v1254
        %1271 = vrot.lane.b32.xlu0 %v1259, 98
        %v1272 = vpop.permute.xlu0 %1271
        %1273 = vrot.lane.b32.xlu0 %v1260, 98
        %v1274 = vpop.permute.xlu0 %1273
        %1275 = vrot.lane.b32.xlu0 %v1261, 98
        %v1276 = vpop.permute.xlu0 %1275
        %1277 = vrot.lane.b32.xlu0 %v1262, 98
        %v1278 = vpop.permute.xlu0 %1277
        %1279 = vrot.lane.b32.xlu0 %v1263, 98
        %v1280 = vpop.permute.xlu0 %1279
        %1281 = vrot.lane.b32.xlu0 %v1264, 98
        %v1282 = vpop.permute.xlu0 %1281
        %v1283 = vsel %vm509, %v1272, %v1274
        %v1284 = vsel %vm509, %v1274, %v1276
        %v1285 = vsel %vm509, %v1278, %v1280
        %v1286 = vsel %vm509, %v1280, %v1282
        %1291 = vst [vmem:[#allocation3 + $0x280] sm:$0xff] %v1283
        %1292 = vst [vmem:[#allocation3 + $0x288] sm:$0xff] %v1284
        %1293 = vst [vmem:[#allocation3 + $0x290] sm:$0xff] %v1285
        %1294 = vst [vmem:[#allocation3 + $0x298] sm:$0xff] %v1286
        %v1295 = vld [vmem:[#allocation2 + $0x8] sm:$0xff]
        %v1296 = vld [vmem:[#allocation2 + $0x10] sm:$0xff]
        %v1297 = vld [vmem:[#allocation2 + $0x18] sm:$0xff]
        %v1298 = vld [vmem:[#allocation2 + $0x28] sm:$0xff]
        %v1299 = vld [vmem:[#allocation2 + $0x30] sm:$0xff]
        %v1300 = vld [vmem:[#allocation2 + $0x38] sm:$0xff]
        %1301 = vrot.lane.b32.xlu0 %v334, 31
        %v1302 = vpop.permute.xlu0 %1301
        %1303 = vrot.lane.b32.xlu0 %v341, 31
        %v1304 = vpop.permute.xlu0 %1303
        %v1305 = vsel %vm476, %v1302, %v1304
        %v1309 = vmul.bf16 %v1295, %v1302
        %v1310 = vmul.bf16 %v1296, %v1305
        %v1311 = vmul.bf16 %v1297, %v1304
        %v1312 = vmul.bf16 %v1298, %v1302
        %v1313 = vmul.bf16 %v1299, %v1305
        %v1314 = vmul.bf16 %v1300, %v1304
        %1321 = vrot.lane.b32.xlu0 %v1309, 97
        %v1322 = vpop.permute.xlu0 %1321
        %1323 = vrot.lane.b32.xlu0 %v1310, 97
        %v1324 = vpop.permute.xlu0 %1323
        %1325 = vrot.lane.b32.xlu0 %v1311, 97
        %v1326 = vpop.permute.xlu0 %1325
        %1327 = vrot.lane.b32.xlu0 %v1312, 97
        %v1328 = vpop.permute.xlu0 %1327
        %1329 = vrot.lane.b32.xlu0 %v1313, 97
        %v1330 = vpop.permute.xlu0 %1329
        %1331 = vrot.lane.b32.xlu0 %v1314, 97
        %v1332 = vpop.permute.xlu0 %1331
        %v1333 = vsel %vm447, %v1322, %v1324
        %v1334 = vsel %vm447, %v1324, %v1326
        %v1335 = vsel %vm447, %v1328, %v1330
        %v1336 = vsel %vm447, %v1330, %v1332
        %1341 = vst [vmem:[#allocation3 + $0x2a0] sm:$0xff] %v1333
        %1342 = vst [vmem:[#allocation3 + $0x2a8] sm:$0xff] %v1334
        %1343 = vst [vmem:[#allocation3 + $0x2b0] sm:$0xff] %v1335
        %1344 = vst [vmem:[#allocation3 + $0x2b8] sm:$0xff] %v1336
        %v1345 = vld [vmem:[#allocation2 + $0x8] sm:$0xff]
        %v1346 = vld [vmem:[#allocation2 + $0x10] sm:$0xff]
        %v1347 = vld [vmem:[#allocation2 + $0x18] sm:$0xff]
        %v1348 = vld [vmem:[#allocation2 + $0x28] sm:$0xff]
        %v1349 = vld [vmem:[#allocation2 + $0x30] sm:$0xff]
        %v1350 = vld [vmem:[#allocation2 + $0x38] sm:$0xff]
        %1357 = vrot.lane.b32.xlu0 %v1345, 96
        %v1358 = vpop.permute.xlu0 %1357
        %1359 = vrot.lane.b32.xlu0 %v1346, 96
        %v1360 = vpop.permute.xlu0 %1359
        %1361 = vrot.lane.b32.xlu0 %v1347, 96
        %v1362 = vpop.permute.xlu0 %1361
        %1363 = vrot.lane.b32.xlu0 %v1348, 96
        %v1364 = vpop.permute.xlu0 %1363
        %1365 = vrot.lane.b32.xlu0 %v1349, 96
        %v1366 = vpop.permute.xlu0 %1365
        %1367 = vrot.lane.b32.xlu0 %v1350, 96
        %v1368 = vpop.permute.xlu0 %1367
        %vm1369 = vcmask 785408
        %v1370 = vsel %vm1369, %v1358, %v1360
        %v1371 = vsel %vm1369, %v1360, %v1362
        %v1372 = vsel %vm1369, %v1364, %v1366
        %v1373 = vsel %vm1369, %v1366, %v1368
        %1378 = vst [vmem:[#allocation3 + $0x2c0] sm:$0xff] %v1370
        %1379 = vst [vmem:[#allocation3 + $0x2c8] sm:$0xff] %v1371
        %1380 = vst [vmem:[#allocation3 + $0x2d0] sm:$0xff] %v1372
        %1381 = vst [vmem:[#allocation3 + $0x2d8] sm:$0xff] %v1373
        %v1382 = vld [vmem:[#allocation2 + $0x8] sm:$0xff]
        %v1383 = vld [vmem:[#allocation2 + $0x10] sm:$0xff]
        %v1384 = vld [vmem:[#allocation2 + $0x18] sm:$0xff]
        %v1385 = vld [vmem:[#allocation2 + $0x28] sm:$0xff]
        %v1386 = vld [vmem:[#allocation2 + $0x30] sm:$0xff]
        %v1387 = vld [vmem:[#allocation2 + $0x38] sm:$0xff]
        %1388 = vrot.lane.b32.xlu0 %v436, 33
        %v1389 = vpop.permute.xlu0 %1388
        %1390 = vrot.lane.b32.xlu0 %v440, 33
        %v1391 = vpop.permute.xlu0 %1390
        %v1392 = vsel %vm377, %v1389, %v1391
        %v1396 = vmul.bf16 %v1382, %v1389
        %v1397 = vmul.bf16 %v1383, %v1392
        %v1398 = vmul.bf16 %v1384, %v1391
        %v1399 = vmul.bf16 %v1385, %v1389
        %v1400 = vmul.bf16 %v1386, %v1392
        %v1401 = vmul.bf16 %v1387, %v1391
        %1408 = vrot.lane.b32.xlu0 %v1396, 95
        %v1409 = vpop.permute.xlu0 %1408
        %1410 = vrot.lane.b32.xlu0 %v1397, 95
        %v1411 = vpop.permute.xlu0 %1410
        %1412 = vrot.lane.b32.xlu0 %v1398, 95
        %v1413 = vpop.permute.xlu0 %1412
        %1414 = vrot.lane.b32.xlu0 %v1399, 95
        %v1415 = vpop.permute.xlu0 %1414
        %1416 = vrot.lane.b32.xlu0 %v1400, 95
        %v1417 = vpop.permute.xlu0 %1416
        %1418 = vrot.lane.b32.xlu0 %v1401, 95
        %v1419 = vpop.permute.xlu0 %1418
        %v1420 = vsel %vm348, %v1409, %v1411
        %v1421 = vsel %vm348, %v1411, %v1413
        %v1422 = vsel %vm348, %v1415, %v1417
        %v1423 = vsel %vm348, %v1417, %v1419
        %1428 = vst [vmem:[#allocation3 + $0x2e0] sm:$0xff] %v1420
        %1429 = vst [vmem:[#allocation3 + $0x2e8] sm:$0xff] %v1421
        %1430 = vst [vmem:[#allocation3 + $0x2f0] sm:$0xff] %v1422
        %1431 = vst [vmem:[#allocation3 + $0x2f8] sm:$0xff] %v1423
        %v1432 = vld [vmem:[#allocation2 + $0x8] sm:$0xff]
        %v1433 = vld [vmem:[#allocation2 + $0x10] sm:$0xff]
        %v1434 = vld [vmem:[#allocation2 + $0x18] sm:$0xff]
        %v1435 = vld [vmem:[#allocation2 + $0x28] sm:$0xff]
        %v1436 = vld [vmem:[#allocation2 + $0x30] sm:$0xff]
        %v1437 = vld [vmem:[#allocation2 + $0x38] sm:$0xff]
        %1438 = vrot.lane.b32.xlu0 %v498, 34
        %v1439 = vpop.permute.xlu0 %1438
        %1440 = vrot.lane.b32.xlu0 %v502, 34
        %v1441 = vpop.permute.xlu0 %1440
        %v1442 = vsel %vm309, %v1439, %v1441
        %v1446 = vmul.bf16 %v1432, %v1439
        %v1447 = vmul.bf16 %v1433, %v1442
        %v1448 = vmul.bf16 %v1434, %v1441
        %v1449 = vmul.bf16 %v1435, %v1439
        %v1450 = vmul.bf16 %v1436, %v1442
        %v1451 = vmul.bf16 %v1437, %v1441
        %1458 = vrot.lane.b32.xlu0 %v1446, 94
        %v1459 = vpop.permute.xlu0 %1458
        %1460 = vrot.lane.b32.xlu0 %v1447, 94
        %v1461 = vpop.permute.xlu0 %1460
        %1462 = vrot.lane.b32.xlu0 %v1448, 94
        %v1463 = vpop.permute.xlu0 %1462
        %1464 = vrot.lane.b32.xlu0 %v1449, 94
        %v1465 = vpop.permute.xlu0 %1464
        %1466 = vrot.lane.b32.xlu0 %v1450, 94
        %v1467 = vpop.permute.xlu0 %1466
        %1468 = vrot.lane.b32.xlu0 %v1451, 94
        %v1469 = vpop.permute.xlu0 %1468
        %v1470 = vsel %vm280, %v1459, %v1461
        %v1471 = vsel %vm280, %v1461, %v1463
        %v1472 = vsel %vm280, %v1465, %v1467
        %v1473 = vsel %vm280, %v1467, %v1469
        %1478 = vst [vmem:[#allocation3 + $0x300] sm:$0xff] %v1470
        %1479 = vst [vmem:[#allocation3 + $0x308] sm:$0xff] %v1471
        %1480 = vst [vmem:[#allocation3 + $0x310] sm:$0xff] %v1472
        %1481 = vst [vmem:[#allocation3 + $0x318] sm:$0xff] %v1473
        %v1482 = vld [vmem:[#allocation3] sm:$0xff]
        %v1483 = vld [vmem:[#allocation3 + $0x8] sm:$0xff]
        %v1484 = vld [vmem:[#allocation3 + $0x10] sm:$0xff]
        %v1485 = vld [vmem:[#allocation3 + $0x18] sm:$0xff]
        %v1486 = vld [vmem:[#allocation3 + $0x20] sm:$0xff]
        %v1487 = vld [vmem:[#allocation3 + $0x28] sm:$0xff]
        %v1488 = vld [vmem:[#allocation3 + $0x30] sm:$0xff]
        %v1489 = vld [vmem:[#allocation3 + $0x38] sm:$0xff]
        %v1490 = vld [vmem:[#allocation3 + $0x40] sm:$0xff]
        %v1491 = vld [vmem:[#allocation3 + $0x48] sm:$0xff]
        %v1492 = vld [vmem:[#allocation3 + $0x50] sm:$0xff]
        %v1493 = vld [vmem:[#allocation3 + $0x58] sm:$0xff]
        %v1494 = vld [vmem:[#allocation3 + $0x60] sm:$0xff]
        %v1495 = vld [vmem:[#allocation3 + $0x68] sm:$0xff]
        %v1496 = vld [vmem:[#allocation3 + $0x70] sm:$0xff]
        %v1497 = vld [vmem:[#allocation3 + $0x78] sm:$0xff]
        %v1498 = vld [vmem:[#allocation3 + $0x80] sm:$0xff]
        %v1499 = vld [vmem:[#allocation3 + $0x88] sm:$0xff]
        %v1500 = vld [vmem:[#allocation3 + $0x90] sm:$0xff]
        %v1501 = vld [vmem:[#allocation3 + $0x98] sm:$0xff]
        %v1502 = vld [vmem:[#allocation3 + $0xa0] sm:$0xff]
        %v1503 = vld [vmem:[#allocation3 + $0xa8] sm:$0xff]
        %v1504 = vld [vmem:[#allocation3 + $0xb0] sm:$0xff]
        %v1505 = vld [vmem:[#allocation3 + $0xb8] sm:$0xff]
        %v1506 = vld [vmem:[#allocation3 + $0xc0] sm:$0xff]
        %v1507 = vld [vmem:[#allocation3 + $0xc8] sm:$0xff]
        %v1508 = vld [vmem:[#allocation3 + $0xd0] sm:$0xff]
        %v1509 = vld [vmem:[#allocation3 + $0xd8] sm:$0xff]
        %v1510 = vld [vmem:[#allocation3 + $0xe0] sm:$0xff]
        %v1511 = vld [vmem:[#allocation3 + $0xe8] sm:$0xff]
        %v1512 = vld [vmem:[#allocation3 + $0xf0] sm:$0xff]
        %v1513 = vld [vmem:[#allocation3 + $0xf8] sm:$0xff]
        %v1514 = vld [vmem:[#allocation3 + $0x100] sm:$0xff]
        %v1515 = vld [vmem:[#allocation3 + $0x108] sm:$0xff]
        %v1516 = vld [vmem:[#allocation3 + $0x110] sm:$0xff]
        %v1517 = vld [vmem:[#allocation3 + $0x118] sm:$0xff]
        %v1518 = vld [vmem:[#allocation3 + $0x120] sm:$0xff]
        %v1519 = vld [vmem:[#allocation3 + $0x128] sm:$0xff]
        %v1520 = vld [vmem:[#allocation3 + $0x130] sm:$0xff]
        %v1521 = vld [vmem:[#allocation3 + $0x138] sm:$0xff]
        %v1522 = vld [vmem:[#allocation3 + $0x140] sm:$0xff]
        %v1523 = vld [vmem:[#allocation3 + $0x148] sm:$0xff]
        %v1524 = vld [vmem:[#allocation3 + $0x150] sm:$0xff]
        %v1525 = vld [vmem:[#allocation3 + $0x158] sm:$0xff]
        %v1526 = vld [vmem:[#allocation3 + $0x160] sm:$0xff]
        %v1527 = vld [vmem:[#allocation3 + $0x168] sm:$0xff]
        %v1528 = vld [vmem:[#allocation3 + $0x170] sm:$0xff]
        %v1529 = vld [vmem:[#allocation3 + $0x178] sm:$0xff]
        %v1530 = vld [vmem:[#allocation3 + $0x180] sm:$0xff]
        %v1531 = vld [vmem:[#allocation3 + $0x188] sm:$0xff]
        %v1532 = vld [vmem:[#allocation3 + $0x190] sm:$0xff]
        %v1533 = vld [vmem:[#allocation3 + $0x198] sm:$0xff]
        %v1534 = vld [vmem:[#allocation3 + $0x1a0] sm:$0xff]
        %v1535 = vld [vmem:[#allocation3 + $0x1a8] sm:$0xff]
        %v1536 = vld [vmem:[#allocation3 + $0x1b0] sm:$0xff]
        %v1537 = vld [vmem:[#allocation3 + $0x1b8] sm:$0xff]
        %v1538 = vld [vmem:[#allocation3 + $0x1c0] sm:$0xff]
        %v1539 = vld [vmem:[#allocation3 + $0x1c8] sm:$0xff]
        %v1540 = vld [vmem:[#allocation3 + $0x1d0] sm:$0xff]
        %v1541 = vld [vmem:[#allocation3 + $0x1d8] sm:$0xff]
        %v1542 = vld [vmem:[#allocation3 + $0x1e0] sm:$0xff]
        %v1543 = vld [vmem:[#allocation3 + $0x1e8] sm:$0xff]
        %v1544 = vld [vmem:[#allocation3 + $0x1f0] sm:$0xff]
        %v1545 = vld [vmem:[#allocation3 + $0x1f8] sm:$0xff]
        %v1546 = vld [vmem:[#allocation3 + $0x200] sm:$0xff]
        %v1547 = vld [vmem:[#allocation3 + $0x208] sm:$0xff]
        %v1548 = vld [vmem:[#allocation3 + $0x210] sm:$0xff]
        %v1549 = vld [vmem:[#allocation3 + $0x218] sm:$0xff]
        %v1550 = vld [vmem:[#allocation3 + $0x220] sm:$0xff]
        %v1551 = vld [vmem:[#allocation3 + $0x228] sm:$0xff]
        %v1552 = vld [vmem:[#allocation3 + $0x230] sm:$0xff]
        %v1553 = vld [vmem:[#allocation3 + $0x238] sm:$0xff]
        %v1554 = vld [vmem:[#allocation3 + $0x240] sm:$0xff]
        %v1555 = vld [vmem:[#allocation3 + $0x248] sm:$0xff]
        %v1556 = vld [vmem:[#allocation3 + $0x250] sm:$0xff]
        %v1557 = vld [vmem:[#allocation3 + $0x258] sm:$0xff]
        %v1558 = vld [vmem:[#allocation3 + $0x260] sm:$0xff]
        %v1559 = vld [vmem:[#allocation3 + $0x268] sm:$0xff]
        %v1560 = vld [vmem:[#allocation3 + $0x270] sm:$0xff]
        %v1561 = vld [vmem:[#allocation3 + $0x278] sm:$0xff]
        %v1562 = vld [vmem:[#allocation3 + $0x280] sm:$0xff]
        %v1563 = vld [vmem:[#allocation3 + $0x288] sm:$0xff]
        %v1564 = vld [vmem:[#allocation3 + $0x290] sm:$0xff]
        %v1565 = vld [vmem:[#allocation3 + $0x298] sm:$0xff]
        %v1566 = vld [vmem:[#allocation3 + $0x2a0] sm:$0xff]
        %v1567 = vld [vmem:[#allocation3 + $0x2a8] sm:$0xff]
        %v1568 = vld [vmem:[#allocation3 + $0x2b0] sm:$0xff]
        %v1569 = vld [vmem:[#allocation3 + $0x2b8] sm:$0xff]
        %v1570 = vld [vmem:[#allocation3 + $0x2c0] sm:$0xff]
        %v1571 = vld [vmem:[#allocation3 + $0x2c8] sm:$0xff]
        %v1572 = vld [vmem:[#allocation3 + $0x2d0] sm:$0xff]
        %v1573 = vld [vmem:[#allocation3 + $0x2d8] sm:$0xff]
        %v1574 = vld [vmem:[#allocation3 + $0x2e0] sm:$0xff]
        %v1575 = vld [vmem:[#allocation3 + $0x2e8] sm:$0xff]
        %v1576 = vld [vmem:[#allocation3 + $0x2f0] sm:$0xff]
        %v1577 = vld [vmem:[#allocation3 + $0x2f8] sm:$0xff]
        %v1578 = vld [vmem:[#allocation3 + $0x300] sm:$0xff]
        %v1579 = vld [vmem:[#allocation3 + $0x308] sm:$0xff]
        %v1580 = vld [vmem:[#allocation3 + $0x310] sm:$0xff]
        %v1581 = vld [vmem:[#allocation3 + $0x318] sm:$0xff]
        %v1582 = vld [vmem:[%s3] sm:$0xff]
        %v1583 = vld [vmem:[%s3 + $0x8] sm:$0xff]
        %v1584 = vld [vmem:[%s3 + $0x10] sm:$0xff]
        %v1585 = vld [vmem:[%s3 + $0x18] sm:$0xff]
        %1587 = vset.pattern.permute.xlu0 0
        %1588 = vperm.xlu0 %1587, %v1582
        %v1589 = vpop.permute.xlu0 %1588
        %1592 = vset.pattern.permute.xlu0 0
        %1593 = vperm.xlu0 %1592, %v1583
        %v1594 = vpop.permute.xlu0 %1593
        %1597 = vset.pattern.permute.xlu0 0
        %1598 = vperm.xlu0 %1597, %v1584
        %v1599 = vpop.permute.xlu0 %1598
        %1602 = vset.pattern.permute.xlu0 0
        %1603 = vperm.xlu0 %1602, %v1585
        %v1604 = vpop.permute.xlu0 %1603
        %v1622 = vunpack.c.l.b16 %v233
        %v1623 = vunpack.c.h.b16 %v233
        %v1624 = vunpack.c.l.b16 %v234
        %v1625 = vunpack.c.h.b16 %v234
        %v1626 = vunpack.c.l.b16 %v235
        %v1627 = vunpack.c.h.b16 %v235
        %v1628 = vunpack.c.l.b16 %v236
        %v1629 = vunpack.c.l.b16 %v237
        %v1630 = vunpack.c.h.b16 %v237
        %v1631 = vunpack.c.l.b16 %v238
        %v1632 = vunpack.c.h.b16 %v238
        %v1633 = vunpack.c.l.b16 %v239
        %v1634 = vunpack.c.h.b16 %v239
        %v1635 = vunpack.c.l.b16 %v240
        %v1636 = vunpack.c.l.b16 %v241
        %v1637 = vunpack.c.h.b16 %v241
        %v1638 = vunpack.c.l.b16 %v242
        %v1639 = vunpack.c.h.b16 %v242
        %v1640 = vunpack.c.l.b16 %v243
        %v1641 = vunpack.c.h.b16 %v243
        %v1642 = vunpack.c.l.b16 %v244
        %v1643 = vunpack.c.l.b16 %v245
        %v1644 = vunpack.c.h.b16 %v245
        %v1645 = vunpack.c.l.b16 %v246
        %v1646 = vunpack.c.h.b16 %v246
        %v1647 = vunpack.c.l.b16 %v247
        %v1648 = vunpack.c.h.b16 %v247
        %v1649 = vunpack.c.l.b16 %v248
        %v1650 = vpack.c.b16 %v1629, %v1622
        %v1651 = vpack.c.b16 %v1630, %v1623
        %v1652 = vpack.c.b16 %v1631, %v1624
        %v1653 = vpack.c.b16 %v1632, %v1625
        %v1654 = vpack.c.b16 %v1633, %v1626
        %v1655 = vpack.c.b16 %v1634, %v1627
        %v1656 = vpack.c.b16 %v1635, %v1628
        %v1657 = vpack.c.b16 %v1643, %v1636
        %v1658 = vpack.c.b16 %v1644, %v1637
        %v1659 = vpack.c.b16 %v1645, %v1638
        %v1660 = vpack.c.b16 %v1646, %v1639
        %v1661 = vpack.c.b16 %v1647, %v1640
        %v1662 = vpack.c.b16 %v1648, %v1641
        %v1663 = vpack.c.b16 %v1649, %v1642
        %vm1676 = vcmask 261120
        %v1678 = vsel %vm1676, %v1656, 0
        %v1681 = vsel %vm1676, %v1663, 0
        %1683 = vmatprep.subr.bf16.mxu0 %v1483
        %1684 = vmatpush1.bf16.msra.mxu0 %v1482
        %1685 = vmatprep.subr.bf16.mxu0 %v1485
        %1686 = vmatpush1.bf16.msra.mxu0 %v1484
        %1687 = vmatprep.subr.bf16.mxu0 %v1487
        %1688 = vmatpush1.bf16.msra.mxu0 %v1486
        %1689 = vmatprep.subr.bf16.mxu0 %v1489
        %1690 = vmatpush1.bf16.msra.mxu0 %v1488
        %1691 = vmatprep.subr.bf16.mxu0 %v1491
        %1692 = vmatpush1.bf16.msra.mxu0 %v1490
        %1693 = vmatprep.subr.bf16.mxu0 %v1493
        %1694 = vmatpush1.bf16.msra.mxu0 %v1492
        %1695 = vmatprep.subr.bf16.mxu0 %v1495
        %1696 = vmatpush1.bf16.msra.mxu0 %v1494
        %1697 = vmatprep.subr.bf16.mxu0 %v1497
        %1698 = vmatpush1.bf16.msra.mxu0 %v1496
        %1699 = vmatprep.subr.bf16.mxu0 %v1499
        %1700 = vmatpush1.bf16.msra.mxu0 %v1498
        %1701 = vmatprep.subr.bf16.mxu0 %v1501
        %1702 = vmatpush1.bf16.msra.mxu0 %v1500
        %1703 = vmatprep.subr.bf16.mxu0 %v1503
        %1704 = vmatpush1.bf16.msra.mxu0 %v1502
        %1705 = vmatprep.subr.bf16.mxu0 %v1505
        %1706 = vmatpush1.bf16.msra.mxu0 %v1504
        %1707 = vmatprep.subr.bf16.mxu0 %v1507
        %1708 = vmatpush1.bf16.msra.mxu0 %v1506
        %1709 = vmatprep.subr.bf16.mxu0 %v1509
        %1710 = vmatpush1.bf16.msra.mxu0 %v1508
        %1711 = vmatprep.subr.bf16.mxu0 %v1511
        %1712 = vmatpush1.bf16.msra.mxu0 %v1510
        %1713 = vmatprep.subr.bf16.mxu0 %v1513
        %1714 = vmatpush1.bf16.msra.mxu0 %v1512
        %1715 = vmatprep.mubr.bf16.mxu0 %v1651
        %1716 = vmatmul.mubr.bf16.gmra.mrb[0].mxu0 %v1650
        %v1717 = vpop.f32.mrb[0].mxu0
        %v1718 = vadd.f32 %v1589, %v1717
        %v1719 = vpop.f32.mrb[0].mxu0
        %v1720 = vadd.f32 %v1589, %v1719
        %v1721 = vpop.f32.mrb[0].mxu0
        %v1722 = vadd.f32 %v1594, %v1721
        %v1723 = vpop.f32.mrb[0].mxu0
        %v1724 = vadd.f32 %v1594, %v1723
        %1725 = vmatprep.mubr.bf16.mxu0 %v1658
        %1726 = vmatmul.mubr.bf16.gmra.mrb[0].mxu0 %v1657
        %v1727 = vpop.f32.mrb[0].mxu0
        %v1728 = vadd.f32 %v1599, %v1727
        %v1729 = vpop.f32.mrb[0].mxu0
        %v1730 = vadd.f32 %v1599, %v1729
        %v1731 = vpop.f32.mrb[0].mxu0
        %v1732 = vadd.f32 %v1604, %v1731
        %v1733 = vpop.f32.mrb[0].mxu0
        %v1734 = vadd.f32 %v1604, %v1733
        %1735 = vdwg.mxu0
        %1736 = vmatprep.subr.bf16.mxu0 %v1515
        %1737 = vmatpush1.bf16.msra.mxu0 %v1514
        %1738 = vmatprep.subr.bf16.mxu0 %v1517
        %1739 = vmatpush1.bf16.msra.mxu0 %v1516
        %1740 = vmatprep.subr.bf16.mxu0 %v1519
        %1741 = vmatpush1.bf16.msra.mxu0 %v1518
        %1742 = vmatprep.subr.bf16.mxu0 %v1521
        %1743 = vmatpush1.bf16.msra.mxu0 %v1520
        %1744 = vmatprep.subr.bf16.mxu0 %v1523
        %1745 = vmatpush1.bf16.msra.mxu0 %v1522
        %1746 = vmatprep.subr.bf16.mxu0 %v1525
        %1747 = vmatpush1.bf16.msra.mxu0 %v1524
        %1748 = vmatprep.subr.bf16.mxu0 %v1527
        %1749 = vmatpush1.bf16.msra.mxu0 %v1526
        %1750 = vmatprep.subr.bf16.mxu0 %v1529
        %1751 = vmatpush1.bf16.msra.mxu0 %v1528
        %1752 = vmatprep.subr.bf16.mxu0 %v1531
        %1753 = vmatpush1.bf16.msra.mxu0 %v1530
        %1754 = vmatprep.subr.bf16.mxu0 %v1533
        %1755 = vmatpush1.bf16.msra.mxu0 %v1532
        %1756 = vmatprep.subr.bf16.mxu0 %v1535
        %1757 = vmatpush1.bf16.msra.mxu0 %v1534
        %1758 = vmatprep.subr.bf16.mxu0 %v1537
        %1759 = vmatpush1.bf16.msra.mxu0 %v1536
        %1760 = vmatprep.subr.bf16.mxu0 %v1539
        %1761 = vmatpush1.bf16.msra.mxu0 %v1538
        %1762 = vmatprep.subr.bf16.mxu0 %v1541
        %1763 = vmatpush1.bf16.msra.mxu0 %v1540
        %1764 = vmatprep.subr.bf16.mxu0 %v1543
        %1765 = vmatpush1.bf16.msra.mxu0 %v1542
        %1766 = vmatprep.subr.bf16.mxu0 %v1545
        %1767 = vmatpush1.bf16.msra.mxu0 %v1544
        %1768 = vmatprep.mubr.bf16.mxu0 %v1653
        %1769 = vmatmul.mubr.bf16.gmra.mrb[0].mxu0 %v1652
        %v1770 = vpop.f32.mrb[0].mxu0
        %v1771 = vadd.f32 %v1718, %v1770
        %v1772 = vpop.f32.mrb[0].mxu0
        %v1773 = vadd.f32 %v1720, %v1772
        %v1774 = vpop.f32.mrb[0].mxu0
        %v1775 = vadd.f32 %v1722, %v1774
        %v1776 = vpop.f32.mrb[0].mxu0
        %v1777 = vadd.f32 %v1724, %v1776
        %1778 = vmatprep.mubr.bf16.mxu0 %v1660
        %1779 = vmatmul.mubr.bf16.gmra.mrb[0].mxu0 %v1659
        %v1780 = vpop.f32.mrb[0].mxu0
        %v1781 = vadd.f32 %v1728, %v1780
        %v1782 = vpop.f32.mrb[0].mxu0
        %v1783 = vadd.f32 %v1730, %v1782
        %v1784 = vpop.f32.mrb[0].mxu0
        %v1785 = vadd.f32 %v1732, %v1784
        %v1786 = vpop.f32.mrb[0].mxu0
        %v1787 = vadd.f32 %v1734, %v1786
        %1788 = vdwg.mxu0
        %1789 = vmatprep.subr.bf16.mxu0 %v1547
        %1790 = vmatpush1.bf16.msra.mxu0 %v1546
        %1791 = vmatprep.subr.bf16.mxu0 %v1549
        %1792 = vmatpush1.bf16.msra.mxu0 %v1548
        %1793 = vmatprep.subr.bf16.mxu0 %v1551
        %1794 = vmatpush1.bf16.msra.mxu0 %v1550
        %1795 = vmatprep.subr.bf16.mxu0 %v1553
        %1796 = vmatpush1.bf16.msra.mxu0 %v1552
        %1797 = vmatprep.subr.bf16.mxu0 %v1555
        %1798 = vmatpush1.bf16.msra.mxu0 %v1554
        %1799 = vmatprep.subr.bf16.mxu0 %v1557
        %1800 = vmatpush1.bf16.msra.mxu0 %v1556
        %1801 = vmatprep.subr.bf16.mxu0 %v1559
        %1802 = vmatpush1.bf16.msra.mxu0 %v1558
        %1803 = vmatprep.subr.bf16.mxu0 %v1561
        %1804 = vmatpush1.bf16.msra.mxu0 %v1560
        %1805 = vmatprep.subr.bf16.mxu0 %v1563
        %1806 = vmatpush1.bf16.msra.mxu0 %v1562
        %1807 = vmatprep.subr.bf16.mxu0 %v1565
        %1808 = vmatpush1.bf16.msra.mxu0 %v1564
        %1809 = vmatprep.subr.bf16.mxu0 %v1567
        %1810 = vmatpush1.bf16.msra.mxu0 %v1566
        %1811 = vmatprep.subr.bf16.mxu0 %v1569
        %1812 = vmatpush1.bf16.msra.mxu0 %v1568
        %1813 = vmatprep.subr.bf16.mxu0 %v1571
        %1814 = vmatpush1.bf16.msra.mxu0 %v1570
        %1815 = vmatprep.subr.bf16.mxu0 %v1573
        %1816 = vmatpush1.bf16.msra.mxu0 %v1572
        %1817 = vmatprep.subr.bf16.mxu0 %v1575
        %1818 = vmatpush1.bf16.msra.mxu0 %v1574
        %1819 = vmatprep.subr.bf16.mxu0 %v1577
        %1820 = vmatpush1.bf16.msra.mxu0 %v1576
        %1821 = vmatprep.mubr.bf16.mxu0 %v1655
        %1822 = vmatmul.mubr.bf16.gmra.mrb[0].mxu0 %v1654
        %v1823 = vpop.f32.mrb[0].mxu0
        %v1824 = vadd.f32 %v1771, %v1823
        %v1825 = vpop.f32.mrb[0].mxu0
        %v1826 = vadd.f32 %v1773, %v1825
        %v1827 = vpop.f32.mrb[0].mxu0
        %v1828 = vadd.f32 %v1775, %v1827
        %v1829 = vpop.f32.mrb[0].mxu0
        %v1830 = vadd.f32 %v1777, %v1829
        %1831 = vmatprep.mubr.bf16.mxu0 %v1662
        %1832 = vmatmul.mubr.bf16.gmra.mrb[0].mxu0 %v1661
        %v1833 = vpop.f32.mrb[0].mxu0
        %v1834 = vadd.f32 %v1781, %v1833
        %v1835 = vpop.f32.mrb[0].mxu0
        %v1836 = vadd.f32 %v1783, %v1835
        %v1837 = vpop.f32.mrb[0].mxu0
        %v1838 = vadd.f32 %v1785, %v1837
        %v1839 = vpop.f32.mrb[0].mxu0
        %v1840 = vadd.f32 %v1787, %v1839
        %1841 = vdwg.mxu0
        %1842 = vmatprep.subr.bf16.mxu0 %v1579
        %1843 = vmatpush1.bf16.msra.mxu0 %v1578
        %1844 = vmatprep.subr.bf16.mxu0 %v1581
        %1845 = vmatpush1.bf16.msra.mxu0 %v1580
        %1846 = vmatprep.subr.bf16.mxu0 0
        %1847 = vmatpush1.bf16.msra.mxu0 0
        %1848 = vmatprep.subr.bf16.mxu0 0
        %1849 = vmatpush1.bf16.msra.mxu0 0
        %1850 = vmatprep.subr.bf16.mxu0 0
        %1851 = vmatpush1.bf16.msra.mxu0 0
        %1852 = vmatprep.subr.bf16.mxu0 0
        %1853 = vmatpush1.bf16.msra.mxu0 0
        %1854 = vmatprep.subr.bf16.mxu0 0
        %1855 = vmatpush1.bf16.msra.mxu0 0
        %1856 = vmatprep.subr.bf16.mxu0 0
        %1857 = vmatpush1.bf16.msra.mxu0 0
        %1858 = vmatprep.subr.bf16.mxu0 0
        %1859 = vmatpush1.bf16.msra.mxu0 0
        %1860 = vmatprep.subr.bf16.mxu0 0
        %1861 = vmatpush1.bf16.msra.mxu0 0
        %1862 = vmatprep.subr.bf16.mxu0 0
        %1863 = vmatpush1.bf16.msra.mxu0 0
        %1864 = vmatprep.subr.bf16.mxu0 0
        %1865 = vmatpush1.bf16.msra.mxu0 0
        %1866 = vmatprep.subr.bf16.mxu0 0
        %1867 = vmatpush1.bf16.msra.mxu0 0
        %1868 = vmatprep.subr.bf16.mxu0 0
        %1869 = vmatpush1.bf16.msra.mxu0 0
        %1870 = vmatprep.subr.bf16.mxu0 0
        %1871 = vmatpush1.bf16.msra.mxu0 0
        %1872 = vmatprep.subr.bf16.mxu0 0
        %1873 = vmatpush1.bf16.msra.mxu0 0
        %1874 = vmatprep.mubr.bf16.mxu0 0
        %1875 = vmatmul.mubr.bf16.gmra.mrb[0].mxu0 %v1678
        %v1876 = vpop.f32.mrb[0].mxu0
        %v1877 = vadd.f32 %v1824, %v1876
        %v1878 = vpop.f32.mrb[0].mxu0
        %v1879 = vadd.f32 %v1826, %v1878
        %v1880 = vpop.f32.mrb[0].mxu0
        %v1881 = vadd.f32 %v1828, %v1880
        %v1882 = vpop.f32.mrb[0].mxu0
        %v1883 = vadd.f32 %v1830, %v1882
        %1884 = vmatprep.mubr.bf16.mxu0 0
        %1885 = vmatmul.mubr.bf16.gmra.mrb[0].mxu0 %v1681
        %v1886 = vpop.f32.mrb[0].mxu0
        %v1887 = vadd.f32 %v1834, %v1886
        %v1888 = vpop.f32.mrb[0].mxu0
        %v1889 = vadd.f32 %v1836, %v1888
        %v1890 = vpop.f32.mrb[0].mxu0
        %v1891 = vadd.f32 %v1838, %v1890
        %v1892 = vpop.f32.mrb[0].mxu0
        %v1893 = vadd.f32 %v1840, %v1892
        %1894 = vdwg.mxu0
        %v1895 = vmax.f32 %v1877, 0.0
        %v1896 = vmax.f32 %v1879, 0.0
        %v1897 = vmax.f32 %v1881, 0.0
        %v1898 = vmax.f32 %v1883, 0.0
        %v1899 = vmax.f32 %v1887, 0.0
        %v1900 = vmax.f32 %v1889, 0.0
        %v1901 = vmax.f32 %v1891, 0.0
        %v1902 = vmax.f32 %v1893, 0.0
        %v1903 = vpack.c.bf16 %v1897, %v1895
        %v1904 = vpack.c.bf16 %v1898, %v1896
        %v1905 = vpack.c.bf16 %v1901, %v1899
        %v1906 = vpack.c.bf16 %v1902, %v1900
        %1907 = vst [vmem:[#allocation2 + $0x8] sm:$0xff] %v1903
        %1908 = vst [vmem:[#allocation2 + $0x10] sm:$0xff] %v1904
        %1909 = vst [vmem:[#allocation2 + $0x28] sm:$0xff] %v1905
        %1910 = vst [vmem:[#allocation2 + $0x30] sm:$0xff] %v1906
        %s1911 = scalar_lea.vmem [#allocation4], 112
        %v1912 = vld [vmem:[%s1911] sm:$0xff]
        %v1913 = vld [vmem:[%s1911 + $0x8] sm:$0xff]
        %v1914 = vld [vmem:[%s1911 + $0x10] sm:$0xff]
        %v1915 = vld [vmem:[%s1911 + $0x18] sm:$0xf]
        %v1916 = vld [vmem:[%s1911 + $0x1c] sm:$0xff]
        %v1917 = vld [vmem:[%s1911 + $0x24] sm:$0xff]
        %v1918 = vld [vmem:[%s1911 + $0x2c] sm:$0xff]
        %v1919 = vld [vmem:[%s1911 + $0x34] sm:$0xf]
        %v1920 = vld [vmem:[%s1911 + $0x38] sm:$0xff]
        %v1921 = vld [vmem:[%s1911 + $0x40] sm:$0xff]
        %v1922 = vld [vmem:[%s1911 + $0x48] sm:$0xff]
        %v1923 = vld [vmem:[%s1911 + $0x50] sm:$0xf]
        %v1924 = vld [vmem:[%s1911 + $0x54] sm:$0xff]
        %v1925 = vld [vmem:[%s1911 + $0x5c] sm:$0xff]
        %v1926 = vld [vmem:[%s1911 + $0x64] sm:$0xff]
        %v1927 = vld [vmem:[%s1911 + $0x6c] sm:$0xf]
        %v1928 = vld [vmem:[#allocation2] sm:$0xff]
        %v1929 = vld [vmem:[#allocation2 + $0x8] sm:$0xff]
        %v1930 = vld [vmem:[#allocation2 + $0x10] sm:$0xff]
        %v1931 = vld [vmem:[#allocation2 + $0x20] sm:$0xff]
        %v1932 = vld [vmem:[#allocation2 + $0x28] sm:$0xff]
        %v1933 = vld [vmem:[#allocation2 + $0x30] sm:$0xff]
        %v1934 = vmul.bf16 %v1928, %v277
        %v1935 = vmul.bf16 %v1929, %v281
        %v1936 = vmul.bf16 %v1930, %v279
        %v1937 = vmul.bf16 %v1931, %v277
        %v1938 = vmul.bf16 %v1932, %v281
        %v1939 = vmul.bf16 %v1933, %v279
        %1946 = vrot.lane.b32.xlu0 %v1934, 34
        %v1947 = vpop.permute.xlu0 %1946
        %1948 = vrot.lane.b32.xlu0 %v1935, 34
        %v1949 = vpop.permute.xlu0 %1948
        %1950 = vrot.lane.b32.xlu0 %v1936, 34
        %v1951 = vpop.permute.xlu0 %1950
        %1952 = vrot.lane.b32.xlu0 %v1937, 34
        %v1953 = vpop.permute.xlu0 %1952
        %1954 = vrot.lane.b32.xlu0 %v1938, 34
        %v1955 = vpop.permute.xlu0 %1954
        %1956 = vrot.lane.b32.xlu0 %v1939, 34
        %v1957 = vpop.permute.xlu0 %1956
        %v1958 = vsel %vm309, %v1947, %v1949
        %v1959 = vsel %vm309, %v1949, %v1951
        %v1960 = vsel %vm309, %v1953, %v1955
        %v1961 = vsel %vm309, %v1955, %v1957
        %1966 = vst [vmem:[#allocation3] sm:$0xff] %v1958
        %1967 = vst [vmem:[#allocation3 + $0x8] sm:$0xff] %v1959
        %1968 = vst [vmem:[#allocation3 + $0x10] sm:$0xff] %v1960
        %1969 = vst [vmem:[#allocation3 + $0x18] sm:$0xff] %v1961
        %v1970 = vld [vmem:[#allocation2] sm:$0xff]
        %v1971 = vld [vmem:[#allocation2 + $0x8] sm:$0xff]
        %v1972 = vld [vmem:[#allocation2 + $0x10] sm:$0xff]
        %v1973 = vld [vmem:[#allocation2 + $0x20] sm:$0xff]
        %v1974 = vld [vmem:[#allocation2 + $0x28] sm:$0xff]
        %v1975 = vld [vmem:[#allocation2 + $0x30] sm:$0xff]
        %v1976 = vmul.bf16 %v1970, %v345
        %v1977 = vmul.bf16 %v1971, %v349
        %v1978 = vmul.bf16 %v1972, %v347
        %v1979 = vmul.bf16 %v1973, %v345
        %v1980 = vmul.bf16 %v1974, %v349
        %v1981 = vmul.bf16 %v1975, %v347
        %1988 = vrot.lane.b32.xlu0 %v1976, 33
        %v1989 = vpop.permute.xlu0 %1988
        %1990 = vrot.lane.b32.xlu0 %v1977, 33
        %v1991 = vpop.permute.xlu0 %1990
        %1992 = vrot.lane.b32.xlu0 %v1978, 33
        %v1993 = vpop.permute.xlu0 %1992
        %1994 = vrot.lane.b32.xlu0 %v1979, 33
        %v1995 = vpop.permute.xlu0 %1994
        %1996 = vrot.lane.b32.xlu0 %v1980, 33
        %v1997 = vpop.permute.xlu0 %1996
        %1998 = vrot.lane.b32.xlu0 %v1981, 33
        %v1999 = vpop.permute.xlu0 %1998
        %v2000 = vsel %vm377, %v1989, %v1991
        %v2001 = vsel %vm377, %v1991, %v1993
        %v2002 = vsel %vm377, %v1995, %v1997
        %v2003 = vsel %vm377, %v1997, %v1999
        %2008 = vst [vmem:[#allocation3 + $0x20] sm:$0xff] %v2000
        %2009 = vst [vmem:[#allocation3 + $0x28] sm:$0xff] %v2001
        %2010 = vst [vmem:[#allocation3 + $0x30] sm:$0xff] %v2002
        %2011 = vst [vmem:[#allocation3 + $0x38] sm:$0xff] %v2003
        %v2012 = vld [vmem:[#allocation2] sm:$0xff]
        %v2013 = vld [vmem:[#allocation2 + $0x8] sm:$0xff]
        %v2014 = vld [vmem:[#allocation2 + $0x10] sm:$0xff]
        %v2015 = vld [vmem:[#allocation2 + $0x20] sm:$0xff]
        %v2016 = vld [vmem:[#allocation2 + $0x28] sm:$0xff]
        %v2017 = vld [vmem:[#allocation2 + $0x30] sm:$0xff]
        %2024 = vrot.lane.b32.xlu0 %v2012, 32
        %v2025 = vpop.permute.xlu0 %2024
        %2026 = vrot.lane.b32.xlu0 %v2013, 32
        %v2027 = vpop.permute.xlu0 %2026
        %2028 = vrot.lane.b32.xlu0 %v2014, 32
        %v2029 = vpop.permute.xlu0 %2028
        %2030 = vrot.lane.b32.xlu0 %v2015, 32
        %v2031 = vpop.permute.xlu0 %2030
        %2032 = vrot.lane.b32.xlu0 %v2016, 32
        %v2033 = vpop.permute.xlu0 %2032
        %2034 = vrot.lane.b32.xlu0 %v2017, 32
        %v2035 = vpop.permute.xlu0 %2034
        %v2036 = vsel %vm414, %v2025, %v2027
        %v2037 = vsel %vm414, %v2027, %v2029
        %v2038 = vsel %vm414, %v2031, %v2033
        %v2039 = vsel %vm414, %v2033, %v2035
        %2044 = vst [vmem:[#allocation3 + $0x40] sm:$0xff] %v2036
        %2045 = vst [vmem:[#allocation3 + $0x48] sm:$0xff] %v2037
        %2046 = vst [vmem:[#allocation3 + $0x50] sm:$0xff] %v2038
        %2047 = vst [vmem:[#allocation3 + $0x58] sm:$0xff] %v2039
        %v2048 = vld [vmem:[#allocation2] sm:$0xff]
        %v2049 = vld [vmem:[#allocation2 + $0x8] sm:$0xff]
        %v2050 = vld [vmem:[#allocation2 + $0x10] sm:$0xff]
        %v2051 = vld [vmem:[#allocation2 + $0x20] sm:$0xff]
        %v2052 = vld [vmem:[#allocation2 + $0x28] sm:$0xff]
        %v2053 = vld [vmem:[#allocation2 + $0x30] sm:$0xff]
        %v2054 = vmul.bf16 %v2048, %v444
        %v2055 = vmul.bf16 %v2049, %v448
        %v2056 = vmul.bf16 %v2050, %v446
        %v2057 = vmul.bf16 %v2051, %v444
        %v2058 = vmul.bf16 %v2052, %v448
        %v2059 = vmul.bf16 %v2053, %v446
        %2066 = vrot.lane.b32.xlu0 %v2054, 31
        %v2067 = vpop.permute.xlu0 %2066
        %2068 = vrot.lane.b32.xlu0 %v2055, 31
        %v2069 = vpop.permute.xlu0 %2068
        %2070 = vrot.lane.b32.xlu0 %v2056, 31
        %v2071 = vpop.permute.xlu0 %2070
        %2072 = vrot.lane.b32.xlu0 %v2057, 31
        %v2073 = vpop.permute.xlu0 %2072
        %2074 = vrot.lane.b32.xlu0 %v2058, 31
        %v2075 = vpop.permute.xlu0 %2074
        %2076 = vrot.lane.b32.xlu0 %v2059, 31
        %v2077 = vpop.permute.xlu0 %2076
        %v2078 = vsel %vm476, %v2067, %v2069
        %v2079 = vsel %vm476, %v2069, %v2071
        %v2080 = vsel %vm476, %v2073, %v2075
        %v2081 = vsel %vm476, %v2075, %v2077
        %2086 = vst [vmem:[#allocation3 + $0x60] sm:$0xff] %v2078
        %2087 = vst [vmem:[#allocation3 + $0x68] sm:$0xff] %v2079
        %2088 = vst [vmem:[#allocation3 + $0x70] sm:$0xff] %v2080
        %2089 = vst [vmem:[#allocation3 + $0x78] sm:$0xff] %v2081
        %v2090 = vld [vmem:[#allocation2] sm:$0xff]
        %v2091 = vld [vmem:[#allocation2 + $0x8] sm:$0xff]
        %v2092 = vld [vmem:[#allocation2 + $0x10] sm:$0xff]
        %v2093 = vld [vmem:[#allocation2 + $0x20] sm:$0xff]
        %v2094 = vld [vmem:[#allocation2 + $0x28] sm:$0xff]
        %v2095 = vld [vmem:[#allocation2 + $0x30] sm:$0xff]
        %v2096 = vmul.bf16 %v2090, %v506
        %v2097 = vmul.bf16 %v2091, %v510
        %v2098 = vmul.bf16 %v2092, %v508
        %v2099 = vmul.bf16 %v2093, %v506
        %v2100 = vmul.bf16 %v2094, %v510
        %v2101 = vmul.bf16 %v2095, %v508
        %2108 = vrot.lane.b32.xlu0 %v2096, 30
        %v2109 = vpop.permute.xlu0 %2108
        %2110 = vrot.lane.b32.xlu0 %v2097, 30
        %v2111 = vpop.permute.xlu0 %2110
        %2112 = vrot.lane.b32.xlu0 %v2098, 30
        %v2113 = vpop.permute.xlu0 %2112
        %2114 = vrot.lane.b32.xlu0 %v2099, 30
        %v2115 = vpop.permute.xlu0 %2114
        %2116 = vrot.lane.b32.xlu0 %v2100, 30
        %v2117 = vpop.permute.xlu0 %2116
        %2118 = vrot.lane.b32.xlu0 %v2101, 30
        %v2119 = vpop.permute.xlu0 %2118
        %v2120 = vsel %vm538, %v2109, %v2111
        %v2121 = vsel %vm538, %v2111, %v2113
        %v2122 = vsel %vm538, %v2115, %v2117
        %v2123 = vsel %vm538, %v2117, %v2119
        %2128 = vst [vmem:[#allocation3 + $0x80] sm:$0xff] %v2120
        %2129 = vst [vmem:[#allocation3 + $0x88] sm:$0xff] %v2121
        %2130 = vst [vmem:[#allocation3 + $0x90] sm:$0xff] %v2122
        %2131 = vst [vmem:[#allocation3 + $0x98] sm:$0xff] %v2123
        %v2132 = vld [vmem:[#allocation2] sm:$0xff]
        %v2133 = vld [vmem:[#allocation2 + $0x8] sm:$0xff]
        %v2134 = vld [vmem:[#allocation2 + $0x10] sm:$0xff]
        %v2135 = vld [vmem:[#allocation2 + $0x20] sm:$0xff]
        %v2136 = vld [vmem:[#allocation2 + $0x28] sm:$0xff]
        %v2137 = vld [vmem:[#allocation2 + $0x30] sm:$0xff]
        %v2138 = vmul.bf16 %v2132, %v558
        %v2139 = vmul.bf16 %v2133, %v562
        %v2140 = vmul.bf16 %v2134, %v560
        %v2141 = vmul.bf16 %v2135, %v558
        %v2142 = vmul.bf16 %v2136, %v562
        %v2143 = vmul.bf16 %v2137, %v560
        %2150 = vrot.lane.b32.xlu0 %v2138, 18
        %v2151 = vpop.permute.xlu0 %2150
        %2152 = vrot.lane.b32.xlu0 %v2139, 18
        %v2153 = vpop.permute.xlu0 %2152
        %2154 = vrot.lane.b32.xlu0 %v2140, 18
        %v2155 = vpop.permute.xlu0 %2154
        %2156 = vrot.lane.b32.xlu0 %v2141, 18
        %v2157 = vpop.permute.xlu0 %2156
        %2158 = vrot.lane.b32.xlu0 %v2142, 18
        %v2159 = vpop.permute.xlu0 %2158
        %2160 = vrot.lane.b32.xlu0 %v2143, 18
        %v2161 = vpop.permute.xlu0 %2160
        %v2162 = vsel %vm590, %v2151, %v2153
        %v2163 = vsel %vm590, %v2153, %v2155
        %v2164 = vsel %vm590, %v2157, %v2159
        %v2165 = vsel %vm590, %v2159, %v2161
        %2170 = vst [vmem:[#allocation3 + $0xa0] sm:$0xff] %v2162
        %2171 = vst [vmem:[#allocation3 + $0xa8] sm:$0xff] %v2163
        %2172 = vst [vmem:[#allocation3 + $0xb0] sm:$0xff] %v2164
        %2173 = vst [vmem:[#allocation3 + $0xb8] sm:$0xff] %v2165
        %v2174 = vld [vmem:[#allocation2] sm:$0xff]
        %v2175 = vld [vmem:[#allocation2 + $0x8] sm:$0xff]
        %v2176 = vld [vmem:[#allocation2 + $0x10] sm:$0xff]
        %v2177 = vld [vmem:[#allocation2 + $0x20] sm:$0xff]
        %v2178 = vld [vmem:[#allocation2 + $0x28] sm:$0xff]
        %v2179 = vld [vmem:[#allocation2 + $0x30] sm:$0xff]
        %v2180 = vmul.bf16 %v2174, %v610
        %v2181 = vmul.bf16 %v2175, %v614
        %v2182 = vmul.bf16 %v2176, %v612
        %v2183 = vmul.bf16 %v2177, %v610
        %v2184 = vmul.bf16 %v2178, %v614
        %v2185 = vmul.bf16 %v2179, %v612
        %2192 = vrot.lane.b32.xlu0 %v2180, 17
        %v2193 = vpop.permute.xlu0 %2192
        %2194 = vrot.lane.b32.xlu0 %v2181, 17
        %v2195 = vpop.permute.xlu0 %2194
        %2196 = vrot.lane.b32.xlu0 %v2182, 17
        %v2197 = vpop.permute.xlu0 %2196
        %2198 = vrot.lane.b32.xlu0 %v2183, 17
        %v2199 = vpop.permute.xlu0 %2198
        %2200 = vrot.lane.b32.xlu0 %v2184, 17
        %v2201 = vpop.permute.xlu0 %2200
        %2202 = vrot.lane.b32.xlu0 %v2185, 17
        %v2203 = vpop.permute.xlu0 %2202
        %v2204 = vsel %vm642, %v2193, %v2195
        %v2205 = vsel %vm642, %v2195, %v2197
        %v2206 = vsel %vm642, %v2199, %v2201
        %v2207 = vsel %vm642, %v2201, %v2203
        %2212 = vst [vmem:[#allocation3 + $0xc0] sm:$0xff] %v2204
        %2213 = vst [vmem:[#allocation3 + $0xc8] sm:$0xff] %v2205
        %2214 = vst [vmem:[#allocation3 + $0xd0] sm:$0xff] %v2206
        %2215 = vst [vmem:[#allocation3 + $0xd8] sm:$0xff] %v2207
        %v2216 = vld [vmem:[#allocation2] sm:$0xff]
        %v2217 = vld [vmem:[#allocation2 + $0x8] sm:$0xff]
        %v2218 = vld [vmem:[#allocation2 + $0x10] sm:$0xff]
        %v2219 = vld [vmem:[#allocation2 + $0x20] sm:$0xff]
        %v2220 = vld [vmem:[#allocation2 + $0x28] sm:$0xff]
        %v2221 = vld [vmem:[#allocation2 + $0x30] sm:$0xff]
        %2228 = vrot.lane.b32.xlu0 %v2216, 16
        %v2229 = vpop.permute.xlu0 %2228
        %2230 = vrot.lane.b32.xlu0 %v2217, 16
        %v2231 = vpop.permute.xlu0 %2230
        %2232 = vrot.lane.b32.xlu0 %v2218, 16
        %v2233 = vpop.permute.xlu0 %2232
        %2234 = vrot.lane.b32.xlu0 %v2219, 16
        %v2235 = vpop.permute.xlu0 %2234
        %2236 = vrot.lane.b32.xlu0 %v2220, 16
        %v2237 = vpop.permute.xlu0 %2236
        %2238 = vrot.lane.b32.xlu0 %v2221, 16
        %v2239 = vpop.permute.xlu0 %2238
        %v2240 = vsel %vm679, %v2229, %v2231
        %v2241 = vsel %vm679, %v2231, %v2233
        %v2242 = vsel %vm679, %v2235, %v2237
        %v2243 = vsel %vm679, %v2237, %v2239
        %2248 = vst [vmem:[#allocation3 + $0xe0] sm:$0xff] %v2240
        %2249 = vst [vmem:[#allocation3 + $0xe8] sm:$0xff] %v2241
        %2250 = vst [vmem:[#allocation3 + $0xf0] sm:$0xff] %v2242
        %2251 = vst [vmem:[#allocation3 + $0xf8] sm:$0xff] %v2243
        %v2252 = vld [vmem:[#allocation2] sm:$0xff]
        %v2253 = vld [vmem:[#allocation2 + $0x8] sm:$0xff]
        %v2254 = vld [vmem:[#allocation2 + $0x10] sm:$0xff]
        %v2255 = vld [vmem:[#allocation2 + $0x20] sm:$0xff]
        %v2256 = vld [vmem:[#allocation2 + $0x28] sm:$0xff]
        %v2257 = vld [vmem:[#allocation2 + $0x30] sm:$0xff]
        %v2258 = vmul.bf16 %v2252, %v699
        %v2259 = vmul.bf16 %v2253, %v703
        %v2260 = vmul.bf16 %v2254, %v701
        %v2261 = vmul.bf16 %v2255, %v699
        %v2262 = vmul.bf16 %v2256, %v703
        %v2263 = vmul.bf16 %v2257, %v701
        %2270 = vrot.lane.b32.xlu0 %v2258, 15
        %v2271 = vpop.permute.xlu0 %2270
        %2272 = vrot.lane.b32.xlu0 %v2259, 15
        %v2273 = vpop.permute.xlu0 %2272
        %2274 = vrot.lane.b32.xlu0 %v2260, 15
        %v2275 = vpop.permute.xlu0 %2274
        %2276 = vrot.lane.b32.xlu0 %v2261, 15
        %v2277 = vpop.permute.xlu0 %2276
        %2278 = vrot.lane.b32.xlu0 %v2262, 15
        %v2279 = vpop.permute.xlu0 %2278
        %2280 = vrot.lane.b32.xlu0 %v2263, 15
        %v2281 = vpop.permute.xlu0 %2280
        %v2282 = vsel %vm731, %v2271, %v2273
        %v2283 = vsel %vm731, %v2273, %v2275
        %v2284 = vsel %vm731, %v2277, %v2279
        %v2285 = vsel %vm731, %v2279, %v2281
        %2290 = vst [vmem:[#allocation3 + $0x100] sm:$0xff] %v2282
        %2291 = vst [vmem:[#allocation3 + $0x108] sm:$0xff] %v2283
        %2292 = vst [vmem:[#allocation3 + $0x110] sm:$0xff] %v2284
        %2293 = vst [vmem:[#allocation3 + $0x118] sm:$0xff] %v2285
        %v2294 = vld [vmem:[#allocation2] sm:$0xff]
        %v2295 = vld [vmem:[#allocation2 + $0x8] sm:$0xff]
        %v2296 = vld [vmem:[#allocation2 + $0x10] sm:$0xff]
        %v2297 = vld [vmem:[#allocation2 + $0x20] sm:$0xff]
        %v2298 = vld [vmem:[#allocation2 + $0x28] sm:$0xff]
        %v2299 = vld [vmem:[#allocation2 + $0x30] sm:$0xff]
        %v2300 = vmul.bf16 %v2294, %v751
        %v2301 = vmul.bf16 %v2295, %v755
        %v2302 = vmul.bf16 %v2296, %v753
        %v2303 = vmul.bf16 %v2297, %v751
        %v2304 = vmul.bf16 %v2298, %v755
        %v2305 = vmul.bf16 %v2299, %v753
        %2312 = vrot.lane.b32.xlu0 %v2300, 14
        %v2313 = vpop.permute.xlu0 %2312
        %2314 = vrot.lane.b32.xlu0 %v2301, 14
        %v2315 = vpop.permute.xlu0 %2314
        %2316 = vrot.lane.b32.xlu0 %v2302, 14
        %v2317 = vpop.permute.xlu0 %2316
        %2318 = vrot.lane.b32.xlu0 %v2303, 14
        %v2319 = vpop.permute.xlu0 %2318
        %2320 = vrot.lane.b32.xlu0 %v2304, 14
        %v2321 = vpop.permute.xlu0 %2320
        %2322 = vrot.lane.b32.xlu0 %v2305, 14
        %v2323 = vpop.permute.xlu0 %2322
        %v2324 = vsel %vm783, %v2313, %v2315
        %v2325 = vsel %vm783, %v2315, %v2317
        %v2326 = vsel %vm783, %v2319, %v2321
        %v2327 = vsel %vm783, %v2321, %v2323
        %2332 = vst [vmem:[#allocation3 + $0x120] sm:$0xff] %v2324
        %2333 = vst [vmem:[#allocation3 + $0x128] sm:$0xff] %v2325
        %2334 = vst [vmem:[#allocation3 + $0x130] sm:$0xff] %v2326
        %2335 = vst [vmem:[#allocation3 + $0x138] sm:$0xff] %v2327
        %v2336 = vld [vmem:[#allocation2] sm:$0xff]
        %v2337 = vld [vmem:[#allocation2 + $0x8] sm:$0xff]
        %v2338 = vld [vmem:[#allocation2 + $0x10] sm:$0xff]
        %v2339 = vld [vmem:[#allocation2 + $0x20] sm:$0xff]
        %v2340 = vld [vmem:[#allocation2 + $0x28] sm:$0xff]
        %v2341 = vld [vmem:[#allocation2 + $0x30] sm:$0xff]
        %v2342 = vmul.bf16 %v2336, %v803
        %v2343 = vmul.bf16 %v2337, %v807
        %v2344 = vmul.bf16 %v2338, %v805
        %v2345 = vmul.bf16 %v2339, %v803
        %v2346 = vmul.bf16 %v2340, %v807
        %v2347 = vmul.bf16 %v2341, %v805
        %2354 = vrot.lane.b32.xlu0 %v2342, 2
        %v2355 = vpop.permute.xlu0 %2354
        %2356 = vrot.lane.b32.xlu0 %v2343, 2
        %v2357 = vpop.permute.xlu0 %2356
        %2358 = vrot.lane.b32.xlu0 %v2344, 2
        %v2359 = vpop.permute.xlu0 %2358
        %2360 = vrot.lane.b32.xlu0 %v2345, 2
        %v2361 = vpop.permute.xlu0 %2360
        %2362 = vrot.lane.b32.xlu0 %v2346, 2
        %v2363 = vpop.permute.xlu0 %2362
        %2364 = vrot.lane.b32.xlu0 %v2347, 2
        %v2365 = vpop.permute.xlu0 %2364
        %v2366 = vsel %vm835, %v2355, %v2357
        %v2367 = vsel %vm835, %v2357, %v2359
        %v2368 = vsel %vm835, %v2361, %v2363
        %v2369 = vsel %vm835, %v2363, %v2365
        %2374 = vst [vmem:[#allocation3 + $0x140] sm:$0xff] %v2366
        %2375 = vst [vmem:[#allocation3 + $0x148] sm:$0xff] %v2367
        %2376 = vst [vmem:[#allocation3 + $0x150] sm:$0xff] %v2368
        %2377 = vst [vmem:[#allocation3 + $0x158] sm:$0xff] %v2369
        %v2378 = vld [vmem:[#allocation2] sm:$0xff]
        %v2379 = vld [vmem:[#allocation2 + $0x8] sm:$0xff]
        %v2380 = vld [vmem:[#allocation2 + $0x10] sm:$0xff]
        %v2381 = vld [vmem:[#allocation2 + $0x20] sm:$0xff]
        %v2382 = vld [vmem:[#allocation2 + $0x28] sm:$0xff]
        %v2383 = vld [vmem:[#allocation2 + $0x30] sm:$0xff]
        %v2384 = vmul.bf16 %v2378, %v855
        %v2385 = vmul.bf16 %v2379, %v859
        %v2386 = vmul.bf16 %v2380, %v857
        %v2387 = vmul.bf16 %v2381, %v855
        %v2388 = vmul.bf16 %v2382, %v859
        %v2389 = vmul.bf16 %v2383, %v857
        %2396 = vrot.lane.b32.xlu0 %v2384, 1
        %v2397 = vpop.permute.xlu0 %2396
        %2398 = vrot.lane.b32.xlu0 %v2385, 1
        %v2399 = vpop.permute.xlu0 %2398
        %2400 = vrot.lane.b32.xlu0 %v2386, 1
        %v2401 = vpop.permute.xlu0 %2400
        %2402 = vrot.lane.b32.xlu0 %v2387, 1
        %v2403 = vpop.permute.xlu0 %2402
        %2404 = vrot.lane.b32.xlu0 %v2388, 1
        %v2405 = vpop.permute.xlu0 %2404
        %2406 = vrot.lane.b32.xlu0 %v2389, 1
        %v2407 = vpop.permute.xlu0 %2406
        %v2408 = vsel %vm887, %v2397, %v2399
        %v2409 = vsel %vm887, %v2399, %v2401
        %v2410 = vsel %vm887, %v2403, %v2405
        %v2411 = vsel %vm887, %v2405, %v2407
        %2416 = vst [vmem:[#allocation3 + $0x160] sm:$0xff] %v2408
        %2417 = vst [vmem:[#allocation3 + $0x168] sm:$0xff] %v2409
        %2418 = vst [vmem:[#allocation3 + $0x170] sm:$0xff] %v2410
        %2419 = vst [vmem:[#allocation3 + $0x178] sm:$0xff] %v2411
        %v2420 = vld [vmem:[#allocation2 + $0x8] sm:$0xff]
        %v2421 = vld [vmem:[#allocation2 + $0x10] sm:$0xff]
        %v2422 = vld [vmem:[#allocation2 + $0x28] sm:$0xff]
        %v2423 = vld [vmem:[#allocation2 + $0x30] sm:$0xff]
        %2424 = vst [vmem:[#allocation3 + $0x180] sm:$0xff] %v2420
        %2425 = vst [vmem:[#allocation3 + $0x188] sm:$0xff] %v2421
        %2426 = vst [vmem:[#allocation3 + $0x190] sm:$0xff] %v2422
        %2427 = vst [vmem:[#allocation3 + $0x198] sm:$0xff] %v2423
        %v2428 = vld [vmem:[#allocation2 + $0x8] sm:$0xff]
        %v2429 = vld [vmem:[#allocation2 + $0x10] sm:$0xff]
        %v2430 = vld [vmem:[#allocation2 + $0x18] sm:$0xff]
        %v2431 = vld [vmem:[#allocation2 + $0x28] sm:$0xff]
        %v2432 = vld [vmem:[#allocation2 + $0x30] sm:$0xff]
        %v2433 = vld [vmem:[#allocation2 + $0x38] sm:$0xff]
        %v2434 = vmul.bf16 %v2428, %v915
        %v2435 = vmul.bf16 %v2429, %v918
        %v2436 = vmul.bf16 %v2430, %v917
        %v2437 = vmul.bf16 %v2431, %v915
        %v2438 = vmul.bf16 %v2432, %v918
        %v2439 = vmul.bf16 %v2433, %v917
        %2446 = vrot.lane.b32.xlu0 %v2434, 127
        %v2447 = vpop.permute.xlu0 %2446
        %2448 = vrot.lane.b32.xlu0 %v2435, 127
        %v2449 = vpop.permute.xlu0 %2448
        %2450 = vrot.lane.b32.xlu0 %v2436, 127
        %v2451 = vpop.permute.xlu0 %2450
        %2452 = vrot.lane.b32.xlu0 %v2437, 127
        %v2453 = vpop.permute.xlu0 %2452
        %2454 = vrot.lane.b32.xlu0 %v2438, 127
        %v2455 = vpop.permute.xlu0 %2454
        %2456 = vrot.lane.b32.xlu0 %v2439, 127
        %v2457 = vpop.permute.xlu0 %2456
        %v2458 = vsel %vm858, %v2447, %v2449
        %v2459 = vsel %vm858, %v2449, %v2451
        %v2460 = vsel %vm858, %v2453, %v2455
        %v2461 = vsel %vm858, %v2455, %v2457
        %2466 = vst [vmem:[#allocation3 + $0x1a0] sm:$0xff] %v2458
        %2467 = vst [vmem:[#allocation3 + $0x1a8] sm:$0xff] %v2459
        %2468 = vst [vmem:[#allocation3 + $0x1b0] sm:$0xff] %v2460
        %2469 = vst [vmem:[#allocation3 + $0x1b8] sm:$0xff] %v2461
        %v2470 = vld [vmem:[#allocation2 + $0x8] sm:$0xff]
        %v2471 = vld [vmem:[#allocation2 + $0x10] sm:$0xff]
        %v2472 = vld [vmem:[#allocation2 + $0x18] sm:$0xff]
        %v2473 = vld [vmem:[#allocation2 + $0x28] sm:$0xff]
        %v2474 = vld [vmem:[#allocation2 + $0x30] sm:$0xff]
        %v2475 = vld [vmem:[#allocation2 + $0x38] sm:$0xff]
        %v2476 = vmul.bf16 %v2470, %v965
        %v2477 = vmul.bf16 %v2471, %v968
        %v2478 = vmul.bf16 %v2472, %v967
        %v2479 = vmul.bf16 %v2473, %v965
        %v2480 = vmul.bf16 %v2474, %v968
        %v2481 = vmul.bf16 %v2475, %v967
        %2488 = vrot.lane.b32.xlu0 %v2476, 126
        %v2489 = vpop.permute.xlu0 %2488
        %2490 = vrot.lane.b32.xlu0 %v2477, 126
        %v2491 = vpop.permute.xlu0 %2490
        %2492 = vrot.lane.b32.xlu0 %v2478, 126
        %v2493 = vpop.permute.xlu0 %2492
        %2494 = vrot.lane.b32.xlu0 %v2479, 126
        %v2495 = vpop.permute.xlu0 %2494
        %2496 = vrot.lane.b32.xlu0 %v2480, 126
        %v2497 = vpop.permute.xlu0 %2496
        %2498 = vrot.lane.b32.xlu0 %v2481, 126
        %v2499 = vpop.permute.xlu0 %2498
        %v2500 = vsel %vm806, %v2489, %v2491
        %v2501 = vsel %vm806, %v2491, %v2493
        %v2502 = vsel %vm806, %v2495, %v2497
        %v2503 = vsel %vm806, %v2497, %v2499
        %2508 = vst [vmem:[#allocation3 + $0x1c0] sm:$0xff] %v2500
        %2509 = vst [vmem:[#allocation3 + $0x1c8] sm:$0xff] %v2501
        %2510 = vst [vmem:[#allocation3 + $0x1d0] sm:$0xff] %v2502
        %2511 = vst [vmem:[#allocation3 + $0x1d8] sm:$0xff] %v2503
        %v2512 = vld [vmem:[#allocation2 + $0x8] sm:$0xff]
        %v2513 = vld [vmem:[#allocation2 + $0x10] sm:$0xff]
        %v2514 = vld [vmem:[#allocation2 + $0x18] sm:$0xff]
        %v2515 = vld [vmem:[#allocation2 + $0x28] sm:$0xff]
        %v2516 = vld [vmem:[#allocation2 + $0x30] sm:$0xff]
        %v2517 = vld [vmem:[#allocation2 + $0x38] sm:$0xff]
        %v2518 = vmul.bf16 %v2512, %v1015
        %v2519 = vmul.bf16 %v2513, %v1018
        %v2520 = vmul.bf16 %v2514, %v1017
        %v2521 = vmul.bf16 %v2515, %v1015
        %v2522 = vmul.bf16 %v2516, %v1018
        %v2523 = vmul.bf16 %v2517, %v1017
        %2530 = vrot.lane.b32.xlu0 %v2518, 114
        %v2531 = vpop.permute.xlu0 %2530
        %2532 = vrot.lane.b32.xlu0 %v2519, 114
        %v2533 = vpop.permute.xlu0 %2532
        %2534 = vrot.lane.b32.xlu0 %v2520, 114
        %v2535 = vpop.permute.xlu0 %2534
        %2536 = vrot.lane.b32.xlu0 %v2521, 114
        %v2537 = vpop.permute.xlu0 %2536
        %2538 = vrot.lane.b32.xlu0 %v2522, 114
        %v2539 = vpop.permute.xlu0 %2538
        %2540 = vrot.lane.b32.xlu0 %v2523, 114
        %v2541 = vpop.permute.xlu0 %2540
        %v2542 = vsel %vm754, %v2531, %v2533
        %v2543 = vsel %vm754, %v2533, %v2535
        %v2544 = vsel %vm754, %v2537, %v2539
        %v2545 = vsel %vm754, %v2539, %v2541
        %2550 = vst [vmem:[#allocation3 + $0x1e0] sm:$0xff] %v2542
        %2551 = vst [vmem:[#allocation3 + $0x1e8] sm:$0xff] %v2543
        %2552 = vst [vmem:[#allocation3 + $0x1f0] sm:$0xff] %v2544
        %2553 = vst [vmem:[#allocation3 + $0x1f8] sm:$0xff] %v2545
        %v2554 = vld [vmem:[#allocation2 + $0x8] sm:$0xff]
        %v2555 = vld [vmem:[#allocation2 + $0x10] sm:$0xff]
        %v2556 = vld [vmem:[#allocation2 + $0x18] sm:$0xff]
        %v2557 = vld [vmem:[#allocation2 + $0x28] sm:$0xff]
        %v2558 = vld [vmem:[#allocation2 + $0x30] sm:$0xff]
        %v2559 = vld [vmem:[#allocation2 + $0x38] sm:$0xff]
        %v2560 = vmul.bf16 %v2554, %v1065
        %v2561 = vmul.bf16 %v2555, %v1068
        %v2562 = vmul.bf16 %v2556, %v1067
        %v2563 = vmul.bf16 %v2557, %v1065
        %v2564 = vmul.bf16 %v2558, %v1068
        %v2565 = vmul.bf16 %v2559, %v1067
        %2572 = vrot.lane.b32.xlu0 %v2560, 113
        %v2573 = vpop.permute.xlu0 %2572
        %2574 = vrot.lane.b32.xlu0 %v2561, 113
        %v2575 = vpop.permute.xlu0 %2574
        %2576 = vrot.lane.b32.xlu0 %v2562, 113
        %v2577 = vpop.permute.xlu0 %2576
        %2578 = vrot.lane.b32.xlu0 %v2563, 113
        %v2579 = vpop.permute.xlu0 %2578
        %2580 = vrot.lane.b32.xlu0 %v2564, 113
        %v2581 = vpop.permute.xlu0 %2580
        %2582 = vrot.lane.b32.xlu0 %v2565, 113
        %v2583 = vpop.permute.xlu0 %2582
        %v2584 = vsel %vm702, %v2573, %v2575
        %v2585 = vsel %vm702, %v2575, %v2577
        %v2586 = vsel %vm702, %v2579, %v2581
        %v2587 = vsel %vm702, %v2581, %v2583
        %2592 = vst [vmem:[#allocation3 + $0x200] sm:$0xff] %v2584
        %2593 = vst [vmem:[#allocation3 + $0x208] sm:$0xff] %v2585
        %2594 = vst [vmem:[#allocation3 + $0x210] sm:$0xff] %v2586
        %2595 = vst [vmem:[#allocation3 + $0x218] sm:$0xff] %v2587
        %v2596 = vld [vmem:[#allocation2 + $0x8] sm:$0xff]
        %v2597 = vld [vmem:[#allocation2 + $0x10] sm:$0xff]
        %v2598 = vld [vmem:[#allocation2 + $0x18] sm:$0xff]
        %v2599 = vld [vmem:[#allocation2 + $0x28] sm:$0xff]
        %v2600 = vld [vmem:[#allocation2 + $0x30] sm:$0xff]
        %v2601 = vld [vmem:[#allocation2 + $0x38] sm:$0xff]
        %2608 = vrot.lane.b32.xlu0 %v2596, 112
        %v2609 = vpop.permute.xlu0 %2608
        %2610 = vrot.lane.b32.xlu0 %v2597, 112
        %v2611 = vpop.permute.xlu0 %2610
        %2612 = vrot.lane.b32.xlu0 %v2598, 112
        %v2613 = vpop.permute.xlu0 %2612
        %2614 = vrot.lane.b32.xlu0 %v2599, 112
        %v2615 = vpop.permute.xlu0 %2614
        %2616 = vrot.lane.b32.xlu0 %v2600, 112
        %v2617 = vpop.permute.xlu0 %2616
        %2618 = vrot.lane.b32.xlu0 %v2601, 112
        %v2619 = vpop.permute.xlu0 %2618
        %v2620 = vsel %vm1132, %v2609, %v2611
        %v2621 = vsel %vm1132, %v2611, %v2613
        %v2622 = vsel %vm1132, %v2615, %v2617
        %v2623 = vsel %vm1132, %v2617, %v2619
        %2628 = vst [vmem:[#allocation3 + $0x220] sm:$0xff] %v2620
        %2629 = vst [vmem:[#allocation3 + $0x228] sm:$0xff] %v2621
        %2630 = vst [vmem:[#allocation3 + $0x230] sm:$0xff] %v2622
        %2631 = vst [vmem:[#allocation3 + $0x238] sm:$0xff] %v2623
        %v2632 = vld [vmem:[#allocation2 + $0x8] sm:$0xff]
        %v2633 = vld [vmem:[#allocation2 + $0x10] sm:$0xff]
        %v2634 = vld [vmem:[#allocation2 + $0x18] sm:$0xff]
        %v2635 = vld [vmem:[#allocation2 + $0x28] sm:$0xff]
        %v2636 = vld [vmem:[#allocation2 + $0x30] sm:$0xff]
        %v2637 = vld [vmem:[#allocation2 + $0x38] sm:$0xff]
        %v2638 = vmul.bf16 %v2632, %v1152
        %v2639 = vmul.bf16 %v2633, %v1155
        %v2640 = vmul.bf16 %v2634, %v1154
        %v2641 = vmul.bf16 %v2635, %v1152
        %v2642 = vmul.bf16 %v2636, %v1155
        %v2643 = vmul.bf16 %v2637, %v1154
        %2650 = vrot.lane.b32.xlu0 %v2638, 111
        %v2651 = vpop.permute.xlu0 %2650
        %2652 = vrot.lane.b32.xlu0 %v2639, 111
        %v2653 = vpop.permute.xlu0 %2652
        %2654 = vrot.lane.b32.xlu0 %v2640, 111
        %v2655 = vpop.permute.xlu0 %2654
        %2656 = vrot.lane.b32.xlu0 %v2641, 111
        %v2657 = vpop.permute.xlu0 %2656
        %2658 = vrot.lane.b32.xlu0 %v2642, 111
        %v2659 = vpop.permute.xlu0 %2658
        %2660 = vrot.lane.b32.xlu0 %v2643, 111
        %v2661 = vpop.permute.xlu0 %2660
        %v2662 = vsel %vm613, %v2651, %v2653
        %v2663 = vsel %vm613, %v2653, %v2655
        %v2664 = vsel %vm613, %v2657, %v2659
        %v2665 = vsel %vm613, %v2659, %v2661
        %2670 = vst [vmem:[#allocation3 + $0x240] sm:$0xff] %v2662
        %2671 = vst [vmem:[#allocation3 + $0x248] sm:$0xff] %v2663
        %2672 = vst [vmem:[#allocation3 + $0x250] sm:$0xff] %v2664
        %2673 = vst [vmem:[#allocation3 + $0x258] sm:$0xff] %v2665
        %v2674 = vld [vmem:[#allocation2 + $0x8] sm:$0xff]
        %v2675 = vld [vmem:[#allocation2 + $0x10] sm:$0xff]
        %v2676 = vld [vmem:[#allocation2 + $0x18] sm:$0xff]
        %v2677 = vld [vmem:[#allocation2 + $0x28] sm:$0xff]
        %v2678 = vld [vmem:[#allocation2 + $0x30] sm:$0xff]
        %v2679 = vld [vmem:[#allocation2 + $0x38] sm:$0xff]
        %v2680 = vmul.bf16 %v2674, %v1202
        %v2681 = vmul.bf16 %v2675, %v1205
        %v2682 = vmul.bf16 %v2676, %v1204
        %v2683 = vmul.bf16 %v2677, %v1202
        %v2684 = vmul.bf16 %v2678, %v1205
        %v2685 = vmul.bf16 %v2679, %v1204
        %2692 = vrot.lane.b32.xlu0 %v2680, 110
        %v2693 = vpop.permute.xlu0 %2692
        %2694 = vrot.lane.b32.xlu0 %v2681, 110
        %v2695 = vpop.permute.xlu0 %2694
        %2696 = vrot.lane.b32.xlu0 %v2682, 110
        %v2697 = vpop.permute.xlu0 %2696
        %2698 = vrot.lane.b32.xlu0 %v2683, 110
        %v2699 = vpop.permute.xlu0 %2698
        %2700 = vrot.lane.b32.xlu0 %v2684, 110
        %v2701 = vpop.permute.xlu0 %2700
        %2702 = vrot.lane.b32.xlu0 %v2685, 110
        %v2703 = vpop.permute.xlu0 %2702
        %v2704 = vsel %vm561, %v2693, %v2695
        %v2705 = vsel %vm561, %v2695, %v2697
        %v2706 = vsel %vm561, %v2699, %v2701
        %v2707 = vsel %vm561, %v2701, %v2703
        %2712 = vst [vmem:[#allocation3 + $0x260] sm:$0xff] %v2704
        %2713 = vst [vmem:[#allocation3 + $0x268] sm:$0xff] %v2705
        %2714 = vst [vmem:[#allocation3 + $0x270] sm:$0xff] %v2706
        %2715 = vst [vmem:[#allocation3 + $0x278] sm:$0xff] %v2707
        %v2716 = vld [vmem:[#allocation2 + $0x8] sm:$0xff]
        %v2717 = vld [vmem:[#allocation2 + $0x10] sm:$0xff]
        %v2718 = vld [vmem:[#allocation2 + $0x18] sm:$0xff]
        %v2719 = vld [vmem:[#allocation2 + $0x28] sm:$0xff]
        %v2720 = vld [vmem:[#allocation2 + $0x30] sm:$0xff]
        %v2721 = vld [vmem:[#allocation2 + $0x38] sm:$0xff]
        %v2722 = vmul.bf16 %v2716, %v1252
        %v2723 = vmul.bf16 %v2717, %v1255
        %v2724 = vmul.bf16 %v2718, %v1254
        %v2725 = vmul.bf16 %v2719, %v1252
        %v2726 = vmul.bf16 %v2720, %v1255
        %v2727 = vmul.bf16 %v2721, %v1254
        %2734 = vrot.lane.b32.xlu0 %v2722, 98
        %v2735 = vpop.permute.xlu0 %2734
        %2736 = vrot.lane.b32.xlu0 %v2723, 98
        %v2737 = vpop.permute.xlu0 %2736
        %2738 = vrot.lane.b32.xlu0 %v2724, 98
        %v2739 = vpop.permute.xlu0 %2738
        %2740 = vrot.lane.b32.xlu0 %v2725, 98
        %v2741 = vpop.permute.xlu0 %2740
        %2742 = vrot.lane.b32.xlu0 %v2726, 98
        %v2743 = vpop.permute.xlu0 %2742
        %2744 = vrot.lane.b32.xlu0 %v2727, 98
        %v2745 = vpop.permute.xlu0 %2744
        %v2746 = vsel %vm509, %v2735, %v2737
        %v2747 = vsel %vm509, %v2737, %v2739
        %v2748 = vsel %vm509, %v2741, %v2743
        %v2749 = vsel %vm509, %v2743, %v2745
        %2754 = vst [vmem:[#allocation3 + $0x280] sm:$0xff] %v2746
        %2755 = vst [vmem:[#allocation3 + $0x288] sm:$0xff] %v2747
        %2756 = vst [vmem:[#allocation3 + $0x290] sm:$0xff] %v2748
        %2757 = vst [vmem:[#allocation3 + $0x298] sm:$0xff] %v2749
        %v2758 = vld [vmem:[#allocation2 + $0x8] sm:$0xff]
        %v2759 = vld [vmem:[#allocation2 + $0x10] sm:$0xff]
        %v2760 = vld [vmem:[#allocation2 + $0x18] sm:$0xff]
        %v2761 = vld [vmem:[#allocation2 + $0x28] sm:$0xff]
        %v2762 = vld [vmem:[#allocation2 + $0x30] sm:$0xff]
        %v2763 = vld [vmem:[#allocation2 + $0x38] sm:$0xff]
        %v2764 = vmul.bf16 %v2758, %v1302
        %v2765 = vmul.bf16 %v2759, %v1305
        %v2766 = vmul.bf16 %v2760, %v1304
        %v2767 = vmul.bf16 %v2761, %v1302
        %v2768 = vmul.bf16 %v2762, %v1305
        %v2769 = vmul.bf16 %v2763, %v1304
        %2776 = vrot.lane.b32.xlu0 %v2764, 97
        %v2777 = vpop.permute.xlu0 %2776
        %2778 = vrot.lane.b32.xlu0 %v2765, 97
        %v2779 = vpop.permute.xlu0 %2778
        %2780 = vrot.lane.b32.xlu0 %v2766, 97
        %v2781 = vpop.permute.xlu0 %2780
        %2782 = vrot.lane.b32.xlu0 %v2767, 97
        %v2783 = vpop.permute.xlu0 %2782
        %2784 = vrot.lane.b32.xlu0 %v2768, 97
        %v2785 = vpop.permute.xlu0 %2784
        %2786 = vrot.lane.b32.xlu0 %v2769, 97
        %v2787 = vpop.permute.xlu0 %2786
        %v2788 = vsel %vm447, %v2777, %v2779
        %v2789 = vsel %vm447, %v2779, %v2781
        %v2790 = vsel %vm447, %v2783, %v2785
        %v2791 = vsel %vm447, %v2785, %v2787
        %2796 = vst [vmem:[#allocation3 + $0x2a0] sm:$0xff] %v2788
        %2797 = vst [vmem:[#allocation3 + $0x2a8] sm:$0xff] %v2789
        %2798 = vst [vmem:[#allocation3 + $0x2b0] sm:$0xff] %v2790
        %2799 = vst [vmem:[#allocation3 + $0x2b8] sm:$0xff] %v2791
        %v2800 = vld [vmem:[#allocation2 + $0x8] sm:$0xff]
        %v2801 = vld [vmem:[#allocation2 + $0x10] sm:$0xff]
        %v2802 = vld [vmem:[#allocation2 + $0x18] sm:$0xff]
        %v2803 = vld [vmem:[#allocation2 + $0x28] sm:$0xff]
        %v2804 = vld [vmem:[#allocation2 + $0x30] sm:$0xff]
        %v2805 = vld [vmem:[#allocation2 + $0x38] sm:$0xff]
        %2812 = vrot.lane.b32.xlu0 %v2800, 96
        %v2813 = vpop.permute.xlu0 %2812
        %2814 = vrot.lane.b32.xlu0 %v2801, 96
        %v2815 = vpop.permute.xlu0 %2814
        %2816 = vrot.lane.b32.xlu0 %v2802, 96
        %v2817 = vpop.permute.xlu0 %2816
        %2818 = vrot.lane.b32.xlu0 %v2803, 96
        %v2819 = vpop.permute.xlu0 %2818
        %2820 = vrot.lane.b32.xlu0 %v2804, 96
        %v2821 = vpop.permute.xlu0 %2820
        %2822 = vrot.lane.b32.xlu0 %v2805, 96
        %v2823 = vpop.permute.xlu0 %2822
        %v2824 = vsel %vm1369, %v2813, %v2815
        %v2825 = vsel %vm1369, %v2815, %v2817
        %v2826 = vsel %vm1369, %v2819, %v2821
        %v2827 = vsel %vm1369, %v2821, %v2823
        %2832 = vst [vmem:[#allocation3 + $0x2c0] sm:$0xff] %v2824
        %2833 = vst [vmem:[#allocation3 + $0x2c8] sm:$0xff] %v2825
        %2834 = vst [vmem:[#allocation3 + $0x2d0] sm:$0xff] %v2826
        %2835 = vst [vmem:[#allocation3 + $0x2d8] sm:$0xff] %v2827
        %v2836 = vld [vmem:[#allocation2 + $0x8] sm:$0xff]
        %v2837 = vld [vmem:[#allocation2 + $0x10] sm:$0xff]
        %v2838 = vld [vmem:[#allocation2 + $0x18] sm:$0xff]
        %v2839 = vld [vmem:[#allocation2 + $0x28] sm:$0xff]
        %v2840 = vld [vmem:[#allocation2 + $0x30] sm:$0xff]
        %v2841 = vld [vmem:[#allocation2 + $0x38] sm:$0xff]
        %v2842 = vmul.bf16 %v2836, %v1389
        %v2843 = vmul.bf16 %v2837, %v1392
        %v2844 = vmul.bf16 %v2838, %v1391
        %v2845 = vmul.bf16 %v2839, %v1389
        %v2846 = vmul.bf16 %v2840, %v1392
        %v2847 = vmul.bf16 %v2841, %v1391
        %2854 = vrot.lane.b32.xlu0 %v2842, 95
        %v2855 = vpop.permute.xlu0 %2854
        %2856 = vrot.lane.b32.xlu0 %v2843, 95
        %v2857 = vpop.permute.xlu0 %2856
        %2858 = vrot.lane.b32.xlu0 %v2844, 95
        %v2859 = vpop.permute.xlu0 %2858
        %2860 = vrot.lane.b32.xlu0 %v2845, 95
        %v2861 = vpop.permute.xlu0 %2860
        %2862 = vrot.lane.b32.xlu0 %v2846, 95
        %v2863 = vpop.permute.xlu0 %2862
        %2864 = vrot.lane.b32.xlu0 %v2847, 95
        %v2865 = vpop.permute.xlu0 %2864
        %v2866 = vsel %vm348, %v2855, %v2857
        %v2867 = vsel %vm348, %v2857, %v2859
        %v2868 = vsel %vm348, %v2861, %v2863
        %v2869 = vsel %vm348, %v2863, %v2865
        %2874 = vst [vmem:[#allocation3 + $0x2e0] sm:$0xff] %v2866
        %2875 = vst [vmem:[#allocation3 + $0x2e8] sm:$0xff] %v2867
        %2876 = vst [vmem:[#allocation3 + $0x2f0] sm:$0xff] %v2868
        %2877 = vst [vmem:[#allocation3 + $0x2f8] sm:$0xff] %v2869
        %v2878 = vld [vmem:[#allocation2 + $0x8] sm:$0xff]
        %v2879 = vld [vmem:[#allocation2 + $0x10] sm:$0xff]
        %v2880 = vld [vmem:[#allocation2 + $0x18] sm:$0xff]
        %v2881 = vld [vmem:[#allocation2 + $0x28] sm:$0xff]
        %v2882 = vld [vmem:[#allocation2 + $0x30] sm:$0xff]
        %v2883 = vld [vmem:[#allocation2 + $0x38] sm:$0xff]
        %v2884 = vmul.bf16 %v2878, %v1439
        %v2885 = vmul.bf16 %v2879, %v1442
        %v2886 = vmul.bf16 %v2880, %v1441
        %v2887 = vmul.bf16 %v2881, %v1439
        %v2888 = vmul.bf16 %v2882, %v1442
        %v2889 = vmul.bf16 %v2883, %v1441
        %2896 = vrot.lane.b32.xlu0 %v2884, 94
        %v2897 = vpop.permute.xlu0 %2896
        %2898 = vrot.lane.b32.xlu0 %v2885, 94
        %v2899 = vpop.permute.xlu0 %2898
        %2900 = vrot.lane.b32.xlu0 %v2886, 94
        %v2901 = vpop.permute.xlu0 %2900
        %2902 = vrot.lane.b32.xlu0 %v2887, 94
        %v2903 = vpop.permute.xlu0 %2902
        %2904 = vrot.lane.b32.xlu0 %v2888, 94
        %v2905 = vpop.permute.xlu0 %2904
        %2906 = vrot.lane.b32.xlu0 %v2889, 94
        %v2907 = vpop.permute.xlu0 %2906
        %v2908 = vsel %vm280, %v2897, %v2899
        %v2909 = vsel %vm280, %v2899, %v2901
        %v2910 = vsel %vm280, %v2903, %v2905
        %v2911 = vsel %vm280, %v2905, %v2907
        %2916 = vst [vmem:[#allocation3 + $0x300] sm:$0xff] %v2908
        %2917 = vst [vmem:[#allocation3 + $0x308] sm:$0xff] %v2909
        %2918 = vst [vmem:[#allocation3 + $0x310] sm:$0xff] %v2910
        %2919 = vst [vmem:[#allocation3 + $0x318] sm:$0xff] %v2911
        %v2920 = vld [vmem:[#allocation3] sm:$0xff]
        %v2921 = vld [vmem:[#allocation3 + $0x8] sm:$0xff]
        %v2922 = vld [vmem:[#allocation3 + $0x10] sm:$0xff]
        %v2923 = vld [vmem:[#allocation3 + $0x18] sm:$0xff]
        %v2924 = vld [vmem:[#allocation3 + $0x20] sm:$0xff]
        %v2925 = vld [vmem:[#allocation3 + $0x28] sm:$0xff]
        %v2926 = vld [vmem:[#allocation3 + $0x30] sm:$0xff]
        %v2927 = vld [vmem:[#allocation3 + $0x38] sm:$0xff]
        %v2928 = vld [vmem:[#allocation3 + $0x40] sm:$0xff]
        %v2929 = vld [vmem:[#allocation3 + $0x48] sm:$0xff]
        %v2930 = vld [vmem:[#allocation3 + $0x50] sm:$0xff]
        %v2931 = vld [vmem:[#allocation3 + $0x58] sm:$0xff]
        %v2932 = vld [vmem:[#allocation3 + $0x60] sm:$0xff]
        %v2933 = vld [vmem:[#allocation3 + $0x68] sm:$0xff]
        %v2934 = vld [vmem:[#allocation3 + $0x70] sm:$0xff]
        %v2935 = vld [vmem:[#allocation3 + $0x78] sm:$0xff]
        %v2936 = vld [vmem:[#allocation3 + $0x80] sm:$0xff]
        %v2937 = vld [vmem:[#allocation3 + $0x88] sm:$0xff]
        %v2938 = vld [vmem:[#allocation3 + $0x90] sm:$0xff]
        %v2939 = vld [vmem:[#allocation3 + $0x98] sm:$0xff]
        %v2940 = vld [vmem:[#allocation3 + $0xa0] sm:$0xff]
        %v2941 = vld [vmem:[#allocation3 + $0xa8] sm:$0xff]
        %v2942 = vld [vmem:[#allocation3 + $0xb0] sm:$0xff]
        %v2943 = vld [vmem:[#allocation3 + $0xb8] sm:$0xff]
        %v2944 = vld [vmem:[#allocation3 + $0xc0] sm:$0xff]
        %v2945 = vld [vmem:[#allocation3 + $0xc8] sm:$0xff]
        %v2946 = vld [vmem:[#allocation3 + $0xd0] sm:$0xff]
        %v2947 = vld [vmem:[#allocation3 + $0xd8] sm:$0xff]
        %v2948 = vld [vmem:[#allocation3 + $0xe0] sm:$0xff]
        %v2949 = vld [vmem:[#allocation3 + $0xe8] sm:$0xff]
        %v2950 = vld [vmem:[#allocation3 + $0xf0] sm:$0xff]
        %v2951 = vld [vmem:[#allocation3 + $0xf8] sm:$0xff]
        %v2952 = vld [vmem:[#allocation3 + $0x100] sm:$0xff]
        %v2953 = vld [vmem:[#allocation3 + $0x108] sm:$0xff]
        %v2954 = vld [vmem:[#allocation3 + $0x110] sm:$0xff]
        %v2955 = vld [vmem:[#allocation3 + $0x118] sm:$0xff]
        %v2956 = vld [vmem:[#allocation3 + $0x120] sm:$0xff]
        %v2957 = vld [vmem:[#allocation3 + $0x128] sm:$0xff]
        %v2958 = vld [vmem:[#allocation3 + $0x130] sm:$0xff]
        %v2959 = vld [vmem:[#allocation3 + $0x138] sm:$0xff]
        %v2960 = vld [vmem:[#allocation3 + $0x140] sm:$0xff]
        %v2961 = vld [vmem:[#allocation3 + $0x148] sm:$0xff]
        %v2962 = vld [vmem:[#allocation3 + $0x150] sm:$0xff]
        %v2963 = vld [vmem:[#allocation3 + $0x158] sm:$0xff]
        %v2964 = vld [vmem:[#allocation3 + $0x160] sm:$0xff]
        %v2965 = vld [vmem:[#allocation3 + $0x168] sm:$0xff]
        %v2966 = vld [vmem:[#allocation3 + $0x170] sm:$0xff]
        %v2967 = vld [vmem:[#allocation3 + $0x178] sm:$0xff]
        %v2968 = vld [vmem:[#allocation3 + $0x180] sm:$0xff]
        %v2969 = vld [vmem:[#allocation3 + $0x188] sm:$0xff]
        %v2970 = vld [vmem:[#allocation3 + $0x190] sm:$0xff]
        %v2971 = vld [vmem:[#allocation3 + $0x198] sm:$0xff]
        %v2972 = vld [vmem:[#allocation3 + $0x1a0] sm:$0xff]
        %v2973 = vld [vmem:[#allocation3 + $0x1a8] sm:$0xff]
        %v2974 = vld [vmem:[#allocation3 + $0x1b0] sm:$0xff]
        %v2975 = vld [vmem:[#allocation3 + $0x1b8] sm:$0xff]
        %v2976 = vld [vmem:[#allocation3 + $0x1c0] sm:$0xff]
        %v2977 = vld [vmem:[#allocation3 + $0x1c8] sm:$0xff]
        %v2978 = vld [vmem:[#allocation3 + $0x1d0] sm:$0xff]
        %v2979 = vld [vmem:[#allocation3 + $0x1d8] sm:$0xff]
        %v2980 = vld [vmem:[#allocation3 + $0x1e0] sm:$0xff]
        %v2981 = vld [vmem:[#allocation3 + $0x1e8] sm:$0xff]
        %v2982 = vld [vmem:[#allocation3 + $0x1f0] sm:$0xff]
        %v2983 = vld [vmem:[#allocation3 + $0x1f8] sm:$0xff]
        %v2984 = vld [vmem:[#allocation3 + $0x200] sm:$0xff]
        %v2985 = vld [vmem:[#allocation3 + $0x208] sm:$0xff]
        %v2986 = vld [vmem:[#allocation3 + $0x210] sm:$0xff]
        %v2987 = vld [vmem:[#allocation3 + $0x218] sm:$0xff]
        %v2988 = vld [vmem:[#allocation3 + $0x220] sm:$0xff]
        %v2989 = vld [vmem:[#allocation3 + $0x228] sm:$0xff]
        %v2990 = vld [vmem:[#allocation3 + $0x230] sm:$0xff]
        %v2991 = vld [vmem:[#allocation3 + $0x238] sm:$0xff]
        %v2992 = vld [vmem:[#allocation3 + $0x240] sm:$0xff]
        %v2993 = vld [vmem:[#allocation3 + $0x248] sm:$0xff]
        %v2994 = vld [vmem:[#allocation3 + $0x250] sm:$0xff]
        %v2995 = vld [vmem:[#allocation3 + $0x258] sm:$0xff]
        %v2996 = vld [vmem:[#allocation3 + $0x260] sm:$0xff]
        %v2997 = vld [vmem:[#allocation3 + $0x268] sm:$0xff]
        %v2998 = vld [vmem:[#allocation3 + $0x270] sm:$0xff]
        %v2999 = vld [vmem:[#allocation3 + $0x278] sm:$0xff]
        %v3000 = vld [vmem:[#allocation3 + $0x280] sm:$0xff]
        %v3001 = vld [vmem:[#allocation3 + $0x288] sm:$0xff]
        %v3002 = vld [vmem:[#allocation3 + $0x290] sm:$0xff]
        %v3003 = vld [vmem:[#allocation3 + $0x298] sm:$0xff]
        %v3004 = vld [vmem:[#allocation3 + $0x2a0] sm:$0xff]
        %v3005 = vld [vmem:[#allocation3 + $0x2a8] sm:$0xff]
        %v3006 = vld [vmem:[#allocation3 + $0x2b0] sm:$0xff]
        %v3007 = vld [vmem:[#allocation3 + $0x2b8] sm:$0xff]
        %v3008 = vld [vmem:[#allocation3 + $0x2c0] sm:$0xff]
        %v3009 = vld [vmem:[#allocation3 + $0x2c8] sm:$0xff]
        %v3010 = vld [vmem:[#allocation3 + $0x2d0] sm:$0xff]
        %v3011 = vld [vmem:[#allocation3 + $0x2d8] sm:$0xff]
        %v3012 = vld [vmem:[#allocation3 + $0x2e0] sm:$0xff]
        %v3013 = vld [vmem:[#allocation3 + $0x2e8] sm:$0xff]
        %v3014 = vld [vmem:[#allocation3 + $0x2f0] sm:$0xff]
        %v3015 = vld [vmem:[#allocation3 + $0x2f8] sm:$0xff]
        %v3016 = vld [vmem:[#allocation3 + $0x300] sm:$0xff]
        %v3017 = vld [vmem:[#allocation3 + $0x308] sm:$0xff]
        %v3018 = vld [vmem:[#allocation3 + $0x310] sm:$0xff]
        %v3019 = vld [vmem:[#allocation3 + $0x318] sm:$0xff]
        %s3020 = scalar_lea.vmem %s3, 32
        %v3021 = vld [vmem:[%s3020] sm:$0xff]
        %v3022 = vld [vmem:[%s3020 + $0x8] sm:$0xff]
        %v3023 = vld [vmem:[%s3020 + $0x10] sm:$0xff]
        %v3024 = vld [vmem:[%s3020 + $0x18] sm:$0xff]
        %3026 = vset.pattern.permute.xlu0 0
        %3027 = vperm.xlu0 %3026, %v3021
        %v3028 = vpop.permute.xlu0 %3027
        %3031 = vset.pattern.permute.xlu0 0
        %3032 = vperm.xlu0 %3031, %v3022
        %v3033 = vpop.permute.xlu0 %3032
        %3036 = vset.pattern.permute.xlu0 0
        %3037 = vperm.xlu0 %3036, %v3023
        %v3038 = vpop.permute.xlu0 %3037
        %3041 = vset.pattern.permute.xlu0 0
        %3042 = vperm.xlu0 %3041, %v3024
        %v3043 = vpop.permute.xlu0 %3042
        %v3061 = vunpack.c.l.b16 %v1912
        %v3062 = vunpack.c.h.b16 %v1912
        %v3063 = vunpack.c.l.b16 %v1913
        %v3064 = vunpack.c.h.b16 %v1913
        %v3065 = vunpack.c.l.b16 %v1914
        %v3066 = vunpack.c.h.b16 %v1914
        %v3067 = vunpack.c.l.b16 %v1915
        %v3068 = vunpack.c.l.b16 %v1916
        %v3069 = vunpack.c.h.b16 %v1916
        %v3070 = vunpack.c.l.b16 %v1917
        %v3071 = vunpack.c.h.b16 %v1917
        %v3072 = vunpack.c.l.b16 %v1918
        %v3073 = vunpack.c.h.b16 %v1918
        %v3074 = vunpack.c.l.b16 %v1919
        %v3075 = vunpack.c.l.b16 %v1920
        %v3076 = vunpack.c.h.b16 %v1920
        %v3077 = vunpack.c.l.b16 %v1921
        %v3078 = vunpack.c.h.b16 %v1921
        %v3079 = vunpack.c.l.b16 %v1922
        %v3080 = vunpack.c.h.b16 %v1922
        %v3081 = vunpack.c.l.b16 %v1923
        %v3082 = vunpack.c.l.b16 %v1924
        %v3083 = vunpack.c.h.b16 %v1924
        %v3084 = vunpack.c.l.b16 %v1925
        %v3085 = vunpack.c.h.b16 %v1925
        %v3086 = vunpack.c.l.b16 %v1926
        %v3087 = vunpack.c.h.b16 %v1926
        %v3088 = vunpack.c.l.b16 %v1927
        %v3089 = vpack.c.b16 %v3068, %v3061
        %v3090 = vpack.c.b16 %v3069, %v3062
        %v3091 = vpack.c.b16 %v3070, %v3063
        %v3092 = vpack.c.b16 %v3071, %v3064
        %v3093 = vpack.c.b16 %v3072, %v3065
        %v3094 = vpack.c.b16 %v3073, %v3066
        %v3095 = vpack.c.b16 %v3074, %v3067
        %v3096 = vpack.c.b16 %v3082, %v3075
        %v3097 = vpack.c.b16 %v3083, %v3076
        %v3098 = vpack.c.b16 %v3084, %v3077
        %v3099 = vpack.c.b16 %v3085, %v3078
        %v3100 = vpack.c.b16 %v3086, %v3079
        %v3101 = vpack.c.b16 %v3087, %v3080
        %v3102 = vpack.c.b16 %v3088, %v3081
        %v3116 = vsel %vm1676, %v3095, 0
        %v3119 = vsel %vm1676, %v3102, 0
        %3121 = vmatprep.subr.bf16.mxu0 %v2921
        %3122 = vmatpush1.bf16.msra.mxu0 %v2920
        %3123 = vmatprep.subr.bf16.mxu0 %v2923
        %3124 = vmatpush1.bf16.msra.mxu0 %v2922
        %3125 = vmatprep.subr.bf16.mxu0 %v2925
        %3126 = vmatpush1.bf16.msra.mxu0 %v2924
        %3127 = vmatprep.subr.bf16.mxu0 %v2927
        %3128 = vmatpush1.bf16.msra.mxu0 %v2926
        %3129 = vmatprep.subr.bf16.mxu0 %v2929
        %3130 = vmatpush1.bf16.msra.mxu0 %v2928
        %3131 = vmatprep.subr.bf16.mxu0 %v2931
        %3132 = vmatpush1.bf16.msra.mxu0 %v2930
        %3133 = vmatprep.subr.bf16.mxu0 %v2933
        %3134 = vmatpush1.bf16.msra.mxu0 %v2932
        %3135 = vmatprep.subr.bf16.mxu0 %v2935
        %3136 = vmatpush1.bf16.msra.mxu0 %v2934
        %3137 = vmatprep.subr.bf16.mxu0 %v2937
        %3138 = vmatpush1.bf16.msra.mxu0 %v2936
        %3139 = vmatprep.subr.bf16.mxu0 %v2939
        %3140 = vmatpush1.bf16.msra.mxu0 %v2938
        %3141 = vmatprep.subr.bf16.mxu0 %v2941
        %3142 = vmatpush1.bf16.msra.mxu0 %v2940
        %3143 = vmatprep.subr.bf16.mxu0 %v2943
        %3144 = vmatpush1.bf16.msra.mxu0 %v2942
        %3145 = vmatprep.subr.bf16.mxu0 %v2945
        %3146 = vmatpush1.bf16.msra.mxu0 %v2944
        %3147 = vmatprep.subr.bf16.mxu0 %v2947
        %3148 = vmatpush1.bf16.msra.mxu0 %v2946
        %3149 = vmatprep.subr.bf16.mxu0 %v2949
        %3150 = vmatpush1.bf16.msra.mxu0 %v2948
        %3151 = vmatprep.subr.bf16.mxu0 %v2951
        %3152 = vmatpush1.bf16.msra.mxu0 %v2950
        %3153 = vmatprep.mubr.bf16.mxu0 %v3090
        %3154 = vmatmul.mubr.bf16.gmra.mrb[0].mxu0 %v3089
        %v3155 = vpop.f32.mrb[0].mxu0
        %v3156 = vadd.f32 %v3028, %v3155
        %v3157 = vpop.f32.mrb[0].mxu0
        %v3158 = vadd.f32 %v3028, %v3157
        %v3159 = vpop.f32.mrb[0].mxu0
        %v3160 = vadd.f32 %v3033, %v3159
        %v3161 = vpop.f32.mrb[0].mxu0
        %v3162 = vadd.f32 %v3033, %v3161
        %3163 = vmatprep.mubr.bf16.mxu0 %v3097
        %3164 = vmatmul.mubr.bf16.gmra.mrb[0].mxu0 %v3096
        %v3165 = vpop.f32.mrb[0].mxu0
        %v3166 = vadd.f32 %v3038, %v3165
        %v3167 = vpop.f32.mrb[0].mxu0
        %v3168 = vadd.f32 %v3038, %v3167
        %v3169 = vpop.f32.mrb[0].mxu0
        %v3170 = vadd.f32 %v3043, %v3169
        %v3171 = vpop.f32.mrb[0].mxu0
        %v3172 = vadd.f32 %v3043, %v3171
        %3173 = vdwg.mxu0
        %3174 = vmatprep.subr.bf16.mxu0 %v2953
        %3175 = vmatpush1.bf16.msra.mxu0 %v2952
        %3176 = vmatprep.subr.bf16.mxu0 %v2955
        %3177 = vmatpush1.bf16.msra.mxu0 %v2954
        %3178 = vmatprep.subr.bf16.mxu0 %v2957
        %3179 = vmatpush1.bf16.msra.mxu0 %v2956
        %3180 = vmatprep.subr.bf16.mxu0 %v2959
        %3181 = vmatpush1.bf16.msra.mxu0 %v2958
        %3182 = vmatprep.subr.bf16.mxu0 %v2961
        %3183 = vmatpush1.bf16.msra.mxu0 %v2960
        %3184 = vmatprep.subr.bf16.mxu0 %v2963
        %3185 = vmatpush1.bf16.msra.mxu0 %v2962
        %3186 = vmatprep.subr.bf16.mxu0 %v2965
        %3187 = vmatpush1.bf16.msra.mxu0 %v2964
        %3188 = vmatprep.subr.bf16.mxu0 %v2967
        %3189 = vmatpush1.bf16.msra.mxu0 %v2966
        %3190 = vmatprep.subr.bf16.mxu0 %v2969
        %3191 = vmatpush1.bf16.msra.mxu0 %v2968
        %3192 = vmatprep.subr.bf16.mxu0 %v2971
        %3193 = vmatpush1.bf16.msra.mxu0 %v2970
        %3194 = vmatprep.subr.bf16.mxu0 %v2973
        %3195 = vmatpush1.bf16.msra.mxu0 %v2972
        %3196 = vmatprep.subr.bf16.mxu0 %v2975
        %3197 = vmatpush1.bf16.msra.mxu0 %v2974
        %3198 = vmatprep.subr.bf16.mxu0 %v2977
        %3199 = vmatpush1.bf16.msra.mxu0 %v2976
        %3200 = vmatprep.subr.bf16.mxu0 %v2979
        %3201 = vmatpush1.bf16.msra.mxu0 %v2978
        %3202 = vmatprep.subr.bf16.mxu0 %v2981
        %3203 = vmatpush1.bf16.msra.mxu0 %v2980
        %3204 = vmatprep.subr.bf16.mxu0 %v2983
        %3205 = vmatpush1.bf16.msra.mxu0 %v2982
        %3206 = vmatprep.mubr.bf16.mxu0 %v3092
        %3207 = vmatmul.mubr.bf16.gmra.mrb[0].mxu0 %v3091
        %v3208 = vpop.f32.mrb[0].mxu0
        %v3209 = vadd.f32 %v3156, %v3208
        %v3210 = vpop.f32.mrb[0].mxu0
        %v3211 = vadd.f32 %v3158, %v3210
        %v3212 = vpop.f32.mrb[0].mxu0
        %v3213 = vadd.f32 %v3160, %v3212
        %v3214 = vpop.f32.mrb[0].mxu0
        %v3215 = vadd.f32 %v3162, %v3214
        %3216 = vmatprep.mubr.bf16.mxu0 %v3099
        %3217 = vmatmul.mubr.bf16.gmra.mrb[0].mxu0 %v3098
        %v3218 = vpop.f32.mrb[0].mxu0
        %v3219 = vadd.f32 %v3166, %v3218
        %v3220 = vpop.f32.mrb[0].mxu0
        %v3221 = vadd.f32 %v3168, %v3220
        %v3222 = vpop.f32.mrb[0].mxu0
        %v3223 = vadd.f32 %v3170, %v3222
        %v3224 = vpop.f32.mrb[0].mxu0
        %v3225 = vadd.f32 %v3172, %v3224
        %3226 = vdwg.mxu0
        %3227 = vmatprep.subr.bf16.mxu0 %v2985
        %3228 = vmatpush1.bf16.msra.mxu0 %v2984
        %3229 = vmatprep.subr.bf16.mxu0 %v2987
        %3230 = vmatpush1.bf16.msra.mxu0 %v2986
        %3231 = vmatprep.subr.bf16.mxu0 %v2989
        %3232 = vmatpush1.bf16.msra.mxu0 %v2988
        %3233 = vmatprep.subr.bf16.mxu0 %v2991
        %3234 = vmatpush1.bf16.msra.mxu0 %v2990
        %3235 = vmatprep.subr.bf16.mxu0 %v2993
        %3236 = vmatpush1.bf16.msra.mxu0 %v2992
        %3237 = vmatprep.subr.bf16.mxu0 %v2995
        %3238 = vmatpush1.bf16.msra.mxu0 %v2994
        %3239 = vmatprep.subr.bf16.mxu0 %v2997
        %3240 = vmatpush1.bf16.msra.mxu0 %v2996
        %3241 = vmatprep.subr.bf16.mxu0 %v2999
        %3242 = vmatpush1.bf16.msra.mxu0 %v2998
        %3243 = vmatprep.subr.bf16.mxu0 %v3001
        %3244 = vmatpush1.bf16.msra.mxu0 %v3000
        %3245 = vmatprep.subr.bf16.mxu0 %v3003
        %3246 = vmatpush1.bf16.msra.mxu0 %v3002
        %3247 = vmatprep.subr.bf16.mxu0 %v3005
        %3248 = vmatpush1.bf16.msra.mxu0 %v3004
        %3249 = vmatprep.subr.bf16.mxu0 %v3007
        %3250 = vmatpush1.bf16.msra.mxu0 %v3006
        %3251 = vmatprep.subr.bf16.mxu0 %v3009
        %3252 = vmatpush1.bf16.msra.mxu0 %v3008
        %3253 = vmatprep.subr.bf16.mxu0 %v3011
        %3254 = vmatpush1.bf16.msra.mxu0 %v3010
        %3255 = vmatprep.subr.bf16.mxu0 %v3013
        %3256 = vmatpush1.bf16.msra.mxu0 %v3012
        %3257 = vmatprep.subr.bf16.mxu0 %v3015
        %3258 = vmatpush1.bf16.msra.mxu0 %v3014
        %3259 = vmatprep.mubr.bf16.mxu0 %v3094
        %3260 = vmatmul.mubr.bf16.gmra.mrb[0].mxu0 %v3093
        %v3261 = vpop.f32.mrb[0].mxu0
        %v3262 = vadd.f32 %v3209, %v3261
        %v3263 = vpop.f32.mrb[0].mxu0
        %v3264 = vadd.f32 %v3211, %v3263
        %v3265 = vpop.f32.mrb[0].mxu0
        %v3266 = vadd.f32 %v3213, %v3265
        %v3267 = vpop.f32.mrb[0].mxu0
        %v3268 = vadd.f32 %v3215, %v3267
        %3269 = vmatprep.mubr.bf16.mxu0 %v3101
        %3270 = vmatmul.mubr.bf16.gmra.mrb[0].mxu0 %v3100
        %v3271 = vpop.f32.mrb[0].mxu0
        %v3272 = vadd.f32 %v3219, %v3271
        %v3273 = vpop.f32.mrb[0].mxu0
        %v3274 = vadd.f32 %v3221, %v3273
        %v3275 = vpop.f32.mrb[0].mxu0
        %v3276 = vadd.f32 %v3223, %v3275
        %v3277 = vpop.f32.mrb[0].mxu0
        %v3278 = vadd.f32 %v3225, %v3277
        %3279 = vdwg.mxu0
        %3280 = vmatprep.subr.bf16.mxu0 %v3017
        %3281 = vmatpush1.bf16.msra.mxu0 %v3016
        %3282 = vmatprep.subr.bf16.mxu0 %v3019
        %3283 = vmatpush1.bf16.msra.mxu0 %v3018
        %3284 = vmatprep.subr.bf16.mxu0 0
        %3285 = vmatpush1.bf16.msra.mxu0 0
        %3286 = vmatprep.subr.bf16.mxu0 0
        %3287 = vmatpush1.bf16.msra.mxu0 0
        %3288 = vmatprep.subr.bf16.mxu0 0
        %3289 = vmatpush1.bf16.msra.mxu0 0
        %3290 = vmatprep.subr.bf16.mxu0 0
        %3291 = vmatpush1.bf16.msra.mxu0 0
        %3292 = vmatprep.subr.bf16.mxu0 0
        %3293 = vmatpush1.bf16.msra.mxu0 0
        %3294 = vmatprep.subr.bf16.mxu0 0
        %3295 = vmatpush1.bf16.msra.mxu0 0
        %3296 = vmatprep.subr.bf16.mxu0 0
        %3297 = vmatpush1.bf16.msra.mxu0 0
        %3298 = vmatprep.subr.bf16.mxu0 0
        %3299 = vmatpush1.bf16.msra.mxu0 0
        %3300 = vmatprep.subr.bf16.mxu0 0
        %3301 = vmatpush1.bf16.msra.mxu0 0
        %3302 = vmatprep.subr.bf16.mxu0 0
        %3303 = vmatpush1.bf16.msra.mxu0 0
        %3304 = vmatprep.subr.bf16.mxu0 0
        %3305 = vmatpush1.bf16.msra.mxu0 0
        %3306 = vmatprep.subr.bf16.mxu0 0
        %3307 = vmatpush1.bf16.msra.mxu0 0
        %3308 = vmatprep.subr.bf16.mxu0 0
        %3309 = vmatpush1.bf16.msra.mxu0 0
        %3310 = vmatprep.subr.bf16.mxu0 0
        %3311 = vmatpush1.bf16.msra.mxu0 0
        %3312 = vmatprep.mubr.bf16.mxu0 0
        %3313 = vmatmul.mubr.bf16.gmra.mrb[0].mxu0 %v3116
        %v3314 = vpop.f32.mrb[0].mxu0
        %v3315 = vadd.f32 %v3262, %v3314
        %v3316 = vpop.f32.mrb[0].mxu0
        %v3317 = vadd.f32 %v3264, %v3316
        %v3318 = vpop.f32.mrb[0].mxu0
        %v3319 = vadd.f32 %v3266, %v3318
        %v3320 = vpop.f32.mrb[0].mxu0
        %v3321 = vadd.f32 %v3268, %v3320
        %3322 = vmatprep.mubr.bf16.mxu0 0
        %3323 = vmatmul.mubr.bf16.gmra.mrb[0].mxu0 %v3119
        %v3324 = vpop.f32.mrb[0].mxu0
        %v3325 = vadd.f32 %v3272, %v3324
        %v3326 = vpop.f32.mrb[0].mxu0
        %v3327 = vadd.f32 %v3274, %v3326
        %v3328 = vpop.f32.mrb[0].mxu0
        %v3329 = vadd.f32 %v3276, %v3328
        %v3330 = vpop.f32.mrb[0].mxu0
        %v3331 = vadd.f32 %v3278, %v3330
        %3332 = vdwg.mxu0
        %v3333 = vmax.f32 %v3315, 0.0
        %v3334 = vmax.f32 %v3317, 0.0
        %v3335 = vmax.f32 %v3319, 0.0
        %v3336 = vmax.f32 %v3321, 0.0
        %v3337 = vmax.f32 %v3325, 0.0
        %v3338 = vmax.f32 %v3327, 0.0
        %v3339 = vmax.f32 %v3329, 0.0
        %v3340 = vmax.f32 %v3331, 0.0
        %v3341 = vpack.c.bf16 %v3335, %v3333
        %v3342 = vpack.c.bf16 %v3336, %v3334
        %v3343 = vpack.c.bf16 %v3339, %v3337
        %v3344 = vpack.c.bf16 %v3340, %v3338
        %3345 = vst [vmem:[#allocation2 + $0x8] sm:$0xff] %v3341
        %3346 = vst [vmem:[#allocation2 + $0x10] sm:$0xff] %v3342
        %3347 = vst [vmem:[#allocation2 + $0x28] sm:$0xff] %v3343
        %3348 = vst [vmem:[#allocation2 + $0x30] sm:$0xff] %v3344
        %s3349 = scalar_lea.vmem [#allocation4], 224
        %v3350 = vld [vmem:[%s3349] sm:$0xff]
        %v3351 = vld [vmem:[%s3349 + $0x8] sm:$0xff]
        %v3352 = vld [vmem:[%s3349 + $0x10] sm:$0xff]
        %v3353 = vld [vmem:[%s3349 + $0x18] sm:$0xf]
        %v3354 = vld [vmem:[%s3349 + $0x1c] sm:$0xff]
        %v3355 = vld [vmem:[%s3349 + $0x24] sm:$0xff]
        %v3356 = vld [vmem:[%s3349 + $0x2c] sm:$0xff]
        %v3357 = vld [vmem:[%s3349 + $0x34] sm:$0xf]
        %v3358 = vld [vmem:[%s3349 + $0x38] sm:$0xff]
        %v3359 = vld [vmem:[%s3349 + $0x40] sm:$0xff]
        %v3360 = vld [vmem:[%s3349 + $0x48] sm:$0xff]
        %v3361 = vld [vmem:[%s3349 + $0x50] sm:$0xf]
        %v3362 = vld [vmem:[%s3349 + $0x54] sm:$0xff]
        %v3363 = vld [vmem:[%s3349 + $0x5c] sm:$0xff]
        %v3364 = vld [vmem:[%s3349 + $0x64] sm:$0xff]
        %v3365 = vld [vmem:[%s3349 + $0x6c] sm:$0xf]
        %v3366 = vld [vmem:[#allocation2] sm:$0xff]
        %v3367 = vld [vmem:[#allocation2 + $0x8] sm:$0xff]
        %v3368 = vld [vmem:[#allocation2 + $0x10] sm:$0xff]
        %v3369 = vld [vmem:[#allocation2 + $0x20] sm:$0xff]
        %v3370 = vld [vmem:[#allocation2 + $0x28] sm:$0xff]
        %v3371 = vld [vmem:[#allocation2 + $0x30] sm:$0xff]
        %v3372 = vmul.bf16 %v3366, %v277
        %v3373 = vmul.bf16 %v3367, %v281
        %v3374 = vmul.bf16 %v3368, %v279
        %v3375 = vmul.bf16 %v3369, %v277
        %v3376 = vmul.bf16 %v3370, %v281
        %v3377 = vmul.bf16 %v3371, %v279
        %3384 = vrot.lane.b32.xlu0 %v3372, 34
        %v3385 = vpop.permute.xlu0 %3384
        %3386 = vrot.lane.b32.xlu0 %v3373, 34
        %v3387 = vpop.permute.xlu0 %3386
        %3388 = vrot.lane.b32.xlu0 %v3374, 34
        %v3389 = vpop.permute.xlu0 %3388
        %3390 = vrot.lane.b32.xlu0 %v3375, 34
        %v3391 = vpop.permute.xlu0 %3390
        %3392 = vrot.lane.b32.xlu0 %v3376, 34
        %v3393 = vpop.permute.xlu0 %3392
        %3394 = vrot.lane.b32.xlu0 %v3377, 34
        %v3395 = vpop.permute.xlu0 %3394
        %v3396 = vsel %vm309, %v3385, %v3387
        %v3397 = vsel %vm309, %v3387, %v3389
        %v3398 = vsel %vm309, %v3391, %v3393
        %v3399 = vsel %vm309, %v3393, %v3395
        %3404 = vst [vmem:[#allocation3] sm:$0xff] %v3396
        %3405 = vst [vmem:[#allocation3 + $0x8] sm:$0xff] %v3397
        %3406 = vst [vmem:[#allocation3 + $0x10] sm:$0xff] %v3398
        %3407 = vst [vmem:[#allocation3 + $0x18] sm:$0xff] %v3399
        %v3408 = vld [vmem:[#allocation2] sm:$0xff]
        %v3409 = vld [vmem:[#allocation2 + $0x8] sm:$0xff]
        %v3410 = vld [vmem:[#allocation2 + $0x10] sm:$0xff]
        %v3411 = vld [vmem:[#allocation2 + $0x20] sm:$0xff]
        %v3412 = vld [vmem:[#allocation2 + $0x28] sm:$0xff]
        %v3413 = vld [vmem:[#allocation2 + $0x30] sm:$0xff]
        %v3414 = vmul.bf16 %v3408, %v345
        %v3415 = vmul.bf16 %v3409, %v349
        %v3416 = vmul.bf16 %v3410, %v347
        %v3417 = vmul.bf16 %v3411, %v345
        %v3418 = vmul.bf16 %v3412, %v349
        %v3419 = vmul.bf16 %v3413, %v347
        %3426 = vrot.lane.b32.xlu0 %v3414, 33
        %v3427 = vpop.permute.xlu0 %3426
        %3428 = vrot.lane.b32.xlu0 %v3415, 33
        %v3429 = vpop.permute.xlu0 %3428
        %3430 = vrot.lane.b32.xlu0 %v3416, 33
        %v3431 = vpop.permute.xlu0 %3430
        %3432 = vrot.lane.b32.xlu0 %v3417, 33
        %v3433 = vpop.permute.xlu0 %3432
        %3434 = vrot.lane.b32.xlu0 %v3418, 33
        %v3435 = vpop.permute.xlu0 %3434
        %3436 = vrot.lane.b32.xlu0 %v3419, 33
        %v3437 = vpop.permute.xlu0 %3436
        %v3438 = vsel %vm377, %v3427, %v3429
        %v3439 = vsel %vm377, %v3429, %v3431
        %v3440 = vsel %vm377, %v3433, %v3435
        %v3441 = vsel %vm377, %v3435, %v3437
        %3446 = vst [vmem:[#allocation3 + $0x20] sm:$0xff] %v3438
        %3447 = vst [vmem:[#allocation3 + $0x28] sm:$0xff] %v3439
        %3448 = vst [vmem:[#allocation3 + $0x30] sm:$0xff] %v3440
        %3449 = vst [vmem:[#allocation3 + $0x38] sm:$0xff] %v3441
        %v3450 = vld [vmem:[#allocation2] sm:$0xff]
        %v3451 = vld [vmem:[#allocation2 + $0x8] sm:$0xff]
        %v3452 = vld [vmem:[#allocation2 + $0x10] sm:$0xff]
        %v3453 = vld [vmem:[#allocation2 + $0x20] sm:$0xff]
        %v3454 = vld [vmem:[#allocation2 + $0x28] sm:$0xff]
        %v3455 = vld [vmem:[#allocation2 + $0x30] sm:$0xff]
        %3462 = vrot.lane.b32.xlu0 %v3450, 32
        %v3463 = vpop.permute.xlu0 %3462
        %3464 = vrot.lane.b32.xlu0 %v3451, 32
        %v3465 = vpop.permute.xlu0 %3464
        %3466 = vrot.lane.b32.xlu0 %v3452, 32
        %v3467 = vpop.permute.xlu0 %3466
        %3468 = vrot.lane.b32.xlu0 %v3453, 32
        %v3469 = vpop.permute.xlu0 %3468
        %3470 = vrot.lane.b32.xlu0 %v3454, 32
        %v3471 = vpop.permute.xlu0 %3470
        %3472 = vrot.lane.b32.xlu0 %v3455, 32
        %v3473 = vpop.permute.xlu0 %3472
        %v3474 = vsel %vm414, %v3463, %v3465
        %v3475 = vsel %vm414, %v3465, %v3467
        %v3476 = vsel %vm414, %v3469, %v3471
        %v3477 = vsel %vm414, %v3471, %v3473
        %3482 = vst [vmem:[#allocation3 + $0x40] sm:$0xff] %v3474
        %3483 = vst [vmem:[#allocation3 + $0x48] sm:$0xff] %v3475
        %3484 = vst [vmem:[#allocation3 + $0x50] sm:$0xff] %v3476
        %3485 = vst [vmem:[#allocation3 + $0x58] sm:$0xff] %v3477
        %v3486 = vld [vmem:[#allocation2] sm:$0xff]
        %v3487 = vld [vmem:[#allocation2 + $0x8] sm:$0xff]
        %v3488 = vld [vmem:[#allocation2 + $0x10] sm:$0xff]
        %v3489 = vld [vmem:[#allocation2 + $0x20] sm:$0xff]
        %v3490 = vld [vmem:[#allocation2 + $0x28] sm:$0xff]
        %v3491 = vld [vmem:[#allocation2 + $0x30] sm:$0xff]
        %v3492 = vmul.bf16 %v3486, %v444
        %v3493 = vmul.bf16 %v3487, %v448
        %v3494 = vmul.bf16 %v3488, %v446
        %v3495 = vmul.bf16 %v3489, %v444
        %v3496 = vmul.bf16 %v3490, %v448
        %v3497 = vmul.bf16 %v3491, %v446
        %3504 = vrot.lane.b32.xlu0 %v3492, 31
        %v3505 = vpop.permute.xlu0 %3504
        %3506 = vrot.lane.b32.xlu0 %v3493, 31
        %v3507 = vpop.permute.xlu0 %3506
        %3508 = vrot.lane.b32.xlu0 %v3494, 31
        %v3509 = vpop.permute.xlu0 %3508
        %3510 = vrot.lane.b32.xlu0 %v3495, 31
        %v3511 = vpop.permute.xlu0 %3510
        %3512 = vrot.lane.b32.xlu0 %v3496, 31
        %v3513 = vpop.permute.xlu0 %3512
        %3514 = vrot.lane.b32.xlu0 %v3497, 31
        %v3515 = vpop.permute.xlu0 %3514
        %v3516 = vsel %vm476, %v3505, %v3507
        %v3517 = vsel %vm476, %v3507, %v3509
        %v3518 = vsel %vm476, %v3511, %v3513
        %v3519 = vsel %vm476, %v3513, %v3515
        %3524 = vst [vmem:[#allocation3 + $0x60] sm:$0xff] %v3516
        %3525 = vst [vmem:[#allocation3 + $0x68] sm:$0xff] %v3517
        %3526 = vst [vmem:[#allocation3 + $0x70] sm:$0xff] %v3518
        %3527 = vst [vmem:[#allocation3 + $0x78] sm:$0xff] %v3519
        %v3528 = vld [vmem:[#allocation2] sm:$0xff]
        %v3529 = vld [vmem:[#allocation2 + $0x8] sm:$0xff]
        %v3530 = vld [vmem:[#allocation2 + $0x10] sm:$0xff]
        %v3531 = vld [vmem:[#allocation2 + $0x20] sm:$0xff]
        %v3532 = vld [vmem:[#allocation2 + $0x28] sm:$0xff]
        %v3533 = vld [vmem:[#allocation2 + $0x30] sm:$0xff]
        %v3534 = vmul.bf16 %v3528, %v506
        %v3535 = vmul.bf16 %v3529, %v510
        %v3536 = vmul.bf16 %v3530, %v508
        %v3537 = vmul.bf16 %v3531, %v506
        %v3538 = vmul.bf16 %v3532, %v510
        %v3539 = vmul.bf16 %v3533, %v508
        %3546 = vrot.lane.b32.xlu0 %v3534, 30
        %v3547 = vpop.permute.xlu0 %3546
        %3548 = vrot.lane.b32.xlu0 %v3535, 30
        %v3549 = vpop.permute.xlu0 %3548
        %3550 = vrot.lane.b32.xlu0 %v3536, 30
        %v3551 = vpop.permute.xlu0 %3550
        %3552 = vrot.lane.b32.xlu0 %v3537, 30
        %v3553 = vpop.permute.xlu0 %3552
        %3554 = vrot.lane.b32.xlu0 %v3538, 30
        %v3555 = vpop.permute.xlu0 %3554
        %3556 = vrot.lane.b32.xlu0 %v3539, 30
        %v3557 = vpop.permute.xlu0 %3556
        %v3558 = vsel %vm538, %v3547, %v3549
        %v3559 = vsel %vm538, %v3549, %v3551
        %v3560 = vsel %vm538, %v3553, %v3555
        %v3561 = vsel %vm538, %v3555, %v3557
        %3566 = vst [vmem:[#allocation3 + $0x80] sm:$0xff] %v3558
        %3567 = vst [vmem:[#allocation3 + $0x88] sm:$0xff] %v3559
        %3568 = vst [vmem:[#allocation3 + $0x90] sm:$0xff] %v3560
        %3569 = vst [vmem:[#allocation3 + $0x98] sm:$0xff] %v3561
        %v3570 = vld [vmem:[#allocation2] sm:$0xff]
        %v3571 = vld [vmem:[#allocation2 + $0x8] sm:$0xff]
        %v3572 = vld [vmem:[#allocation2 + $0x10] sm:$0xff]
        %v3573 = vld [vmem:[#allocation2 + $0x20] sm:$0xff]
        %v3574 = vld [vmem:[#allocation2 + $0x28] sm:$0xff]
        %v3575 = vld [vmem:[#allocation2 + $0x30] sm:$0xff]
        %v3576 = vmul.bf16 %v3570, %v558
        %v3577 = vmul.bf16 %v3571, %v562
        %v3578 = vmul.bf16 %v3572, %v560
        %v3579 = vmul.bf16 %v3573, %v558
        %v3580 = vmul.bf16 %v3574, %v562
        %v3581 = vmul.bf16 %v3575, %v560
        %3588 = vrot.lane.b32.xlu0 %v3576, 18
        %v3589 = vpop.permute.xlu0 %3588
        %3590 = vrot.lane.b32.xlu0 %v3577, 18
        %v3591 = vpop.permute.xlu0 %3590
        %3592 = vrot.lane.b32.xlu0 %v3578, 18
        %v3593 = vpop.permute.xlu0 %3592
        %3594 = vrot.lane.b32.xlu0 %v3579, 18
        %v3595 = vpop.permute.xlu0 %3594
        %3596 = vrot.lane.b32.xlu0 %v3580, 18
        %v3597 = vpop.permute.xlu0 %3596
        %3598 = vrot.lane.b32.xlu0 %v3581, 18
        %v3599 = vpop.permute.xlu0 %3598
        %v3600 = vsel %vm590, %v3589, %v3591
        %v3601 = vsel %vm590, %v3591, %v3593
        %v3602 = vsel %vm590, %v3595, %v3597
        %v3603 = vsel %vm590, %v3597, %v3599
        %3608 = vst [vmem:[#allocation3 + $0xa0] sm:$0xff] %v3600
        %3609 = vst [vmem:[#allocation3 + $0xa8] sm:$0xff] %v3601
        %3610 = vst [vmem:[#allocation3 + $0xb0] sm:$0xff] %v3602
        %3611 = vst [vmem:[#allocation3 + $0xb8] sm:$0xff] %v3603
        %v3612 = vld [vmem:[#allocation2] sm:$0xff]
        %v3613 = vld [vmem:[#allocation2 + $0x8] sm:$0xff]
        %v3614 = vld [vmem:[#allocation2 + $0x10] sm:$0xff]
        %v3615 = vld [vmem:[#allocation2 + $0x20] sm:$0xff]
        %v3616 = vld [vmem:[#allocation2 + $0x28] sm:$0xff]
        %v3617 = vld [vmem:[#allocation2 + $0x30] sm:$0xff]
        %v3618 = vmul.bf16 %v3612, %v610
        %v3619 = vmul.bf16 %v3613, %v614
        %v3620 = vmul.bf16 %v3614, %v612
        %v3621 = vmul.bf16 %v3615, %v610
        %v3622 = vmul.bf16 %v3616, %v614
        %v3623 = vmul.bf16 %v3617, %v612
        %3630 = vrot.lane.b32.xlu0 %v3618, 17
        %v3631 = vpop.permute.xlu0 %3630
        %3632 = vrot.lane.b32.xlu0 %v3619, 17
        %v3633 = vpop.permute.xlu0 %3632
        %3634 = vrot.lane.b32.xlu0 %v3620, 17
        %v3635 = vpop.permute.xlu0 %3634
        %3636 = vrot.lane.b32.xlu0 %v3621, 17
        %v3637 = vpop.permute.xlu0 %3636
        %3638 = vrot.lane.b32.xlu0 %v3622, 17
        %v3639 = vpop.permute.xlu0 %3638
        %3640 = vrot.lane.b32.xlu0 %v3623, 17
        %v3641 = vpop.permute.xlu0 %3640
        %v3642 = vsel %vm642, %v3631, %v3633
        %v3643 = vsel %vm642, %v3633, %v3635
        %v3644 = vsel %vm642, %v3637, %v3639
        %v3645 = vsel %vm642, %v3639, %v3641
        %3650 = vst [vmem:[#allocation3 + $0xc0] sm:$0xff] %v3642
        %3651 = vst [vmem:[#allocation3 + $0xc8] sm:$0xff] %v3643
        %3652 = vst [vmem:[#allocation3 + $0xd0] sm:$0xff] %v3644
        %3653 = vst [vmem:[#allocation3 + $0xd8] sm:$0xff] %v3645
        %v3654 = vld [vmem:[#allocation2] sm:$0xff]
        %v3655 = vld [vmem:[#allocation2 + $0x8] sm:$0xff]
        %v3656 = vld [vmem:[#allocation2 + $0x10] sm:$0xff]
        %v3657 = vld [vmem:[#allocation2 + $0x20] sm:$0xff]
        %v3658 = vld [vmem:[#allocation2 + $0x28] sm:$0xff]
        %v3659 = vld [vmem:[#allocation2 + $0x30] sm:$0xff]
        %3666 = vrot.lane.b32.xlu0 %v3654, 16
        %v3667 = vpop.permute.xlu0 %3666
        %3668 = vrot.lane.b32.xlu0 %v3655, 16
        %v3669 = vpop.permute.xlu0 %3668
        %3670 = vrot.lane.b32.xlu0 %v3656, 16
        %v3671 = vpop.permute.xlu0 %3670
        %3672 = vrot.lane.b32.xlu0 %v3657, 16
        %v3673 = vpop.permute.xlu0 %3672
        %3674 = vrot.lane.b32.xlu0 %v3658, 16
        %v3675 = vpop.permute.xlu0 %3674
        %3676 = vrot.lane.b32.xlu0 %v3659, 16
        %v3677 = vpop.permute.xlu0 %3676
        %v3678 = vsel %vm679, %v3667, %v3669
        %v3679 = vsel %vm679, %v3669, %v3671
        %v3680 = vsel %vm679, %v3673, %v3675
        %v3681 = vsel %vm679, %v3675, %v3677
        %3686 = vst [vmem:[#allocation3 + $0xe0] sm:$0xff] %v3678
        %3687 = vst [vmem:[#allocation3 + $0xe8] sm:$0xff] %v3679
        %3688 = vst [vmem:[#allocation3 + $0xf0] sm:$0xff] %v3680
        %3689 = vst [vmem:[#allocation3 + $0xf8] sm:$0xff] %v3681
        %v3690 = vld [vmem:[#allocation2] sm:$0xff]
        %v3691 = vld [vmem:[#allocation2 + $0x8] sm:$0xff]
        %v3692 = vld [vmem:[#allocation2 + $0x10] sm:$0xff]
        %v3693 = vld [vmem:[#allocation2 + $0x20] sm:$0xff]
        %v3694 = vld [vmem:[#allocation2 + $0x28] sm:$0xff]
        %v3695 = vld [vmem:[#allocation2 + $0x30] sm:$0xff]
        %v3696 = vmul.bf16 %v3690, %v699
        %v3697 = vmul.bf16 %v3691, %v703
        %v3698 = vmul.bf16 %v3692, %v701
        %v3699 = vmul.bf16 %v3693, %v699
        %v3700 = vmul.bf16 %v3694, %v703
        %v3701 = vmul.bf16 %v3695, %v701
        %3708 = vrot.lane.b32.xlu0 %v3696, 15
        %v3709 = vpop.permute.xlu0 %3708
        %3710 = vrot.lane.b32.xlu0 %v3697, 15
        %v3711 = vpop.permute.xlu0 %3710
        %3712 = vrot.lane.b32.xlu0 %v3698, 15
        %v3713 = vpop.permute.xlu0 %3712
        %3714 = vrot.lane.b32.xlu0 %v3699, 15
        %v3715 = vpop.permute.xlu0 %3714
        %3716 = vrot.lane.b32.xlu0 %v3700, 15
        %v3717 = vpop.permute.xlu0 %3716
        %3718 = vrot.lane.b32.xlu0 %v3701, 15
        %v3719 = vpop.permute.xlu0 %3718
        %v3720 = vsel %vm731, %v3709, %v3711
        %v3721 = vsel %vm731, %v3711, %v3713
        %v3722 = vsel %vm731, %v3715, %v3717
        %v3723 = vsel %vm731, %v3717, %v3719
        %3728 = vst [vmem:[#allocation3 + $0x100] sm:$0xff] %v3720
        %3729 = vst [vmem:[#allocation3 + $0x108] sm:$0xff] %v3721
        %3730 = vst [vmem:[#allocation3 + $0x110] sm:$0xff] %v3722
        %3731 = vst [vmem:[#allocation3 + $0x118] sm:$0xff] %v3723
        %v3732 = vld [vmem:[#allocation2] sm:$0xff]
        %v3733 = vld [vmem:[#allocation2 + $0x8] sm:$0xff]
        %v3734 = vld [vmem:[#allocation2 + $0x10] sm:$0xff]
        %v3735 = vld [vmem:[#allocation2 + $0x20] sm:$0xff]
        %v3736 = vld [vmem:[#allocation2 + $0x28] sm:$0xff]
        %v3737 = vld [vmem:[#allocation2 + $0x30] sm:$0xff]
        %v3738 = vmul.bf16 %v3732, %v751
        %v3739 = vmul.bf16 %v3733, %v755
        %v3740 = vmul.bf16 %v3734, %v753
        %v3741 = vmul.bf16 %v3735, %v751
        %v3742 = vmul.bf16 %v3736, %v755
        %v3743 = vmul.bf16 %v3737, %v753
        %3750 = vrot.lane.b32.xlu0 %v3738, 14
        %v3751 = vpop.permute.xlu0 %3750
        %3752 = vrot.lane.b32.xlu0 %v3739, 14
        %v3753 = vpop.permute.xlu0 %3752
        %3754 = vrot.lane.b32.xlu0 %v3740, 14
        %v3755 = vpop.permute.xlu0 %3754
        %3756 = vrot.lane.b32.xlu0 %v3741, 14
        %v3757 = vpop.permute.xlu0 %3756
        %3758 = vrot.lane.b32.xlu0 %v3742, 14
        %v3759 = vpop.permute.xlu0 %3758
        %3760 = vrot.lane.b32.xlu0 %v3743, 14
        %v3761 = vpop.permute.xlu0 %3760
        %v3762 = vsel %vm783, %v3751, %v3753
        %v3763 = vsel %vm783, %v3753, %v3755
        %v3764 = vsel %vm783, %v3757, %v3759
        %v3765 = vsel %vm783, %v3759, %v3761
        %3770 = vst [vmem:[#allocation3 + $0x120] sm:$0xff] %v3762
        %3771 = vst [vmem:[#allocation3 + $0x128] sm:$0xff] %v3763
        %3772 = vst [vmem:[#allocation3 + $0x130] sm:$0xff] %v3764
        %3773 = vst [vmem:[#allocation3 + $0x138] sm:$0xff] %v3765
        %v3774 = vld [vmem:[#allocation2] sm:$0xff]
        %v3775 = vld [vmem:[#allocation2 + $0x8] sm:$0xff]
        %v3776 = vld [vmem:[#allocation2 + $0x10] sm:$0xff]
        %v3777 = vld [vmem:[#allocation2 + $0x20] sm:$0xff]
        %v3778 = vld [vmem:[#allocation2 + $0x28] sm:$0xff]
        %v3779 = vld [vmem:[#allocation2 + $0x30] sm:$0xff]
        %v3780 = vmul.bf16 %v3774, %v803
        %v3781 = vmul.bf16 %v3775, %v807
        %v3782 = vmul.bf16 %v3776, %v805
        %v3783 = vmul.bf16 %v3777, %v803
        %v3784 = vmul.bf16 %v3778, %v807
        %v3785 = vmul.bf16 %v3779, %v805
        %3792 = vrot.lane.b32.xlu0 %v3780, 2
        %v3793 = vpop.permute.xlu0 %3792
        %3794 = vrot.lane.b32.xlu0 %v3781, 2
        %v3795 = vpop.permute.xlu0 %3794
        %3796 = vrot.lane.b32.xlu0 %v3782, 2
        %v3797 = vpop.permute.xlu0 %3796
        %3798 = vrot.lane.b32.xlu0 %v3783, 2
        %v3799 = vpop.permute.xlu0 %3798
        %3800 = vrot.lane.b32.xlu0 %v3784, 2
        %v3801 = vpop.permute.xlu0 %3800
        %3802 = vrot.lane.b32.xlu0 %v3785, 2
        %v3803 = vpop.permute.xlu0 %3802
        %v3804 = vsel %vm835, %v3793, %v3795
        %v3805 = vsel %vm835, %v3795, %v3797
        %v3806 = vsel %vm835, %v3799, %v3801
        %v3807 = vsel %vm835, %v3801, %v3803
        %3812 = vst [vmem:[#allocation3 + $0x140] sm:$0xff] %v3804
        %3813 = vst [vmem:[#allocation3 + $0x148] sm:$0xff] %v3805
        %3814 = vst [vmem:[#allocation3 + $0x150] sm:$0xff] %v3806
        %3815 = vst [vmem:[#allocation3 + $0x158] sm:$0xff] %v3807
        %v3816 = vld [vmem:[#allocation2] sm:$0xff]
        %v3817 = vld [vmem:[#allocation2 + $0x8] sm:$0xff]
        %v3818 = vld [vmem:[#allocation2 + $0x10] sm:$0xff]
        %v3819 = vld [vmem:[#allocation2 + $0x20] sm:$0xff]
        %v3820 = vld [vmem:[#allocation2 + $0x28] sm:$0xff]
        %v3821 = vld [vmem:[#allocation2 + $0x30] sm:$0xff]
        %v3822 = vmul.bf16 %v3816, %v855
        %v3823 = vmul.bf16 %v3817, %v859
        %v3824 = vmul.bf16 %v3818, %v857
        %v3825 = vmul.bf16 %v3819, %v855
        %v3826 = vmul.bf16 %v3820, %v859
        %v3827 = vmul.bf16 %v3821, %v857
        %3834 = vrot.lane.b32.xlu0 %v3822, 1
        %v3835 = vpop.permute.xlu0 %3834
        %3836 = vrot.lane.b32.xlu0 %v3823, 1
        %v3837 = vpop.permute.xlu0 %3836
        %3838 = vrot.lane.b32.xlu0 %v3824, 1
        %v3839 = vpop.permute.xlu0 %3838
        %3840 = vrot.lane.b32.xlu0 %v3825, 1
        %v3841 = vpop.permute.xlu0 %3840
        %3842 = vrot.lane.b32.xlu0 %v3826, 1
        %v3843 = vpop.permute.xlu0 %3842
        %3844 = vrot.lane.b32.xlu0 %v3827, 1
        %v3845 = vpop.permute.xlu0 %3844
        %v3846 = vsel %vm887, %v3835, %v3837
        %v3847 = vsel %vm887, %v3837, %v3839
        %v3848 = vsel %vm887, %v3841, %v3843
        %v3849 = vsel %vm887, %v3843, %v3845
        %3854 = vst [vmem:[#allocation3 + $0x160] sm:$0xff] %v3846
        %3855 = vst [vmem:[#allocation3 + $0x168] sm:$0xff] %v3847
        %3856 = vst [vmem:[#allocation3 + $0x170] sm:$0xff] %v3848
        %3857 = vst [vmem:[#allocation3 + $0x178] sm:$0xff] %v3849
        %v3858 = vld [vmem:[#allocation2 + $0x8] sm:$0xff]
        %v3859 = vld [vmem:[#allocation2 + $0x10] sm:$0xff]
        %v3860 = vld [vmem:[#allocation2 + $0x28] sm:$0xff]
        %v3861 = vld [vmem:[#allocation2 + $0x30] sm:$0xff]
        %3862 = vst [vmem:[#allocation3 + $0x180] sm:$0xff] %v3858
        %3863 = vst [vmem:[#allocation3 + $0x188] sm:$0xff] %v3859
        %3864 = vst [vmem:[#allocation3 + $0x190] sm:$0xff] %v3860
        %3865 = vst [vmem:[#allocation3 + $0x198] sm:$0xff] %v3861
        %v3866 = vld [vmem:[#allocation2 + $0x8] sm:$0xff]
        %v3867 = vld [vmem:[#allocation2 + $0x10] sm:$0xff]
        %v3868 = vld [vmem:[#allocation2 + $0x18] sm:$0xff]
        %v3869 = vld [vmem:[#allocation2 + $0x28] sm:$0xff]
        %v3870 = vld [vmem:[#allocation2 + $0x30] sm:$0xff]
        %v3871 = vld [vmem:[#allocation2 + $0x38] sm:$0xff]
        %v3872 = vmul.bf16 %v3866, %v915
        %v3873 = vmul.bf16 %v3867, %v918
        %v3874 = vmul.bf16 %v3868, %v917
        %v3875 = vmul.bf16 %v3869, %v915
        %v3876 = vmul.bf16 %v3870, %v918
        %v3877 = vmul.bf16 %v3871, %v917
        %3884 = vrot.lane.b32.xlu0 %v3872, 127
        %v3885 = vpop.permute.xlu0 %3884
        %3886 = vrot.lane.b32.xlu0 %v3873, 127
        %v3887 = vpop.permute.xlu0 %3886
        %3888 = vrot.lane.b32.xlu0 %v3874, 127
        %v3889 = vpop.permute.xlu0 %3888
        %3890 = vrot.lane.b32.xlu0 %v3875, 127
        %v3891 = vpop.permute.xlu0 %3890
        %3892 = vrot.lane.b32.xlu0 %v3876, 127
        %v3893 = vpop.permute.xlu0 %3892
        %3894 = vrot.lane.b32.xlu0 %v3877, 127
        %v3895 = vpop.permute.xlu0 %3894
        %v3896 = vsel %vm858, %v3885, %v3887
        %v3897 = vsel %vm858, %v3887, %v3889
        %v3898 = vsel %vm858, %v3891, %v3893
        %v3899 = vsel %vm858, %v3893, %v3895
        %3904 = vst [vmem:[#allocation3 + $0x1a0] sm:$0xff] %v3896
        %3905 = vst [vmem:[#allocation3 + $0x1a8] sm:$0xff] %v3897
        %3906 = vst [vmem:[#allocation3 + $0x1b0] sm:$0xff] %v3898
        %3907 = vst [vmem:[#allocation3 + $0x1b8] sm:$0xff] %v3899
        %v3908 = vld [vmem:[#allocation2 + $0x8] sm:$0xff]
        %v3909 = vld [vmem:[#allocation2 + $0x10] sm:$0xff]
        %v3910 = vld [vmem:[#allocation2 + $0x18] sm:$0xff]
        %v3911 = vld [vmem:[#allocation2 + $0x28] sm:$0xff]
        %v3912 = vld [vmem:[#allocation2 + $0x30] sm:$0xff]
        %v3913 = vld [vmem:[#allocation2 + $0x38] sm:$0xff]
        %v3914 = vmul.bf16 %v3908, %v965
        %v3915 = vmul.bf16 %v3909, %v968
        %v3916 = vmul.bf16 %v3910, %v967
        %v3917 = vmul.bf16 %v3911, %v965
        %v3918 = vmul.bf16 %v3912, %v968
        %v3919 = vmul.bf16 %v3913, %v967
        %3926 = vrot.lane.b32.xlu0 %v3914, 126
        %v3927 = vpop.permute.xlu0 %3926
        %3928 = vrot.lane.b32.xlu0 %v3915, 126
        %v3929 = vpop.permute.xlu0 %3928
        %3930 = vrot.lane.b32.xlu0 %v3916, 126
        %v3931 = vpop.permute.xlu0 %3930
        %3932 = vrot.lane.b32.xlu0 %v3917, 126
        %v3933 = vpop.permute.xlu0 %3932
        %3934 = vrot.lane.b32.xlu0 %v3918, 126
        %v3935 = vpop.permute.xlu0 %3934
        %3936 = vrot.lane.b32.xlu0 %v3919, 126
        %v3937 = vpop.permute.xlu0 %3936
        %v3938 = vsel %vm806, %v3927, %v3929
        %v3939 = vsel %vm806, %v3929, %v3931
        %v3940 = vsel %vm806, %v3933, %v3935
        %v3941 = vsel %vm806, %v3935, %v3937
        %3946 = vst [vmem:[#allocation3 + $0x1c0] sm:$0xff] %v3938
        %3947 = vst [vmem:[#allocation3 + $0x1c8] sm:$0xff] %v3939
        %3948 = vst [vmem:[#allocation3 + $0x1d0] sm:$0xff] %v3940
        %3949 = vst [vmem:[#allocation3 + $0x1d8] sm:$0xff] %v3941
        %v3950 = vld [vmem:[#allocation2 + $0x8] sm:$0xff]
        %v3951 = vld [vmem:[#allocation2 + $0x10] sm:$0xff]
        %v3952 = vld [vmem:[#allocation2 + $0x18] sm:$0xff]
        %v3953 = vld [vmem:[#allocation2 + $0x28] sm:$0xff]
        %v3954 = vld [vmem:[#allocation2 + $0x30] sm:$0xff]
        %v3955 = vld [vmem:[#allocation2 + $0x38] sm:$0xff]
        %v3956 = vmul.bf16 %v3950, %v1015
        %v3957 = vmul.bf16 %v3951, %v1018
        %v3958 = vmul.bf16 %v3952, %v1017
        %v3959 = vmul.bf16 %v3953, %v1015
        %v3960 = vmul.bf16 %v3954, %v1018
        %v3961 = vmul.bf16 %v3955, %v1017
        %3968 = vrot.lane.b32.xlu0 %v3956, 114
        %v3969 = vpop.permute.xlu0 %3968
        %3970 = vrot.lane.b32.xlu0 %v3957, 114
        %v3971 = vpop.permute.xlu0 %3970
        %3972 = vrot.lane.b32.xlu0 %v3958, 114
        %v3973 = vpop.permute.xlu0 %3972
        %3974 = vrot.lane.b32.xlu0 %v3959, 114
        %v3975 = vpop.permute.xlu0 %3974
        %3976 = vrot.lane.b32.xlu0 %v3960, 114
        %v3977 = vpop.permute.xlu0 %3976
        %3978 = vrot.lane.b32.xlu0 %v3961, 114
        %v3979 = vpop.permute.xlu0 %3978
        %v3980 = vsel %vm754, %v3969, %v3971
        %v3981 = vsel %vm754, %v3971, %v3973
        %v3982 = vsel %vm754, %v3975, %v3977
        %v3983 = vsel %vm754, %v3977, %v3979
        %3988 = vst [vmem:[#allocation3 + $0x1e0] sm:$0xff] %v3980
        %3989 = vst [vmem:[#allocation3 + $0x1e8] sm:$0xff] %v3981
        %3990 = vst [vmem:[#allocation3 + $0x1f0] sm:$0xff] %v3982
        %3991 = vst [vmem:[#allocation3 + $0x1f8] sm:$0xff] %v3983
        %v3992 = vld [vmem:[#allocation2 + $0x8] sm:$0xff]
        %v3993 = vld [vmem:[#allocation2 + $0x10] sm:$0xff]
        %v3994 = vld [vmem:[#allocation2 + $0x18] sm:$0xff]
        %v3995 = vld [vmem:[#allocation2 + $0x28] sm:$0xff]
        %v3996 = vld [vmem:[#allocation2 + $0x30] sm:$0xff]
        %v3997 = vld [vmem:[#allocation2 + $0x38] sm:$0xff]
        %v3998 = vmul.bf16 %v3992, %v1065
        %v3999 = vmul.bf16 %v3993, %v1068
        %v4000 = vmul.bf16 %v3994, %v1067
        %v4001 = vmul.bf16 %v3995, %v1065
        %v4002 = vmul.bf16 %v3996, %v1068
        %v4003 = vmul.bf16 %v3997, %v1067
        %4010 = vrot.lane.b32.xlu0 %v3998, 113
        %v4011 = vpop.permute.xlu0 %4010
        %4012 = vrot.lane.b32.xlu0 %v3999, 113
        %v4013 = vpop.permute.xlu0 %4012
        %4014 = vrot.lane.b32.xlu0 %v4000, 113
        %v4015 = vpop.permute.xlu0 %4014
        %4016 = vrot.lane.b32.xlu0 %v4001, 113
        %v4017 = vpop.permute.xlu0 %4016
        %4018 = vrot.lane.b32.xlu0 %v4002, 113
        %v4019 = vpop.permute.xlu0 %4018
        %4020 = vrot.lane.b32.xlu0 %v4003, 113
        %v4021 = vpop.permute.xlu0 %4020
        %v4022 = vsel %vm702, %v4011, %v4013
        %v4023 = vsel %vm702, %v4013, %v4015
        %v4024 = vsel %vm702, %v4017, %v4019
        %v4025 = vsel %vm702, %v4019, %v4021
        %4030 = vst [vmem:[#allocation3 + $0x200] sm:$0xff] %v4022
        %4031 = vst [vmem:[#allocation3 + $0x208] sm:$0xff] %v4023
        %4032 = vst [vmem:[#allocation3 + $0x210] sm:$0xff] %v4024
        %4033 = vst [vmem:[#allocation3 + $0x218] sm:$0xff] %v4025
        %v4034 = vld [vmem:[#allocation2 + $0x8] sm:$0xff]
        %v4035 = vld [vmem:[#allocation2 + $0x10] sm:$0xff]
        %v4036 = vld [vmem:[#allocation2 + $0x18] sm:$0xff]
        %v4037 = vld [vmem:[#allocation2 + $0x28] sm:$0xff]
        %v4038 = vld [vmem:[#allocation2 + $0x30] sm:$0xff]
        %v4039 = vld [vmem:[#allocation2 + $0x38] sm:$0xff]
        %4046 = vrot.lane.b32.xlu0 %v4034, 112
        %v4047 = vpop.permute.xlu0 %4046
        %4048 = vrot.lane.b32.xlu0 %v4035, 112
        %v4049 = vpop.permute.xlu0 %4048
        %4050 = vrot.lane.b32.xlu0 %v4036, 112
        %v4051 = vpop.permute.xlu0 %4050
        %4052 = vrot.lane.b32.xlu0 %v4037, 112
        %v4053 = vpop.permute.xlu0 %4052
        %4054 = vrot.lane.b32.xlu0 %v4038, 112
        %v4055 = vpop.permute.xlu0 %4054
        %4056 = vrot.lane.b32.xlu0 %v4039, 112
        %v4057 = vpop.permute.xlu0 %4056
        %v4058 = vsel %vm1132, %v4047, %v4049
        %v4059 = vsel %vm1132, %v4049, %v4051
        %v4060 = vsel %vm1132, %v4053, %v4055
        %v4061 = vsel %vm1132, %v4055, %v4057
        %4066 = vst [vmem:[#allocation3 + $0x220] sm:$0xff] %v4058
        %4067 = vst [vmem:[#allocation3 + $0x228] sm:$0xff] %v4059
        %4068 = vst [vmem:[#allocation3 + $0x230] sm:$0xff] %v4060
        %4069 = vst [vmem:[#allocation3 + $0x238] sm:$0xff] %v4061
        %v4070 = vld [vmem:[#allocation2 + $0x8] sm:$0xff]
        %v4071 = vld [vmem:[#allocation2 + $0x10] sm:$0xff]
        %v4072 = vld [vmem:[#allocation2 + $0x18] sm:$0xff]
        %v4073 = vld [vmem:[#allocation2 + $0x28] sm:$0xff]
        %v4074 = vld [vmem:[#allocation2 + $0x30] sm:$0xff]
        %v4075 = vld [vmem:[#allocation2 + $0x38] sm:$0xff]
        %v4076 = vmul.bf16 %v4070, %v1152
        %v4077 = vmul.bf16 %v4071, %v1155
        %v4078 = vmul.bf16 %v4072, %v1154
        %v4079 = vmul.bf16 %v4073, %v1152
        %v4080 = vmul.bf16 %v4074, %v1155
        %v4081 = vmul.bf16 %v4075, %v1154
        %4088 = vrot.lane.b32.xlu0 %v4076, 111
        %v4089 = vpop.permute.xlu0 %4088
        %4090 = vrot.lane.b32.xlu0 %v4077, 111
        %v4091 = vpop.permute.xlu0 %4090
        %4092 = vrot.lane.b32.xlu0 %v4078, 111
        %v4093 = vpop.permute.xlu0 %4092
        %4094 = vrot.lane.b32.xlu0 %v4079, 111
        %v4095 = vpop.permute.xlu0 %4094
        %4096 = vrot.lane.b32.xlu0 %v4080, 111
        %v4097 = vpop.permute.xlu0 %4096
        %4098 = vrot.lane.b32.xlu0 %v4081, 111
        %v4099 = vpop.permute.xlu0 %4098
        %v4100 = vsel %vm613, %v4089, %v4091
        %v4101 = vsel %vm613, %v4091, %v4093
        %v4102 = vsel %vm613, %v4095, %v4097
        %v4103 = vsel %vm613, %v4097, %v4099
        %4108 = vst [vmem:[#allocation3 + $0x240] sm:$0xff] %v4100
        %4109 = vst [vmem:[#allocation3 + $0x248] sm:$0xff] %v4101
        %4110 = vst [vmem:[#allocation3 + $0x250] sm:$0xff] %v4102
        %4111 = vst [vmem:[#allocation3 + $0x258] sm:$0xff] %v4103
        %v4112 = vld [vmem:[#allocation2 + $0x8] sm:$0xff]
        %v4113 = vld [vmem:[#allocation2 + $0x10] sm:$0xff]
        %v4114 = vld [vmem:[#allocation2 + $0x18] sm:$0xff]
        %v4115 = vld [vmem:[#allocation2 + $0x28] sm:$0xff]
        %v4116 = vld [vmem:[#allocation2 + $0x30] sm:$0xff]
        %v4117 = vld [vmem:[#allocation2 + $0x38] sm:$0xff]
        %v4118 = vmul.bf16 %v4112, %v1202
        %v4119 = vmul.bf16 %v4113, %v1205
        %v4120 = vmul.bf16 %v4114, %v1204
        %v4121 = vmul.bf16 %v4115, %v1202
        %v4122 = vmul.bf16 %v4116, %v1205
        %v4123 = vmul.bf16 %v4117, %v1204
        %4130 = vrot.lane.b32.xlu0 %v4118, 110
        %v4131 = vpop.permute.xlu0 %4130
        %4132 = vrot.lane.b32.xlu0 %v4119, 110
        %v4133 = vpop.permute.xlu0 %4132
        %4134 = vrot.lane.b32.xlu0 %v4120, 110
        %v4135 = vpop.permute.xlu0 %4134
        %4136 = vrot.lane.b32.xlu0 %v4121, 110
        %v4137 = vpop.permute.xlu0 %4136
        %4138 = vrot.lane.b32.xlu0 %v4122, 110
        %v4139 = vpop.permute.xlu0 %4138
        %4140 = vrot.lane.b32.xlu0 %v4123, 110
        %v4141 = vpop.permute.xlu0 %4140
        %v4142 = vsel %vm561, %v4131, %v4133
        %v4143 = vsel %vm561, %v4133, %v4135
        %v4144 = vsel %vm561, %v4137, %v4139
        %v4145 = vsel %vm561, %v4139, %v4141
        %4150 = vst [vmem:[#allocation3 + $0x260] sm:$0xff] %v4142
        %4151 = vst [vmem:[#allocation3 + $0x268] sm:$0xff] %v4143
        %4152 = vst [vmem:[#allocation3 + $0x270] sm:$0xff] %v4144
        %4153 = vst [vmem:[#allocation3 + $0x278] sm:$0xff] %v4145
        %v4154 = vld [vmem:[#allocation2 + $0x8] sm:$0xff]
        %v4155 = vld [vmem:[#allocation2 + $0x10] sm:$0xff]
        %v4156 = vld [vmem:[#allocation2 + $0x18] sm:$0xff]
        %v4157 = vld [vmem:[#allocation2 + $0x28] sm:$0xff]
        %v4158 = vld [vmem:[#allocation2 + $0x30] sm:$0xff]
        %v4159 = vld [vmem:[#allocation2 + $0x38] sm:$0xff]
        %v4160 = vmul.bf16 %v4154, %v1252
        %v4161 = vmul.bf16 %v4155, %v1255
        %v4162 = vmul.bf16 %v4156, %v1254
        %v4163 = vmul.bf16 %v4157, %v1252
        %v4164 = vmul.bf16 %v4158, %v1255
        %v4165 = vmul.bf16 %v4159, %v1254
        %4172 = vrot.lane.b32.xlu0 %v4160, 98
        %v4173 = vpop.permute.xlu0 %4172
        %4174 = vrot.lane.b32.xlu0 %v4161, 98
        %v4175 = vpop.permute.xlu0 %4174
        %4176 = vrot.lane.b32.xlu0 %v4162, 98
        %v4177 = vpop.permute.xlu0 %4176
        %4178 = vrot.lane.b32.xlu0 %v4163, 98
        %v4179 = vpop.permute.xlu0 %4178
        %4180 = vrot.lane.b32.xlu0 %v4164, 98
        %v4181 = vpop.permute.xlu0 %4180
        %4182 = vrot.lane.b32.xlu0 %v4165, 98
        %v4183 = vpop.permute.xlu0 %4182
        %v4184 = vsel %vm509, %v4173, %v4175
        %v4185 = vsel %vm509, %v4175, %v4177
        %v4186 = vsel %vm509, %v4179, %v4181
        %v4187 = vsel %vm509, %v4181, %v4183
        %4192 = vst [vmem:[#allocation3 + $0x280] sm:$0xff] %v4184
        %4193 = vst [vmem:[#allocation3 + $0x288] sm:$0xff] %v4185
        %4194 = vst [vmem:[#allocation3 + $0x290] sm:$0xff] %v4186
        %4195 = vst [vmem:[#allocation3 + $0x298] sm:$0xff] %v4187
        %v4196 = vld [vmem:[#allocation2 + $0x8] sm:$0xff]
        %v4197 = vld [vmem:[#allocation2 + $0x10] sm:$0xff]
        %v4198 = vld [vmem:[#allocation2 + $0x18] sm:$0xff]
        %v4199 = vld [vmem:[#allocation2 + $0x28] sm:$0xff]
        %v4200 = vld [vmem:[#allocation2 + $0x30] sm:$0xff]
        %v4201 = vld [vmem:[#allocation2 + $0x38] sm:$0xff]
        %v4202 = vmul.bf16 %v4196, %v1302
        %v4203 = vmul.bf16 %v4197, %v1305
        %v4204 = vmul.bf16 %v4198, %v1304
        %v4205 = vmul.bf16 %v4199, %v1302
        %v4206 = vmul.bf16 %v4200, %v1305
        %v4207 = vmul.bf16 %v4201, %v1304
        %4214 = vrot.lane.b32.xlu0 %v4202, 97
        %v4215 = vpop.permute.xlu0 %4214
        %4216 = vrot.lane.b32.xlu0 %v4203, 97
        %v4217 = vpop.permute.xlu0 %4216
        %4218 = vrot.lane.b32.xlu0 %v4204, 97
        %v4219 = vpop.permute.xlu0 %4218
        %4220 = vrot.lane.b32.xlu0 %v4205, 97
        %v4221 = vpop.permute.xlu0 %4220
        %4222 = vrot.lane.b32.xlu0 %v4206, 97
        %v4223 = vpop.permute.xlu0 %4222
        %4224 = vrot.lane.b32.xlu0 %v4207, 97
        %v4225 = vpop.permute.xlu0 %4224
        %v4226 = vsel %vm447, %v4215, %v4217
        %v4227 = vsel %vm447, %v4217, %v4219
        %v4228 = vsel %vm447, %v4221, %v4223
        %v4229 = vsel %vm447, %v4223, %v4225
        %4234 = vst [vmem:[#allocation3 + $0x2a0] sm:$0xff] %v4226
        %4235 = vst [vmem:[#allocation3 + $0x2a8] sm:$0xff] %v4227
        %4236 = vst [vmem:[#allocation3 + $0x2b0] sm:$0xff] %v4228
        %4237 = vst [vmem:[#allocation3 + $0x2b8] sm:$0xff] %v4229
        %v4238 = vld [vmem:[#allocation2 + $0x8] sm:$0xff]
        %v4239 = vld [vmem:[#allocation2 + $0x10] sm:$0xff]
        %v4240 = vld [vmem:[#allocation2 + $0x18] sm:$0xff]
        %v4241 = vld [vmem:[#allocation2 + $0x28] sm:$0xff]
        %v4242 = vld [vmem:[#allocation2 + $0x30] sm:$0xff]
        %v4243 = vld [vmem:[#allocation2 + $0x38] sm:$0xff]
        %4250 = vrot.lane.b32.xlu0 %v4238, 96
        %v4251 = vpop.permute.xlu0 %4250
        %4252 = vrot.lane.b32.xlu0 %v4239, 96
        %v4253 = vpop.permute.xlu0 %4252
        %4254 = vrot.lane.b32.xlu0 %v4240, 96
        %v4255 = vpop.permute.xlu0 %4254
        %4256 = vrot.lane.b32.xlu0 %v4241, 96
        %v4257 = vpop.permute.xlu0 %4256
        %4258 = vrot.lane.b32.xlu0 %v4242, 96
        %v4259 = vpop.permute.xlu0 %4258
        %4260 = vrot.lane.b32.xlu0 %v4243, 96
        %v4261 = vpop.permute.xlu0 %4260
        %v4262 = vsel %vm1369, %v4251, %v4253
        %v4263 = vsel %vm1369, %v4253, %v4255
        %v4264 = vsel %vm1369, %v4257, %v4259
        %v4265 = vsel %vm1369, %v4259, %v4261
        %4270 = vst [vmem:[#allocation3 + $0x2c0] sm:$0xff] %v4262
        %4271 = vst [vmem:[#allocation3 + $0x2c8] sm:$0xff] %v4263
        %4272 = vst [vmem:[#allocation3 + $0x2d0] sm:$0xff] %v4264
        %4273 = vst [vmem:[#allocation3 + $0x2d8] sm:$0xff] %v4265
        %v4274 = vld [vmem:[#allocation2 + $0x8] sm:$0xff]
        %v4275 = vld [vmem:[#allocation2 + $0x10] sm:$0xff]
        %v4276 = vld [vmem:[#allocation2 + $0x18] sm:$0xff]
        %v4277 = vld [vmem:[#allocation2 + $0x28] sm:$0xff]
        %v4278 = vld [vmem:[#allocation2 + $0x30] sm:$0xff]
        %v4279 = vld [vmem:[#allocation2 + $0x38] sm:$0xff]
        %v4280 = vmul.bf16 %v4274, %v1389
        %v4281 = vmul.bf16 %v4275, %v1392
        %v4282 = vmul.bf16 %v4276, %v1391
        %v4283 = vmul.bf16 %v4277, %v1389
        %v4284 = vmul.bf16 %v4278, %v1392
        %v4285 = vmul.bf16 %v4279, %v1391
        %4292 = vrot.lane.b32.xlu0 %v4280, 95
        %v4293 = vpop.permute.xlu0 %4292
        %4294 = vrot.lane.b32.xlu0 %v4281, 95
        %v4295 = vpop.permute.xlu0 %4294
        %4296 = vrot.lane.b32.xlu0 %v4282, 95
        %v4297 = vpop.permute.xlu0 %4296
        %4298 = vrot.lane.b32.xlu0 %v4283, 95
        %v4299 = vpop.permute.xlu0 %4298
        %4300 = vrot.lane.b32.xlu0 %v4284, 95
        %v4301 = vpop.permute.xlu0 %4300
        %4302 = vrot.lane.b32.xlu0 %v4285, 95
        %v4303 = vpop.permute.xlu0 %4302
        %v4304 = vsel %vm348, %v4293, %v4295
        %v4305 = vsel %vm348, %v4295, %v4297
        %v4306 = vsel %vm348, %v4299, %v4301
        %v4307 = vsel %vm348, %v4301, %v4303
        %4312 = vst [vmem:[#allocation3 + $0x2e0] sm:$0xff] %v4304
        %4313 = vst [vmem:[#allocation3 + $0x2e8] sm:$0xff] %v4305
        %4314 = vst [vmem:[#allocation3 + $0x2f0] sm:$0xff] %v4306
        %4315 = vst [vmem:[#allocation3 + $0x2f8] sm:$0xff] %v4307
        %v4316 = vld [vmem:[#allocation2 + $0x8] sm:$0xff]
        %v4317 = vld [vmem:[#allocation2 + $0x10] sm:$0xff]
        %v4318 = vld [vmem:[#allocation2 + $0x18] sm:$0xff]
        %v4319 = vld [vmem:[#allocation2 + $0x28] sm:$0xff]
        %v4320 = vld [vmem:[#allocation2 + $0x30] sm:$0xff]
        %v4321 = vld [vmem:[#allocation2 + $0x38] sm:$0xff]
        %v4322 = vmul.bf16 %v4316, %v1439
        %v4323 = vmul.bf16 %v4317, %v1442
        %v4324 = vmul.bf16 %v4318, %v1441
        %v4325 = vmul.bf16 %v4319, %v1439
        %v4326 = vmul.bf16 %v4320, %v1442
        %v4327 = vmul.bf16 %v4321, %v1441
        %4334 = vrot.lane.b32.xlu0 %v4322, 94
        %v4335 = vpop.permute.xlu0 %4334
        %4336 = vrot.lane.b32.xlu0 %v4323, 94
        %v4337 = vpop.permute.xlu0 %4336
        %4338 = vrot.lane.b32.xlu0 %v4324, 94
        %v4339 = vpop.permute.xlu0 %4338
        %4340 = vrot.lane.b32.xlu0 %v4325, 94
        %v4341 = vpop.permute.xlu0 %4340
        %4342 = vrot.lane.b32.xlu0 %v4326, 94
        %v4343 = vpop.permute.xlu0 %4342
        %4344 = vrot.lane.b32.xlu0 %v4327, 94
        %v4345 = vpop.permute.xlu0 %4344
        %v4346 = vsel %vm280, %v4335, %v4337
        %v4347 = vsel %vm280, %v4337, %v4339
        %v4348 = vsel %vm280, %v4341, %v4343
        %v4349 = vsel %vm280, %v4343, %v4345
        %4354 = vst [vmem:[#allocation3 + $0x300] sm:$0xff] %v4346
        %4355 = vst [vmem:[#allocation3 + $0x308] sm:$0xff] %v4347
        %4356 = vst [vmem:[#allocation3 + $0x310] sm:$0xff] %v4348
        %4357 = vst [vmem:[#allocation3 + $0x318] sm:$0xff] %v4349
        %v4358 = vld [vmem:[#allocation3] sm:$0xff]
        %v4359 = vld [vmem:[#allocation3 + $0x8] sm:$0xff]
        %v4360 = vld [vmem:[#allocation3 + $0x10] sm:$0xff]
        %v4361 = vld [vmem:[#allocation3 + $0x18] sm:$0xff]
        %v4362 = vld [vmem:[#allocation3 + $0x20] sm:$0xff]
        %v4363 = vld [vmem:[#allocation3 + $0x28] sm:$0xff]
        %v4364 = vld [vmem:[#allocation3 + $0x30] sm:$0xff]
        %v4365 = vld [vmem:[#allocation3 + $0x38] sm:$0xff]
        %v4366 = vld [vmem:[#allocation3 + $0x40] sm:$0xff]
        %v4367 = vld [vmem:[#allocation3 + $0x48] sm:$0xff]
        %v4368 = vld [vmem:[#allocation3 + $0x50] sm:$0xff]
        %v4369 = vld [vmem:[#allocation3 + $0x58] sm:$0xff]
        %v4370 = vld [vmem:[#allocation3 + $0x60] sm:$0xff]
        %v4371 = vld [vmem:[#allocation3 + $0x68] sm:$0xff]
        %v4372 = vld [vmem:[#allocation3 + $0x70] sm:$0xff]
        %v4373 = vld [vmem:[#allocation3 + $0x78] sm:$0xff]
        %v4374 = vld [vmem:[#allocation3 + $0x80] sm:$0xff]
        %v4375 = vld [vmem:[#allocation3 + $0x88] sm:$0xff]
        %v4376 = vld [vmem:[#allocation3 + $0x90] sm:$0xff]
        %v4377 = vld [vmem:[#allocation3 + $0x98] sm:$0xff]
        %v4378 = vld [vmem:[#allocation3 + $0xa0] sm:$0xff]
        %v4379 = vld [vmem:[#allocation3 + $0xa8] sm:$0xff]
        %v4380 = vld [vmem:[#allocation3 + $0xb0] sm:$0xff]
        %v4381 = vld [vmem:[#allocation3 + $0xb8] sm:$0xff]
        %v4382 = vld [vmem:[#allocation3 + $0xc0] sm:$0xff]
        %v4383 = vld [vmem:[#allocation3 + $0xc8] sm:$0xff]
        %v4384 = vld [vmem:[#allocation3 + $0xd0] sm:$0xff]
        %v4385 = vld [vmem:[#allocation3 + $0xd8] sm:$0xff]
        %v4386 = vld [vmem:[#allocation3 + $0xe0] sm:$0xff]
        %v4387 = vld [vmem:[#allocation3 + $0xe8] sm:$0xff]
        %v4388 = vld [vmem:[#allocation3 + $0xf0] sm:$0xff]
        %v4389 = vld [vmem:[#allocation3 + $0xf8] sm:$0xff]
        %v4390 = vld [vmem:[#allocation3 + $0x100] sm:$0xff]
        %v4391 = vld [vmem:[#allocation3 + $0x108] sm:$0xff]
        %v4392 = vld [vmem:[#allocation3 + $0x110] sm:$0xff]
        %v4393 = vld [vmem:[#allocation3 + $0x118] sm:$0xff]
        %v4394 = vld [vmem:[#allocation3 + $0x120] sm:$0xff]
        %v4395 = vld [vmem:[#allocation3 + $0x128] sm:$0xff]
        %v4396 = vld [vmem:[#allocation3 + $0x130] sm:$0xff]
        %v4397 = vld [vmem:[#allocation3 + $0x138] sm:$0xff]
        %v4398 = vld [vmem:[#allocation3 + $0x140] sm:$0xff]
        %v4399 = vld [vmem:[#allocation3 + $0x148] sm:$0xff]
        %v4400 = vld [vmem:[#allocation3 + $0x150] sm:$0xff]
        %v4401 = vld [vmem:[#allocation3 + $0x158] sm:$0xff]
        %v4402 = vld [vmem:[#allocation3 + $0x160] sm:$0xff]
        %v4403 = vld [vmem:[#allocation3 + $0x168] sm:$0xff]
        %v4404 = vld [vmem:[#allocation3 + $0x170] sm:$0xff]
        %v4405 = vld [vmem:[#allocation3 + $0x178] sm:$0xff]
        %v4406 = vld [vmem:[#allocation3 + $0x180] sm:$0xff]
        %v4407 = vld [vmem:[#allocation3 + $0x188] sm:$0xff]
        %v4408 = vld [vmem:[#allocation3 + $0x190] sm:$0xff]
        %v4409 = vld [vmem:[#allocation3 + $0x198] sm:$0xff]
        %v4410 = vld [vmem:[#allocation3 + $0x1a0] sm:$0xff]
        %v4411 = vld [vmem:[#allocation3 + $0x1a8] sm:$0xff]
        %v4412 = vld [vmem:[#allocation3 + $0x1b0] sm:$0xff]
        %v4413 = vld [vmem:[#allocation3 + $0x1b8] sm:$0xff]
        %v4414 = vld [vmem:[#allocation3 + $0x1c0] sm:$0xff]
        %v4415 = vld [vmem:[#allocation3 + $0x1c8] sm:$0xff]
        %v4416 = vld [vmem:[#allocation3 + $0x1d0] sm:$0xff]
        %v4417 = vld [vmem:[#allocation3 + $0x1d8] sm:$0xff]
        %v4418 = vld [vmem:[#allocation3 + $0x1e0] sm:$0xff]
        %v4419 = vld [vmem:[#allocation3 + $0x1e8] sm:$0xff]
        %v4420 = vld [vmem:[#allocation3 + $0x1f0] sm:$0xff]
        %v4421 = vld [vmem:[#allocation3 + $0x1f8] sm:$0xff]
        %v4422 = vld [vmem:[#allocation3 + $0x200] sm:$0xff]
        %v4423 = vld [vmem:[#allocation3 + $0x208] sm:$0xff]
        %v4424 = vld [vmem:[#allocation3 + $0x210] sm:$0xff]
        %v4425 = vld [vmem:[#allocation3 + $0x218] sm:$0xff]
        %v4426 = vld [vmem:[#allocation3 + $0x220] sm:$0xff]
        %v4427 = vld [vmem:[#allocation3 + $0x228] sm:$0xff]
        %v4428 = vld [vmem:[#allocation3 + $0x230] sm:$0xff]
        %v4429 = vld [vmem:[#allocation3 + $0x238] sm:$0xff]
        %v4430 = vld [vmem:[#allocation3 + $0x240] sm:$0xff]
        %v4431 = vld [vmem:[#allocation3 + $0x248] sm:$0xff]
        %v4432 = vld [vmem:[#allocation3 + $0x250] sm:$0xff]
        %v4433 = vld [vmem:[#allocation3 + $0x258] sm:$0xff]
        %v4434 = vld [vmem:[#allocation3 + $0x260] sm:$0xff]
        %v4435 = vld [vmem:[#allocation3 + $0x268] sm:$0xff]
        %v4436 = vld [vmem:[#allocation3 + $0x270] sm:$0xff]
        %v4437 = vld [vmem:[#allocation3 + $0x278] sm:$0xff]
        %v4438 = vld [vmem:[#allocation3 + $0x280] sm:$0xff]
        %v4439 = vld [vmem:[#allocation3 + $0x288] sm:$0xff]
        %v4440 = vld [vmem:[#allocation3 + $0x290] sm:$0xff]
        %v4441 = vld [vmem:[#allocation3 + $0x298] sm:$0xff]
        %v4442 = vld [vmem:[#allocation3 + $0x2a0] sm:$0xff]
        %v4443 = vld [vmem:[#allocation3 + $0x2a8] sm:$0xff]
        %v4444 = vld [vmem:[#allocation3 + $0x2b0] sm:$0xff]
        %v4445 = vld [vmem:[#allocation3 + $0x2b8] sm:$0xff]
        %v4446 = vld [vmem:[#allocation3 + $0x2c0] sm:$0xff]
        %v4447 = vld [vmem:[#allocation3 + $0x2c8] sm:$0xff]
        %v4448 = vld [vmem:[#allocation3 + $0x2d0] sm:$0xff]
        %v4449 = vld [vmem:[#allocation3 + $0x2d8] sm:$0xff]
        %v4450 = vld [vmem:[#allocation3 + $0x2e0] sm:$0xff]
        %v4451 = vld [vmem:[#allocation3 + $0x2e8] sm:$0xff]
        %v4452 = vld [vmem:[#allocation3 + $0x2f0] sm:$0xff]
        %v4453 = vld [vmem:[#allocation3 + $0x2f8] sm:$0xff]
        %v4454 = vld [vmem:[#allocation3 + $0x300] sm:$0xff]
        %v4455 = vld [vmem:[#allocation3 + $0x308] sm:$0xff]
        %v4456 = vld [vmem:[#allocation3 + $0x310] sm:$0xff]
        %v4457 = vld [vmem:[#allocation3 + $0x318] sm:$0xff]
        %s4458 = scalar_lea.vmem %s3, 64
        %v4459 = vld [vmem:[%s4458] sm:$0xff]
        %v4460 = vld [vmem:[%s4458 + $0x8] sm:$0xff]
        %v4461 = vld [vmem:[%s4458 + $0x10] sm:$0xff]
        %v4462 = vld [vmem:[%s4458 + $0x18] sm:$0xff]
        %4464 = vset.pattern.permute.xlu0 0
        %4465 = vperm.xlu0 %4464, %v4459
        %v4466 = vpop.permute.xlu0 %4465
        %4469 = vset.pattern.permute.xlu0 0
        %4470 = vperm.xlu0 %4469, %v4460
        %v4471 = vpop.permute.xlu0 %4470
        %4474 = vset.pattern.permute.xlu0 0
        %4475 = vperm.xlu0 %4474, %v4461
        %v4476 = vpop.permute.xlu0 %4475
        %4479 = vset.pattern.permute.xlu0 0
        %4480 = vperm.xlu0 %4479, %v4462
        %v4481 = vpop.permute.xlu0 %4480
        %v4499 = vunpack.c.l.b16 %v3350
        %v4500 = vunpack.c.h.b16 %v3350
        %v4501 = vunpack.c.l.b16 %v3351
        %v4502 = vunpack.c.h.b16 %v3351
        %v4503 = vunpack.c.l.b16 %v3352
        %v4504 = vunpack.c.h.b16 %v3352
        %v4505 = vunpack.c.l.b16 %v3353
        %v4506 = vunpack.c.l.b16 %v3354
        %v4507 = vunpack.c.h.b16 %v3354
        %v4508 = vunpack.c.l.b16 %v3355
        %v4509 = vunpack.c.h.b16 %v3355
        %v4510 = vunpack.c.l.b16 %v3356
        %v4511 = vunpack.c.h.b16 %v3356
        %v4512 = vunpack.c.l.b16 %v3357
        %v4513 = vunpack.c.l.b16 %v3358
        %v4514 = vunpack.c.h.b16 %v3358
        %v4515 = vunpack.c.l.b16 %v3359
        %v4516 = vunpack.c.h.b16 %v3359
        %v4517 = vunpack.c.l.b16 %v3360
        %v4518 = vunpack.c.h.b16 %v3360
        %v4519 = vunpack.c.l.b16 %v3361
        %v4520 = vunpack.c.l.b16 %v3362
        %v4521 = vunpack.c.h.b16 %v3362
        %v4522 = vunpack.c.l.b16 %v3363
        %v4523 = vunpack.c.h.b16 %v3363
        %v4524 = vunpack.c.l.b16 %v3364
        %v4525 = vunpack.c.h.b16 %v3364
        %v4526 = vunpack.c.l.b16 %v3365
        %v4527 = vpack.c.b16 %v4506, %v4499
        %v4528 = vpack.c.b16 %v4507, %v4500
        %v4529 = vpack.c.b16 %v4508, %v4501
        %v4530 = vpack.c.b16 %v4509, %v4502
        %v4531 = vpack.c.b16 %v4510, %v4503
        %v4532 = vpack.c.b16 %v4511, %v4504
        %v4533 = vpack.c.b16 %v4512, %v4505
        %v4534 = vpack.c.b16 %v4520, %v4513
        %v4535 = vpack.c.b16 %v4521, %v4514
        %v4536 = vpack.c.b16 %v4522, %v4515
        %v4537 = vpack.c.b16 %v4523, %v4516
        %v4538 = vpack.c.b16 %v4524, %v4517
        %v4539 = vpack.c.b16 %v4525, %v4518
        %v4540 = vpack.c.b16 %v4526, %v4519
        %v4554 = vsel %vm1676, %v4533, 0
        %v4557 = vsel %vm1676, %v4540, 0
        %4559 = vmatprep.subr.bf16.mxu0 %v4359
        %4560 = vmatpush1.bf16.msra.mxu0 %v4358
        %4561 = vmatprep.subr.bf16.mxu0 %v4361
        %4562 = vmatpush1.bf16.msra.mxu0 %v4360
        %4563 = vmatprep.subr.bf16.mxu0 %v4363
        %4564 = vmatpush1.bf16.msra.mxu0 %v4362
        %4565 = vmatprep.subr.bf16.mxu0 %v4365
        %4566 = vmatpush1.bf16.msra.mxu0 %v4364
        %4567 = vmatprep.subr.bf16.mxu0 %v4367
        %4568 = vmatpush1.bf16.msra.mxu0 %v4366
        %4569 = vmatprep.subr.bf16.mxu0 %v4369
        %4570 = vmatpush1.bf16.msra.mxu0 %v4368
        %4571 = vmatprep.subr.bf16.mxu0 %v4371
        %4572 = vmatpush1.bf16.msra.mxu0 %v4370
        %4573 = vmatprep.subr.bf16.mxu0 %v4373
        %4574 = vmatpush1.bf16.msra.mxu0 %v4372
        %4575 = vmatprep.subr.bf16.mxu0 %v4375
        %4576 = vmatpush1.bf16.msra.mxu0 %v4374
        %4577 = vmatprep.subr.bf16.mxu0 %v4377
        %4578 = vmatpush1.bf16.msra.mxu0 %v4376
        %4579 = vmatprep.subr.bf16.mxu0 %v4379
        %4580 = vmatpush1.bf16.msra.mxu0 %v4378
        %4581 = vmatprep.subr.bf16.mxu0 %v4381
        %4582 = vmatpush1.bf16.msra.mxu0 %v4380
        %4583 = vmatprep.subr.bf16.mxu0 %v4383
        %4584 = vmatpush1.bf16.msra.mxu0 %v4382
        %4585 = vmatprep.subr.bf16.mxu0 %v4385
        %4586 = vmatpush1.bf16.msra.mxu0 %v4384
        %4587 = vmatprep.subr.bf16.mxu0 %v4387
        %4588 = vmatpush1.bf16.msra.mxu0 %v4386
        %4589 = vmatprep.subr.bf16.mxu0 %v4389
        %4590 = vmatpush1.bf16.msra.mxu0 %v4388
        %4591 = vmatprep.mubr.bf16.mxu0 %v4528
        %4592 = vmatmul.mubr.bf16.gmra.mrb[0].mxu0 %v4527
        %v4593 = vpop.f32.mrb[0].mxu0
        %v4594 = vadd.f32 %v4466, %v4593
        %v4595 = vpop.f32.mrb[0].mxu0
        %v4596 = vadd.f32 %v4466, %v4595
        %v4597 = vpop.f32.mrb[0].mxu0
        %v4598 = vadd.f32 %v4471, %v4597
        %v4599 = vpop.f32.mrb[0].mxu0
        %v4600 = vadd.f32 %v4471, %v4599
        %4601 = vmatprep.mubr.bf16.mxu0 %v4535
        %4602 = vmatmul.mubr.bf16.gmra.mrb[0].mxu0 %v4534
        %v4603 = vpop.f32.mrb[0].mxu0
        %v4604 = vadd.f32 %v4476, %v4603
        %v4605 = vpop.f32.mrb[0].mxu0
        %v4606 = vadd.f32 %v4476, %v4605
        %v4607 = vpop.f32.mrb[0].mxu0
        %v4608 = vadd.f32 %v4481, %v4607
        %v4609 = vpop.f32.mrb[0].mxu0
        %v4610 = vadd.f32 %v4481, %v4609
        %4611 = vdwg.mxu0
        %4612 = vmatprep.subr.bf16.mxu0 %v4391
        %4613 = vmatpush1.bf16.msra.mxu0 %v4390
        %4614 = vmatprep.subr.bf16.mxu0 %v4393
        %4615 = vmatpush1.bf16.msra.mxu0 %v4392
        %4616 = vmatprep.subr.bf16.mxu0 %v4395
        %4617 = vmatpush1.bf16.msra.mxu0 %v4394
        %4618 = vmatprep.subr.bf16.mxu0 %v4397
        %4619 = vmatpush1.bf16.msra.mxu0 %v4396
        %4620 = vmatprep.subr.bf16.mxu0 %v4399
        %4621 = vmatpush1.bf16.msra.mxu0 %v4398
        %4622 = vmatprep.subr.bf16.mxu0 %v4401
        %4623 = vmatpush1.bf16.msra.mxu0 %v4400
        %4624 = vmatprep.subr.bf16.mxu0 %v4403
        %4625 = vmatpush1.bf16.msra.mxu0 %v4402
        %4626 = vmatprep.subr.bf16.mxu0 %v4405
        %4627 = vmatpush1.bf16.msra.mxu0 %v4404
        %4628 = vmatprep.subr.bf16.mxu0 %v4407
        %4629 = vmatpush1.bf16.msra.mxu0 %v4406
        %4630 = vmatprep.subr.bf16.mxu0 %v4409
        %4631 = vmatpush1.bf16.msra.mxu0 %v4408
        %4632 = vmatprep.subr.bf16.mxu0 %v4411
        %4633 = vmatpush1.bf16.msra.mxu0 %v4410
        %4634 = vmatprep.subr.bf16.mxu0 %v4413
        %4635 = vmatpush1.bf16.msra.mxu0 %v4412
        %4636 = vmatprep.subr.bf16.mxu0 %v4415
        %4637 = vmatpush1.bf16.msra.mxu0 %v4414
        %4638 = vmatprep.subr.bf16.mxu0 %v4417
        %4639 = vmatpush1.bf16.msra.mxu0 %v4416
        %4640 = vmatprep.subr.bf16.mxu0 %v4419
        %4641 = vmatpush1.bf16.msra.mxu0 %v4418
        %4642 = vmatprep.subr.bf16.mxu0 %v4421
        %4643 = vmatpush1.bf16.msra.mxu0 %v4420
        %4644 = vmatprep.mubr.bf16.mxu0 %v4530
        %4645 = vmatmul.mubr.bf16.gmra.mrb[0].mxu0 %v4529
        %v4646 = vpop.f32.mrb[0].mxu0
        %v4647 = vadd.f32 %v4594, %v4646
        %v4648 = vpop.f32.mrb[0].mxu0
        %v4649 = vadd.f32 %v4596, %v4648
        %v4650 = vpop.f32.mrb[0].mxu0
        %v4651 = vadd.f32 %v4598, %v4650
        %v4652 = vpop.f32.mrb[0].mxu0
        %v4653 = vadd.f32 %v4600, %v4652
        %4654 = vmatprep.mubr.bf16.mxu0 %v4537
        %4655 = vmatmul.mubr.bf16.gmra.mrb[0].mxu0 %v4536
        %v4656 = vpop.f32.mrb[0].mxu0
        %v4657 = vadd.f32 %v4604, %v4656
        %v4658 = vpop.f32.mrb[0].mxu0
        %v4659 = vadd.f32 %v4606, %v4658
        %v4660 = vpop.f32.mrb[0].mxu0
        %v4661 = vadd.f32 %v4608, %v4660
        %v4662 = vpop.f32.mrb[0].mxu0
        %v4663 = vadd.f32 %v4610, %v4662
        %4664 = vdwg.mxu0
        %4665 = vmatprep.subr.bf16.mxu0 %v4423
        %4666 = vmatpush1.bf16.msra.mxu0 %v4422
        %4667 = vmatprep.subr.bf16.mxu0 %v4425
        %4668 = vmatpush1.bf16.msra.mxu0 %v4424
        %4669 = vmatprep.subr.bf16.mxu0 %v4427
        %4670 = vmatpush1.bf16.msra.mxu0 %v4426
        %4671 = vmatprep.subr.bf16.mxu0 %v4429
        %4672 = vmatpush1.bf16.msra.mxu0 %v4428
        %4673 = vmatprep.subr.bf16.mxu0 %v4431
        %4674 = vmatpush1.bf16.msra.mxu0 %v4430
        %4675 = vmatprep.subr.bf16.mxu0 %v4433
        %4676 = vmatpush1.bf16.msra.mxu0 %v4432
        %4677 = vmatprep.subr.bf16.mxu0 %v4435
        %4678 = vmatpush1.bf16.msra.mxu0 %v4434
        %4679 = vmatprep.subr.bf16.mxu0 %v4437
        %4680 = vmatpush1.bf16.msra.mxu0 %v4436
        %4681 = vmatprep.subr.bf16.mxu0 %v4439
        %4682 = vmatpush1.bf16.msra.mxu0 %v4438
        %4683 = vmatprep.subr.bf16.mxu0 %v4441
        %4684 = vmatpush1.bf16.msra.mxu0 %v4440
        %4685 = vmatprep.subr.bf16.mxu0 %v4443
        %4686 = vmatpush1.bf16.msra.mxu0 %v4442
        %4687 = vmatprep.subr.bf16.mxu0 %v4445
        %4688 = vmatpush1.bf16.msra.mxu0 %v4444
        %4689 = vmatprep.subr.bf16.mxu0 %v4447
        %4690 = vmatpush1.bf16.msra.mxu0 %v4446
        %4691 = vmatprep.subr.bf16.mxu0 %v4449
        %4692 = vmatpush1.bf16.msra.mxu0 %v4448
        %4693 = vmatprep.subr.bf16.mxu0 %v4451
        %4694 = vmatpush1.bf16.msra.mxu0 %v4450
        %4695 = vmatprep.subr.bf16.mxu0 %v4453
        %4696 = vmatpush1.bf16.msra.mxu0 %v4452
        %4697 = vmatprep.mubr.bf16.mxu0 %v4532
        %4698 = vmatmul.mubr.bf16.gmra.mrb[0].mxu0 %v4531
        %v4699 = vpop.f32.mrb[0].mxu0
        %v4700 = vadd.f32 %v4647, %v4699
        %v4701 = vpop.f32.mrb[0].mxu0
        %v4702 = vadd.f32 %v4649, %v4701
        %v4703 = vpop.f32.mrb[0].mxu0
        %v4704 = vadd.f32 %v4651, %v4703
        %v4705 = vpop.f32.mrb[0].mxu0
        %v4706 = vadd.f32 %v4653, %v4705
        %4707 = vmatprep.mubr.bf16.mxu0 %v4539
        %4708 = vmatmul.mubr.bf16.gmra.mrb[0].mxu0 %v4538
        %v4709 = vpop.f32.mrb[0].mxu0
        %v4710 = vadd.f32 %v4657, %v4709
        %v4711 = vpop.f32.mrb[0].mxu0
        %v4712 = vadd.f32 %v4659, %v4711
        %v4713 = vpop.f32.mrb[0].mxu0
        %v4714 = vadd.f32 %v4661, %v4713
        %v4715 = vpop.f32.mrb[0].mxu0
        %v4716 = vadd.f32 %v4663, %v4715
        %4717 = vdwg.mxu0
        %4718 = vmatprep.subr.bf16.mxu0 %v4455
        %4719 = vmatpush1.bf16.msra.mxu0 %v4454
        %4720 = vmatprep.subr.bf16.mxu0 %v4457
        %4721 = vmatpush1.bf16.msra.mxu0 %v4456
        %4722 = vmatprep.subr.bf16.mxu0 0
        %4723 = vmatpush1.bf16.msra.mxu0 0
        %4724 = vmatprep.subr.bf16.mxu0 0
        %4725 = vmatpush1.bf16.msra.mxu0 0
        %4726 = vmatprep.subr.bf16.mxu0 0
        %4727 = vmatpush1.bf16.msra.mxu0 0
        %4728 = vmatprep.subr.bf16.mxu0 0
        %4729 = vmatpush1.bf16.msra.mxu0 0
        %4730 = vmatprep.subr.bf16.mxu0 0
        %4731 = vmatpush1.bf16.msra.mxu0 0
        %4732 = vmatprep.subr.bf16.mxu0 0
        %4733 = vmatpush1.bf16.msra.mxu0 0
        %4734 = vmatprep.subr.bf16.mxu0 0
        %4735 = vmatpush1.bf16.msra.mxu0 0
        %4736 = vmatprep.subr.bf16.mxu0 0
        %4737 = vmatpush1.bf16.msra.mxu0 0
        %4738 = vmatprep.subr.bf16.mxu0 0
        %4739 = vmatpush1.bf16.msra.mxu0 0
        %4740 = vmatprep.subr.bf16.mxu0 0
        %4741 = vmatpush1.bf16.msra.mxu0 0
        %4742 = vmatprep.subr.bf16.mxu0 0
        %4743 = vmatpush1.bf16.msra.mxu0 0
        %4744 = vmatprep.subr.bf16.mxu0 0
        %4745 = vmatpush1.bf16.msra.mxu0 0
        %4746 = vmatprep.subr.bf16.mxu0 0
        %4747 = vmatpush1.bf16.msra.mxu0 0
        %4748 = vmatprep.subr.bf16.mxu0 0
        %4749 = vmatpush1.bf16.msra.mxu0 0
        %4750 = vmatprep.mubr.bf16.mxu0 0
        %4751 = vmatmul.mubr.bf16.gmra.mrb[0].mxu0 %v4554
        %v4752 = vpop.f32.mrb[0].mxu0
        %v4753 = vadd.f32 %v4700, %v4752
        %v4754 = vpop.f32.mrb[0].mxu0
        %v4755 = vadd.f32 %v4702, %v4754
        %v4756 = vpop.f32.mrb[0].mxu0
        %v4757 = vadd.f32 %v4704, %v4756
        %v4758 = vpop.f32.mrb[0].mxu0
        %v4759 = vadd.f32 %v4706, %v4758
        %4760 = vmatprep.mubr.bf16.mxu0 0
        %4761 = vmatmul.mubr.bf16.gmra.mrb[0].mxu0 %v4557
        %v4762 = vpop.f32.mrb[0].mxu0
        %v4763 = vadd.f32 %v4710, %v4762
        %v4764 = vpop.f32.mrb[0].mxu0
        %v4765 = vadd.f32 %v4712, %v4764
        %v4766 = vpop.f32.mrb[0].mxu0
        %v4767 = vadd.f32 %v4714, %v4766
        %v4768 = vpop.f32.mrb[0].mxu0
        %v4769 = vadd.f32 %v4716, %v4768
        %4770 = vdwg.mxu0
        %v4771 = vmax.f32 %v4753, 0.0
        %v4772 = vmax.f32 %v4755, 0.0
        %v4773 = vmax.f32 %v4757, 0.0
        %v4774 = vmax.f32 %v4759, 0.0
        %v4775 = vmax.f32 %v4763, 0.0
        %v4776 = vmax.f32 %v4765, 0.0
        %v4777 = vmax.f32 %v4767, 0.0
        %v4778 = vmax.f32 %v4769, 0.0
        %v4779 = vpack.c.bf16 %v4773, %v4771
        %v4780 = vpack.c.bf16 %v4774, %v4772
        %v4781 = vpack.c.bf16 %v4777, %v4775
        %v4782 = vpack.c.bf16 %v4778, %v4776
        %4783 = vst [vmem:[#allocation2 + $0x8] sm:$0xff] %v4779
        %4784 = vst [vmem:[#allocation2 + $0x10] sm:$0xff] %v4780
        %4785 = vst [vmem:[#allocation2 + $0x28] sm:$0xff] %v4781
        %4786 = vst [vmem:[#allocation2 + $0x30] sm:$0xff] %v4782
        %s4787 = scalar_lea.vmem [#allocation4], 336
        %v4788 = vld [vmem:[%s4787] sm:$0xff]
        %v4789 = vld [vmem:[%s4787 + $0x8] sm:$0xff]
        %v4790 = vld [vmem:[%s4787 + $0x10] sm:$0xff]
        %v4791 = vld [vmem:[%s4787 + $0x18] sm:$0xf]
        %v4792 = vld [vmem:[%s4787 + $0x1c] sm:$0xff]
        %v4793 = vld [vmem:[%s4787 + $0x24] sm:$0xff]
        %v4794 = vld [vmem:[%s4787 + $0x2c] sm:$0xff]
        %v4795 = vld [vmem:[%s4787 + $0x34] sm:$0xf]
        %v4796 = vld [vmem:[%s4787 + $0x38] sm:$0xff]
        %v4797 = vld [vmem:[%s4787 + $0x40] sm:$0xff]
        %v4798 = vld [vmem:[%s4787 + $0x48] sm:$0xff]
        %v4799 = vld [vmem:[%s4787 + $0x50] sm:$0xf]
        %v4800 = vld [vmem:[%s4787 + $0x54] sm:$0xff]
        %v4801 = vld [vmem:[%s4787 + $0x5c] sm:$0xff]
        %v4802 = vld [vmem:[%s4787 + $0x64] sm:$0xff]
        %v4803 = vld [vmem:[%s4787 + $0x6c] sm:$0xf]
        %v4804 = vld [vmem:[#allocation2] sm:$0xff]
        %v4805 = vld [vmem:[#allocation2 + $0x8] sm:$0xff]
        %v4806 = vld [vmem:[#allocation2 + $0x10] sm:$0xff]
        %v4807 = vld [vmem:[#allocation2 + $0x20] sm:$0xff]
        %v4808 = vld [vmem:[#allocation2 + $0x28] sm:$0xff]
        %v4809 = vld [vmem:[#allocation2 + $0x30] sm:$0xff]
        %v4810 = vmul.bf16 %v4804, %v277
        %v4811 = vmul.bf16 %v4805, %v281
        %v4812 = vmul.bf16 %v4806, %v279
        %v4813 = vmul.bf16 %v4807, %v277
        %v4814 = vmul.bf16 %v4808, %v281
        %v4815 = vmul.bf16 %v4809, %v279
        %4822 = vrot.lane.b32.xlu0 %v4810, 34
        %v4823 = vpop.permute.xlu0 %4822
        %4824 = vrot.lane.b32.xlu0 %v4811, 34
        %v4825 = vpop.permute.xlu0 %4824
        %4826 = vrot.lane.b32.xlu0 %v4812, 34
        %v4827 = vpop.permute.xlu0 %4826
        %4828 = vrot.lane.b32.xlu0 %v4813, 34
        %v4829 = vpop.permute.xlu0 %4828
        %4830 = vrot.lane.b32.xlu0 %v4814, 34
        %v4831 = vpop.permute.xlu0 %4830
        %4832 = vrot.lane.b32.xlu0 %v4815, 34
        %v4833 = vpop.permute.xlu0 %4832
        %v4834 = vsel %vm309, %v4823, %v4825
        %v4835 = vsel %vm309, %v4825, %v4827
        %v4836 = vsel %vm309, %v4829, %v4831
        %v4837 = vsel %vm309, %v4831, %v4833
        %4842 = vst [vmem:[#allocation3] sm:$0xff] %v4834
        %4843 = vst [vmem:[#allocation3 + $0x8] sm:$0xff] %v4835
        %4844 = vst [vmem:[#allocation3 + $0x10] sm:$0xff] %v4836
        %4845 = vst [vmem:[#allocation3 + $0x18] sm:$0xff] %v4837
        %v4846 = vld [vmem:[#allocation2] sm:$0xff]
        %v4847 = vld [vmem:[#allocation2 + $0x8] sm:$0xff]
        %v4848 = vld [vmem:[#allocation2 + $0x10] sm:$0xff]
        %v4849 = vld [vmem:[#allocation2 + $0x20] sm:$0xff]
        %v4850 = vld [vmem:[#allocation2 + $0x28] sm:$0xff]
        %v4851 = vld [vmem:[#allocation2 + $0x30] sm:$0xff]
        %v4852 = vmul.bf16 %v4846, %v345
        %v4853 = vmul.bf16 %v4847, %v349
        %v4854 = vmul.bf16 %v4848, %v347
        %v4855 = vmul.bf16 %v4849, %v345
        %v4856 = vmul.bf16 %v4850, %v349
        %v4857 = vmul.bf16 %v4851, %v347
        %4864 = vrot.lane.b32.xlu0 %v4852, 33
        %v4865 = vpop.permute.xlu0 %4864
        %4866 = vrot.lane.b32.xlu0 %v4853, 33
        %v4867 = vpop.permute.xlu0 %4866
        %4868 = vrot.lane.b32.xlu0 %v4854, 33
        %v4869 = vpop.permute.xlu0 %4868
        %4870 = vrot.lane.b32.xlu0 %v4855, 33
        %v4871 = vpop.permute.xlu0 %4870
        %4872 = vrot.lane.b32.xlu0 %v4856, 33
        %v4873 = vpop.permute.xlu0 %4872
        %4874 = vrot.lane.b32.xlu0 %v4857, 33
        %v4875 = vpop.permute.xlu0 %4874
        %v4876 = vsel %vm377, %v4865, %v4867
        %v4877 = vsel %vm377, %v4867, %v4869
        %v4878 = vsel %vm377, %v4871, %v4873
        %v4879 = vsel %vm377, %v4873, %v4875
        %4884 = vst [vmem:[#allocation3 + $0x20] sm:$0xff] %v4876
        %4885 = vst [vmem:[#allocation3 + $0x28] sm:$0xff] %v4877
        %4886 = vst [vmem:[#allocation3 + $0x30] sm:$0xff] %v4878
        %4887 = vst [vmem:[#allocation3 + $0x38] sm:$0xff] %v4879
        %v4888 = vld [vmem:[#allocation2] sm:$0xff]
        %v4889 = vld [vmem:[#allocation2 + $0x8] sm:$0xff]
        %v4890 = vld [vmem:[#allocation2 + $0x10] sm:$0xff]
        %v4891 = vld [vmem:[#allocation2 + $0x20] sm:$0xff]
        %v4892 = vld [vmem:[#allocation2 + $0x28] sm:$0xff]
        %v4893 = vld [vmem:[#allocation2 + $0x30] sm:$0xff]
        %4900 = vrot.lane.b32.xlu0 %v4888, 32
        %v4901 = vpop.permute.xlu0 %4900
        %4902 = vrot.lane.b32.xlu0 %v4889, 32
        %v4903 = vpop.permute.xlu0 %4902
        %4904 = vrot.lane.b32.xlu0 %v4890, 32
        %v4905 = vpop.permute.xlu0 %4904
        %4906 = vrot.lane.b32.xlu0 %v4891, 32
        %v4907 = vpop.permute.xlu0 %4906
        %4908 = vrot.lane.b32.xlu0 %v4892, 32
        %v4909 = vpop.permute.xlu0 %4908
        %4910 = vrot.lane.b32.xlu0 %v4893, 32
        %v4911 = vpop.permute.xlu0 %4910
        %v4912 = vsel %vm414, %v4901, %v4903
        %v4913 = vsel %vm414, %v4903, %v4905
        %v4914 = vsel %vm414, %v4907, %v4909
        %v4915 = vsel %vm414, %v4909, %v4911
        %4920 = vst [vmem:[#allocation3 + $0x40] sm:$0xff] %v4912
        %4921 = vst [vmem:[#allocation3 + $0x48] sm:$0xff] %v4913
        %4922 = vst [vmem:[#allocation3 + $0x50] sm:$0xff] %v4914
        %4923 = vst [vmem:[#allocation3 + $0x58] sm:$0xff] %v4915
        %v4924 = vld [vmem:[#allocation2] sm:$0xff]
        %v4925 = vld [vmem:[#allocation2 + $0x8] sm:$0xff]
        %v4926 = vld [vmem:[#allocation2 + $0x10] sm:$0xff]
        %v4927 = vld [vmem:[#allocation2 + $0x20] sm:$0xff]
        %v4928 = vld [vmem:[#allocation2 + $0x28] sm:$0xff]
        %v4929 = vld [vmem:[#allocation2 + $0x30] sm:$0xff]
        %v4930 = vmul.bf16 %v4924, %v444
        %v4931 = vmul.bf16 %v4925, %v448
        %v4932 = vmul.bf16 %v4926, %v446
        %v4933 = vmul.bf16 %v4927, %v444
        %v4934 = vmul.bf16 %v4928, %v448
        %v4935 = vmul.bf16 %v4929, %v446
        %4942 = vrot.lane.b32.xlu0 %v4930, 31
        %v4943 = vpop.permute.xlu0 %4942
        %4944 = vrot.lane.b32.xlu0 %v4931, 31
        %v4945 = vpop.permute.xlu0 %4944
        %4946 = vrot.lane.b32.xlu0 %v4932, 31
        %v4947 = vpop.permute.xlu0 %4946
        %4948 = vrot.lane.b32.xlu0 %v4933, 31
        %v4949 = vpop.permute.xlu0 %4948
        %4950 = vrot.lane.b32.xlu0 %v4934, 31
        %v4951 = vpop.permute.xlu0 %4950
        %4952 = vrot.lane.b32.xlu0 %v4935, 31
        %v4953 = vpop.permute.xlu0 %4952
        %v4954 = vsel %vm476, %v4943, %v4945
        %v4955 = vsel %vm476, %v4945, %v4947
        %v4956 = vsel %vm476, %v4949, %v4951
        %v4957 = vsel %vm476, %v4951, %v4953
        %4962 = vst [vmem:[#allocation3 + $0x60] sm:$0xff] %v4954
        %4963 = vst [vmem:[#allocation3 + $0x68] sm:$0xff] %v4955
        %4964 = vst [vmem:[#allocation3 + $0x70] sm:$0xff] %v4956
        %4965 = vst [vmem:[#allocation3 + $0x78] sm:$0xff] %v4957
        %v4966 = vld [vmem:[#allocation2] sm:$0xff]
        %v4967 = vld [vmem:[#allocation2 + $0x8] sm:$0xff]
        %v4968 = vld [vmem:[#allocation2 + $0x10] sm:$0xff]
        %v4969 = vld [vmem:[#allocation2 + $0x20] sm:$0xff]
        %v4970 = vld [vmem:[#allocation2 + $0x28] sm:$0xff]
        %v4971 = vld [vmem:[#allocation2 + $0x30] sm:$0xff]
        %v4972 = vmul.bf16 %v4966, %v506
        %v4973 = vmul.bf16 %v4967, %v510
        %v4974 = vmul.bf16 %v4968, %v508
        %v4975 = vmul.bf16 %v4969, %v506
        %v4976 = vmul.bf16 %v4970, %v510
        %v4977 = vmul.bf16 %v4971, %v508
        %4984 = vrot.lane.b32.xlu0 %v4972, 30
        %v4985 = vpop.permute.xlu0 %4984
        %4986 = vrot.lane.b32.xlu0 %v4973, 30
        %v4987 = vpop.permute.xlu0 %4986
        %4988 = vrot.lane.b32.xlu0 %v4974, 30
        %v4989 = vpop.permute.xlu0 %4988
        %4990 = vrot.lane.b32.xlu0 %v4975, 30
        %v4991 = vpop.permute.xlu0 %4990
        %4992 = vrot.lane.b32.xlu0 %v4976, 30
        %v4993 = vpop.permute.xlu0 %4992
        %4994 = vrot.lane.b32.xlu0 %v4977, 30
        %v4995 = vpop.permute.xlu0 %4994
        %v4996 = vsel %vm538, %v4985, %v4987
        %v4997 = vsel %vm538, %v4987, %v4989
        %v4998 = vsel %vm538, %v4991, %v4993
        %v4999 = vsel %vm538, %v4993, %v4995
        %5004 = vst [vmem:[#allocation3 + $0x80] sm:$0xff] %v4996
        %5005 = vst [vmem:[#allocation3 + $0x88] sm:$0xff] %v4997
        %5006 = vst [vmem:[#allocation3 + $0x90] sm:$0xff] %v4998
        %5007 = vst [vmem:[#allocation3 + $0x98] sm:$0xff] %v4999
        %v5008 = vld [vmem:[#allocation2] sm:$0xff]
        %v5009 = vld [vmem:[#allocation2 + $0x8] sm:$0xff]
        %v5010 = vld [vmem:[#allocation2 + $0x10] sm:$0xff]
        %v5011 = vld [vmem:[#allocation2 + $0x20] sm:$0xff]
        %v5012 = vld [vmem:[#allocation2 + $0x28] sm:$0xff]
        %v5013 = vld [vmem:[#allocation2 + $0x30] sm:$0xff]
        %v5014 = vmul.bf16 %v5008, %v558
        %v5015 = vmul.bf16 %v5009, %v562
        %v5016 = vmul.bf16 %v5010, %v560
        %v5017 = vmul.bf16 %v5011, %v558
        %v5018 = vmul.bf16 %v5012, %v562
        %v5019 = vmul.bf16 %v5013, %v560
        %5026 = vrot.lane.b32.xlu0 %v5014, 18
        %v5027 = vpop.permute.xlu0 %5026
        %5028 = vrot.lane.b32.xlu0 %v5015, 18
        %v5029 = vpop.permute.xlu0 %5028
        %5030 = vrot.lane.b32.xlu0 %v5016, 18
        %v5031 = vpop.permute.xlu0 %5030
        %5032 = vrot.lane.b32.xlu0 %v5017, 18
        %v5033 = vpop.permute.xlu0 %5032
        %5034 = vrot.lane.b32.xlu0 %v5018, 18
        %v5035 = vpop.permute.xlu0 %5034
        %5036 = vrot.lane.b32.xlu0 %v5019, 18
        %v5037 = vpop.permute.xlu0 %5036
        %v5038 = vsel %vm590, %v5027, %v5029
        %v5039 = vsel %vm590, %v5029, %v5031
        %v5040 = vsel %vm590, %v5033, %v5035
        %v5041 = vsel %vm590, %v5035, %v5037
        %5046 = vst [vmem:[#allocation3 + $0xa0] sm:$0xff] %v5038
        %5047 = vst [vmem:[#allocation3 + $0xa8] sm:$0xff] %v5039
        %5048 = vst [vmem:[#allocation3 + $0xb0] sm:$0xff] %v5040
        %5049 = vst [vmem:[#allocation3 + $0xb8] sm:$0xff] %v5041
        %v5050 = vld [vmem:[#allocation2] sm:$0xff]
        %v5051 = vld [vmem:[#allocation2 + $0x8] sm:$0xff]
        %v5052 = vld [vmem:[#allocation2 + $0x10] sm:$0xff]
        %v5053 = vld [vmem:[#allocation2 + $0x20] sm:$0xff]
        %v5054 = vld [vmem:[#allocation2 + $0x28] sm:$0xff]
        %v5055 = vld [vmem:[#allocation2 + $0x30] sm:$0xff]
        %v5056 = vmul.bf16 %v5050, %v610
        %v5057 = vmul.bf16 %v5051, %v614
        %v5058 = vmul.bf16 %v5052, %v612
        %v5059 = vmul.bf16 %v5053, %v610
        %v5060 = vmul.bf16 %v5054, %v614
        %v5061 = vmul.bf16 %v5055, %v612
        %5068 = vrot.lane.b32.xlu0 %v5056, 17
        %v5069 = vpop.permute.xlu0 %5068
        %5070 = vrot.lane.b32.xlu0 %v5057, 17
        %v5071 = vpop.permute.xlu0 %5070
        %5072 = vrot.lane.b32.xlu0 %v5058, 17
        %v5073 = vpop.permute.xlu0 %5072
        %5074 = vrot.lane.b32.xlu0 %v5059, 17
        %v5075 = vpop.permute.xlu0 %5074
        %5076 = vrot.lane.b32.xlu0 %v5060, 17
        %v5077 = vpop.permute.xlu0 %5076
        %5078 = vrot.lane.b32.xlu0 %v5061, 17
        %v5079 = vpop.permute.xlu0 %5078
        %v5080 = vsel %vm642, %v5069, %v5071
        %v5081 = vsel %vm642, %v5071, %v5073
        %v5082 = vsel %vm642, %v5075, %v5077
        %v5083 = vsel %vm642, %v5077, %v5079
        %5088 = vst [vmem:[#allocation3 + $0xc0] sm:$0xff] %v5080
        %5089 = vst [vmem:[#allocation3 + $0xc8] sm:$0xff] %v5081
        %5090 = vst [vmem:[#allocation3 + $0xd0] sm:$0xff] %v5082
        %5091 = vst [vmem:[#allocation3 + $0xd8] sm:$0xff] %v5083
        %v5092 = vld [vmem:[#allocation2] sm:$0xff]
        %v5093 = vld [vmem:[#allocation2 + $0x8] sm:$0xff]
        %v5094 = vld [vmem:[#allocation2 + $0x10] sm:$0xff]
        %v5095 = vld [vmem:[#allocation2 + $0x20] sm:$0xff]
        %v5096 = vld [vmem:[#allocation2 + $0x28] sm:$0xff]
        %v5097 = vld [vmem:[#allocation2 + $0x30] sm:$0xff]
        %5104 = vrot.lane.b32.xlu0 %v5092, 16
        %v5105 = vpop.permute.xlu0 %5104
        %5106 = vrot.lane.b32.xlu0 %v5093, 16
        %v5107 = vpop.permute.xlu0 %5106
        %5108 = vrot.lane.b32.xlu0 %v5094, 16
        %v5109 = vpop.permute.xlu0 %5108
        %5110 = vrot.lane.b32.xlu0 %v5095, 16
        %v5111 = vpop.permute.xlu0 %5110
        %5112 = vrot.lane.b32.xlu0 %v5096, 16
        %v5113 = vpop.permute.xlu0 %5112
        %5114 = vrot.lane.b32.xlu0 %v5097, 16
        %v5115 = vpop.permute.xlu0 %5114
        %v5116 = vsel %vm679, %v5105, %v5107
        %v5117 = vsel %vm679, %v5107, %v5109
        %v5118 = vsel %vm679, %v5111, %v5113
        %v5119 = vsel %vm679, %v5113, %v5115
        %5124 = vst [vmem:[#allocation3 + $0xe0] sm:$0xff] %v5116
        %5125 = vst [vmem:[#allocation3 + $0xe8] sm:$0xff] %v5117
        %5126 = vst [vmem:[#allocation3 + $0xf0] sm:$0xff] %v5118
        %5127 = vst [vmem:[#allocation3 + $0xf8] sm:$0xff] %v5119
        %v5128 = vld [vmem:[#allocation2] sm:$0xff]
        %v5129 = vld [vmem:[#allocation2 + $0x8] sm:$0xff]
        %v5130 = vld [vmem:[#allocation2 + $0x10] sm:$0xff]
        %v5131 = vld [vmem:[#allocation2 + $0x20] sm:$0xff]
        %v5132 = vld [vmem:[#allocation2 + $0x28] sm:$0xff]
        %v5133 = vld [vmem:[#allocation2 + $0x30] sm:$0xff]
        %v5134 = vmul.bf16 %v5128, %v699
        %v5135 = vmul.bf16 %v5129, %v703
        %v5136 = vmul.bf16 %v5130, %v701
        %v5137 = vmul.bf16 %v5131, %v699
        %v5138 = vmul.bf16 %v5132, %v703
        %v5139 = vmul.bf16 %v5133, %v701
        %5146 = vrot.lane.b32.xlu0 %v5134, 15
        %v5147 = vpop.permute.xlu0 %5146
        %5148 = vrot.lane.b32.xlu0 %v5135, 15
        %v5149 = vpop.permute.xlu0 %5148
        %5150 = vrot.lane.b32.xlu0 %v5136, 15
        %v5151 = vpop.permute.xlu0 %5150
        %5152 = vrot.lane.b32.xlu0 %v5137, 15
        %v5153 = vpop.permute.xlu0 %5152
        %5154 = vrot.lane.b32.xlu0 %v5138, 15
        %v5155 = vpop.permute.xlu0 %5154
        %5156 = vrot.lane.b32.xlu0 %v5139, 15
        %v5157 = vpop.permute.xlu0 %5156
        %v5158 = vsel %vm731, %v5147, %v5149
        %v5159 = vsel %vm731, %v5149, %v5151
        %v5160 = vsel %vm731, %v5153, %v5155
        %v5161 = vsel %vm731, %v5155, %v5157
        %5166 = vst [vmem:[#allocation3 + $0x100] sm:$0xff] %v5158
        %5167 = vst [vmem:[#allocation3 + $0x108] sm:$0xff] %v5159
        %5168 = vst [vmem:[#allocation3 + $0x110] sm:$0xff] %v5160
        %5169 = vst [vmem:[#allocation3 + $0x118] sm:$0xff] %v5161
        %v5170 = vld [vmem:[#allocation2] sm:$0xff]
        %v5171 = vld [vmem:[#allocation2 + $0x8] sm:$0xff]
        %v5172 = vld [vmem:[#allocation2 + $0x10] sm:$0xff]
        %v5173 = vld [vmem:[#allocation2 + $0x20] sm:$0xff]
        %v5174 = vld [vmem:[#allocation2 + $0x28] sm:$0xff]
        %v5175 = vld [vmem:[#allocation2 + $0x30] sm:$0xff]
        %v5176 = vmul.bf16 %v5170, %v751
        %v5177 = vmul.bf16 %v5171, %v755
        %v5178 = vmul.bf16 %v5172, %v753
        %v5179 = vmul.bf16 %v5173, %v751
        %v5180 = vmul.bf16 %v5174, %v755
        %v5181 = vmul.bf16 %v5175, %v753
        %5188 = vrot.lane.b32.xlu0 %v5176, 14
        %v5189 = vpop.permute.xlu0 %5188
        %5190 = vrot.lane.b32.xlu0 %v5177, 14
        %v5191 = vpop.permute.xlu0 %5190
        %5192 = vrot.lane.b32.xlu0 %v5178, 14
        %v5193 = vpop.permute.xlu0 %5192
        %5194 = vrot.lane.b32.xlu0 %v5179, 14
        %v5195 = vpop.permute.xlu0 %5194
        %5196 = vrot.lane.b32.xlu0 %v5180, 14
        %v5197 = vpop.permute.xlu0 %5196
        %5198 = vrot.lane.b32.xlu0 %v5181, 14
        %v5199 = vpop.permute.xlu0 %5198
        %v5200 = vsel %vm783, %v5189, %v5191
        %v5201 = vsel %vm783, %v5191, %v5193
        %v5202 = vsel %vm783, %v5195, %v5197
        %v5203 = vsel %vm783, %v5197, %v5199
        %5208 = vst [vmem:[#allocation3 + $0x120] sm:$0xff] %v5200
        %5209 = vst [vmem:[#allocation3 + $0x128] sm:$0xff] %v5201
        %5210 = vst [vmem:[#allocation3 + $0x130] sm:$0xff] %v5202
        %5211 = vst [vmem:[#allocation3 + $0x138] sm:$0xff] %v5203
        %v5212 = vld [vmem:[#allocation2] sm:$0xff]
        %v5213 = vld [vmem:[#allocation2 + $0x8] sm:$0xff]
        %v5214 = vld [vmem:[#allocation2 + $0x10] sm:$0xff]
        %v5215 = vld [vmem:[#allocation2 + $0x20] sm:$0xff]
        %v5216 = vld [vmem:[#allocation2 + $0x28] sm:$0xff]
        %v5217 = vld [vmem:[#allocation2 + $0x30] sm:$0xff]
        %v5218 = vmul.bf16 %v5212, %v803
        %v5219 = vmul.bf16 %v5213, %v807
        %v5220 = vmul.bf16 %v5214, %v805
        %v5221 = vmul.bf16 %v5215, %v803
        %v5222 = vmul.bf16 %v5216, %v807
        %v5223 = vmul.bf16 %v5217, %v805
        %5230 = vrot.lane.b32.xlu0 %v5218, 2
        %v5231 = vpop.permute.xlu0 %5230
        %5232 = vrot.lane.b32.xlu0 %v5219, 2
        %v5233 = vpop.permute.xlu0 %5232
        %5234 = vrot.lane.b32.xlu0 %v5220, 2
        %v5235 = vpop.permute.xlu0 %5234
        %5236 = vrot.lane.b32.xlu0 %v5221, 2
        %v5237 = vpop.permute.xlu0 %5236
        %5238 = vrot.lane.b32.xlu0 %v5222, 2
        %v5239 = vpop.permute.xlu0 %5238
        %5240 = vrot.lane.b32.xlu0 %v5223, 2
        %v5241 = vpop.permute.xlu0 %5240
        %v5242 = vsel %vm835, %v5231, %v5233
        %v5243 = vsel %vm835, %v5233, %v5235
        %v5244 = vsel %vm835, %v5237, %v5239
        %v5245 = vsel %vm835, %v5239, %v5241
        %5250 = vst [vmem:[#allocation3 + $0x140] sm:$0xff] %v5242
        %5251 = vst [vmem:[#allocation3 + $0x148] sm:$0xff] %v5243
        %5252 = vst [vmem:[#allocation3 + $0x150] sm:$0xff] %v5244
        %5253 = vst [vmem:[#allocation3 + $0x158] sm:$0xff] %v5245
        %v5254 = vld [vmem:[#allocation2] sm:$0xff]
        %v5255 = vld [vmem:[#allocation2 + $0x8] sm:$0xff]
        %v5256 = vld [vmem:[#allocation2 + $0x10] sm:$0xff]
        %v5257 = vld [vmem:[#allocation2 + $0x20] sm:$0xff]
        %v5258 = vld [vmem:[#allocation2 + $0x28] sm:$0xff]
        %v5259 = vld [vmem:[#allocation2 + $0x30] sm:$0xff]
        %v5260 = vmul.bf16 %v5254, %v855
        %v5261 = vmul.bf16 %v5255, %v859
        %v5262 = vmul.bf16 %v5256, %v857
        %v5263 = vmul.bf16 %v5257, %v855
        %v5264 = vmul.bf16 %v5258, %v859
        %v5265 = vmul.bf16 %v5259, %v857
        %5272 = vrot.lane.b32.xlu0 %v5260, 1
        %v5273 = vpop.permute.xlu0 %5272
        %5274 = vrot.lane.b32.xlu0 %v5261, 1
        %v5275 = vpop.permute.xlu0 %5274
        %5276 = vrot.lane.b32.xlu0 %v5262, 1
        %v5277 = vpop.permute.xlu0 %5276
        %5278 = vrot.lane.b32.xlu0 %v5263, 1
        %v5279 = vpop.permute.xlu0 %5278
        %5280 = vrot.lane.b32.xlu0 %v5264, 1
        %v5281 = vpop.permute.xlu0 %5280
        %5282 = vrot.lane.b32.xlu0 %v5265, 1
        %v5283 = vpop.permute.xlu0 %5282
        %v5284 = vsel %vm887, %v5273, %v5275
        %v5285 = vsel %vm887, %v5275, %v5277
        %v5286 = vsel %vm887, %v5279, %v5281
        %v5287 = vsel %vm887, %v5281, %v5283
        %5292 = vst [vmem:[#allocation3 + $0x160] sm:$0xff] %v5284
        %5293 = vst [vmem:[#allocation3 + $0x168] sm:$0xff] %v5285
        %5294 = vst [vmem:[#allocation3 + $0x170] sm:$0xff] %v5286
        %5295 = vst [vmem:[#allocation3 + $0x178] sm:$0xff] %v5287
        %v5296 = vld [vmem:[#allocation2 + $0x8] sm:$0xff]
        %v5297 = vld [vmem:[#allocation2 + $0x10] sm:$0xff]
        %v5298 = vld [vmem:[#allocation2 + $0x28] sm:$0xff]
        %v5299 = vld [vmem:[#allocation2 + $0x30] sm:$0xff]
        %5300 = vst [vmem:[#allocation3 + $0x180] sm:$0xff] %v5296
        %5301 = vst [vmem:[#allocation3 + $0x188] sm:$0xff] %v5297
        %5302 = vst [vmem:[#allocation3 + $0x190] sm:$0xff] %v5298
        %5303 = vst [vmem:[#allocation3 + $0x198] sm:$0xff] %v5299
        %v5304 = vld [vmem:[#allocation2 + $0x8] sm:$0xff]
        %v5305 = vld [vmem:[#allocation2 + $0x10] sm:$0xff]
        %v5306 = vld [vmem:[#allocation2 + $0x18] sm:$0xff]
        %v5307 = vld [vmem:[#allocation2 + $0x28] sm:$0xff]
        %v5308 = vld [vmem:[#allocation2 + $0x30] sm:$0xff]
        %v5309 = vld [vmem:[#allocation2 + $0x38] sm:$0xff]
        %v5310 = vmul.bf16 %v5304, %v915
        %v5311 = vmul.bf16 %v5305, %v918
        %v5312 = vmul.bf16 %v5306, %v917
        %v5313 = vmul.bf16 %v5307, %v915
        %v5314 = vmul.bf16 %v5308, %v918
        %v5315 = vmul.bf16 %v5309, %v917
        %5322 = vrot.lane.b32.xlu0 %v5310, 127
        %v5323 = vpop.permute.xlu0 %5322
        %5324 = vrot.lane.b32.xlu0 %v5311, 127
        %v5325 = vpop.permute.xlu0 %5324
        %5326 = vrot.lane.b32.xlu0 %v5312, 127
        %v5327 = vpop.permute.xlu0 %5326
        %5328 = vrot.lane.b32.xlu0 %v5313, 127
        %v5329 = vpop.permute.xlu0 %5328
        %5330 = vrot.lane.b32.xlu0 %v5314, 127
        %v5331 = vpop.permute.xlu0 %5330
        %5332 = vrot.lane.b32.xlu0 %v5315, 127
        %v5333 = vpop.permute.xlu0 %5332
        %v5334 = vsel %vm858, %v5323, %v5325
        %v5335 = vsel %vm858, %v5325, %v5327
        %v5336 = vsel %vm858, %v5329, %v5331
        %v5337 = vsel %vm858, %v5331, %v5333
        %5342 = vst [vmem:[#allocation3 + $0x1a0] sm:$0xff] %v5334
        %5343 = vst [vmem:[#allocation3 + $0x1a8] sm:$0xff] %v5335
        %5344 = vst [vmem:[#allocation3 + $0x1b0] sm:$0xff] %v5336
        %5345 = vst [vmem:[#allocation3 + $0x1b8] sm:$0xff] %v5337
        %v5346 = vld [vmem:[#allocation2 + $0x8] sm:$0xff]
        %v5347 = vld [vmem:[#allocation2 + $0x10] sm:$0xff]
        %v5348 = vld [vmem:[#allocation2 + $0x18] sm:$0xff]
        %v5349 = vld [vmem:[#allocation2 + $0x28] sm:$0xff]
        %v5350 = vld [vmem:[#allocation2 + $0x30] sm:$0xff]
        %v5351 = vld [vmem:[#allocation2 + $0x38] sm:$0xff]
        %v5352 = vmul.bf16 %v5346, %v965
        %v5353 = vmul.bf16 %v5347, %v968
        %v5354 = vmul.bf16 %v5348, %v967
        %v5355 = vmul.bf16 %v5349, %v965
        %v5356 = vmul.bf16 %v5350, %v968
        %v5357 = vmul.bf16 %v5351, %v967
        %5364 = vrot.lane.b32.xlu0 %v5352, 126
        %v5365 = vpop.permute.xlu0 %5364
        %5366 = vrot.lane.b32.xlu0 %v5353, 126
        %v5367 = vpop.permute.xlu0 %5366
        %5368 = vrot.lane.b32.xlu0 %v5354, 126
        %v5369 = vpop.permute.xlu0 %5368
        %5370 = vrot.lane.b32.xlu0 %v5355, 126
        %v5371 = vpop.permute.xlu0 %5370
        %5372 = vrot.lane.b32.xlu0 %v5356, 126
        %v5373 = vpop.permute.xlu0 %5372
        %5374 = vrot.lane.b32.xlu0 %v5357, 126
        %v5375 = vpop.permute.xlu0 %5374
        %v5376 = vsel %vm806, %v5365, %v5367
        %v5377 = vsel %vm806, %v5367, %v5369
        %v5378 = vsel %vm806, %v5371, %v5373
        %v5379 = vsel %vm806, %v5373, %v5375
        %5384 = vst [vmem:[#allocation3 + $0x1c0] sm:$0xff] %v5376
        %5385 = vst [vmem:[#allocation3 + $0x1c8] sm:$0xff] %v5377
        %5386 = vst [vmem:[#allocation3 + $0x1d0] sm:$0xff] %v5378
        %5387 = vst [vmem:[#allocation3 + $0x1d8] sm:$0xff] %v5379
        %v5388 = vld [vmem:[#allocation2 + $0x8] sm:$0xff]
        %v5389 = vld [vmem:[#allocation2 + $0x10] sm:$0xff]
        %v5390 = vld [vmem:[#allocation2 + $0x18] sm:$0xff]
        %v5391 = vld [vmem:[#allocation2 + $0x28] sm:$0xff]
        %v5392 = vld [vmem:[#allocation2 + $0x30] sm:$0xff]
        %v5393 = vld [vmem:[#allocation2 + $0x38] sm:$0xff]
        %v5394 = vmul.bf16 %v5388, %v1015
        %v5395 = vmul.bf16 %v5389, %v1018
        %v5396 = vmul.bf16 %v5390, %v1017
        %v5397 = vmul.bf16 %v5391, %v1015
        %v5398 = vmul.bf16 %v5392, %v1018
        %v5399 = vmul.bf16 %v5393, %v1017
        %5406 = vrot.lane.b32.xlu0 %v5394, 114
        %v5407 = vpop.permute.xlu0 %5406
        %5408 = vrot.lane.b32.xlu0 %v5395, 114
        %v5409 = vpop.permute.xlu0 %5408
        %5410 = vrot.lane.b32.xlu0 %v5396, 114
        %v5411 = vpop.permute.xlu0 %5410
        %5412 = vrot.lane.b32.xlu0 %v5397, 114
        %v5413 = vpop.permute.xlu0 %5412
        %5414 = vrot.lane.b32.xlu0 %v5398, 114
        %v5415 = vpop.permute.xlu0 %5414
        %5416 = vrot.lane.b32.xlu0 %v5399, 114
        %v5417 = vpop.permute.xlu0 %5416
        %v5418 = vsel %vm754, %v5407, %v5409
        %v5419 = vsel %vm754, %v5409, %v5411
        %v5420 = vsel %vm754, %v5413, %v5415
        %v5421 = vsel %vm754, %v5415, %v5417
        %5426 = vst [vmem:[#allocation3 + $0x1e0] sm:$0xff] %v5418
        %5427 = vst [vmem:[#allocation3 + $0x1e8] sm:$0xff] %v5419
        %5428 = vst [vmem:[#allocation3 + $0x1f0] sm:$0xff] %v5420
        %5429 = vst [vmem:[#allocation3 + $0x1f8] sm:$0xff] %v5421
        %v5430 = vld [vmem:[#allocation2 + $0x8] sm:$0xff]
        %v5431 = vld [vmem:[#allocation2 + $0x10] sm:$0xff]
        %v5432 = vld [vmem:[#allocation2 + $0x18] sm:$0xff]
        %v5433 = vld [vmem:[#allocation2 + $0x28] sm:$0xff]
        %v5434 = vld [vmem:[#allocation2 + $0x30] sm:$0xff]
        %v5435 = vld [vmem:[#allocation2 + $0x38] sm:$0xff]
        %v5436 = vmul.bf16 %v5430, %v1065
        %v5437 = vmul.bf16 %v5431, %v1068
        %v5438 = vmul.bf16 %v5432, %v1067
        %v5439 = vmul.bf16 %v5433, %v1065
        %v5440 = vmul.bf16 %v5434, %v1068
        %v5441 = vmul.bf16 %v5435, %v1067
        %5448 = vrot.lane.b32.xlu0 %v5436, 113
        %v5449 = vpop.permute.xlu0 %5448
        %5450 = vrot.lane.b32.xlu0 %v5437, 113
        %v5451 = vpop.permute.xlu0 %5450
        %5452 = vrot.lane.b32.xlu0 %v5438, 113
        %v5453 = vpop.permute.xlu0 %5452
        %5454 = vrot.lane.b32.xlu0 %v5439, 113
        %v5455 = vpop.permute.xlu0 %5454
        %5456 = vrot.lane.b32.xlu0 %v5440, 113
        %v5457 = vpop.permute.xlu0 %5456
        %5458 = vrot.lane.b32.xlu0 %v5441, 113
        %v5459 = vpop.permute.xlu0 %5458
        %v5460 = vsel %vm702, %v5449, %v5451
        %v5461 = vsel %vm702, %v5451, %v5453
        %v5462 = vsel %vm702, %v5455, %v5457
        %v5463 = vsel %vm702, %v5457, %v5459
        %5468 = vst [vmem:[#allocation3 + $0x200] sm:$0xff] %v5460
        %5469 = vst [vmem:[#allocation3 + $0x208] sm:$0xff] %v5461
        %5470 = vst [vmem:[#allocation3 + $0x210] sm:$0xff] %v5462
        %5471 = vst [vmem:[#allocation3 + $0x218] sm:$0xff] %v5463
        %v5472 = vld [vmem:[#allocation2 + $0x8] sm:$0xff]
        %v5473 = vld [vmem:[#allocation2 + $0x10] sm:$0xff]
        %v5474 = vld [vmem:[#allocation2 + $0x18] sm:$0xff]
        %v5475 = vld [vmem:[#allocation2 + $0x28] sm:$0xff]
        %v5476 = vld [vmem:[#allocation2 + $0x30] sm:$0xff]
        %v5477 = vld [vmem:[#allocation2 + $0x38] sm:$0xff]
        %5484 = vrot.lane.b32.xlu0 %v5472, 112
        %v5485 = vpop.permute.xlu0 %5484
        %5486 = vrot.lane.b32.xlu0 %v5473, 112
        %v5487 = vpop.permute.xlu0 %5486
        %5488 = vrot.lane.b32.xlu0 %v5474, 112
        %v5489 = vpop.permute.xlu0 %5488
        %5490 = vrot.lane.b32.xlu0 %v5475, 112
        %v5491 = vpop.permute.xlu0 %5490
        %5492 = vrot.lane.b32.xlu0 %v5476, 112
        %v5493 = vpop.permute.xlu0 %5492
        %5494 = vrot.lane.b32.xlu0 %v5477, 112
        %v5495 = vpop.permute.xlu0 %5494
        %v5496 = vsel %vm1132, %v5485, %v5487
        %v5497 = vsel %vm1132, %v5487, %v5489
        %v5498 = vsel %vm1132, %v5491, %v5493
        %v5499 = vsel %vm1132, %v5493, %v5495
        %5504 = vst [vmem:[#allocation3 + $0x220] sm:$0xff] %v5496
        %5505 = vst [vmem:[#allocation3 + $0x228] sm:$0xff] %v5497
        %5506 = vst [vmem:[#allocation3 + $0x230] sm:$0xff] %v5498
        %5507 = vst [vmem:[#allocation3 + $0x238] sm:$0xff] %v5499
        %v5508 = vld [vmem:[#allocation2 + $0x8] sm:$0xff]
        %v5509 = vld [vmem:[#allocation2 + $0x10] sm:$0xff]
        %v5510 = vld [vmem:[#allocation2 + $0x18] sm:$0xff]
        %v5511 = vld [vmem:[#allocation2 + $0x28] sm:$0xff]
        %v5512 = vld [vmem:[#allocation2 + $0x30] sm:$0xff]
        %v5513 = vld [vmem:[#allocation2 + $0x38] sm:$0xff]
        %v5514 = vmul.bf16 %v5508, %v1152
        %v5515 = vmul.bf16 %v5509, %v1155
        %v5516 = vmul.bf16 %v5510, %v1154
        %v5517 = vmul.bf16 %v5511, %v1152
        %v5518 = vmul.bf16 %v5512, %v1155
        %v5519 = vmul.bf16 %v5513, %v1154
        %5526 = vrot.lane.b32.xlu0 %v5514, 111
        %v5527 = vpop.permute.xlu0 %5526
        %5528 = vrot.lane.b32.xlu0 %v5515, 111
        %v5529 = vpop.permute.xlu0 %5528
        %5530 = vrot.lane.b32.xlu0 %v5516, 111
        %v5531 = vpop.permute.xlu0 %5530
        %5532 = vrot.lane.b32.xlu0 %v5517, 111
        %v5533 = vpop.permute.xlu0 %5532
        %5534 = vrot.lane.b32.xlu0 %v5518, 111
        %v5535 = vpop.permute.xlu0 %5534
        %5536 = vrot.lane.b32.xlu0 %v5519, 111
        %v5537 = vpop.permute.xlu0 %5536
        %v5538 = vsel %vm613, %v5527, %v5529
        %v5539 = vsel %vm613, %v5529, %v5531
        %v5540 = vsel %vm613, %v5533, %v5535
        %v5541 = vsel %vm613, %v5535, %v5537
        %5546 = vst [vmem:[#allocation3 + $0x240] sm:$0xff] %v5538
        %5547 = vst [vmem:[#allocation3 + $0x248] sm:$0xff] %v5539
        %5548 = vst [vmem:[#allocation3 + $0x250] sm:$0xff] %v5540
        %5549 = vst [vmem:[#allocation3 + $0x258] sm:$0xff] %v5541
        %v5550 = vld [vmem:[#allocation2 + $0x8] sm:$0xff]
        %v5551 = vld [vmem:[#allocation2 + $0x10] sm:$0xff]
        %v5552 = vld [vmem:[#allocation2 + $0x18] sm:$0xff]
        %v5553 = vld [vmem:[#allocation2 + $0x28] sm:$0xff]
        %v5554 = vld [vmem:[#allocation2 + $0x30] sm:$0xff]
        %v5555 = vld [vmem:[#allocation2 + $0x38] sm:$0xff]
        %v5556 = vmul.bf16 %v5550, %v1202
        %v5557 = vmul.bf16 %v5551, %v1205
        %v5558 = vmul.bf16 %v5552, %v1204
        %v5559 = vmul.bf16 %v5553, %v1202
        %v5560 = vmul.bf16 %v5554, %v1205
        %v5561 = vmul.bf16 %v5555, %v1204
        %5568 = vrot.lane.b32.xlu0 %v5556, 110
        %v5569 = vpop.permute.xlu0 %5568
        %5570 = vrot.lane.b32.xlu0 %v5557, 110
        %v5571 = vpop.permute.xlu0 %5570
        %5572 = vrot.lane.b32.xlu0 %v5558, 110
        %v5573 = vpop.permute.xlu0 %5572
        %5574 = vrot.lane.b32.xlu0 %v5559, 110
        %v5575 = vpop.permute.xlu0 %5574
        %5576 = vrot.lane.b32.xlu0 %v5560, 110
        %v5577 = vpop.permute.xlu0 %5576
        %5578 = vrot.lane.b32.xlu0 %v5561, 110
        %v5579 = vpop.permute.xlu0 %5578
        %v5580 = vsel %vm561, %v5569, %v5571
        %v5581 = vsel %vm561, %v5571, %v5573
        %v5582 = vsel %vm561, %v5575, %v5577
        %v5583 = vsel %vm561, %v5577, %v5579
        %5588 = vst [vmem:[#allocation3 + $0x260] sm:$0xff] %v5580
        %5589 = vst [vmem:[#allocation3 + $0x268] sm:$0xff] %v5581
        %5590 = vst [vmem:[#allocation3 + $0x270] sm:$0xff] %v5582
        %5591 = vst [vmem:[#allocation3 + $0x278] sm:$0xff] %v5583
        %v5592 = vld [vmem:[#allocation2 + $0x8] sm:$0xff]
        %v5593 = vld [vmem:[#allocation2 + $0x10] sm:$0xff]
        %v5594 = vld [vmem:[#allocation2 + $0x18] sm:$0xff]
        %v5595 = vld [vmem:[#allocation2 + $0x28] sm:$0xff]
        %v5596 = vld [vmem:[#allocation2 + $0x30] sm:$0xff]
        %v5597 = vld [vmem:[#allocation2 + $0x38] sm:$0xff]
        %v5598 = vmul.bf16 %v5592, %v1252
        %v5599 = vmul.bf16 %v5593, %v1255
        %v5600 = vmul.bf16 %v5594, %v1254
        %v5601 = vmul.bf16 %v5595, %v1252
        %v5602 = vmul.bf16 %v5596, %v1255
        %v5603 = vmul.bf16 %v5597, %v1254
        %5610 = vrot.lane.b32.xlu0 %v5598, 98
        %v5611 = vpop.permute.xlu0 %5610
        %5612 = vrot.lane.b32.xlu0 %v5599, 98
        %v5613 = vpop.permute.xlu0 %5612
        %5614 = vrot.lane.b32.xlu0 %v5600, 98
        %v5615 = vpop.permute.xlu0 %5614
        %5616 = vrot.lane.b32.xlu0 %v5601, 98
        %v5617 = vpop.permute.xlu0 %5616
        %5618 = vrot.lane.b32.xlu0 %v5602, 98
        %v5619 = vpop.permute.xlu0 %5618
        %5620 = vrot.lane.b32.xlu0 %v5603, 98
        %v5621 = vpop.permute.xlu0 %5620
        %v5622 = vsel %vm509, %v5611, %v5613
        %v5623 = vsel %vm509, %v5613, %v5615
        %v5624 = vsel %vm509, %v5617, %v5619
        %v5625 = vsel %vm509, %v5619, %v5621
        %5630 = vst [vmem:[#allocation3 + $0x280] sm:$0xff] %v5622
        %5631 = vst [vmem:[#allocation3 + $0x288] sm:$0xff] %v5623
        %5632 = vst [vmem:[#allocation3 + $0x290] sm:$0xff] %v5624
        %5633 = vst [vmem:[#allocation3 + $0x298] sm:$0xff] %v5625
        %v5634 = vld [vmem:[#allocation2 + $0x8] sm:$0xff]
        %v5635 = vld [vmem:[#allocation2 + $0x10] sm:$0xff]
        %v5636 = vld [vmem:[#allocation2 + $0x18] sm:$0xff]
        %v5637 = vld [vmem:[#allocation2 + $0x28] sm:$0xff]
        %v5638 = vld [vmem:[#allocation2 + $0x30] sm:$0xff]
        %v5639 = vld [vmem:[#allocation2 + $0x38] sm:$0xff]
        %v5640 = vmul.bf16 %v5634, %v1302
        %v5641 = vmul.bf16 %v5635, %v1305
        %v5642 = vmul.bf16 %v5636, %v1304
        %v5643 = vmul.bf16 %v5637, %v1302
        %v5644 = vmul.bf16 %v5638, %v1305
        %v5645 = vmul.bf16 %v5639, %v1304
        %5652 = vrot.lane.b32.xlu0 %v5640, 97
        %v5653 = vpop.permute.xlu0 %5652
        %5654 = vrot.lane.b32.xlu0 %v5641, 97
        %v5655 = vpop.permute.xlu0 %5654
        %5656 = vrot.lane.b32.xlu0 %v5642, 97
        %v5657 = vpop.permute.xlu0 %5656
        %5658 = vrot.lane.b32.xlu0 %v5643, 97
        %v5659 = vpop.permute.xlu0 %5658
        %5660 = vrot.lane.b32.xlu0 %v5644, 97
        %v5661 = vpop.permute.xlu0 %5660
        %5662 = vrot.lane.b32.xlu0 %v5645, 97
        %v5663 = vpop.permute.xlu0 %5662
        %v5664 = vsel %vm447, %v5653, %v5655
        %v5665 = vsel %vm447, %v5655, %v5657
        %v5666 = vsel %vm447, %v5659, %v5661
        %v5667 = vsel %vm447, %v5661, %v5663
        %5672 = vst [vmem:[#allocation3 + $0x2a0] sm:$0xff] %v5664
        %5673 = vst [vmem:[#allocation3 + $0x2a8] sm:$0xff] %v5665
        %5674 = vst [vmem:[#allocation3 + $0x2b0] sm:$0xff] %v5666
        %5675 = vst [vmem:[#allocation3 + $0x2b8] sm:$0xff] %v5667
        %v5676 = vld [vmem:[#allocation2 + $0x8] sm:$0xff]
        %v5677 = vld [vmem:[#allocation2 + $0x10] sm:$0xff]
        %v5678 = vld [vmem:[#allocation2 + $0x18] sm:$0xff]
        %v5679 = vld [vmem:[#allocation2 + $0x28] sm:$0xff]
        %v5680 = vld [vmem:[#allocation2 + $0x30] sm:$0xff]
        %v5681 = vld [vmem:[#allocation2 + $0x38] sm:$0xff]
        %5688 = vrot.lane.b32.xlu0 %v5676, 96
        %v5689 = vpop.permute.xlu0 %5688
        %5690 = vrot.lane.b32.xlu0 %v5677, 96
        %v5691 = vpop.permute.xlu0 %5690
        %5692 = vrot.lane.b32.xlu0 %v5678, 96
        %v5693 = vpop.permute.xlu0 %5692
        %5694 = vrot.lane.b32.xlu0 %v5679, 96
        %v5695 = vpop.permute.xlu0 %5694
        %5696 = vrot.lane.b32.xlu0 %v5680, 96
        %v5697 = vpop.permute.xlu0 %5696
        %5698 = vrot.lane.b32.xlu0 %v5681, 96
        %v5699 = vpop.permute.xlu0 %5698
        %v5700 = vsel %vm1369, %v5689, %v5691
        %v5701 = vsel %vm1369, %v5691, %v5693
        %v5702 = vsel %vm1369, %v5695, %v5697
        %v5703 = vsel %vm1369, %v5697, %v5699
        %5708 = vst [vmem:[#allocation3 + $0x2c0] sm:$0xff] %v5700
        %5709 = vst [vmem:[#allocation3 + $0x2c8] sm:$0xff] %v5701
        %5710 = vst [vmem:[#allocation3 + $0x2d0] sm:$0xff] %v5702
        %5711 = vst [vmem:[#allocation3 + $0x2d8] sm:$0xff] %v5703
        %v5712 = vld [vmem:[#allocation2 + $0x8] sm:$0xff]
        %v5713 = vld [vmem:[#allocation2 + $0x10] sm:$0xff]
        %v5714 = vld [vmem:[#allocation2 + $0x18] sm:$0xff]
        %v5715 = vld [vmem:[#allocation2 + $0x28] sm:$0xff]
        %v5716 = vld [vmem:[#allocation2 + $0x30] sm:$0xff]
        %v5717 = vld [vmem:[#allocation2 + $0x38] sm:$0xff]
        %v5718 = vmul.bf16 %v5712, %v1389
        %v5719 = vmul.bf16 %v5713, %v1392
        %v5720 = vmul.bf16 %v5714, %v1391
        %v5721 = vmul.bf16 %v5715, %v1389
        %v5722 = vmul.bf16 %v5716, %v1392
        %v5723 = vmul.bf16 %v5717, %v1391
        %5730 = vrot.lane.b32.xlu0 %v5718, 95
        %v5731 = vpop.permute.xlu0 %5730
        %5732 = vrot.lane.b32.xlu0 %v5719, 95
        %v5733 = vpop.permute.xlu0 %5732
        %5734 = vrot.lane.b32.xlu0 %v5720, 95
        %v5735 = vpop.permute.xlu0 %5734
        %5736 = vrot.lane.b32.xlu0 %v5721, 95
        %v5737 = vpop.permute.xlu0 %5736
        %5738 = vrot.lane.b32.xlu0 %v5722, 95
        %v5739 = vpop.permute.xlu0 %5738
        %5740 = vrot.lane.b32.xlu0 %v5723, 95
        %v5741 = vpop.permute.xlu0 %5740
        %v5742 = vsel %vm348, %v5731, %v5733
        %v5743 = vsel %vm348, %v5733, %v5735
        %v5744 = vsel %vm348, %v5737, %v5739
        %v5745 = vsel %vm348, %v5739, %v5741
        %5750 = vst [vmem:[#allocation3 + $0x2e0] sm:$0xff] %v5742
        %5751 = vst [vmem:[#allocation3 + $0x2e8] sm:$0xff] %v5743
        %5752 = vst [vmem:[#allocation3 + $0x2f0] sm:$0xff] %v5744
        %5753 = vst [vmem:[#allocation3 + $0x2f8] sm:$0xff] %v5745
        %v5754 = vld [vmem:[#allocation2 + $0x8] sm:$0xff]
        %v5755 = vld [vmem:[#allocation2 + $0x10] sm:$0xff]
        %v5756 = vld [vmem:[#allocation2 + $0x18] sm:$0xff]
        %v5757 = vld [vmem:[#allocation2 + $0x28] sm:$0xff]
        %v5758 = vld [vmem:[#allocation2 + $0x30] sm:$0xff]
        %v5759 = vld [vmem:[#allocation2 + $0x38] sm:$0xff]
        %v5760 = vmul.bf16 %v5754, %v1439
        %v5761 = vmul.bf16 %v5755, %v1442
        %v5762 = vmul.bf16 %v5756, %v1441
        %v5763 = vmul.bf16 %v5757, %v1439
        %v5764 = vmul.bf16 %v5758, %v1442
        %v5765 = vmul.bf16 %v5759, %v1441
        %5772 = vrot.lane.b32.xlu0 %v5760, 94
        %v5773 = vpop.permute.xlu0 %5772
        %5774 = vrot.lane.b32.xlu0 %v5761, 94
        %v5775 = vpop.permute.xlu0 %5774
        %5776 = vrot.lane.b32.xlu0 %v5762, 94
        %v5777 = vpop.permute.xlu0 %5776
        %5778 = vrot.lane.b32.xlu0 %v5763, 94
        %v5779 = vpop.permute.xlu0 %5778
        %5780 = vrot.lane.b32.xlu0 %v5764, 94
        %v5781 = vpop.permute.xlu0 %5780
        %5782 = vrot.lane.b32.xlu0 %v5765, 94
        %v5783 = vpop.permute.xlu0 %5782
        %v5784 = vsel %vm280, %v5773, %v5775
        %v5785 = vsel %vm280, %v5775, %v5777
        %v5786 = vsel %vm280, %v5779, %v5781
        %v5787 = vsel %vm280, %v5781, %v5783
        %5792 = vst [vmem:[#allocation3 + $0x300] sm:$0xff] %v5784
        %5793 = vst [vmem:[#allocation3 + $0x308] sm:$0xff] %v5785
        %5794 = vst [vmem:[#allocation3 + $0x310] sm:$0xff] %v5786
        %5795 = vst [vmem:[#allocation3 + $0x318] sm:$0xff] %v5787
        %v5796 = vld [vmem:[#allocation3] sm:$0xff]
        %v5797 = vld [vmem:[#allocation3 + $0x8] sm:$0xff]
        %v5798 = vld [vmem:[#allocation3 + $0x10] sm:$0xff]
        %v5799 = vld [vmem:[#allocation3 + $0x18] sm:$0xff]
        %v5800 = vld [vmem:[#allocation3 + $0x20] sm:$0xff]
        %v5801 = vld [vmem:[#allocation3 + $0x28] sm:$0xff]
        %v5802 = vld [vmem:[#allocation3 + $0x30] sm:$0xff]
        %v5803 = vld [vmem:[#allocation3 + $0x38] sm:$0xff]
        %v5804 = vld [vmem:[#allocation3 + $0x40] sm:$0xff]
        %v5805 = vld [vmem:[#allocation3 + $0x48] sm:$0xff]
        %v5806 = vld [vmem:[#allocation3 + $0x50] sm:$0xff]
        %v5807 = vld [vmem:[#allocation3 + $0x58] sm:$0xff]
        %v5808 = vld [vmem:[#allocation3 + $0x60] sm:$0xff]
        %v5809 = vld [vmem:[#allocation3 + $0x68] sm:$0xff]
        %v5810 = vld [vmem:[#allocation3 + $0x70] sm:$0xff]
        %v5811 = vld [vmem:[#allocation3 + $0x78] sm:$0xff]
        %v5812 = vld [vmem:[#allocation3 + $0x80] sm:$0xff]
        %v5813 = vld [vmem:[#allocation3 + $0x88] sm:$0xff]
        %v5814 = vld [vmem:[#allocation3 + $0x90] sm:$0xff]
        %v5815 = vld [vmem:[#allocation3 + $0x98] sm:$0xff]
        %v5816 = vld [vmem:[#allocation3 + $0xa0] sm:$0xff]
        %v5817 = vld [vmem:[#allocation3 + $0xa8] sm:$0xff]
        %v5818 = vld [vmem:[#allocation3 + $0xb0] sm:$0xff]
        %v5819 = vld [vmem:[#allocation3 + $0xb8] sm:$0xff]
        %v5820 = vld [vmem:[#allocation3 + $0xc0] sm:$0xff]
        %v5821 = vld [vmem:[#allocation3 + $0xc8] sm:$0xff]
        %v5822 = vld [vmem:[#allocation3 + $0xd0] sm:$0xff]
        %v5823 = vld [vmem:[#allocation3 + $0xd8] sm:$0xff]
        %v5824 = vld [vmem:[#allocation3 + $0xe0] sm:$0xff]
        %v5825 = vld [vmem:[#allocation3 + $0xe8] sm:$0xff]
        %v5826 = vld [vmem:[#allocation3 + $0xf0] sm:$0xff]
        %v5827 = vld [vmem:[#allocation3 + $0xf8] sm:$0xff]
        %v5828 = vld [vmem:[#allocation3 + $0x100] sm:$0xff]
        %v5829 = vld [vmem:[#allocation3 + $0x108] sm:$0xff]
        %v5830 = vld [vmem:[#allocation3 + $0x110] sm:$0xff]
        %v5831 = vld [vmem:[#allocation3 + $0x118] sm:$0xff]
        %v5832 = vld [vmem:[#allocation3 + $0x120] sm:$0xff]
        %v5833 = vld [vmem:[#allocation3 + $0x128] sm:$0xff]
        %v5834 = vld [vmem:[#allocation3 + $0x130] sm:$0xff]
        %v5835 = vld [vmem:[#allocation3 + $0x138] sm:$0xff]
        %v5836 = vld [vmem:[#allocation3 + $0x140] sm:$0xff]
        %v5837 = vld [vmem:[#allocation3 + $0x148] sm:$0xff]
        %v5838 = vld [vmem:[#allocation3 + $0x150] sm:$0xff]
        %v5839 = vld [vmem:[#allocation3 + $0x158] sm:$0xff]
        %v5840 = vld [vmem:[#allocation3 + $0x160] sm:$0xff]
        %v5841 = vld [vmem:[#allocation3 + $0x168] sm:$0xff]
        %v5842 = vld [vmem:[#allocation3 + $0x170] sm:$0xff]
        %v5843 = vld [vmem:[#allocation3 + $0x178] sm:$0xff]
        %v5844 = vld [vmem:[#allocation3 + $0x180] sm:$0xff]
        %v5845 = vld [vmem:[#allocation3 + $0x188] sm:$0xff]
        %v5846 = vld [vmem:[#allocation3 + $0x190] sm:$0xff]
        %v5847 = vld [vmem:[#allocation3 + $0x198] sm:$0xff]
        %v5848 = vld [vmem:[#allocation3 + $0x1a0] sm:$0xff]
        %v5849 = vld [vmem:[#allocation3 + $0x1a8] sm:$0xff]
        %v5850 = vld [vmem:[#allocation3 + $0x1b0] sm:$0xff]
        %v5851 = vld [vmem:[#allocation3 + $0x1b8] sm:$0xff]
        %v5852 = vld [vmem:[#allocation3 + $0x1c0] sm:$0xff]
        %v5853 = vld [vmem:[#allocation3 + $0x1c8] sm:$0xff]
        %v5854 = vld [vmem:[#allocation3 + $0x1d0] sm:$0xff]
        %v5855 = vld [vmem:[#allocation3 + $0x1d8] sm:$0xff]
        %v5856 = vld [vmem:[#allocation3 + $0x1e0] sm:$0xff]
        %v5857 = vld [vmem:[#allocation3 + $0x1e8] sm:$0xff]
        %v5858 = vld [vmem:[#allocation3 + $0x1f0] sm:$0xff]
        %v5859 = vld [vmem:[#allocation3 + $0x1f8] sm:$0xff]
        %v5860 = vld [vmem:[#allocation3 + $0x200] sm:$0xff]
        %v5861 = vld [vmem:[#allocation3 + $0x208] sm:$0xff]
        %v5862 = vld [vmem:[#allocation3 + $0x210] sm:$0xff]
        %v5863 = vld [vmem:[#allocation3 + $0x218] sm:$0xff]
        %v5864 = vld [vmem:[#allocation3 + $0x220] sm:$0xff]
        %v5865 = vld [vmem:[#allocation3 + $0x228] sm:$0xff]
        %v5866 = vld [vmem:[#allocation3 + $0x230] sm:$0xff]
        %v5867 = vld [vmem:[#allocation3 + $0x238] sm:$0xff]
        %v5868 = vld [vmem:[#allocation3 + $0x240] sm:$0xff]
        %v5869 = vld [vmem:[#allocation3 + $0x248] sm:$0xff]
        %v5870 = vld [vmem:[#allocation3 + $0x250] sm:$0xff]
        %v5871 = vld [vmem:[#allocation3 + $0x258] sm:$0xff]
        %v5872 = vld [vmem:[#allocation3 + $0x260] sm:$0xff]
        %v5873 = vld [vmem:[#allocation3 + $0x268] sm:$0xff]
        %v5874 = vld [vmem:[#allocation3 + $0x270] sm:$0xff]
        %v5875 = vld [vmem:[#allocation3 + $0x278] sm:$0xff]
        %v5876 = vld [vmem:[#allocation3 + $0x280] sm:$0xff]
        %v5877 = vld [vmem:[#allocation3 + $0x288] sm:$0xff]
        %v5878 = vld [vmem:[#allocation3 + $0x290] sm:$0xff]
        %v5879 = vld [vmem:[#allocation3 + $0x298] sm:$0xff]
        %v5880 = vld [vmem:[#allocation3 + $0x2a0] sm:$0xff]
        %v5881 = vld [vmem:[#allocation3 + $0x2a8] sm:$0xff]
        %v5882 = vld [vmem:[#allocation3 + $0x2b0] sm:$0xff]
        %v5883 = vld [vmem:[#allocation3 + $0x2b8] sm:$0xff]
        %v5884 = vld [vmem:[#allocation3 + $0x2c0] sm:$0xff]
        %v5885 = vld [vmem:[#allocation3 + $0x2c8] sm:$0xff]
        %v5886 = vld [vmem:[#allocation3 + $0x2d0] sm:$0xff]
        %v5887 = vld [vmem:[#allocation3 + $0x2d8] sm:$0xff]
        %v5888 = vld [vmem:[#allocation3 + $0x2e0] sm:$0xff]
        %v5889 = vld [vmem:[#allocation3 + $0x2e8] sm:$0xff]
        %v5890 = vld [vmem:[#allocation3 + $0x2f0] sm:$0xff]
        %v5891 = vld [vmem:[#allocation3 + $0x2f8] sm:$0xff]
        %v5892 = vld [vmem:[#allocation3 + $0x300] sm:$0xff]
        %v5893 = vld [vmem:[#allocation3 + $0x308] sm:$0xff]
        %v5894 = vld [vmem:[#allocation3 + $0x310] sm:$0xff]
        %v5895 = vld [vmem:[#allocation3 + $0x318] sm:$0xff]
        %s5896 = scalar_lea.vmem %s3, 96
        %v5897 = vld [vmem:[%s5896] sm:$0xff]
        %v5898 = vld [vmem:[%s5896 + $0x8] sm:$0xff]
        %v5899 = vld [vmem:[%s5896 + $0x10] sm:$0xff]
        %v5900 = vld [vmem:[%s5896 + $0x18] sm:$0xff]
        %5902 = vset.pattern.permute.xlu0 0
        %5903 = vperm.xlu0 %5902, %v5897
        %v5904 = vpop.permute.xlu0 %5903
        %5907 = vset.pattern.permute.xlu0 0
        %5908 = vperm.xlu0 %5907, %v5898
        %v5909 = vpop.permute.xlu0 %5908
        %5912 = vset.pattern.permute.xlu0 0
        %5913 = vperm.xlu0 %5912, %v5899
        %v5914 = vpop.permute.xlu0 %5913
        %5917 = vset.pattern.permute.xlu0 0
        %5918 = vperm.xlu0 %5917, %v5900
        %v5919 = vpop.permute.xlu0 %5918
        %v5937 = vunpack.c.l.b16 %v4788
        %v5938 = vunpack.c.h.b16 %v4788
        %v5939 = vunpack.c.l.b16 %v4789
        %v5940 = vunpack.c.h.b16 %v4789
        %v5941 = vunpack.c.l.b16 %v4790
        %v5942 = vunpack.c.h.b16 %v4790
        %v5943 = vunpack.c.l.b16 %v4791
        %v5944 = vunpack.c.l.b16 %v4792
        %v5945 = vunpack.c.h.b16 %v4792
        %v5946 = vunpack.c.l.b16 %v4793
        %v5947 = vunpack.c.h.b16 %v4793
        %v5948 = vunpack.c.l.b16 %v4794
        %v5949 = vunpack.c.h.b16 %v4794
        %v5950 = vunpack.c.l.b16 %v4795
        %v5951 = vunpack.c.l.b16 %v4796
        %v5952 = vunpack.c.h.b16 %v4796
        %v5953 = vunpack.c.l.b16 %v4797
        %v5954 = vunpack.c.h.b16 %v4797
        %v5955 = vunpack.c.l.b16 %v4798
        %v5956 = vunpack.c.h.b16 %v4798
        %v5957 = vunpack.c.l.b16 %v4799
        %v5958 = vunpack.c.l.b16 %v4800
        %v5959 = vunpack.c.h.b16 %v4800
        %v5960 = vunpack.c.l.b16 %v4801
        %v5961 = vunpack.c.h.b16 %v4801
        %v5962 = vunpack.c.l.b16 %v4802
        %v5963 = vunpack.c.h.b16 %v4802
        %v5964 = vunpack.c.l.b16 %v4803
        %v5965 = vpack.c.b16 %v5944, %v5937
        %v5966 = vpack.c.b16 %v5945, %v5938
        %v5967 = vpack.c.b16 %v5946, %v5939
        %v5968 = vpack.c.b16 %v5947, %v5940
        %v5969 = vpack.c.b16 %v5948, %v5941
        %v5970 = vpack.c.b16 %v5949, %v5942
        %v5971 = vpack.c.b16 %v5950, %v5943
        %v5972 = vpack.c.b16 %v5958, %v5951
        %v5973 = vpack.c.b16 %v5959, %v5952
        %v5974 = vpack.c.b16 %v5960, %v5953
        %v5975 = vpack.c.b16 %v5961, %v5954
        %v5976 = vpack.c.b16 %v5962, %v5955
        %v5977 = vpack.c.b16 %v5963, %v5956
        %v5978 = vpack.c.b16 %v5964, %v5957
        %v5992 = vsel %vm1676, %v5971, 0
        %v5995 = vsel %vm1676, %v5978, 0
        %5997 = vmatprep.subr.bf16.mxu0 %v5797
        %5998 = vmatpush1.bf16.msra.mxu0 %v5796
        %5999 = vmatprep.subr.bf16.mxu0 %v5799
        %6000 = vmatpush1.bf16.msra.mxu0 %v5798
        %6001 = vmatprep.subr.bf16.mxu0 %v5801
        %6002 = vmatpush1.bf16.msra.mxu0 %v5800
        %6003 = vmatprep.subr.bf16.mxu0 %v5803
        %6004 = vmatpush1.bf16.msra.mxu0 %v5802
        %6005 = vmatprep.subr.bf16.mxu0 %v5805
        %6006 = vmatpush1.bf16.msra.mxu0 %v5804
        %6007 = vmatprep.subr.bf16.mxu0 %v5807
        %6008 = vmatpush1.bf16.msra.mxu0 %v5806
        %6009 = vmatprep.subr.bf16.mxu0 %v5809
        %6010 = vmatpush1.bf16.msra.mxu0 %v5808
        %6011 = vmatprep.subr.bf16.mxu0 %v5811
        %6012 = vmatpush1.bf16.msra.mxu0 %v5810
        %6013 = vmatprep.subr.bf16.mxu0 %v5813
        %6014 = vmatpush1.bf16.msra.mxu0 %v5812
        %6015 = vmatprep.subr.bf16.mxu0 %v5815
        %6016 = vmatpush1.bf16.msra.mxu0 %v5814
        %6017 = vmatprep.subr.bf16.mxu0 %v5817
        %6018 = vmatpush1.bf16.msra.mxu0 %v5816
        %6019 = vmatprep.subr.bf16.mxu0 %v5819
        %6020 = vmatpush1.bf16.msra.mxu0 %v5818
        %6021 = vmatprep.subr.bf16.mxu0 %v5821
        %6022 = vmatpush1.bf16.msra.mxu0 %v5820
        %6023 = vmatprep.subr.bf16.mxu0 %v5823
        %6024 = vmatpush1.bf16.msra.mxu0 %v5822
        %6025 = vmatprep.subr.bf16.mxu0 %v5825
        %6026 = vmatpush1.bf16.msra.mxu0 %v5824
        %6027 = vmatprep.subr.bf16.mxu0 %v5827
        %6028 = vmatpush1.bf16.msra.mxu0 %v5826
        %6029 = vmatprep.mubr.bf16.mxu0 %v5966
        %6030 = vmatmul.mubr.bf16.gmra.mrb[0].mxu0 %v5965
        %v6031 = vpop.f32.mrb[0].mxu0
        %v6032 = vadd.f32 %v5904, %v6031
        %v6033 = vpop.f32.mrb[0].mxu0
        %v6034 = vadd.f32 %v5904, %v6033
        %v6035 = vpop.f32.mrb[0].mxu0
        %v6036 = vadd.f32 %v5909, %v6035
        %v6037 = vpop.f32.mrb[0].mxu0
        %v6038 = vadd.f32 %v5909, %v6037
        %6039 = vmatprep.mubr.bf16.mxu0 %v5973
        %6040 = vmatmul.mubr.bf16.gmra.mrb[0].mxu0 %v5972
        %v6041 = vpop.f32.mrb[0].mxu0
        %v6042 = vadd.f32 %v5914, %v6041
        %v6043 = vpop.f32.mrb[0].mxu0
        %v6044 = vadd.f32 %v5914, %v6043
        %v6045 = vpop.f32.mrb[0].mxu0
        %v6046 = vadd.f32 %v5919, %v6045
        %v6047 = vpop.f32.mrb[0].mxu0
        %v6048 = vadd.f32 %v5919, %v6047
        %6049 = vdwg.mxu0
        %6050 = vmatprep.subr.bf16.mxu0 %v5829
        %6051 = vmatpush1.bf16.msra.mxu0 %v5828
        %6052 = vmatprep.subr.bf16.mxu0 %v5831
        %6053 = vmatpush1.bf16.msra.mxu0 %v5830
        %6054 = vmatprep.subr.bf16.mxu0 %v5833
        %6055 = vmatpush1.bf16.msra.mxu0 %v5832
        %6056 = vmatprep.subr.bf16.mxu0 %v5835
        %6057 = vmatpush1.bf16.msra.mxu0 %v5834
        %6058 = vmatprep.subr.bf16.mxu0 %v5837
        %6059 = vmatpush1.bf16.msra.mxu0 %v5836
        %6060 = vmatprep.subr.bf16.mxu0 %v5839
        %6061 = vmatpush1.bf16.msra.mxu0 %v5838
        %6062 = vmatprep.subr.bf16.mxu0 %v5841
        %6063 = vmatpush1.bf16.msra.mxu0 %v5840
        %6064 = vmatprep.subr.bf16.mxu0 %v5843
        %6065 = vmatpush1.bf16.msra.mxu0 %v5842
        %6066 = vmatprep.subr.bf16.mxu0 %v5845
        %6067 = vmatpush1.bf16.msra.mxu0 %v5844
        %6068 = vmatprep.subr.bf16.mxu0 %v5847
        %6069 = vmatpush1.bf16.msra.mxu0 %v5846
        %6070 = vmatprep.subr.bf16.mxu0 %v5849
        %6071 = vmatpush1.bf16.msra.mxu0 %v5848
        %6072 = vmatprep.subr.bf16.mxu0 %v5851
        %6073 = vmatpush1.bf16.msra.mxu0 %v5850
        %6074 = vmatprep.subr.bf16.mxu0 %v5853
        %6075 = vmatpush1.bf16.msra.mxu0 %v5852
        %6076 = vmatprep.subr.bf16.mxu0 %v5855
        %6077 = vmatpush1.bf16.msra.mxu0 %v5854
        %6078 = vmatprep.subr.bf16.mxu0 %v5857
        %6079 = vmatpush1.bf16.msra.mxu0 %v5856
        %6080 = vmatprep.subr.bf16.mxu0 %v5859
        %6081 = vmatpush1.bf16.msra.mxu0 %v5858
        %6082 = vmatprep.mubr.bf16.mxu0 %v5968
        %6083 = vmatmul.mubr.bf16.gmra.mrb[0].mxu0 %v5967
        %v6084 = vpop.f32.mrb[0].mxu0
        %v6085 = vadd.f32 %v6032, %v6084
        %v6086 = vpop.f32.mrb[0].mxu0
        %v6087 = vadd.f32 %v6034, %v6086
        %v6088 = vpop.f32.mrb[0].mxu0
        %v6089 = vadd.f32 %v6036, %v6088
        %v6090 = vpop.f32.mrb[0].mxu0
        %v6091 = vadd.f32 %v6038, %v6090
        %6092 = vmatprep.mubr.bf16.mxu0 %v5975
        %6093 = vmatmul.mubr.bf16.gmra.mrb[0].mxu0 %v5974
        %v6094 = vpop.f32.mrb[0].mxu0
        %v6095 = vadd.f32 %v6042, %v6094
        %v6096 = vpop.f32.mrb[0].mxu0
        %v6097 = vadd.f32 %v6044, %v6096
        %v6098 = vpop.f32.mrb[0].mxu0
        %v6099 = vadd.f32 %v6046, %v6098
        %v6100 = vpop.f32.mrb[0].mxu0
        %v6101 = vadd.f32 %v6048, %v6100
        %6102 = vdwg.mxu0
        %6103 = vmatprep.subr.bf16.mxu0 %v5861
        %6104 = vmatpush1.bf16.msra.mxu0 %v5860
        %6105 = vmatprep.subr.bf16.mxu0 %v5863
        %6106 = vmatpush1.bf16.msra.mxu0 %v5862
        %6107 = vmatprep.subr.bf16.mxu0 %v5865
        %6108 = vmatpush1.bf16.msra.mxu0 %v5864
        %6109 = vmatprep.subr.bf16.mxu0 %v5867
        %6110 = vmatpush1.bf16.msra.mxu0 %v5866
        %6111 = vmatprep.subr.bf16.mxu0 %v5869
        %6112 = vmatpush1.bf16.msra.mxu0 %v5868
        %6113 = vmatprep.subr.bf16.mxu0 %v5871
        %6114 = vmatpush1.bf16.msra.mxu0 %v5870
        %6115 = vmatprep.subr.bf16.mxu0 %v5873
        %6116 = vmatpush1.bf16.msra.mxu0 %v5872
        %6117 = vmatprep.subr.bf16.mxu0 %v5875
        %6118 = vmatpush1.bf16.msra.mxu0 %v5874
        %6119 = vmatprep.subr.bf16.mxu0 %v5877
        %6120 = vmatpush1.bf16.msra.mxu0 %v5876
        %6121 = vmatprep.subr.bf16.mxu0 %v5879
        %6122 = vmatpush1.bf16.msra.mxu0 %v5878
        %6123 = vmatprep.subr.bf16.mxu0 %v5881
        %6124 = vmatpush1.bf16.msra.mxu0 %v5880
        %6125 = vmatprep.subr.bf16.mxu0 %v5883
        %6126 = vmatpush1.bf16.msra.mxu0 %v5882
        %6127 = vmatprep.subr.bf16.mxu0 %v5885
        %6128 = vmatpush1.bf16.msra.mxu0 %v5884
        %6129 = vmatprep.subr.bf16.mxu0 %v5887
        %6130 = vmatpush1.bf16.msra.mxu0 %v5886
        %6131 = vmatprep.subr.bf16.mxu0 %v5889
        %6132 = vmatpush1.bf16.msra.mxu0 %v5888
        %6133 = vmatprep.subr.bf16.mxu0 %v5891
        %6134 = vmatpush1.bf16.msra.mxu0 %v5890
        %6135 = vmatprep.mubr.bf16.mxu0 %v5970
        %6136 = vmatmul.mubr.bf16.gmra.mrb[0].mxu0 %v5969
        %v6137 = vpop.f32.mrb[0].mxu0
        %v6138 = vadd.f32 %v6085, %v6137
        %v6139 = vpop.f32.mrb[0].mxu0
        %v6140 = vadd.f32 %v6087, %v6139
        %v6141 = vpop.f32.mrb[0].mxu0
        %v6142 = vadd.f32 %v6089, %v6141
        %v6143 = vpop.f32.mrb[0].mxu0
        %v6144 = vadd.f32 %v6091, %v6143
        %6145 = vmatprep.mubr.bf16.mxu0 %v5977
        %6146 = vmatmul.mubr.bf16.gmra.mrb[0].mxu0 %v5976
        %v6147 = vpop.f32.mrb[0].mxu0
        %v6148 = vadd.f32 %v6095, %v6147
        %v6149 = vpop.f32.mrb[0].mxu0
        %v6150 = vadd.f32 %v6097, %v6149
        %v6151 = vpop.f32.mrb[0].mxu0
        %v6152 = vadd.f32 %v6099, %v6151
        %v6153 = vpop.f32.mrb[0].mxu0
        %v6154 = vadd.f32 %v6101, %v6153
        %6155 = vdwg.mxu0
        %6156 = vmatprep.subr.bf16.mxu0 %v5893
        %6157 = vmatpush1.bf16.msra.mxu0 %v5892
        %6158 = vmatprep.subr.bf16.mxu0 %v5895
        %6159 = vmatpush1.bf16.msra.mxu0 %v5894
        %6160 = vmatprep.subr.bf16.mxu0 0
        %6161 = vmatpush1.bf16.msra.mxu0 0
        %6162 = vmatprep.subr.bf16.mxu0 0
        %6163 = vmatpush1.bf16.msra.mxu0 0
        %6164 = vmatprep.subr.bf16.mxu0 0
        %6165 = vmatpush1.bf16.msra.mxu0 0
        %6166 = vmatprep.subr.bf16.mxu0 0
        %6167 = vmatpush1.bf16.msra.mxu0 0
        %6168 = vmatprep.subr.bf16.mxu0 0
        %6169 = vmatpush1.bf16.msra.mxu0 0
        %6170 = vmatprep.subr.bf16.mxu0 0
        %6171 = vmatpush1.bf16.msra.mxu0 0
        %6172 = vmatprep.subr.bf16.mxu0 0
        %6173 = vmatpush1.bf16.msra.mxu0 0
        %6174 = vmatprep.subr.bf16.mxu0 0
        %6175 = vmatpush1.bf16.msra.mxu0 0
        %6176 = vmatprep.subr.bf16.mxu0 0
        %6177 = vmatpush1.bf16.msra.mxu0 0
        %6178 = vmatprep.subr.bf16.mxu0 0
        %6179 = vmatpush1.bf16.msra.mxu0 0
        %6180 = vmatprep.subr.bf16.mxu0 0
        %6181 = vmatpush1.bf16.msra.mxu0 0
        %6182 = vmatprep.subr.bf16.mxu0 0
        %6183 = vmatpush1.bf16.msra.mxu0 0
        %6184 = vmatprep.subr.bf16.mxu0 0
        %6185 = vmatpush1.bf16.msra.mxu0 0
        %6186 = vmatprep.subr.bf16.mxu0 0
        %6187 = vmatpush1.bf16.msra.mxu0 0
        %6188 = vmatprep.mubr.bf16.mxu0 0
        %6189 = vmatmul.mubr.bf16.gmra.mrb[0].mxu0 %v5992
        %v6190 = vpop.f32.mrb[0].mxu0
        %v6191 = vadd.f32 %v6138, %v6190
        %v6192 = vpop.f32.mrb[0].mxu0
        %v6193 = vadd.f32 %v6140, %v6192
        %v6194 = vpop.f32.mrb[0].mxu0
        %v6195 = vadd.f32 %v6142, %v6194
        %v6196 = vpop.f32.mrb[0].mxu0
        %v6197 = vadd.f32 %v6144, %v6196
        %6198 = vmatprep.mubr.bf16.mxu0 0
        %6199 = vmatmul.mubr.bf16.gmra.mrb[0].mxu0 %v5995
        %v6200 = vpop.f32.mrb[0].mxu0
        %v6201 = vadd.f32 %v6148, %v6200
        %v6202 = vpop.f32.mrb[0].mxu0
        %v6203 = vadd.f32 %v6150, %v6202
        %v6204 = vpop.f32.mrb[0].mxu0
        %v6205 = vadd.f32 %v6152, %v6204
        %v6206 = vpop.f32.mrb[0].mxu0
        %v6207 = vadd.f32 %v6154, %v6206
        %6208 = vdwg.mxu0
        %v6209 = vmax.f32 %v6191, 0.0
        %v6210 = vmax.f32 %v6193, 0.0
        %v6211 = vmax.f32 %v6195, 0.0
        %v6212 = vmax.f32 %v6197, 0.0
        %v6213 = vmax.f32 %v6201, 0.0
        %v6214 = vmax.f32 %v6203, 0.0
        %v6215 = vmax.f32 %v6205, 0.0
        %v6216 = vmax.f32 %v6207, 0.0
        %v6217 = vpack.c.bf16 %v6211, %v6209
        %v6218 = vpack.c.bf16 %v6212, %v6210
        %v6219 = vpack.c.bf16 %v6215, %v6213
        %v6220 = vpack.c.bf16 %v6216, %v6214
        %6221 = vst [vmem:[#allocation2 + $0x8] sm:$0xff] %v6217
        %6222 = vst [vmem:[#allocation2 + $0x10] sm:$0xff] %v6218
        %6223 = vst [vmem:[#allocation2 + $0x28] sm:$0xff] %v6219
        %6224 = vst [vmem:[#allocation2 + $0x30] sm:$0xff] %v6220
        %s6225 = scalar_lea.vmem [#allocation4], 448
        %v6226 = vld [vmem:[%s6225] sm:$0xff]
        %v6227 = vld [vmem:[%s6225 + $0x8] sm:$0xff]
        %v6228 = vld [vmem:[%s6225 + $0x10] sm:$0xff]
        %v6229 = vld [vmem:[%s6225 + $0x18] sm:$0xf]
        %v6230 = vld [vmem:[%s6225 + $0x1c] sm:$0xff]
        %v6231 = vld [vmem:[%s6225 + $0x24] sm:$0xff]
        %v6232 = vld [vmem:[%s6225 + $0x2c] sm:$0xff]
        %v6233 = vld [vmem:[%s6225 + $0x34] sm:$0xf]
        %v6234 = vld [vmem:[%s6225 + $0x38] sm:$0xff]
        %v6235 = vld [vmem:[%s6225 + $0x40] sm:$0xff]
        %v6236 = vld [vmem:[%s6225 + $0x48] sm:$0xff]
        %v6237 = vld [vmem:[%s6225 + $0x50] sm:$0xf]
        %v6238 = vld [vmem:[%s6225 + $0x54] sm:$0xff]
        %v6239 = vld [vmem:[%s6225 + $0x5c] sm:$0xff]
        %v6240 = vld [vmem:[%s6225 + $0x64] sm:$0xff]
        %v6241 = vld [vmem:[%s6225 + $0x6c] sm:$0xf]
        %v6242 = vld [vmem:[#allocation2] sm:$0xff]
        %v6243 = vld [vmem:[#allocation2 + $0x8] sm:$0xff]
        %v6244 = vld [vmem:[#allocation2 + $0x10] sm:$0xff]
        %v6245 = vld [vmem:[#allocation2 + $0x20] sm:$0xff]
        %v6246 = vld [vmem:[#allocation2 + $0x28] sm:$0xff]
        %v6247 = vld [vmem:[#allocation2 + $0x30] sm:$0xff]
        %v6248 = vmul.bf16 %v6242, %v277
        %v6249 = vmul.bf16 %v6243, %v281
        %v6250 = vmul.bf16 %v6244, %v279
        %v6251 = vmul.bf16 %v6245, %v277
        %v6252 = vmul.bf16 %v6246, %v281
        %v6253 = vmul.bf16 %v6247, %v279
        %6260 = vrot.lane.b32.xlu0 %v6248, 34
        %v6261 = vpop.permute.xlu0 %6260
        %6262 = vrot.lane.b32.xlu0 %v6249, 34
        %v6263 = vpop.permute.xlu0 %6262
        %6264 = vrot.lane.b32.xlu0 %v6250, 34
        %v6265 = vpop.permute.xlu0 %6264
        %6266 = vrot.lane.b32.xlu0 %v6251, 34
        %v6267 = vpop.permute.xlu0 %6266
        %6268 = vrot.lane.b32.xlu0 %v6252, 34
        %v6269 = vpop.permute.xlu0 %6268
        %6270 = vrot.lane.b32.xlu0 %v6253, 34
        %v6271 = vpop.permute.xlu0 %6270
        %v6272 = vsel %vm309, %v6261, %v6263
        %v6273 = vsel %vm309, %v6263, %v6265
        %v6274 = vsel %vm309, %v6267, %v6269
        %v6275 = vsel %vm309, %v6269, %v6271
        %6280 = vst [vmem:[#allocation3] sm:$0xff] %v6272
        %6281 = vst [vmem:[#allocation3 + $0x8] sm:$0xff] %v6273
        %6282 = vst [vmem:[#allocation3 + $0x10] sm:$0xff] %v6274
        %6283 = vst [vmem:[#allocation3 + $0x18] sm:$0xff] %v6275
        %v6284 = vld [vmem:[#allocation2] sm:$0xff]
        %v6285 = vld [vmem:[#allocation2 + $0x8] sm:$0xff]
        %v6286 = vld [vmem:[#allocation2 + $0x10] sm:$0xff]
        %v6287 = vld [vmem:[#allocation2 + $0x20] sm:$0xff]
        %v6288 = vld [vmem:[#allocation2 + $0x28] sm:$0xff]
        %v6289 = vld [vmem:[#allocation2 + $0x30] sm:$0xff]
        %v6290 = vmul.bf16 %v6284, %v345
        %v6291 = vmul.bf16 %v6285, %v349
        %v6292 = vmul.bf16 %v6286, %v347
        %v6293 = vmul.bf16 %v6287, %v345
        %v6294 = vmul.bf16 %v6288, %v349
        %v6295 = vmul.bf16 %v6289, %v347
        %6302 = vrot.lane.b32.xlu0 %v6290, 33
        %v6303 = vpop.permute.xlu0 %6302
        %6304 = vrot.lane.b32.xlu0 %v6291, 33
        %v6305 = vpop.permute.xlu0 %6304
        %6306 = vrot.lane.b32.xlu0 %v6292, 33
        %v6307 = vpop.permute.xlu0 %6306
        %6308 = vrot.lane.b32.xlu0 %v6293, 33
        %v6309 = vpop.permute.xlu0 %6308
        %6310 = vrot.lane.b32.xlu0 %v6294, 33
        %v6311 = vpop.permute.xlu0 %6310
        %6312 = vrot.lane.b32.xlu0 %v6295, 33
        %v6313 = vpop.permute.xlu0 %6312
        %v6314 = vsel %vm377, %v6303, %v6305
        %v6315 = vsel %vm377, %v6305, %v6307
        %v6316 = vsel %vm377, %v6309, %v6311
        %v6317 = vsel %vm377, %v6311, %v6313
        %6322 = vst [vmem:[#allocation3 + $0x20] sm:$0xff] %v6314
        %6323 = vst [vmem:[#allocation3 + $0x28] sm:$0xff] %v6315
        %6324 = vst [vmem:[#allocation3 + $0x30] sm:$0xff] %v6316
        %6325 = vst [vmem:[#allocation3 + $0x38] sm:$0xff] %v6317
        %v6326 = vld [vmem:[#allocation2] sm:$0xff]
        %v6327 = vld [vmem:[#allocation2 + $0x8] sm:$0xff]
        %v6328 = vld [vmem:[#allocation2 + $0x10] sm:$0xff]
        %v6329 = vld [vmem:[#allocation2 + $0x20] sm:$0xff]
        %v6330 = vld [vmem:[#allocation2 + $0x28] sm:$0xff]
        %v6331 = vld [vmem:[#allocation2 + $0x30] sm:$0xff]
        %6338 = vrot.lane.b32.xlu0 %v6326, 32
        %v6339 = vpop.permute.xlu0 %6338
        %6340 = vrot.lane.b32.xlu0 %v6327, 32
        %v6341 = vpop.permute.xlu0 %6340
        %6342 = vrot.lane.b32.xlu0 %v6328, 32
        %v6343 = vpop.permute.xlu0 %6342
        %6344 = vrot.lane.b32.xlu0 %v6329, 32
        %v6345 = vpop.permute.xlu0 %6344
        %6346 = vrot.lane.b32.xlu0 %v6330, 32
        %v6347 = vpop.permute.xlu0 %6346
        %6348 = vrot.lane.b32.xlu0 %v6331, 32
        %v6349 = vpop.permute.xlu0 %6348
        %v6350 = vsel %vm414, %v6339, %v6341
        %v6351 = vsel %vm414, %v6341, %v6343
        %v6352 = vsel %vm414, %v6345, %v6347
        %v6353 = vsel %vm414, %v6347, %v6349
        %6358 = vst [vmem:[#allocation3 + $0x40] sm:$0xff] %v6350
        %6359 = vst [vmem:[#allocation3 + $0x48] sm:$0xff] %v6351
        %6360 = vst [vmem:[#allocation3 + $0x50] sm:$0xff] %v6352
        %6361 = vst [vmem:[#allocation3 + $0x58] sm:$0xff] %v6353
        %v6362 = vld [vmem:[#allocation2] sm:$0xff]
        %v6363 = vld [vmem:[#allocation2 + $0x8] sm:$0xff]
        %v6364 = vld [vmem:[#allocation2 + $0x10] sm:$0xff]
        %v6365 = vld [vmem:[#allocation2 + $0x20] sm:$0xff]
        %v6366 = vld [vmem:[#allocation2 + $0x28] sm:$0xff]
        %v6367 = vld [vmem:[#allocation2 + $0x30] sm:$0xff]
        %v6368 = vmul.bf16 %v6362, %v444
        %v6369 = vmul.bf16 %v6363, %v448
        %v6370 = vmul.bf16 %v6364, %v446
        %v6371 = vmul.bf16 %v6365, %v444
        %v6372 = vmul.bf16 %v6366, %v448
        %v6373 = vmul.bf16 %v6367, %v446
        %6380 = vrot.lane.b32.xlu0 %v6368, 31
        %v6381 = vpop.permute.xlu0 %6380
        %6382 = vrot.lane.b32.xlu0 %v6369, 31
        %v6383 = vpop.permute.xlu0 %6382
        %6384 = vrot.lane.b32.xlu0 %v6370, 31
        %v6385 = vpop.permute.xlu0 %6384
        %6386 = vrot.lane.b32.xlu0 %v6371, 31
        %v6387 = vpop.permute.xlu0 %6386
        %6388 = vrot.lane.b32.xlu0 %v6372, 31
        %v6389 = vpop.permute.xlu0 %6388
        %6390 = vrot.lane.b32.xlu0 %v6373, 31
        %v6391 = vpop.permute.xlu0 %6390
        %v6392 = vsel %vm476, %v6381, %v6383
        %v6393 = vsel %vm476, %v6383, %v6385
        %v6394 = vsel %vm476, %v6387, %v6389
        %v6395 = vsel %vm476, %v6389, %v6391
        %6400 = vst [vmem:[#allocation3 + $0x60] sm:$0xff] %v6392
        %6401 = vst [vmem:[#allocation3 + $0x68] sm:$0xff] %v6393
        %6402 = vst [vmem:[#allocation3 + $0x70] sm:$0xff] %v6394
        %6403 = vst [vmem:[#allocation3 + $0x78] sm:$0xff] %v6395
        %v6404 = vld [vmem:[#allocation2] sm:$0xff]
        %v6405 = vld [vmem:[#allocation2 + $0x8] sm:$0xff]
        %v6406 = vld [vmem:[#allocation2 + $0x10] sm:$0xff]
        %v6407 = vld [vmem:[#allocation2 + $0x20] sm:$0xff]
        %v6408 = vld [vmem:[#allocation2 + $0x28] sm:$0xff]
        %v6409 = vld [vmem:[#allocation2 + $0x30] sm:$0xff]
        %v6410 = vmul.bf16 %v6404, %v506
        %v6411 = vmul.bf16 %v6405, %v510
        %v6412 = vmul.bf16 %v6406, %v508
        %v6413 = vmul.bf16 %v6407, %v506
        %v6414 = vmul.bf16 %v6408, %v510
        %v6415 = vmul.bf16 %v6409, %v508
        %6422 = vrot.lane.b32.xlu0 %v6410, 30
        %v6423 = vpop.permute.xlu0 %6422
        %6424 = vrot.lane.b32.xlu0 %v6411, 30
        %v6425 = vpop.permute.xlu0 %6424
        %6426 = vrot.lane.b32.xlu0 %v6412, 30
        %v6427 = vpop.permute.xlu0 %6426
        %6428 = vrot.lane.b32.xlu0 %v6413, 30
        %v6429 = vpop.permute.xlu0 %6428
        %6430 = vrot.lane.b32.xlu0 %v6414, 30
        %v6431 = vpop.permute.xlu0 %6430
        %6432 = vrot.lane.b32.xlu0 %v6415, 30
        %v6433 = vpop.permute.xlu0 %6432
        %v6434 = vsel %vm538, %v6423, %v6425
        %v6435 = vsel %vm538, %v6425, %v6427
        %v6436 = vsel %vm538, %v6429, %v6431
        %v6437 = vsel %vm538, %v6431, %v6433
        %6442 = vst [vmem:[#allocation3 + $0x80] sm:$0xff] %v6434
        %6443 = vst [vmem:[#allocation3 + $0x88] sm:$0xff] %v6435
        %6444 = vst [vmem:[#allocation3 + $0x90] sm:$0xff] %v6436
        %6445 = vst [vmem:[#allocation3 + $0x98] sm:$0xff] %v6437
        %v6446 = vld [vmem:[#allocation2] sm:$0xff]
        %v6447 = vld [vmem:[#allocation2 + $0x8] sm:$0xff]
        %v6448 = vld [vmem:[#allocation2 + $0x10] sm:$0xff]
        %v6449 = vld [vmem:[#allocation2 + $0x20] sm:$0xff]
        %v6450 = vld [vmem:[#allocation2 + $0x28] sm:$0xff]
        %v6451 = vld [vmem:[#allocation2 + $0x30] sm:$0xff]
        %v6452 = vmul.bf16 %v6446, %v558
        %v6453 = vmul.bf16 %v6447, %v562
        %v6454 = vmul.bf16 %v6448, %v560
        %v6455 = vmul.bf16 %v6449, %v558
        %v6456 = vmul.bf16 %v6450, %v562
        %v6457 = vmul.bf16 %v6451, %v560
        %6464 = vrot.lane.b32.xlu0 %v6452, 18
        %v6465 = vpop.permute.xlu0 %6464
        %6466 = vrot.lane.b32.xlu0 %v6453, 18
        %v6467 = vpop.permute.xlu0 %6466
        %6468 = vrot.lane.b32.xlu0 %v6454, 18
        %v6469 = vpop.permute.xlu0 %6468
        %6470 = vrot.lane.b32.xlu0 %v6455, 18
        %v6471 = vpop.permute.xlu0 %6470
        %6472 = vrot.lane.b32.xlu0 %v6456, 18
        %v6473 = vpop.permute.xlu0 %6472
        %6474 = vrot.lane.b32.xlu0 %v6457, 18
        %v6475 = vpop.permute.xlu0 %6474
        %v6476 = vsel %vm590, %v6465, %v6467
        %v6477 = vsel %vm590, %v6467, %v6469
        %v6478 = vsel %vm590, %v6471, %v6473
        %v6479 = vsel %vm590, %v6473, %v6475
        %6484 = vst [vmem:[#allocation3 + $0xa0] sm:$0xff] %v6476
        %6485 = vst [vmem:[#allocation3 + $0xa8] sm:$0xff] %v6477
        %6486 = vst [vmem:[#allocation3 + $0xb0] sm:$0xff] %v6478
        %6487 = vst [vmem:[#allocation3 + $0xb8] sm:$0xff] %v6479
        %v6488 = vld [vmem:[#allocation2] sm:$0xff]
        %v6489 = vld [vmem:[#allocation2 + $0x8] sm:$0xff]
        %v6490 = vld [vmem:[#allocation2 + $0x10] sm:$0xff]
        %v6491 = vld [vmem:[#allocation2 + $0x20] sm:$0xff]
        %v6492 = vld [vmem:[#allocation2 + $0x28] sm:$0xff]
        %v6493 = vld [vmem:[#allocation2 + $0x30] sm:$0xff]
        %v6494 = vmul.bf16 %v6488, %v610
        %v6495 = vmul.bf16 %v6489, %v614
        %v6496 = vmul.bf16 %v6490, %v612
        %v6497 = vmul.bf16 %v6491, %v610
        %v6498 = vmul.bf16 %v6492, %v614
        %v6499 = vmul.bf16 %v6493, %v612
        %6506 = vrot.lane.b32.xlu0 %v6494, 17
        %v6507 = vpop.permute.xlu0 %6506
        %6508 = vrot.lane.b32.xlu0 %v6495, 17
        %v6509 = vpop.permute.xlu0 %6508
        %6510 = vrot.lane.b32.xlu0 %v6496, 17
        %v6511 = vpop.permute.xlu0 %6510
        %6512 = vrot.lane.b32.xlu0 %v6497, 17
        %v6513 = vpop.permute.xlu0 %6512
        %6514 = vrot.lane.b32.xlu0 %v6498, 17
        %v6515 = vpop.permute.xlu0 %6514
        %6516 = vrot.lane.b32.xlu0 %v6499, 17
        %v6517 = vpop.permute.xlu0 %6516
        %v6518 = vsel %vm642, %v6507, %v6509
        %v6519 = vsel %vm642, %v6509, %v6511
        %v6520 = vsel %vm642, %v6513, %v6515
        %v6521 = vsel %vm642, %v6515, %v6517
        %6526 = vst [vmem:[#allocation3 + $0xc0] sm:$0xff] %v6518
        %6527 = vst [vmem:[#allocation3 + $0xc8] sm:$0xff] %v6519
        %6528 = vst [vmem:[#allocation3 + $0xd0] sm:$0xff] %v6520
        %6529 = vst [vmem:[#allocation3 + $0xd8] sm:$0xff] %v6521
        %v6530 = vld [vmem:[#allocation2] sm:$0xff]
        %v6531 = vld [vmem:[#allocation2 + $0x8] sm:$0xff]
        %v6532 = vld [vmem:[#allocation2 + $0x10] sm:$0xff]
        %v6533 = vld [vmem:[#allocation2 + $0x20] sm:$0xff]
        %v6534 = vld [vmem:[#allocation2 + $0x28] sm:$0xff]
        %v6535 = vld [vmem:[#allocation2 + $0x30] sm:$0xff]
        %6542 = vrot.lane.b32.xlu0 %v6530, 16
        %v6543 = vpop.permute.xlu0 %6542
        %6544 = vrot.lane.b32.xlu0 %v6531, 16
        %v6545 = vpop.permute.xlu0 %6544
        %6546 = vrot.lane.b32.xlu0 %v6532, 16
        %v6547 = vpop.permute.xlu0 %6546
        %6548 = vrot.lane.b32.xlu0 %v6533, 16
        %v6549 = vpop.permute.xlu0 %6548
        %6550 = vrot.lane.b32.xlu0 %v6534, 16
        %v6551 = vpop.permute.xlu0 %6550
        %6552 = vrot.lane.b32.xlu0 %v6535, 16
        %v6553 = vpop.permute.xlu0 %6552
        %v6554 = vsel %vm679, %v6543, %v6545
        %v6555 = vsel %vm679, %v6545, %v6547
        %v6556 = vsel %vm679, %v6549, %v6551
        %v6557 = vsel %vm679, %v6551, %v6553
        %6562 = vst [vmem:[#allocation3 + $0xe0] sm:$0xff] %v6554
        %6563 = vst [vmem:[#allocation3 + $0xe8] sm:$0xff] %v6555
        %6564 = vst [vmem:[#allocation3 + $0xf0] sm:$0xff] %v6556
        %6565 = vst [vmem:[#allocation3 + $0xf8] sm:$0xff] %v6557
        %v6566 = vld [vmem:[#allocation2] sm:$0xff]
        %v6567 = vld [vmem:[#allocation2 + $0x8] sm:$0xff]
        %v6568 = vld [vmem:[#allocation2 + $0x10] sm:$0xff]
        %v6569 = vld [vmem:[#allocation2 + $0x20] sm:$0xff]
        %v6570 = vld [vmem:[#allocation2 + $0x28] sm:$0xff]
        %v6571 = vld [vmem:[#allocation2 + $0x30] sm:$0xff]
        %v6572 = vmul.bf16 %v6566, %v699
        %v6573 = vmul.bf16 %v6567, %v703
        %v6574 = vmul.bf16 %v6568, %v701
        %v6575 = vmul.bf16 %v6569, %v699
        %v6576 = vmul.bf16 %v6570, %v703
        %v6577 = vmul.bf16 %v6571, %v701
        %6584 = vrot.lane.b32.xlu0 %v6572, 15
        %v6585 = vpop.permute.xlu0 %6584
        %6586 = vrot.lane.b32.xlu0 %v6573, 15
        %v6587 = vpop.permute.xlu0 %6586
        %6588 = vrot.lane.b32.xlu0 %v6574, 15
        %v6589 = vpop.permute.xlu0 %6588
        %6590 = vrot.lane.b32.xlu0 %v6575, 15
        %v6591 = vpop.permute.xlu0 %6590
        %6592 = vrot.lane.b32.xlu0 %v6576, 15
        %v6593 = vpop.permute.xlu0 %6592
        %6594 = vrot.lane.b32.xlu0 %v6577, 15
        %v6595 = vpop.permute.xlu0 %6594
        %v6596 = vsel %vm731, %v6585, %v6587
        %v6597 = vsel %vm731, %v6587, %v6589
        %v6598 = vsel %vm731, %v6591, %v6593
        %v6599 = vsel %vm731, %v6593, %v6595
        %6604 = vst [vmem:[#allocation3 + $0x100] sm:$0xff] %v6596
        %6605 = vst [vmem:[#allocation3 + $0x108] sm:$0xff] %v6597
        %6606 = vst [vmem:[#allocation3 + $0x110] sm:$0xff] %v6598
        %6607 = vst [vmem:[#allocation3 + $0x118] sm:$0xff] %v6599
        %v6608 = vld [vmem:[#allocation2] sm:$0xff]
        %v6609 = vld [vmem:[#allocation2 + $0x8] sm:$0xff]
        %v6610 = vld [vmem:[#allocation2 + $0x10] sm:$0xff]
        %v6611 = vld [vmem:[#allocation2 + $0x20] sm:$0xff]
        %v6612 = vld [vmem:[#allocation2 + $0x28] sm:$0xff]
        %v6613 = vld [vmem:[#allocation2 + $0x30] sm:$0xff]
        %v6614 = vmul.bf16 %v6608, %v751
        %v6615 = vmul.bf16 %v6609, %v755
        %v6616 = vmul.bf16 %v6610, %v753
        %v6617 = vmul.bf16 %v6611, %v751
        %v6618 = vmul.bf16 %v6612, %v755
        %v6619 = vmul.bf16 %v6613, %v753
        %6626 = vrot.lane.b32.xlu0 %v6614, 14
        %v6627 = vpop.permute.xlu0 %6626
        %6628 = vrot.lane.b32.xlu0 %v6615, 14
        %v6629 = vpop.permute.xlu0 %6628
        %6630 = vrot.lane.b32.xlu0 %v6616, 14
        %v6631 = vpop.permute.xlu0 %6630
        %6632 = vrot.lane.b32.xlu0 %v6617, 14
        %v6633 = vpop.permute.xlu0 %6632
        %6634 = vrot.lane.b32.xlu0 %v6618, 14
        %v6635 = vpop.permute.xlu0 %6634
        %6636 = vrot.lane.b32.xlu0 %v6619, 14
        %v6637 = vpop.permute.xlu0 %6636
        %v6638 = vsel %vm783, %v6627, %v6629
        %v6639 = vsel %vm783, %v6629, %v6631
        %v6640 = vsel %vm783, %v6633, %v6635
        %v6641 = vsel %vm783, %v6635, %v6637
        %6646 = vst [vmem:[#allocation3 + $0x120] sm:$0xff] %v6638
        %6647 = vst [vmem:[#allocation3 + $0x128] sm:$0xff] %v6639
        %6648 = vst [vmem:[#allocation3 + $0x130] sm:$0xff] %v6640
        %6649 = vst [vmem:[#allocation3 + $0x138] sm:$0xff] %v6641
        %v6650 = vld [vmem:[#allocation2] sm:$0xff]
        %v6651 = vld [vmem:[#allocation2 + $0x8] sm:$0xff]
        %v6652 = vld [vmem:[#allocation2 + $0x10] sm:$0xff]
        %v6653 = vld [vmem:[#allocation2 + $0x20] sm:$0xff]
        %v6654 = vld [vmem:[#allocation2 + $0x28] sm:$0xff]
        %v6655 = vld [vmem:[#allocation2 + $0x30] sm:$0xff]
        %v6656 = vmul.bf16 %v6650, %v803
        %v6657 = vmul.bf16 %v6651, %v807
        %v6658 = vmul.bf16 %v6652, %v805
        %v6659 = vmul.bf16 %v6653, %v803
        %v6660 = vmul.bf16 %v6654, %v807
        %v6661 = vmul.bf16 %v6655, %v805
        %6668 = vrot.lane.b32.xlu0 %v6656, 2
        %v6669 = vpop.permute.xlu0 %6668
        %6670 = vrot.lane.b32.xlu0 %v6657, 2
        %v6671 = vpop.permute.xlu0 %6670
        %6672 = vrot.lane.b32.xlu0 %v6658, 2
        %v6673 = vpop.permute.xlu0 %6672
        %6674 = vrot.lane.b32.xlu0 %v6659, 2
        %v6675 = vpop.permute.xlu0 %6674
        %6676 = vrot.lane.b32.xlu0 %v6660, 2
        %v6677 = vpop.permute.xlu0 %6676
        %6678 = vrot.lane.b32.xlu0 %v6661, 2
        %v6679 = vpop.permute.xlu0 %6678
        %v6680 = vsel %vm835, %v6669, %v6671
        %v6681 = vsel %vm835, %v6671, %v6673
        %v6682 = vsel %vm835, %v6675, %v6677
        %v6683 = vsel %vm835, %v6677, %v6679
        %6688 = vst [vmem:[#allocation3 + $0x140] sm:$0xff] %v6680
        %6689 = vst [vmem:[#allocation3 + $0x148] sm:$0xff] %v6681
        %6690 = vst [vmem:[#allocation3 + $0x150] sm:$0xff] %v6682
        %6691 = vst [vmem:[#allocation3 + $0x158] sm:$0xff] %v6683
        %v6692 = vld [vmem:[#allocation2] sm:$0xff]
        %v6693 = vld [vmem:[#allocation2 + $0x8] sm:$0xff]
        %v6694 = vld [vmem:[#allocation2 + $0x10] sm:$0xff]
        %v6695 = vld [vmem:[#allocation2 + $0x20] sm:$0xff]
        %v6696 = vld [vmem:[#allocation2 + $0x28] sm:$0xff]
        %v6697 = vld [vmem:[#allocation2 + $0x30] sm:$0xff]
        %v6698 = vmul.bf16 %v6692, %v855
        %v6699 = vmul.bf16 %v6693, %v859
        %v6700 = vmul.bf16 %v6694, %v857
        %v6701 = vmul.bf16 %v6695, %v855
        %v6702 = vmul.bf16 %v6696, %v859
        %v6703 = vmul.bf16 %v6697, %v857
        %6710 = vrot.lane.b32.xlu0 %v6698, 1
        %v6711 = vpop.permute.xlu0 %6710
        %6712 = vrot.lane.b32.xlu0 %v6699, 1
        %v6713 = vpop.permute.xlu0 %6712
        %6714 = vrot.lane.b32.xlu0 %v6700, 1
        %v6715 = vpop.permute.xlu0 %6714
        %6716 = vrot.lane.b32.xlu0 %v6701, 1
        %v6717 = vpop.permute.xlu0 %6716
        %6718 = vrot.lane.b32.xlu0 %v6702, 1
        %v6719 = vpop.permute.xlu0 %6718
        %6720 = vrot.lane.b32.xlu0 %v6703, 1
        %v6721 = vpop.permute.xlu0 %6720
        %v6722 = vsel %vm887, %v6711, %v6713
        %v6723 = vsel %vm887, %v6713, %v6715
        %v6724 = vsel %vm887, %v6717, %v6719
        %v6725 = vsel %vm887, %v6719, %v6721
        %6730 = vst [vmem:[#allocation3 + $0x160] sm:$0xff] %v6722
        %6731 = vst [vmem:[#allocation3 + $0x168] sm:$0xff] %v6723
        %6732 = vst [vmem:[#allocation3 + $0x170] sm:$0xff] %v6724
        %6733 = vst [vmem:[#allocation3 + $0x178] sm:$0xff] %v6725
        %v6734 = vld [vmem:[#allocation2 + $0x8] sm:$0xff]
        %v6735 = vld [vmem:[#allocation2 + $0x10] sm:$0xff]
        %v6736 = vld [vmem:[#allocation2 + $0x28] sm:$0xff]
        %v6737 = vld [vmem:[#allocation2 + $0x30] sm:$0xff]
        %6738 = vst [vmem:[#allocation3 + $0x180] sm:$0xff] %v6734
        %6739 = vst [vmem:[#allocation3 + $0x188] sm:$0xff] %v6735
        %6740 = vst [vmem:[#allocation3 + $0x190] sm:$0xff] %v6736
        %6741 = vst [vmem:[#allocation3 + $0x198] sm:$0xff] %v6737
        %v6742 = vld [vmem:[#allocation2 + $0x8] sm:$0xff]
        %v6743 = vld [vmem:[#allocation2 + $0x10] sm:$0xff]
        %v6744 = vld [vmem:[#allocation2 + $0x18] sm:$0xff]
        %v6745 = vld [vmem:[#allocation2 + $0x28] sm:$0xff]
        %v6746 = vld [vmem:[#allocation2 + $0x30] sm:$0xff]
        %v6747 = vld [vmem:[#allocation2 + $0x38] sm:$0xff]
        %v6748 = vmul.bf16 %v6742, %v915
        %v6749 = vmul.bf16 %v6743, %v918
        %v6750 = vmul.bf16 %v6744, %v917
        %v6751 = vmul.bf16 %v6745, %v915
        %v6752 = vmul.bf16 %v6746, %v918
        %v6753 = vmul.bf16 %v6747, %v917
        %6760 = vrot.lane.b32.xlu0 %v6748, 127
        %v6761 = vpop.permute.xlu0 %6760
        %6762 = vrot.lane.b32.xlu0 %v6749, 127
        %v6763 = vpop.permute.xlu0 %6762
        %6764 = vrot.lane.b32.xlu0 %v6750, 127
        %v6765 = vpop.permute.xlu0 %6764
        %6766 = vrot.lane.b32.xlu0 %v6751, 127
        %v6767 = vpop.permute.xlu0 %6766
        %6768 = vrot.lane.b32.xlu0 %v6752, 127
        %v6769 = vpop.permute.xlu0 %6768
        %6770 = vrot.lane.b32.xlu0 %v6753, 127
        %v6771 = vpop.permute.xlu0 %6770
        %v6772 = vsel %vm858, %v6761, %v6763
        %v6773 = vsel %vm858, %v6763, %v6765
        %v6774 = vsel %vm858, %v6767, %v6769
        %v6775 = vsel %vm858, %v6769, %v6771
        %6780 = vst [vmem:[#allocation3 + $0x1a0] sm:$0xff] %v6772
        %6781 = vst [vmem:[#allocation3 + $0x1a8] sm:$0xff] %v6773
        %6782 = vst [vmem:[#allocation3 + $0x1b0] sm:$0xff] %v6774
        %6783 = vst [vmem:[#allocation3 + $0x1b8] sm:$0xff] %v6775
        %v6784 = vld [vmem:[#allocation2 + $0x8] sm:$0xff]
        %v6785 = vld [vmem:[#allocation2 + $0x10] sm:$0xff]
        %v6786 = vld [vmem:[#allocation2 + $0x18] sm:$0xff]
        %v6787 = vld [vmem:[#allocation2 + $0x28] sm:$0xff]
        %v6788 = vld [vmem:[#allocation2 + $0x30] sm:$0xff]
        %v6789 = vld [vmem:[#allocation2 + $0x38] sm:$0xff]
        %v6790 = vmul.bf16 %v6784, %v965
        %v6791 = vmul.bf16 %v6785, %v968
        %v6792 = vmul.bf16 %v6786, %v967
        %v6793 = vmul.bf16 %v6787, %v965
        %v6794 = vmul.bf16 %v6788, %v968
        %v6795 = vmul.bf16 %v6789, %v967
        %6802 = vrot.lane.b32.xlu0 %v6790, 126
        %v6803 = vpop.permute.xlu0 %6802
        %6804 = vrot.lane.b32.xlu0 %v6791, 126
        %v6805 = vpop.permute.xlu0 %6804
        %6806 = vrot.lane.b32.xlu0 %v6792, 126
        %v6807 = vpop.permute.xlu0 %6806
        %6808 = vrot.lane.b32.xlu0 %v6793, 126
        %v6809 = vpop.permute.xlu0 %6808
        %6810 = vrot.lane.b32.xlu0 %v6794, 126
        %v6811 = vpop.permute.xlu0 %6810
        %6812 = vrot.lane.b32.xlu0 %v6795, 126
        %v6813 = vpop.permute.xlu0 %6812
        %v6814 = vsel %vm806, %v6803, %v6805
        %v6815 = vsel %vm806, %v6805, %v6807
        %v6816 = vsel %vm806, %v6809, %v6811
        %v6817 = vsel %vm806, %v6811, %v6813
        %6822 = vst [vmem:[#allocation3 + $0x1c0] sm:$0xff] %v6814
        %6823 = vst [vmem:[#allocation3 + $0x1c8] sm:$0xff] %v6815
        %6824 = vst [vmem:[#allocation3 + $0x1d0] sm:$0xff] %v6816
        %6825 = vst [vmem:[#allocation3 + $0x1d8] sm:$0xff] %v6817
        %v6826 = vld [vmem:[#allocation2 + $0x8] sm:$0xff]
        %v6827 = vld [vmem:[#allocation2 + $0x10] sm:$0xff]
        %v6828 = vld [vmem:[#allocation2 + $0x18] sm:$0xff]
        %v6829 = vld [vmem:[#allocation2 + $0x28] sm:$0xff]
        %v6830 = vld [vmem:[#allocation2 + $0x30] sm:$0xff]
        %v6831 = vld [vmem:[#allocation2 + $0x38] sm:$0xff]
        %v6832 = vmul.bf16 %v6826, %v1015
        %v6833 = vmul.bf16 %v6827, %v1018
        %v6834 = vmul.bf16 %v6828, %v1017
        %v6835 = vmul.bf16 %v6829, %v1015
        %v6836 = vmul.bf16 %v6830, %v1018
        %v6837 = vmul.bf16 %v6831, %v1017
        %6844 = vrot.lane.b32.xlu0 %v6832, 114
        %v6845 = vpop.permute.xlu0 %6844
        %6846 = vrot.lane.b32.xlu0 %v6833, 114
        %v6847 = vpop.permute.xlu0 %6846
        %6848 = vrot.lane.b32.xlu0 %v6834, 114
        %v6849 = vpop.permute.xlu0 %6848
        %6850 = vrot.lane.b32.xlu0 %v6835, 114
        %v6851 = vpop.permute.xlu0 %6850
        %6852 = vrot.lane.b32.xlu0 %v6836, 114
        %v6853 = vpop.permute.xlu0 %6852
        %6854 = vrot.lane.b32.xlu0 %v6837, 114
        %v6855 = vpop.permute.xlu0 %6854
        %v6856 = vsel %vm754, %v6845, %v6847
        %v6857 = vsel %vm754, %v6847, %v6849
        %v6858 = vsel %vm754, %v6851, %v6853
        %v6859 = vsel %vm754, %v6853, %v6855
        %6864 = vst [vmem:[#allocation3 + $0x1e0] sm:$0xff] %v6856
        %6865 = vst [vmem:[#allocation3 + $0x1e8] sm:$0xff] %v6857
        %6866 = vst [vmem:[#allocation3 + $0x1f0] sm:$0xff] %v6858
        %6867 = vst [vmem:[#allocation3 + $0x1f8] sm:$0xff] %v6859
        %v6868 = vld [vmem:[#allocation2 + $0x8] sm:$0xff]
        %v6869 = vld [vmem:[#allocation2 + $0x10] sm:$0xff]
        %v6870 = vld [vmem:[#allocation2 + $0x18] sm:$0xff]
        %v6871 = vld [vmem:[#allocation2 + $0x28] sm:$0xff]
        %v6872 = vld [vmem:[#allocation2 + $0x30] sm:$0xff]
        %v6873 = vld [vmem:[#allocation2 + $0x38] sm:$0xff]
        %v6874 = vmul.bf16 %v6868, %v1065
        %v6875 = vmul.bf16 %v6869, %v1068
        %v6876 = vmul.bf16 %v6870, %v1067
        %v6877 = vmul.bf16 %v6871, %v1065
        %v6878 = vmul.bf16 %v6872, %v1068
        %v6879 = vmul.bf16 %v6873, %v1067
        %6886 = vrot.lane.b32.xlu0 %v6874, 113
        %v6887 = vpop.permute.xlu0 %6886
        %6888 = vrot.lane.b32.xlu0 %v6875, 113
        %v6889 = vpop.permute.xlu0 %6888
        %6890 = vrot.lane.b32.xlu0 %v6876, 113
        %v6891 = vpop.permute.xlu0 %6890
        %6892 = vrot.lane.b32.xlu0 %v6877, 113
        %v6893 = vpop.permute.xlu0 %6892
        %6894 = vrot.lane.b32.xlu0 %v6878, 113
        %v6895 = vpop.permute.xlu0 %6894
        %6896 = vrot.lane.b32.xlu0 %v6879, 113
        %v6897 = vpop.permute.xlu0 %6896
        %v6898 = vsel %vm702, %v6887, %v6889
        %v6899 = vsel %vm702, %v6889, %v6891
        %v6900 = vsel %vm702, %v6893, %v6895
        %v6901 = vsel %vm702, %v6895, %v6897
        %6906 = vst [vmem:[#allocation3 + $0x200] sm:$0xff] %v6898
        %6907 = vst [vmem:[#allocation3 + $0x208] sm:$0xff] %v6899
        %6908 = vst [vmem:[#allocation3 + $0x210] sm:$0xff] %v6900
        %6909 = vst [vmem:[#allocation3 + $0x218] sm:$0xff] %v6901
        %v6910 = vld [vmem:[#allocation2 + $0x8] sm:$0xff]
        %v6911 = vld [vmem:[#allocation2 + $0x10] sm:$0xff]
        %v6912 = vld [vmem:[#allocation2 + $0x18] sm:$0xff]
        %v6913 = vld [vmem:[#allocation2 + $0x28] sm:$0xff]
        %v6914 = vld [vmem:[#allocation2 + $0x30] sm:$0xff]
        %v6915 = vld [vmem:[#allocation2 + $0x38] sm:$0xff]
        %6922 = vrot.lane.b32.xlu0 %v6910, 112
        %v6923 = vpop.permute.xlu0 %6922
        %6924 = vrot.lane.b32.xlu0 %v6911, 112
        %v6925 = vpop.permute.xlu0 %6924
        %6926 = vrot.lane.b32.xlu0 %v6912, 112
        %v6927 = vpop.permute.xlu0 %6926
        %6928 = vrot.lane.b32.xlu0 %v6913, 112
        %v6929 = vpop.permute.xlu0 %6928
        %6930 = vrot.lane.b32.xlu0 %v6914, 112
        %v6931 = vpop.permute.xlu0 %6930
        %6932 = vrot.lane.b32.xlu0 %v6915, 112
        %v6933 = vpop.permute.xlu0 %6932
        %v6934 = vsel %vm1132, %v6923, %v6925
        %v6935 = vsel %vm1132, %v6925, %v6927
        %v6936 = vsel %vm1132, %v6929, %v6931
        %v6937 = vsel %vm1132, %v6931, %v6933
        %6942 = vst [vmem:[#allocation3 + $0x220] sm:$0xff] %v6934
        %6943 = vst [vmem:[#allocation3 + $0x228] sm:$0xff] %v6935
        %6944 = vst [vmem:[#allocation3 + $0x230] sm:$0xff] %v6936
        %6945 = vst [vmem:[#allocation3 + $0x238] sm:$0xff] %v6937
        %v6946 = vld [vmem:[#allocation2 + $0x8] sm:$0xff]
        %v6947 = vld [vmem:[#allocation2 + $0x10] sm:$0xff]
        %v6948 = vld [vmem:[#allocation2 + $0x18] sm:$0xff]
        %v6949 = vld [vmem:[#allocation2 + $0x28] sm:$0xff]
        %v6950 = vld [vmem:[#allocation2 + $0x30] sm:$0xff]
        %v6951 = vld [vmem:[#allocation2 + $0x38] sm:$0xff]
        %v6952 = vmul.bf16 %v6946, %v1152
        %v6953 = vmul.bf16 %v6947, %v1155
        %v6954 = vmul.bf16 %v6948, %v1154
        %v6955 = vmul.bf16 %v6949, %v1152
        %v6956 = vmul.bf16 %v6950, %v1155
        %v6957 = vmul.bf16 %v6951, %v1154
        %6964 = vrot.lane.b32.xlu0 %v6952, 111
        %v6965 = vpop.permute.xlu0 %6964
        %6966 = vrot.lane.b32.xlu0 %v6953, 111
        %v6967 = vpop.permute.xlu0 %6966
        %6968 = vrot.lane.b32.xlu0 %v6954, 111
        %v6969 = vpop.permute.xlu0 %6968
        %6970 = vrot.lane.b32.xlu0 %v6955, 111
        %v6971 = vpop.permute.xlu0 %6970
        %6972 = vrot.lane.b32.xlu0 %v6956, 111
        %v6973 = vpop.permute.xlu0 %6972
        %6974 = vrot.lane.b32.xlu0 %v6957, 111
        %v6975 = vpop.permute.xlu0 %6974
        %v6976 = vsel %vm613, %v6965, %v6967
        %v6977 = vsel %vm613, %v6967, %v6969
        %v6978 = vsel %vm613, %v6971, %v6973
        %v6979 = vsel %vm613, %v6973, %v6975
        %6984 = vst [vmem:[#allocation3 + $0x240] sm:$0xff] %v6976
        %6985 = vst [vmem:[#allocation3 + $0x248] sm:$0xff] %v6977
        %6986 = vst [vmem:[#allocation3 + $0x250] sm:$0xff] %v6978
        %6987 = vst [vmem:[#allocation3 + $0x258] sm:$0xff] %v6979
        %v6988 = vld [vmem:[#allocation2 + $0x8] sm:$0xff]
        %v6989 = vld [vmem:[#allocation2 + $0x10] sm:$0xff]
        %v6990 = vld [vmem:[#allocation2 + $0x18] sm:$0xff]
        %v6991 = vld [vmem:[#allocation2 + $0x28] sm:$0xff]
        %v6992 = vld [vmem:[#allocation2 + $0x30] sm:$0xff]
        %v6993 = vld [vmem:[#allocation2 + $0x38] sm:$0xff]
        %v6994 = vmul.bf16 %v6988, %v1202
        %v6995 = vmul.bf16 %v6989, %v1205
        %v6996 = vmul.bf16 %v6990, %v1204
        %v6997 = vmul.bf16 %v6991, %v1202
        %v6998 = vmul.bf16 %v6992, %v1205
        %v6999 = vmul.bf16 %v6993, %v1204
        %7006 = vrot.lane.b32.xlu0 %v6994, 110
        %v7007 = vpop.permute.xlu0 %7006
        %7008 = vrot.lane.b32.xlu0 %v6995, 110
        %v7009 = vpop.permute.xlu0 %7008
        %7010 = vrot.lane.b32.xlu0 %v6996, 110
        %v7011 = vpop.permute.xlu0 %7010
        %7012 = vrot.lane.b32.xlu0 %v6997, 110
        %v7013 = vpop.permute.xlu0 %7012
        %7014 = vrot.lane.b32.xlu0 %v6998, 110
        %v7015 = vpop.permute.xlu0 %7014
        %7016 = vrot.lane.b32.xlu0 %v6999, 110
        %v7017 = vpop.permute.xlu0 %7016
        %v7018 = vsel %vm561, %v7007, %v7009
        %v7019 = vsel %vm561, %v7009, %v7011
        %v7020 = vsel %vm561, %v7013, %v7015
        %v7021 = vsel %vm561, %v7015, %v7017
        %7026 = vst [vmem:[#allocation3 + $0x260] sm:$0xff] %v7018
        %7027 = vst [vmem:[#allocation3 + $0x268] sm:$0xff] %v7019
        %7028 = vst [vmem:[#allocation3 + $0x270] sm:$0xff] %v7020
        %7029 = vst [vmem:[#allocation3 + $0x278] sm:$0xff] %v7021
        %v7030 = vld [vmem:[#allocation2 + $0x8] sm:$0xff]
        %v7031 = vld [vmem:[#allocation2 + $0x10] sm:$0xff]
        %v7032 = vld [vmem:[#allocation2 + $0x18] sm:$0xff]
        %v7033 = vld [vmem:[#allocation2 + $0x28] sm:$0xff]
        %v7034 = vld [vmem:[#allocation2 + $0x30] sm:$0xff]
        %v7035 = vld [vmem:[#allocation2 + $0x38] sm:$0xff]
        %v7036 = vmul.bf16 %v7030, %v1252
        %v7037 = vmul.bf16 %v7031, %v1255
        %v7038 = vmul.bf16 %v7032, %v1254
        %v7039 = vmul.bf16 %v7033, %v1252
        %v7040 = vmul.bf16 %v7034, %v1255
        %v7041 = vmul.bf16 %v7035, %v1254
        %7048 = vrot.lane.b32.xlu0 %v7036, 98
        %v7049 = vpop.permute.xlu0 %7048
        %7050 = vrot.lane.b32.xlu0 %v7037, 98
        %v7051 = vpop.permute.xlu0 %7050
        %7052 = vrot.lane.b32.xlu0 %v7038, 98
        %v7053 = vpop.permute.xlu0 %7052
        %7054 = vrot.lane.b32.xlu0 %v7039, 98
        %v7055 = vpop.permute.xlu0 %7054
        %7056 = vrot.lane.b32.xlu0 %v7040, 98
        %v7057 = vpop.permute.xlu0 %7056
        %7058 = vrot.lane.b32.xlu0 %v7041, 98
        %v7059 = vpop.permute.xlu0 %7058
        %v7060 = vsel %vm509, %v7049, %v7051
        %v7061 = vsel %vm509, %v7051, %v7053
        %v7062 = vsel %vm509, %v7055, %v7057
        %v7063 = vsel %vm509, %v7057, %v7059
        %7068 = vst [vmem:[#allocation3 + $0x280] sm:$0xff] %v7060
        %7069 = vst [vmem:[#allocation3 + $0x288] sm:$0xff] %v7061
        %7070 = vst [vmem:[#allocation3 + $0x290] sm:$0xff] %v7062
        %7071 = vst [vmem:[#allocation3 + $0x298] sm:$0xff] %v7063
        %v7072 = vld [vmem:[#allocation2 + $0x8] sm:$0xff]
        %v7073 = vld [vmem:[#allocation2 + $0x10] sm:$0xff]
        %v7074 = vld [vmem:[#allocation2 + $0x18] sm:$0xff]
        %v7075 = vld [vmem:[#allocation2 + $0x28] sm:$0xff]
        %v7076 = vld [vmem:[#allocation2 + $0x30] sm:$0xff]
        %v7077 = vld [vmem:[#allocation2 + $0x38] sm:$0xff]
        %v7078 = vmul.bf16 %v7072, %v1302
        %v7079 = vmul.bf16 %v7073, %v1305
        %v7080 = vmul.bf16 %v7074, %v1304
        %v7081 = vmul.bf16 %v7075, %v1302
        %v7082 = vmul.bf16 %v7076, %v1305
        %v7083 = vmul.bf16 %v7077, %v1304
        %7090 = vrot.lane.b32.xlu0 %v7078, 97
        %v7091 = vpop.permute.xlu0 %7090
        %7092 = vrot.lane.b32.xlu0 %v7079, 97
        %v7093 = vpop.permute.xlu0 %7092
        %7094 = vrot.lane.b32.xlu0 %v7080, 97
        %v7095 = vpop.permute.xlu0 %7094
        %7096 = vrot.lane.b32.xlu0 %v7081, 97
        %v7097 = vpop.permute.xlu0 %7096
        %7098 = vrot.lane.b32.xlu0 %v7082, 97
        %v7099 = vpop.permute.xlu0 %7098
        %7100 = vrot.lane.b32.xlu0 %v7083, 97
        %v7101 = vpop.permute.xlu0 %7100
        %v7102 = vsel %vm447, %v7091, %v7093
        %v7103 = vsel %vm447, %v7093, %v7095
        %v7104 = vsel %vm447, %v7097, %v7099
        %v7105 = vsel %vm447, %v7099, %v7101
        %7110 = vst [vmem:[#allocation3 + $0x2a0] sm:$0xff] %v7102
        %7111 = vst [vmem:[#allocation3 + $0x2a8] sm:$0xff] %v7103
        %7112 = vst [vmem:[#allocation3 + $0x2b0] sm:$0xff] %v7104
        %7113 = vst [vmem:[#allocation3 + $0x2b8] sm:$0xff] %v7105
        %v7114 = vld [vmem:[#allocation2 + $0x8] sm:$0xff]
        %v7115 = vld [vmem:[#allocation2 + $0x10] sm:$0xff]
        %v7116 = vld [vmem:[#allocation2 + $0x18] sm:$0xff]
        %v7117 = vld [vmem:[#allocation2 + $0x28] sm:$0xff]
        %v7118 = vld [vmem:[#allocation2 + $0x30] sm:$0xff]
        %v7119 = vld [vmem:[#allocation2 + $0x38] sm:$0xff]
        %7126 = vrot.lane.b32.xlu0 %v7114, 96
        %v7127 = vpop.permute.xlu0 %7126
        %7128 = vrot.lane.b32.xlu0 %v7115, 96
        %v7129 = vpop.permute.xlu0 %7128
        %7130 = vrot.lane.b32.xlu0 %v7116, 96
        %v7131 = vpop.permute.xlu0 %7130
        %7132 = vrot.lane.b32.xlu0 %v7117, 96
        %v7133 = vpop.permute.xlu0 %7132
        %7134 = vrot.lane.b32.xlu0 %v7118, 96
        %v7135 = vpop.permute.xlu0 %7134
        %7136 = vrot.lane.b32.xlu0 %v7119, 96
        %v7137 = vpop.permute.xlu0 %7136
        %v7138 = vsel %vm1369, %v7127, %v7129
        %v7139 = vsel %vm1369, %v7129, %v7131
        %v7140 = vsel %vm1369, %v7133, %v7135
        %v7141 = vsel %vm1369, %v7135, %v7137
        %7146 = vst [vmem:[#allocation3 + $0x2c0] sm:$0xff] %v7138
        %7147 = vst [vmem:[#allocation3 + $0x2c8] sm:$0xff] %v7139
        %7148 = vst [vmem:[#allocation3 + $0x2d0] sm:$0xff] %v7140
        %7149 = vst [vmem:[#allocation3 + $0x2d8] sm:$0xff] %v7141
        %v7150 = vld [vmem:[#allocation2 + $0x8] sm:$0xff]
        %v7151 = vld [vmem:[#allocation2 + $0x10] sm:$0xff]
        %v7152 = vld [vmem:[#allocation2 + $0x18] sm:$0xff]
        %v7153 = vld [vmem:[#allocation2 + $0x28] sm:$0xff]
        %v7154 = vld [vmem:[#allocation2 + $0x30] sm:$0xff]
        %v7155 = vld [vmem:[#allocation2 + $0x38] sm:$0xff]
        %v7156 = vmul.bf16 %v7150, %v1389
        %v7157 = vmul.bf16 %v7151, %v1392
        %v7158 = vmul.bf16 %v7152, %v1391
        %v7159 = vmul.bf16 %v7153, %v1389
        %v7160 = vmul.bf16 %v7154, %v1392
        %v7161 = vmul.bf16 %v7155, %v1391
        %7168 = vrot.lane.b32.xlu0 %v7156, 95
        %v7169 = vpop.permute.xlu0 %7168
        %7170 = vrot.lane.b32.xlu0 %v7157, 95
        %v7171 = vpop.permute.xlu0 %7170
        %7172 = vrot.lane.b32.xlu0 %v7158, 95
        %v7173 = vpop.permute.xlu0 %7172
        %7174 = vrot.lane.b32.xlu0 %v7159, 95
        %v7175 = vpop.permute.xlu0 %7174
        %7176 = vrot.lane.b32.xlu0 %v7160, 95
        %v7177 = vpop.permute.xlu0 %7176
        %7178 = vrot.lane.b32.xlu0 %v7161, 95
        %v7179 = vpop.permute.xlu0 %7178
        %v7180 = vsel %vm348, %v7169, %v7171
        %v7181 = vsel %vm348, %v7171, %v7173
        %v7182 = vsel %vm348, %v7175, %v7177
        %v7183 = vsel %vm348, %v7177, %v7179
        %7188 = vst [vmem:[#allocation3 + $0x2e0] sm:$0xff] %v7180
        %7189 = vst [vmem:[#allocation3 + $0x2e8] sm:$0xff] %v7181
        %7190 = vst [vmem:[#allocation3 + $0x2f0] sm:$0xff] %v7182
        %7191 = vst [vmem:[#allocation3 + $0x2f8] sm:$0xff] %v7183
        %v7192 = vld [vmem:[#allocation2 + $0x8] sm:$0xff]
        %v7193 = vld [vmem:[#allocation2 + $0x10] sm:$0xff]
        %v7194 = vld [vmem:[#allocation2 + $0x18] sm:$0xff]
        %v7195 = vld [vmem:[#allocation2 + $0x28] sm:$0xff]
        %v7196 = vld [vmem:[#allocation2 + $0x30] sm:$0xff]
        %v7197 = vld [vmem:[#allocation2 + $0x38] sm:$0xff]
        %v7198 = vmul.bf16 %v7192, %v1439
        %v7199 = vmul.bf16 %v7193, %v1442
        %v7200 = vmul.bf16 %v7194, %v1441
        %v7201 = vmul.bf16 %v7195, %v1439
        %v7202 = vmul.bf16 %v7196, %v1442
        %v7203 = vmul.bf16 %v7197, %v1441
        %7210 = vrot.lane.b32.xlu0 %v7198, 94
        %v7211 = vpop.permute.xlu0 %7210
        %7212 = vrot.lane.b32.xlu0 %v7199, 94
        %v7213 = vpop.permute.xlu0 %7212
        %7214 = vrot.lane.b32.xlu0 %v7200, 94
        %v7215 = vpop.permute.xlu0 %7214
        %7216 = vrot.lane.b32.xlu0 %v7201, 94
        %v7217 = vpop.permute.xlu0 %7216
        %7218 = vrot.lane.b32.xlu0 %v7202, 94
        %v7219 = vpop.permute.xlu0 %7218
        %7220 = vrot.lane.b32.xlu0 %v7203, 94
        %v7221 = vpop.permute.xlu0 %7220
        %v7222 = vsel %vm280, %v7211, %v7213
        %v7223 = vsel %vm280, %v7213, %v7215
        %v7224 = vsel %vm280, %v7217, %v7219
        %v7225 = vsel %vm280, %v7219, %v7221
        %7230 = vst [vmem:[#allocation3 + $0x300] sm:$0xff] %v7222
        %7231 = vst [vmem:[#allocation3 + $0x308] sm:$0xff] %v7223
        %7232 = vst [vmem:[#allocation3 + $0x310] sm:$0xff] %v7224
        %7233 = vst [vmem:[#allocation3 + $0x318] sm:$0xff] %v7225
        %v7234 = vld [vmem:[#allocation3] sm:$0xff]
        %v7235 = vld [vmem:[#allocation3 + $0x8] sm:$0xff]
        %v7236 = vld [vmem:[#allocation3 + $0x10] sm:$0xff]
        %v7237 = vld [vmem:[#allocation3 + $0x18] sm:$0xff]
        %v7238 = vld [vmem:[#allocation3 + $0x20] sm:$0xff]
        %v7239 = vld [vmem:[#allocation3 + $0x28] sm:$0xff]
        %v7240 = vld [vmem:[#allocation3 + $0x30] sm:$0xff]
        %v7241 = vld [vmem:[#allocation3 + $0x38] sm:$0xff]
        %v7242 = vld [vmem:[#allocation3 + $0x40] sm:$0xff]
        %v7243 = vld [vmem:[#allocation3 + $0x48] sm:$0xff]
        %v7244 = vld [vmem:[#allocation3 + $0x50] sm:$0xff]
        %v7245 = vld [vmem:[#allocation3 + $0x58] sm:$0xff]
        %v7246 = vld [vmem:[#allocation3 + $0x60] sm:$0xff]
        %v7247 = vld [vmem:[#allocation3 + $0x68] sm:$0xff]
        %v7248 = vld [vmem:[#allocation3 + $0x70] sm:$0xff]
        %v7249 = vld [vmem:[#allocation3 + $0x78] sm:$0xff]
        %v7250 = vld [vmem:[#allocation3 + $0x80] sm:$0xff]
        %v7251 = vld [vmem:[#allocation3 + $0x88] sm:$0xff]
        %v7252 = vld [vmem:[#allocation3 + $0x90] sm:$0xff]
        %v7253 = vld [vmem:[#allocation3 + $0x98] sm:$0xff]
        %v7254 = vld [vmem:[#allocation3 + $0xa0] sm:$0xff]
        %v7255 = vld [vmem:[#allocation3 + $0xa8] sm:$0xff]
        %v7256 = vld [vmem:[#allocation3 + $0xb0] sm:$0xff]
        %v7257 = vld [vmem:[#allocation3 + $0xb8] sm:$0xff]
        %v7258 = vld [vmem:[#allocation3 + $0xc0] sm:$0xff]
        %v7259 = vld [vmem:[#allocation3 + $0xc8] sm:$0xff]
        %v7260 = vld [vmem:[#allocation3 + $0xd0] sm:$0xff]
        %v7261 = vld [vmem:[#allocation3 + $0xd8] sm:$0xff]
        %v7262 = vld [vmem:[#allocation3 + $0xe0] sm:$0xff]
        %v7263 = vld [vmem:[#allocation3 + $0xe8] sm:$0xff]
        %v7264 = vld [vmem:[#allocation3 + $0xf0] sm:$0xff]
        %v7265 = vld [vmem:[#allocation3 + $0xf8] sm:$0xff]
        %v7266 = vld [vmem:[#allocation3 + $0x100] sm:$0xff]
        %v7267 = vld [vmem:[#allocation3 + $0x108] sm:$0xff]
        %v7268 = vld [vmem:[#allocation3 + $0x110] sm:$0xff]
        %v7269 = vld [vmem:[#allocation3 + $0x118] sm:$0xff]
        %v7270 = vld [vmem:[#allocation3 + $0x120] sm:$0xff]
        %v7271 = vld [vmem:[#allocation3 + $0x128] sm:$0xff]
        %v7272 = vld [vmem:[#allocation3 + $0x130] sm:$0xff]
        %v7273 = vld [vmem:[#allocation3 + $0x138] sm:$0xff]
        %v7274 = vld [vmem:[#allocation3 + $0x140] sm:$0xff]
        %v7275 = vld [vmem:[#allocation3 + $0x148] sm:$0xff]
        %v7276 = vld [vmem:[#allocation3 + $0x150] sm:$0xff]
        %v7277 = vld [vmem:[#allocation3 + $0x158] sm:$0xff]
        %v7278 = vld [vmem:[#allocation3 + $0x160] sm:$0xff]
        %v7279 = vld [vmem:[#allocation3 + $0x168] sm:$0xff]
        %v7280 = vld [vmem:[#allocation3 + $0x170] sm:$0xff]
        %v7281 = vld [vmem:[#allocation3 + $0x178] sm:$0xff]
        %v7282 = vld [vmem:[#allocation3 + $0x180] sm:$0xff]
        %v7283 = vld [vmem:[#allocation3 + $0x188] sm:$0xff]
        %v7284 = vld [vmem:[#allocation3 + $0x190] sm:$0xff]
        %v7285 = vld [vmem:[#allocation3 + $0x198] sm:$0xff]
        %v7286 = vld [vmem:[#allocation3 + $0x1a0] sm:$0xff]
        %v7287 = vld [vmem:[#allocation3 + $0x1a8] sm:$0xff]
        %v7288 = vld [vmem:[#allocation3 + $0x1b0] sm:$0xff]
        %v7289 = vld [vmem:[#allocation3 + $0x1b8] sm:$0xff]
        %v7290 = vld [vmem:[#allocation3 + $0x1c0] sm:$0xff]
        %v7291 = vld [vmem:[#allocation3 + $0x1c8] sm:$0xff]
        %v7292 = vld [vmem:[#allocation3 + $0x1d0] sm:$0xff]
        %v7293 = vld [vmem:[#allocation3 + $0x1d8] sm:$0xff]
        %v7294 = vld [vmem:[#allocation3 + $0x1e0] sm:$0xff]
        %v7295 = vld [vmem:[#allocation3 + $0x1e8] sm:$0xff]
        %v7296 = vld [vmem:[#allocation3 + $0x1f0] sm:$0xff]
        %v7297 = vld [vmem:[#allocation3 + $0x1f8] sm:$0xff]
        %v7298 = vld [vmem:[#allocation3 + $0x200] sm:$0xff]
        %v7299 = vld [vmem:[#allocation3 + $0x208] sm:$0xff]
        %v7300 = vld [vmem:[#allocation3 + $0x210] sm:$0xff]
        %v7301 = vld [vmem:[#allocation3 + $0x218] sm:$0xff]
        %v7302 = vld [vmem:[#allocation3 + $0x220] sm:$0xff]
        %v7303 = vld [vmem:[#allocation3 + $0x228] sm:$0xff]
        %v7304 = vld [vmem:[#allocation3 + $0x230] sm:$0xff]
        %v7305 = vld [vmem:[#allocation3 + $0x238] sm:$0xff]
        %v7306 = vld [vmem:[#allocation3 + $0x240] sm:$0xff]
        %v7307 = vld [vmem:[#allocation3 + $0x248] sm:$0xff]
        %v7308 = vld [vmem:[#allocation3 + $0x250] sm:$0xff]
        %v7309 = vld [vmem:[#allocation3 + $0x258] sm:$0xff]
        %v7310 = vld [vmem:[#allocation3 + $0x260] sm:$0xff]
        %v7311 = vld [vmem:[#allocation3 + $0x268] sm:$0xff]
        %v7312 = vld [vmem:[#allocation3 + $0x270] sm:$0xff]
        %v7313 = vld [vmem:[#allocation3 + $0x278] sm:$0xff]
        %v7314 = vld [vmem:[#allocation3 + $0x280] sm:$0xff]
        %v7315 = vld [vmem:[#allocation3 + $0x288] sm:$0xff]
        %v7316 = vld [vmem:[#allocation3 + $0x290] sm:$0xff]
        %v7317 = vld [vmem:[#allocation3 + $0x298] sm:$0xff]
        %v7318 = vld [vmem:[#allocation3 + $0x2a0] sm:$0xff]
        %v7319 = vld [vmem:[#allocation3 + $0x2a8] sm:$0xff]
        %v7320 = vld [vmem:[#allocation3 + $0x2b0] sm:$0xff]
        %v7321 = vld [vmem:[#allocation3 + $0x2b8] sm:$0xff]
        %v7322 = vld [vmem:[#allocation3 + $0x2c0] sm:$0xff]
        %v7323 = vld [vmem:[#allocation3 + $0x2c8] sm:$0xff]
        %v7324 = vld [vmem:[#allocation3 + $0x2d0] sm:$0xff]
        %v7325 = vld [vmem:[#allocation3 + $0x2d8] sm:$0xff]
        %v7326 = vld [vmem:[#allocation3 + $0x2e0] sm:$0xff]
        %v7327 = vld [vmem:[#allocation3 + $0x2e8] sm:$0xff]
        %v7328 = vld [vmem:[#allocation3 + $0x2f0] sm:$0xff]
        %v7329 = vld [vmem:[#allocation3 + $0x2f8] sm:$0xff]
        %v7330 = vld [vmem:[#allocation3 + $0x300] sm:$0xff]
        %v7331 = vld [vmem:[#allocation3 + $0x308] sm:$0xff]
        %v7332 = vld [vmem:[#allocation3 + $0x310] sm:$0xff]
        %v7333 = vld [vmem:[#allocation3 + $0x318] sm:$0xff]
        %s7334 = scalar_lea.vmem %s3, 128
        %v7335 = vld [vmem:[%s7334] sm:$0xff]
        %v7336 = vld [vmem:[%s7334 + $0x8] sm:$0xff]
        %v7337 = vld [vmem:[%s7334 + $0x10] sm:$0xff]
        %v7338 = vld [vmem:[%s7334 + $0x18] sm:$0xff]
        %7340 = vset.pattern.permute.xlu0 0
        %7341 = vperm.xlu0 %7340, %v7335
        %v7342 = vpop.permute.xlu0 %7341
        %7345 = vset.pattern.permute.xlu0 0
        %7346 = vperm.xlu0 %7345, %v7336
        %v7347 = vpop.permute.xlu0 %7346
        %7350 = vset.pattern.permute.xlu0 0
        %7351 = vperm.xlu0 %7350, %v7337
        %v7352 = vpop.permute.xlu0 %7351
        %7355 = vset.pattern.permute.xlu0 0
        %7356 = vperm.xlu0 %7355, %v7338
        %v7357 = vpop.permute.xlu0 %7356
        %v7375 = vunpack.c.l.b16 %v6226
        %v7376 = vunpack.c.h.b16 %v6226
        %v7377 = vunpack.c.l.b16 %v6227
        %v7378 = vunpack.c.h.b16 %v6227
        %v7379 = vunpack.c.l.b16 %v6228
        %v7380 = vunpack.c.h.b16 %v6228
        %v7381 = vunpack.c.l.b16 %v6229
        %v7382 = vunpack.c.l.b16 %v6230
        %v7383 = vunpack.c.h.b16 %v6230
        %v7384 = vunpack.c.l.b16 %v6231
        %v7385 = vunpack.c.h.b16 %v6231
        %v7386 = vunpack.c.l.b16 %v6232
        %v7387 = vunpack.c.h.b16 %v6232
        %v7388 = vunpack.c.l.b16 %v6233
        %v7389 = vunpack.c.l.b16 %v6234
        %v7390 = vunpack.c.h.b16 %v6234
        %v7391 = vunpack.c.l.b16 %v6235
        %v7392 = vunpack.c.h.b16 %v6235
        %v7393 = vunpack.c.l.b16 %v6236
        %v7394 = vunpack.c.h.b16 %v6236
        %v7395 = vunpack.c.l.b16 %v6237
        %v7396 = vunpack.c.l.b16 %v6238
        %v7397 = vunpack.c.h.b16 %v6238
        %v7398 = vunpack.c.l.b16 %v6239
        %v7399 = vunpack.c.h.b16 %v6239
        %v7400 = vunpack.c.l.b16 %v6240
        %v7401 = vunpack.c.h.b16 %v6240
        %v7402 = vunpack.c.l.b16 %v6241
        %v7403 = vpack.c.b16 %v7382, %v7375
        %v7404 = vpack.c.b16 %v7383, %v7376
        %v7405 = vpack.c.b16 %v7384, %v7377
        %v7406 = vpack.c.b16 %v7385, %v7378
        %v7407 = vpack.c.b16 %v7386, %v7379
        %v7408 = vpack.c.b16 %v7387, %v7380
        %v7409 = vpack.c.b16 %v7388, %v7381
        %v7410 = vpack.c.b16 %v7396, %v7389
        %v7411 = vpack.c.b16 %v7397, %v7390
        %v7412 = vpack.c.b16 %v7398, %v7391
        %v7413 = vpack.c.b16 %v7399, %v7392
        %v7414 = vpack.c.b16 %v7400, %v7393
        %v7415 = vpack.c.b16 %v7401, %v7394
        %v7416 = vpack.c.b16 %v7402, %v7395
        %v7430 = vsel %vm1676, %v7409, 0
        %v7433 = vsel %vm1676, %v7416, 0
        %7435 = vmatprep.subr.bf16.mxu0 %v7235
        %7436 = vmatpush1.bf16.msra.mxu0 %v7234
        %7437 = vmatprep.subr.bf16.mxu0 %v7237
        %7438 = vmatpush1.bf16.msra.mxu0 %v7236
        %7439 = vmatprep.subr.bf16.mxu0 %v7239
        %7440 = vmatpush1.bf16.msra.mxu0 %v7238
        %7441 = vmatprep.subr.bf16.mxu0 %v7241
        %7442 = vmatpush1.bf16.msra.mxu0 %v7240
        %7443 = vmatprep.subr.bf16.mxu0 %v7243
        %7444 = vmatpush1.bf16.msra.mxu0 %v7242
        %7445 = vmatprep.subr.bf16.mxu0 %v7245
        %7446 = vmatpush1.bf16.msra.mxu0 %v7244
        %7447 = vmatprep.subr.bf16.mxu0 %v7247
        %7448 = vmatpush1.bf16.msra.mxu0 %v7246
        %7449 = vmatprep.subr.bf16.mxu0 %v7249
        %7450 = vmatpush1.bf16.msra.mxu0 %v7248
        %7451 = vmatprep.subr.bf16.mxu0 %v7251
        %7452 = vmatpush1.bf16.msra.mxu0 %v7250
        %7453 = vmatprep.subr.bf16.mxu0 %v7253
        %7454 = vmatpush1.bf16.msra.mxu0 %v7252
        %7455 = vmatprep.subr.bf16.mxu0 %v7255
        %7456 = vmatpush1.bf16.msra.mxu0 %v7254
        %7457 = vmatprep.subr.bf16.mxu0 %v7257
        %7458 = vmatpush1.bf16.msra.mxu0 %v7256
        %7459 = vmatprep.subr.bf16.mxu0 %v7259
        %7460 = vmatpush1.bf16.msra.mxu0 %v7258
        %7461 = vmatprep.subr.bf16.mxu0 %v7261
        %7462 = vmatpush1.bf16.msra.mxu0 %v7260
        %7463 = vmatprep.subr.bf16.mxu0 %v7263
        %7464 = vmatpush1.bf16.msra.mxu0 %v7262
        %7465 = vmatprep.subr.bf16.mxu0 %v7265
        %7466 = vmatpush1.bf16.msra.mxu0 %v7264
        %7467 = vmatprep.mubr.bf16.mxu0 %v7404
        %7468 = vmatmul.mubr.bf16.gmra.mrb[0].mxu0 %v7403
        %v7469 = vpop.f32.mrb[0].mxu0
        %v7470 = vadd.f32 %v7342, %v7469
        %v7471 = vpop.f32.mrb[0].mxu0
        %v7472 = vadd.f32 %v7342, %v7471
        %v7473 = vpop.f32.mrb[0].mxu0
        %v7474 = vadd.f32 %v7347, %v7473
        %v7475 = vpop.f32.mrb[0].mxu0
        %v7476 = vadd.f32 %v7347, %v7475
        %7477 = vmatprep.mubr.bf16.mxu0 %v7411
        %7478 = vmatmul.mubr.bf16.gmra.mrb[0].mxu0 %v7410
        %v7479 = vpop.f32.mrb[0].mxu0
        %v7480 = vadd.f32 %v7352, %v7479
        %v7481 = vpop.f32.mrb[0].mxu0
        %v7482 = vadd.f32 %v7352, %v7481
        %v7483 = vpop.f32.mrb[0].mxu0
        %v7484 = vadd.f32 %v7357, %v7483
        %v7485 = vpop.f32.mrb[0].mxu0
        %v7486 = vadd.f32 %v7357, %v7485
        %7487 = vdwg.mxu0
        %7488 = vmatprep.subr.bf16.mxu0 %v7267
        %7489 = vmatpush1.bf16.msra.mxu0 %v7266
        %7490 = vmatprep.subr.bf16.mxu0 %v7269
        %7491 = vmatpush1.bf16.msra.mxu0 %v7268
        %7492 = vmatprep.subr.bf16.mxu0 %v7271
        %7493 = vmatpush1.bf16.msra.mxu0 %v7270
        %7494 = vmatprep.subr.bf16.mxu0 %v7273
        %7495 = vmatpush1.bf16.msra.mxu0 %v7272
        %7496 = vmatprep.subr.bf16.mxu0 %v7275
        %7497 = vmatpush1.bf16.msra.mxu0 %v7274
        %7498 = vmatprep.subr.bf16.mxu0 %v7277
        %7499 = vmatpush1.bf16.msra.mxu0 %v7276
        %7500 = vmatprep.subr.bf16.mxu0 %v7279
        %7501 = vmatpush1.bf16.msra.mxu0 %v7278
        %7502 = vmatprep.subr.bf16.mxu0 %v7281
        %7503 = vmatpush1.bf16.msra.mxu0 %v7280
        %7504 = vmatprep.subr.bf16.mxu0 %v7283
        %7505 = vmatpush1.bf16.msra.mxu0 %v7282
        %7506 = vmatprep.subr.bf16.mxu0 %v7285
        %7507 = vmatpush1.bf16.msra.mxu0 %v7284
        %7508 = vmatprep.subr.bf16.mxu0 %v7287
        %7509 = vmatpush1.bf16.msra.mxu0 %v7286
        %7510 = vmatprep.subr.bf16.mxu0 %v7289
        %7511 = vmatpush1.bf16.msra.mxu0 %v7288
        %7512 = vmatprep.subr.bf16.mxu0 %v7291
        %7513 = vmatpush1.bf16.msra.mxu0 %v7290
        %7514 = vmatprep.subr.bf16.mxu0 %v7293
        %7515 = vmatpush1.bf16.msra.mxu0 %v7292
        %7516 = vmatprep.subr.bf16.mxu0 %v7295
        %7517 = vmatpush1.bf16.msra.mxu0 %v7294
        %7518 = vmatprep.subr.bf16.mxu0 %v7297
        %7519 = vmatpush1.bf16.msra.mxu0 %v7296
        %7520 = vmatprep.mubr.bf16.mxu0 %v7406
        %7521 = vmatmul.mubr.bf16.gmra.mrb[0].mxu0 %v7405
        %v7522 = vpop.f32.mrb[0].mxu0
        %v7523 = vadd.f32 %v7470, %v7522
        %v7524 = vpop.f32.mrb[0].mxu0
        %v7525 = vadd.f32 %v7472, %v7524
        %v7526 = vpop.f32.mrb[0].mxu0
        %v7527 = vadd.f32 %v7474, %v7526
        %v7528 = vpop.f32.mrb[0].mxu0
        %v7529 = vadd.f32 %v7476, %v7528
        %7530 = vmatprep.mubr.bf16.mxu0 %v7413
        %7531 = vmatmul.mubr.bf16.gmra.mrb[0].mxu0 %v7412
        %v7532 = vpop.f32.mrb[0].mxu0
        %v7533 = vadd.f32 %v7480, %v7532
        %v7534 = vpop.f32.mrb[0].mxu0
        %v7535 = vadd.f32 %v7482, %v7534
        %v7536 = vpop.f32.mrb[0].mxu0
        %v7537 = vadd.f32 %v7484, %v7536
        %v7538 = vpop.f32.mrb[0].mxu0
        %v7539 = vadd.f32 %v7486, %v7538
        %7540 = vdwg.mxu0
        %7541 = vmatprep.subr.bf16.mxu0 %v7299
        %7542 = vmatpush1.bf16.msra.mxu0 %v7298
        %7543 = vmatprep.subr.bf16.mxu0 %v7301
        %7544 = vmatpush1.bf16.msra.mxu0 %v7300
        %7545 = vmatprep.subr.bf16.mxu0 %v7303
        %7546 = vmatpush1.bf16.msra.mxu0 %v7302
        %7547 = vmatprep.subr.bf16.mxu0 %v7305
        %7548 = vmatpush1.bf16.msra.mxu0 %v7304
        %7549 = vmatprep.subr.bf16.mxu0 %v7307
        %7550 = vmatpush1.bf16.msra.mxu0 %v7306
        %7551 = vmatprep.subr.bf16.mxu0 %v7309
        %7552 = vmatpush1.bf16.msra.mxu0 %v7308
        %7553 = vmatprep.subr.bf16.mxu0 %v7311
        %7554 = vmatpush1.bf16.msra.mxu0 %v7310
        %7555 = vmatprep.subr.bf16.mxu0 %v7313
        %7556 = vmatpush1.bf16.msra.mxu0 %v7312
        %7557 = vmatprep.subr.bf16.mxu0 %v7315
        %7558 = vmatpush1.bf16.msra.mxu0 %v7314
        %7559 = vmatprep.subr.bf16.mxu0 %v7317
        %7560 = vmatpush1.bf16.msra.mxu0 %v7316
        %7561 = vmatprep.subr.bf16.mxu0 %v7319
        %7562 = vmatpush1.bf16.msra.mxu0 %v7318
        %7563 = vmatprep.subr.bf16.mxu0 %v7321
        %7564 = vmatpush1.bf16.msra.mxu0 %v7320
        %7565 = vmatprep.subr.bf16.mxu0 %v7323
        %7566 = vmatpush1.bf16.msra.mxu0 %v7322
        %7567 = vmatprep.subr.bf16.mxu0 %v7325
        %7568 = vmatpush1.bf16.msra.mxu0 %v7324
        %7569 = vmatprep.subr.bf16.mxu0 %v7327
        %7570 = vmatpush1.bf16.msra.mxu0 %v7326
        %7571 = vmatprep.subr.bf16.mxu0 %v7329
        %7572 = vmatpush1.bf16.msra.mxu0 %v7328
        %7573 = vmatprep.mubr.bf16.mxu0 %v7408
        %7574 = vmatmul.mubr.bf16.gmra.mrb[0].mxu0 %v7407
        %v7575 = vpop.f32.mrb[0].mxu0
        %v7576 = vadd.f32 %v7523, %v7575
        %v7577 = vpop.f32.mrb[0].mxu0
        %v7578 = vadd.f32 %v7525, %v7577
        %v7579 = vpop.f32.mrb[0].mxu0
        %v7580 = vadd.f32 %v7527, %v7579
        %v7581 = vpop.f32.mrb[0].mxu0
        %v7582 = vadd.f32 %v7529, %v7581
        %7583 = vmatprep.mubr.bf16.mxu0 %v7415
        %7584 = vmatmul.mubr.bf16.gmra.mrb[0].mxu0 %v7414
        %v7585 = vpop.f32.mrb[0].mxu0
        %v7586 = vadd.f32 %v7533, %v7585
        %v7587 = vpop.f32.mrb[0].mxu0
        %v7588 = vadd.f32 %v7535, %v7587
        %v7589 = vpop.f32.mrb[0].mxu0
        %v7590 = vadd.f32 %v7537, %v7589
        %v7591 = vpop.f32.mrb[0].mxu0
        %v7592 = vadd.f32 %v7539, %v7591
        %7593 = vdwg.mxu0
        %7594 = vmatprep.subr.bf16.mxu0 %v7331
        %7595 = vmatpush1.bf16.msra.mxu0 %v7330
        %7596 = vmatprep.subr.bf16.mxu0 %v7333
        %7597 = vmatpush1.bf16.msra.mxu0 %v7332
        %7598 = vmatprep.subr.bf16.mxu0 0
        %7599 = vmatpush1.bf16.msra.mxu0 0
        %7600 = vmatprep.subr.bf16.mxu0 0
        %7601 = vmatpush1.bf16.msra.mxu0 0
        %7602 = vmatprep.subr.bf16.mxu0 0
        %7603 = vmatpush1.bf16.msra.mxu0 0
        %7604 = vmatprep.subr.bf16.mxu0 0
        %7605 = vmatpush1.bf16.msra.mxu0 0
        %7606 = vmatprep.subr.bf16.mxu0 0
        %7607 = vmatpush1.bf16.msra.mxu0 0
        %7608 = vmatprep.subr.bf16.mxu0 0
        %7609 = vmatpush1.bf16.msra.mxu0 0
        %7610 = vmatprep.subr.bf16.mxu0 0
        %7611 = vmatpush1.bf16.msra.mxu0 0
        %7612 = vmatprep.subr.bf16.mxu0 0
        %7613 = vmatpush1.bf16.msra.mxu0 0
        %7614 = vmatprep.subr.bf16.mxu0 0
        %7615 = vmatpush1.bf16.msra.mxu0 0
        %7616 = vmatprep.subr.bf16.mxu0 0
        %7617 = vmatpush1.bf16.msra.mxu0 0
        %7618 = vmatprep.subr.bf16.mxu0 0
        %7619 = vmatpush1.bf16.msra.mxu0 0
        %7620 = vmatprep.subr.bf16.mxu0 0
        %7621 = vmatpush1.bf16.msra.mxu0 0
        %7622 = vmatprep.subr.bf16.mxu0 0
        %7623 = vmatpush1.bf16.msra.mxu0 0
        %7624 = vmatprep.subr.bf16.mxu0 0
        %7625 = vmatpush1.bf16.msra.mxu0 0
        %7626 = vmatprep.mubr.bf16.mxu0 0
        %7627 = vmatmul.mubr.bf16.gmra.mrb[0].mxu0 %v7430
        %v7628 = vpop.f32.mrb[0].mxu0
        %v7629 = vadd.f32 %v7576, %v7628
        %v7630 = vpop.f32.mrb[0].mxu0
        %v7631 = vadd.f32 %v7578, %v7630
        %v7632 = vpop.f32.mrb[0].mxu0
        %v7633 = vadd.f32 %v7580, %v7632
        %v7634 = vpop.f32.mrb[0].mxu0
        %v7635 = vadd.f32 %v7582, %v7634
        %7636 = vmatprep.mubr.bf16.mxu0 0
        %7637 = vmatmul.mubr.bf16.gmra.mrb[0].mxu0 %v7433
        %v7638 = vpop.f32.mrb[0].mxu0
        %v7639 = vadd.f32 %v7586, %v7638
        %v7640 = vpop.f32.mrb[0].mxu0
        %v7641 = vadd.f32 %v7588, %v7640
        %v7642 = vpop.f32.mrb[0].mxu0
        %v7643 = vadd.f32 %v7590, %v7642
        %v7644 = vpop.f32.mrb[0].mxu0
        %v7645 = vadd.f32 %v7592, %v7644
        %7646 = vdwg.mxu0
        %7647 = vst [vmem:[%s205] sm:$0xff] %v7629
        %7648 = vst [vmem:[%s205 + $0x8] sm:$0xff] %v7631
        %7649 = vst [vmem:[%s205 + $0x10] sm:$0xff] %v7633
        %7650 = vst [vmem:[%s205 + $0x18] sm:$0xff] %v7635
        %7651 = vst [vmem:[%s205 + $0x20] sm:$0xff] %v7639
        %7652 = vst [vmem:[%s205 + $0x28] sm:$0xff] %v7641
        %7653 = vst [vmem:[%s205 + $0x30] sm:$0xff] %v7643
        %7654 = vst [vmem:[%s205 + $0x38] sm:$0xff] %v7645
        %s7655 = sand.u32 %s116, 1
        %s7656 = scalar_lea.sflag [#allocation6], %s7655
        %s7657 = sand.u32 %s116, 1
        %s7658 = smul.addr %s7657, 64
        %s7659 = scalar_lea.vmem [#allocation7], %s7658
        // Predicated region
        $region41: #{tpu_custom_call.1} parent=35 // pred_check
          %p7660 = pneg %p126
        $region42: #{tpu_custom_call.1} parent=35 // pred_check_branch
          %7662 = sbr.rel (%p7660) target = $region44
        $region43: #{tpu_custom_call.1} parent=35 // pred_region
          %s7664 = ssub.s32 1024, 1024
          %7665 = vsyncadd %s7656, %s7664
          %s7666 = smul.addr %s19, 8
          %s7667 = smul.addr %s7666, 128
          %s7668 = scalar_lea.hbm %s4, %s7667
          %s7669 = sshll.u32 %s7659, 4
          %s7670 = int_to_ptr.vmem [resolvable:$true] %s7669
          %7675 = dma.vmem_to_hbm [thread:$0]  %s7670, 1024, %s7668, %s7656, 256, 256, 16
        $region44: #{tpu_custom_call.1} parent=35 // pred_fallthru
          _
      $region36: #{tpu_custom_call.1} parent=5 // pred_fallthru
        _
      %p7676 = scmp.le.s32.totalorder 2, %s14
      // Predicated region
      $region45: #{tpu_custom_call.1} parent=5 // pred_check
        %p7677 = pneg %p7676
      $region46: #{tpu_custom_call.1} parent=5 // pred_check_branch
        %7679 = sbr.rel (%p7677) target = $region48
      $region47: #{tpu_custom_call.1} parent=5 // pred_region
        %s7680 = ssub.s32 %s14, 2
        // Predicated region
        $region49: #{tpu_custom_call.1} parent=47 // pred_check
          %p7681 = pneg %p132
        $region50: #{tpu_custom_call.1} parent=47 // pred_check_branch
          %7683 = sbr.rel (%p7681) target = $region52
        $region51: #{tpu_custom_call.1} parent=47 // pred_region
          %s7684 = sand.u32 %s117, 1
          %s7685 = scalar_lea.sflag [#allocation6], %s7684
          %s7686 = sand.u32 %s117, 1
          %s7687 = smul.addr %s7686, 64
          %s7688 = scalar_lea.vmem [#allocation7], %s7687
          %7689 = dma.done %s7685, 1024
        $region52: #{tpu_custom_call.1} parent=47 // pred_fallthru
          _
      $region48: #{tpu_custom_call.1} parent=5 // pred_fallthru
        _
    $region6: #{tpu_custom_call.1} parent=1 // loop_footer
      %s18 = sadd.s32 1, %s14
    $region7: #{tpu_custom_call.1} parent=1 // loop_footer_branch
      %13 = sbr.rel target = $region3
    $region8: #{tpu_custom_call.1} parent=1 // loop_exit
      _
    %7690 = vsyncpa [#allocation5], 1
    %s7691 = scalar_lea.sflag [#allocation5], 1
    %7692 = vsyncpa %s7691, 1
    %7693 = vsyncpa [#allocation6], 1
    %s7694 = scalar_lea.sflag [#allocation6], 1
    %7695 = vsyncpa %s7694, 1

</llo_original>
